<compile_context>
chip_gen: v6e
topology: v6e:2x2x1
jax: 0.10.0
libtpu: 0.0.40
codegen_flags: <defaults>
</compile_context>

<pallas_src>
import jax
import jax.numpy as jnp
from jax import lax
from jax.experimental import pallas as pl
from jax.experimental.pallas import tpu as pltpu


def _leaky(v):
    # LeakyReLU(0.2): 1 mul + 1 max (cheaper than cmp + mul + select).
    return jnp.maximum(v, 0.2 * v)


def _zero_halo(pad_ref):
    """Zero only the 1-px spatial halo of the (Nb, H+2, W+2, C) scratch; the
    interior is fully overwritten every step.  Unconditional (not gated on a
    grid index) so it stays correct when the batch axis is sharded across
    TensorCores (scratch is per-core and uninitialized on the second core)."""
    Nb, Hp, Wp, C = pad_ref.shape
    pad_ref[:, 0:1, :, :] = jnp.zeros((Nb, 1, Wp, C), jnp.float32)
    pad_ref[:, Hp - 1:Hp, :, :] = jnp.zeros((Nb, 1, Wp, C), jnp.float32)
    pad_ref[:, 1:Hp - 1, 0:1, :] = jnp.zeros((Nb, Hp - 2, 1, C), jnp.float32)
    pad_ref[:, 1:Hp - 1, Wp - 1:Wp, :] = jnp.zeros((Nb, Hp - 2, 1, C), jnp.float32)


def _conv3x3_acc(pad_ref, w_ref, cin, cout, Nb, H, W):
    """3x3 'SAME' conv as 9 accumulated MXU matmuls over shifted windows of the
    zero-padded scratch (channels [0:cin]).  No materialized im2col."""
    M = Nb * H * W
    acc = jnp.zeros((M, cout), jnp.float32)
    for kh in range(3):
        for kw in range(3):
            win = pad_ref[:, kh:kh + H, kw:kw + W, 0:cin]
            acc = acc + jnp.dot(
                win.reshape(M, cin).astype(jnp.bfloat16),
                w_ref[kh * 3 + kw],
                preferred_element_type=jnp.float32)
    return acc


def rib_kernel(x_ref, w12_ref, wbd_ref, w2c_ref, o_ref, pad_ref):
    Nb, H, W, C = x_ref.shape          # C == 64
    M = Nb * H * W

    _zero_halo(pad_ref)

    x = x_ref[...].reshape(M, C)       # (M, 64) f32

    # Stage 1: both 1x1 convs in one bf16 MXU matmul (K=64, N=64) + leaky.
    #   columns 0:32 -> branch1 pre-act, 32:64 -> branch2 pre-act.
    y = _leaky(jnp.dot(x.astype(jnp.bfloat16), w12_ref[...],
                       preferred_element_type=jnp.float32))            # (M, 64)

    # Stage 2: branch1's 3x3 and branch2's first 3x3 fused via per-tap
    # block-diagonal (64, 64) weights; 9 accumulated matmuls, leaky once.
    #   z[:,  0:32] = lrelu(conv3x3(y[:,  0:32], w1b))  -> branch1 output
    #   z[:, 32:64] = lrelu(conv3x3(y[:, 32:64], w2b))  -> branch2 mid
    pad_ref[:, 1:H + 1, 1:W + 1, :] = y.reshape(Nb, H, W, C)
    z = _leaky(_conv3x3_acc(pad_ref, wbd_ref, C, C, Nb, H, W))          # (M, 64)

    # Stage 3: branch2's second 3x3; reuse channels 0:32 of the same padded
    # scratch (halo already zero, interior overwritten with z[:, 32:64]).
    pad_ref[:, 1:H + 1, 1:W + 1, 0:32] = z[:, 32:64].reshape(Nb, H, W, 32)
    b2 = _leaky(_conv3x3_acc(pad_ref, w2c_ref, 32, 32, Nb, H, W))       # (M, 32)

    # concat([branch1, branch2], channel) + residual, single (Nb,H,W,64) store.
    # NOTE: last dim is 64 (<128 lanes) -> half-masked stores; repacking the
    # output as (H, W*64) is only worth it if the in-kernel repack is cheaper.
    out = jnp.concatenate([z[:, 0:32], b2], axis=-1) + x
    o_ref[...] = out.reshape(Nb, H, W, C).astype(o_ref.dtype)


def _pick_batch_tile(N, max_nb=8):
    """Largest batch tile <= max_nb dividing N, preferring >= 2 grid steps so
    both v7x TensorCores get work (v5e/v6e have a single TensorCore)."""
    cands = [nb for nb in range(1, min(N, max_nb) + 1) if N % nb == 0]
    two_step = [nb for nb in cands if N // nb >= 2]
    return max(two_step) if two_step else max(cands)


def residual_inception_block_nhwc(x_nhwc, params, *, nb=None):
    """Core Pallas entry point: NHWC in / NHWC out, no layout transposes."""
    w1a, w1b, w2a, w2b, w2c = params
    x = x_nhwc.astype(jnp.float32)
    N, H, W, C = x.shape
    assert C == 64, "module is fixed to 64 input channels"

    if nb is None:
        nb = _pick_batch_tile(N)
    assert N % nb == 0

    # ---- host-side weight packing (bf16 MXU operands) -----------------------
    # fused 1x1: [w1a | w2a]                                            (64, 64)
    w12 = jnp.concatenate([w1a, w2a], axis=1).astype(jnp.bfloat16)
    # fused 3x3 pair: per-tap block-diagonal over the two 32-channel halves,
    # (3,3,64,64) HWIO -> (9, 64, 64).
    # NOTE(v5e): half of these MXU FLOPs multiply structural zeros; on v5e
    # (197 TF/s) split stage 2 into two (9,32,32) chains if it becomes MXU-bound.
    wbd = jnp.zeros((3, 3, 64, 64), jnp.float32)
    wbd = wbd.at[:, :, 0:32, 0:32].set(w1b)
    wbd = wbd.at[:, :, 32:64, 32:64].set(w2b)
    wbd = wbd.reshape(9, 64, 64).astype(jnp.bfloat16)
    # branch2 second 3x3, (3,3,32,32) HWIO -> (9, 32, 32)
    w2c_t = w2c.reshape(9, 32, 32).astype(jnp.bfloat16)

    out = pl.pallas_call(
        rib_kernel,
        out_shape=jax.ShapeDtypeStruct((N, H, W, C), jnp.float32),
        grid_spec=pltpu.PrefetchScalarGridSpec(
            num_scalar_prefetch=0,
            grid=(N // nb,),
            in_specs=[
                pl.BlockSpec((nb, H, W, C), lambda n: (n, 0, 0, 0)),
                pl.BlockSpec(w12.shape, lambda n: (0, 0)),
                pl.BlockSpec(wbd.shape, lambda n: (0, 0, 0)),
                pl.BlockSpec(w2c_t.shape, lambda n: (0, 0, 0)),
            ],
            out_specs=pl.BlockSpec((nb, H, W, C), lambda n: (n, 0, 0, 0)),
            scratch_shapes=[
                pltpu.VMEM((nb, H + 2, W + 2, 64), jnp.float32),
            ],
        ),
        compiler_params=pltpu.CompilerParams(
            dimension_semantics=("parallel",),        # batch tiles independent
            # Demo tiles are tiny; when adopting large H*W stripes raise this
            # toward 64-96 MiB on v5e/v6e (128 MiB physical) and keep headroom
            # under v7x's 64 MiB per-core VMEM.
            vmem_limit_bytes=32 * 1024 * 1024),
    )(x, w12, wbd, w2c_t)
    return out


def residual_inception_block(x_nchw, params, *, nb=None):
    """PyTorch-compat shim (NCHW in/out).  The two transposes below are full
    HBM round trips; prefer calling residual_inception_block_nhwc directly
    from an NHWC model."""
    x = jnp.transpose(x_nchw, (0, 2, 3, 1))          # NCHW -> NHWC
    out = residual_inception_block_nhwc(x, params, nb=nb)
    return jnp.transpose(out, (0, 3, 1, 2))          # NHWC -> NCHW


def reference(x_nchw, params):
    """Pure-JAX reference matching the PyTorch module (NCHW).  Conv operands
    are rounded to bf16 — exactly what the kernel feeds the MXU — while
    accumulation stays f32, so kernel vs. reference differ only by summation
    order."""
    w1a, w1b, w2a, w2b, w2c = params
    bf = lambda t: t.astype(jnp.bfloat16).astype(jnp.float32)

    def conv(x, w_hwio, pad):
        return lax.conv_general_dilated(
            bf(x), bf(w_hwio), (1, 1), pad,
            dimension_numbers=('NCHW', 'HWIO', 'NCHW'),
            precision=lax.Precision.HIGHEST)

    lr = lambda v: jnp.maximum(v, 0.2 * v)
    b1 = lr(conv(x_nchw, w1a.reshape(1, 1, 64, 32), 'VALID'))
    b1 = lr(conv(b1, w1b, 'SAME'))
    b2 = lr(conv(x_nchw, w2a.reshape(1, 1, 64, 32), 'VALID'))
    b2 = lr(conv(b2, w2b, 'SAME'))
    b2 = lr(conv(b2, w2c, 'SAME'))
    return jnp.concatenate([b1, b2], axis=1) + x_nchw


def make_params(key):
    ks = jax.random.split(key, 5)
    scale = 0.1
    w1a = jax.random.normal(ks[0], (64, 32), jnp.float32) * scale        # 1x1: (Cin, Cout)
    w1b = jax.random.normal(ks[1], (3, 3, 32, 32), jnp.float32) * scale  # 3x3: HWIO
    w2a = jax.random.normal(ks[2], (64, 32), jnp.float32) * scale
    w2b = jax.random.normal(ks[3], (3, 3, 32, 32), jnp.float32) * scale
    w2c = jax.random.normal(ks[4], (3, 3, 32, 32), jnp.float32) * scale
    return (w1a, w1b, w2a, w2b, w2c)


if __name__ == "__main__":
    key = jax.random.PRNGKey(0)
    kx, kp = jax.random.split(key)

    # Channel count 64 is fixed by the module; N=4 exercises the Nb-batched
    # grid (Nb=2 -> 2 grid steps, keeping both v7x TensorCores busy).
    x = jax.random.normal(kx, (4, 64, 16, 16), jnp.float32)  # NCHW
    params = make_params(kp)

    out = residual_inception_block(x, params)
    out = jax.block_until_ready(out)

    ref = reference(x, params)
    assert out.shape == ref.shape == x.shape, (out.shape, ref.shape)
    assert jnp.allclose(out, ref, atol=1e-2, rtol=1e-2), \
        f"max abs diff {jnp.max(jnp.abs(out - ref))}"

    print("KERNEL_OK")
</pallas_src>

<mosaic_0001>
module attributes {stable_mosaic.version = 11 : i64} {
  func.func @rib_kernel(%arg0: i32, %arg1: memref<2x16x16x64xf32, #tpu.memory_space<vmem>>, %arg2: memref<64x64xbf16, #tpu.memory_space<vmem>>, %arg3: memref<9x64x64xbf16, #tpu.memory_space<vmem>>, %arg4: memref<9x32x32xbf16, #tpu.memory_space<vmem>>, %arg5: memref<2x16x16x64xf32, #tpu.memory_space<vmem>>, %arg6: memref<2x18x18x64xf32, #tpu.memory_space<vmem>>) attributes {dimension_semantics = [#tpu.dimension_semantics<parallel>], iteration_bounds = array<i64: 2>, scalar_prefetch = 0 : i64, scratch_operands = 1 : i64, tpu.core_type = #tpu.core_type<tc>, window_params = [{transform_indices = @transform_0, window_bounds = array<i64: 2, 16, 16, 64>}, {pipeline_mode = #tpu.pipeline_mode<synchronous>, transform_indices = @transform_1, window_bounds = array<i64: 64, 64>}, {pipeline_mode = #tpu.pipeline_mode<synchronous>, transform_indices = @transform_2, window_bounds = array<i64: 9, 64, 64>}, {pipeline_mode = #tpu.pipeline_mode<synchronous>, transform_indices = @transform_3, window_bounds = array<i64: 9, 32, 32>}, {transform_indices = @transform_4, window_bounds = array<i64: 2, 16, 16, 64>}]} {
    %cst = arith.constant 0.000000e+00 : f32
    %0 = vector.broadcast %cst : f32 to vector<2x1x18x64xf32>
    %c0 = arith.constant 0 : index
    %c0_0 = arith.constant 0 : index
    %c0_1 = arith.constant 0 : index
    %c0_2 = arith.constant 0 : index
    %1 = vector.load %arg6[%c0, %c0_0, %c0_1, %c0_2] : memref<2x18x18x64xf32, #tpu.memory_space<vmem>>, vector<2x1x18x64xf32>
    tpu.vector_store %arg6[%c0, %c0_0, %c0_1, %c0_2], %0 {strides = array<i32>} : memref<2x18x18x64xf32, #tpu.memory_space<vmem>>, vector<2x1x18x64xf32>,
    %cst_3 = arith.constant 0.000000e+00 : f32
    %2 = vector.broadcast %cst_3 : f32 to vector<2x1x18x64xf32>
    %c0_4 = arith.constant 0 : index
    %c17 = arith.constant 17 : index
    %c0_5 = arith.constant 0 : index
    %c0_6 = arith.constant 0 : index
    %3 = vector.load %arg6[%c0_4, %c17, %c0_5, %c0_6] : memref<2x18x18x64xf32, #tpu.memory_space<vmem>>, vector<2x1x18x64xf32>
    tpu.vector_store %arg6[%c0_4, %c17, %c0_5, %c0_6], %2 {strides = array<i32>} : memref<2x18x18x64xf32, #tpu.memory_space<vmem>>, vector<2x1x18x64xf32>,
    %cst_7 = arith.constant 0.000000e+00 : f32
    %4 = vector.broadcast %cst_7 : f32 to vector<2x16x1x64xf32>
    %c0_8 = arith.constant 0 : index
    %c1 = arith.constant 1 : index
    %c0_9 = arith.constant 0 : index
    %c0_10 = arith.constant 0 : index
    %5 = vector.load %arg6[%c0_8, %c1, %c0_9, %c0_10] : memref<2x18x18x64xf32, #tpu.memory_space<vmem>>, vector<2x16x1x64xf32>
    tpu.vector_store %arg6[%c0_8, %c1, %c0_9, %c0_10], %4 {strides = array<i32>} : memref<2x18x18x64xf32, #tpu.memory_space<vmem>>, vector<2x16x1x64xf32>,
    %cst_11 = arith.constant 0.000000e+00 : f32
    %6 = vector.broadcast %cst_11 : f32 to vector<2x16x1x64xf32>
    %c0_12 = arith.constant 0 : index
    %c1_13 = arith.constant 1 : index
    %c17_14 = arith.constant 17 : index
    %c0_15 = arith.constant 0 : index
    %7 = vector.load %arg6[%c0_12, %c1_13, %c17_14, %c0_15] : memref<2x18x18x64xf32, #tpu.memory_space<vmem>>, vector<2x16x1x64xf32>
    tpu.vector_store %arg6[%c0_12, %c1_13, %c17_14, %c0_15], %6 {strides = array<i32>} : memref<2x18x18x64xf32, #tpu.memory_space<vmem>>, vector<2x16x1x64xf32>,
    %c0_16 = arith.constant 0 : index
    %c0_17 = arith.constant 0 : index
    %c0_18 = arith.constant 0 : index
    %c0_19 = arith.constant 0 : index
    %8 = vector.load %arg1[%c0_16, %c0_17, %c0_18, %c0_19] : memref<2x16x16x64xf32, #tpu.memory_space<vmem>>, vector<2x16x16x64xf32>
    %9 = vector.shape_cast %8 : vector<2x16x16x64xf32> to vector<512x64xf32>
    %10 = arith.truncf %9 : vector<512x64xf32> to vector<512x64xbf16>
    %c0_20 = arith.constant 0 : index
    %c0_21 = arith.constant 0 : index
    %11 = vector.load %arg2[%c0_20, %c0_21] : memref<64x64xbf16, #tpu.memory_space<vmem>>, vector<64x64xbf16>
    %cst_22 = arith.constant dense<0.000000e+00> : vector<512x64xf32>
    %12 = tpu.matmul %10, %11, %cst_22 {dimension_numbers = #tpu.dot_dimension_numbers<[1], [0], [0], [1], [0, 0, 1, 1], [], []>} : vector<512x64xbf16>, vector<64x64xbf16>, vector<512x64xf32> -> vector<512x64xf32>
    %cst_23 = arith.constant 2.000000e-01 : f32
    %13 = vector.broadcast %cst_23 : f32 to vector<512x64xf32>
    %14 = arith.mulf %13, %12 : vector<512x64xf32>
    %15 = arith.maximumf %12, %14 : vector<512x64xf32>
    %16 = vector.shape_cast %15 : vector<512x64xf32> to vector<2x16x16x64xf32>
    %c0_24 = arith.constant 0 : index
    %c1_25 = arith.constant 1 : index
    %c1_26 = arith.constant 1 : index
    %c0_27 = arith.constant 0 : index
    %17 = vector.load %arg6[%c0_24, %c1_25, %c1_26, %c0_27] : memref<2x18x18x64xf32, #tpu.memory_space<vmem>>, vector<2x16x16x64xf32>
    tpu.vector_store %arg6[%c0_24, %c1_25, %c1_26, %c0_27], %16 {strides = array<i32>} : memref<2x18x18x64xf32, #tpu.memory_space<vmem>>, vector<2x16x16x64xf32>,
    %cst_28 = arith.constant 0.000000e+00 : f32
    %18 = vector.broadcast %cst_28 : f32 to vector<512x64xf32>
    %c0_29 = arith.constant 0 : index
    %c0_30 = arith.constant 0 : index
    %c0_31 = arith.constant 0 : index
    %c0_32 = arith.constant 0 : index
    %19 = vector.load %arg6[%c0_29, %c0_30, %c0_31, %c0_32] : memref<2x18x18x64xf32, #tpu.memory_space<vmem>>, vector<2x16x16x64xf32>
    %20 = vector.shape_cast %19 : vector<2x16x16x64xf32> to vector<512x64xf32>
    %21 = arith.truncf %20 : vector<512x64xf32> to vector<512x64xbf16>
    %c0_33 = arith.constant 0 : index
    %c0_34 = arith.constant 0 : index
    %c0_35 = arith.constant 0 : index
    %22 = vector.load %arg3[%c0_33, %c0_34, %c0_35] : memref<9x64x64xbf16, #tpu.memory_space<vmem>>, vector<1x64x64xbf16>
    %23 = vector.shape_cast %22 : vector<1x64x64xbf16> to vector<64x64xbf16>
    %cst_36 = arith.constant dense<0.000000e+00> : vector<512x64xf32>
    %24 = tpu.matmul %21, %23, %cst_36 {dimension_numbers = #tpu.dot_dimension_numbers<[1], [0], [0], [1], [0, 0, 1, 1], [], []>} : vector<512x64xbf16>, vector<64x64xbf16>, vector<512x64xf32> -> vector<512x64xf32>
    %25 = arith.addf %18, %24 : vector<512x64xf32>
    %c0_37 = arith.constant 0 : index
    %c0_38 = arith.constant 0 : index
    %c1_39 = arith.constant 1 : index
    %c0_40 = arith.constant 0 : index
    %26 = vector.load %arg6[%c0_37, %c0_38, %c1_39, %c0_40] : memref<2x18x18x64xf32, #tpu.memory_space<vmem>>, vector<2x16x16x64xf32>
    %27 = vector.shape_cast %26 : vector<2x16x16x64xf32> to vector<512x64xf32>
    %28 = arith.truncf %27 : vector<512x64xf32> to vector<512x64xbf16>
    %c1_41 = arith.constant 1 : index
    %c0_42 = arith.constant 0 : index
    %c0_43 = arith.constant 0 : index
    %29 = vector.load %arg3[%c1_41, %c0_42, %c0_43] : memref<9x64x64xbf16, #tpu.memory_space<vmem>>, vector<1x64x64xbf16>
    %30 = vector.shape_cast %29 : vector<1x64x64xbf16> to vector<64x64xbf16>
    %cst_44 = arith.constant dense<0.000000e+00> : vector<512x64xf32>
    %31 = tpu.matmul %28, %30, %cst_44 {dimension_numbers = #tpu.dot_dimension_numbers<[1], [0], [0], [1], [0, 0, 1, 1], [], []>} : vector<512x64xbf16>, vector<64x64xbf16>, vector<512x64xf32> -> vector<512x64xf32>
    %32 = arith.addf %25, %31 : vector<512x64xf32>
    %c0_45 = arith.constant 0 : index
    %c0_46 = arith.constant 0 : index
    %c2 = arith.constant 2 : index
    %c0_47 = arith.constant 0 : index
    %33 = vector.load %arg6[%c0_45, %c0_46, %c2, %c0_47] : memref<2x18x18x64xf32, #tpu.memory_space<vmem>>, vector<2x16x16x64xf32>
    %34 = vector.shape_cast %33 : vector<2x16x16x64xf32> to vector<512x64xf32>
    %35 = arith.truncf %34 : vector<512x64xf32> to vector<512x64xbf16>
    %c2_48 = arith.constant 2 : index
    %c0_49 = arith.constant 0 : index
    %c0_50 = arith.constant 0 : index
    %36 = vector.load %arg3[%c2_48, %c0_49, %c0_50] : memref<9x64x64xbf16, #tpu.memory_space<vmem>>, vector<1x64x64xbf16>
    %37 = vector.shape_cast %36 : vector<1x64x64xbf16> to vector<64x64xbf16>
    %cst_51 = arith.constant dense<0.000000e+00> : vector<512x64xf32>
    %38 = tpu.matmul %35, %37, %cst_51 {dimension_numbers = #tpu.dot_dimension_numbers<[1], [0], [0], [1], [0, 0, 1, 1], [], []>} : vector<512x64xbf16>, vector<64x64xbf16>, vector<512x64xf32> -> vector<512x64xf32>
    %39 = arith.addf %32, %38 : vector<512x64xf32>
    %c0_52 = arith.constant 0 : index
    %c1_53 = arith.constant 1 : index
    %c0_54 = arith.constant 0 : index
    %c0_55 = arith.constant 0 : index
    %40 = vector.load %arg6[%c0_52, %c1_53, %c0_54, %c0_55] : memref<2x18x18x64xf32, #tpu.memory_space<vmem>>, vector<2x16x16x64xf32>
    %41 = vector.shape_cast %40 : vector<2x16x16x64xf32> to vector<512x64xf32>
    %42 = arith.truncf %41 : vector<512x64xf32> to vector<512x64xbf16>
    %c3 = arith.constant 3 : index
    %c0_56 = arith.constant 0 : index
    %c0_57 = arith.constant 0 : index
    %43 = vector.load %arg3[%c3, %c0_56, %c0_57] : memref<9x64x64xbf16, #tpu.memory_space<vmem>>, vector<1x64x64xbf16>
    %44 = vector.shape_cast %43 : vector<1x64x64xbf16> to vector<64x64xbf16>
    %cst_58 = arith.constant dense<0.000000e+00> : vector<512x64xf32>
    %45 = tpu.matmul %42, %44, %cst_58 {dimension_numbers = #tpu.dot_dimension_numbers<[1], [0], [0], [1], [0, 0, 1, 1], [], []>} : vector<512x64xbf16>, vector<64x64xbf16>, vector<512x64xf32> -> vector<512x64xf32>
    %46 = arith.addf %39, %45 : vector<512x64xf32>
    %c0_59 = arith.constant 0 : index
    %c1_60 = arith.constant 1 : index
    %c1_61 = arith.constant 1 : index
    %c0_62 = arith.constant 0 : index
    %47 = vector.load %arg6[%c0_59, %c1_60, %c1_61, %c0_62] : memref<2x18x18x64xf32, #tpu.memory_space<vmem>>, vector<2x16x16x64xf32>
    %48 = vector.shape_cast %47 : vector<2x16x16x64xf32> to vector<512x64xf32>
    %49 = arith.truncf %48 : vector<512x64xf32> to vector<512x64xbf16>
    %c4 = arith.constant 4 : index
    %c0_63 = arith.constant 0 : index
    %c0_64 = arith.constant 0 : index
    %50 = vector.load %arg3[%c4, %c0_63, %c0_64] : memref<9x64x64xbf16, #tpu.memory_space<vmem>>, vector<1x64x64xbf16>
    %51 = vector.shape_cast %50 : vector<1x64x64xbf16> to vector<64x64xbf16>
    %cst_65 = arith.constant dense<0.000000e+00> : vector<512x64xf32>
    %52 = tpu.matmul %49, %51, %cst_65 {dimension_numbers = #tpu.dot_dimension_numbers<[1], [0], [0], [1], [0, 0, 1, 1], [], []>} : vector<512x64xbf16>, vector<64x64xbf16>, vector<512x64xf32> -> vector<512x64xf32>
    %53 = arith.addf %46, %52 : vector<512x64xf32>
    %c0_66 = arith.constant 0 : index
    %c1_67 = arith.constant 1 : index
    %c2_68 = arith.constant 2 : index
    %c0_69 = arith.constant 0 : index
    %54 = vector.load %arg6[%c0_66, %c1_67, %c2_68, %c0_69] : memref<2x18x18x64xf32, #tpu.memory_space<vmem>>, vector<2x16x16x64xf32>
    %55 = vector.shape_cast %54 : vector<2x16x16x64xf32> to vector<512x64xf32>
    %56 = arith.truncf %55 : vector<512x64xf32> to vector<512x64xbf16>
    %c5 = arith.constant 5 : index
    %c0_70 = arith.constant 0 : index
    %c0_71 = arith.constant 0 : index
    %57 = vector.load %arg3[%c5, %c0_70, %c0_71] : memref<9x64x64xbf16, #tpu.memory_space<vmem>>, vector<1x64x64xbf16>
    %58 = vector.shape_cast %57 : vector<1x64x64xbf16> to vector<64x64xbf16>
    %cst_72 = arith.constant dense<0.000000e+00> : vector<512x64xf32>
    %59 = tpu.matmul %56, %58, %cst_72 {dimension_numbers = #tpu.dot_dimension_numbers<[1], [0], [0], [1], [0, 0, 1, 1], [], []>} : vector<512x64xbf16>, vector<64x64xbf16>, vector<512x64xf32> -> vector<512x64xf32>
    %60 = arith.addf %53, %59 : vector<512x64xf32>
    %c0_73 = arith.constant 0 : index
    %c2_74 = arith.constant 2 : index
    %c0_75 = arith.constant 0 : index
    %c0_76 = arith.constant 0 : index
    %61 = vector.load %arg6[%c0_73, %c2_74, %c0_75, %c0_76] : memref<2x18x18x64xf32, #tpu.memory_space<vmem>>, vector<2x16x16x64xf32>
    %62 = vector.shape_cast %61 : vector<2x16x16x64xf32> to vector<512x64xf32>
    %63 = arith.truncf %62 : vector<512x64xf32> to vector<512x64xbf16>
    %c6 = arith.constant 6 : index
    %c0_77 = arith.constant 0 : index
    %c0_78 = arith.constant 0 : index
    %64 = vector.load %arg3[%c6, %c0_77, %c0_78] : memref<9x64x64xbf16, #tpu.memory_space<vmem>>, vector<1x64x64xbf16>
    %65 = vector.shape_cast %64 : vector<1x64x64xbf16> to vector<64x64xbf16>
    %cst_79 = arith.constant dense<0.000000e+00> : vector<512x64xf32>
    %66 = tpu.matmul %63, %65, %cst_79 {dimension_numbers = #tpu.dot_dimension_numbers<[1], [0], [0], [1], [0, 0, 1, 1], [], []>} : vector<512x64xbf16>, vector<64x64xbf16>, vector<512x64xf32> -> vector<512x64xf32>
    %67 = arith.addf %60, %66 : vector<512x64xf32>
    %c0_80 = arith.constant 0 : index
    %c2_81 = arith.constant 2 : index
    %c1_82 = arith.constant 1 : index
    %c0_83 = arith.constant 0 : index
    %68 = vector.load %arg6[%c0_80, %c2_81, %c1_82, %c0_83] : memref<2x18x18x64xf32, #tpu.memory_space<vmem>>, vector<2x16x16x64xf32>
    %69 = vector.shape_cast %68 : vector<2x16x16x64xf32> to vector<512x64xf32>
    %70 = arith.truncf %69 : vector<512x64xf32> to vector<512x64xbf16>
    %c7 = arith.constant 7 : index
    %c0_84 = arith.constant 0 : index
    %c0_85 = arith.constant 0 : index
    %71 = vector.load %arg3[%c7, %c0_84, %c0_85] : memref<9x64x64xbf16, #tpu.memory_space<vmem>>, vector<1x64x64xbf16>
    %72 = vector.shape_cast %71 : vector<1x64x64xbf16> to vector<64x64xbf16>
    %cst_86 = arith.constant dense<0.000000e+00> : vector<512x64xf32>
    %73 = tpu.matmul %70, %72, %cst_86 {dimension_numbers = #tpu.dot_dimension_numbers<[1], [0], [0], [1], [0, 0, 1, 1], [], []>} : vector<512x64xbf16>, vector<64x64xbf16>, vector<512x64xf32> -> vector<512x64xf32>
    %74 = arith.addf %67, %73 : vector<512x64xf32>
    %c0_87 = arith.constant 0 : index
    %c2_88 = arith.constant 2 : index
    %c2_89 = arith.constant 2 : index
    %c0_90 = arith.constant 0 : index
    %75 = vector.load %arg6[%c0_87, %c2_88, %c2_89, %c0_90] : memref<2x18x18x64xf32, #tpu.memory_space<vmem>>, vector<2x16x16x64xf32>
    %76 = vector.shape_cast %75 : vector<2x16x16x64xf32> to vector<512x64xf32>
    %77 = arith.truncf %76 : vector<512x64xf32> to vector<512x64xbf16>
    %c8 = arith.constant 8 : index
    %c0_91 = arith.constant 0 : index
    %c0_92 = arith.constant 0 : index
    %78 = vector.load %arg3[%c8, %c0_91, %c0_92] : memref<9x64x64xbf16, #tpu.memory_space<vmem>>, vector<1x64x64xbf16>
    %79 = vector.shape_cast %78 : vector<1x64x64xbf16> to vector<64x64xbf16>
    %cst_93 = arith.constant dense<0.000000e+00> : vector<512x64xf32>
    %80 = tpu.matmul %77, %79, %cst_93 {dimension_numbers = #tpu.dot_dimension_numbers<[1], [0], [0], [1], [0, 0, 1, 1], [], []>} : vector<512x64xbf16>, vector<64x64xbf16>, vector<512x64xf32> -> vector<512x64xf32>
    %81 = arith.addf %74, %80 : vector<512x64xf32>
    %cst_94 = arith.constant 2.000000e-01 : f32
    %82 = vector.broadcast %cst_94 : f32 to vector<512x64xf32>
    %83 = arith.mulf %82, %81 : vector<512x64xf32>
    %84 = arith.maximumf %81, %83 : vector<512x64xf32>
    %85 = vector.extract_strided_slice %84 {offsets = [0, 32], sizes = [512, 32], strides = [1, 1]} : vector<512x64xf32> to vector<512x32xf32>
    %86 = vector.shape_cast %85 : vector<512x32xf32> to vector<2x16x16x32xf32>
    %c0_95 = arith.constant 0 : index
    %c1_96 = arith.constant 1 : index
    %c1_97 = arith.constant 1 : index
    %c0_98 = arith.constant 0 : index
    %87 = vector.load %arg6[%c0_95, %c1_96, %c1_97, %c0_98] : memref<2x18x18x64xf32, #tpu.memory_space<vmem>>, vector<2x16x16x32xf32>
    tpu.vector_store %arg6[%c0_95, %c1_96, %c1_97, %c0_98], %86 {strides = array<i32>} : memref<2x18x18x64xf32, #tpu.memory_space<vmem>>, vector<2x16x16x32xf32>,
    %cst_99 = arith.constant 0.000000e+00 : f32
    %88 = vector.broadcast %cst_99 : f32 to vector<512x32xf32>
    %c0_100 = arith.constant 0 : index
    %c0_101 = arith.constant 0 : index
    %c0_102 = arith.constant 0 : index
    %c0_103 = arith.constant 0 : index
    %89 = vector.load %arg6[%c0_100, %c0_101, %c0_102, %c0_103] : memref<2x18x18x64xf32, #tpu.memory_space<vmem>>, vector<2x16x16x32xf32>
    %90 = vector.shape_cast %89 : vector<2x16x16x32xf32> to vector<512x32xf32>
    %91 = arith.truncf %90 : vector<512x32xf32> to vector<512x32xbf16>
    %c0_104 = arith.constant 0 : index
    %c0_105 = arith.constant 0 : index
    %c0_106 = arith.constant 0 : index
    %92 = vector.load %arg4[%c0_104, %c0_105, %c0_106] : memref<9x32x32xbf16, #tpu.memory_space<vmem>>, vector<1x32x32xbf16>
    %93 = vector.shape_cast %92 : vector<1x32x32xbf16> to vector<32x32xbf16>
    %cst_107 = arith.constant dense<0.000000e+00> : vector<512x32xf32>
    %94 = tpu.matmul %91, %93, %cst_107 {dimension_numbers = #tpu.dot_dimension_numbers<[1], [0], [0], [1], [0, 0, 1, 1], [], []>} : vector<512x32xbf16>, vector<32x32xbf16>, vector<512x32xf32> -> vector<512x32xf32>
    %95 = arith.addf %88, %94 : vector<512x32xf32>
    %c0_108 = arith.constant 0 : index
    %c0_109 = arith.constant 0 : index
    %c1_110 = arith.constant 1 : index
    %c0_111 = arith.constant 0 : index
    %96 = vector.load %arg6[%c0_108, %c0_109, %c1_110, %c0_111] : memref<2x18x18x64xf32, #tpu.memory_space<vmem>>, vector<2x16x16x32xf32>
    %97 = vector.shape_cast %96 : vector<2x16x16x32xf32> to vector<512x32xf32>
    %98 = arith.truncf %97 : vector<512x32xf32> to vector<512x32xbf16>
    %c1_112 = arith.constant 1 : index
    %c0_113 = arith.constant 0 : index
    %c0_114 = arith.constant 0 : index
    %99 = vector.load %arg4[%c1_112, %c0_113, %c0_114] : memref<9x32x32xbf16, #tpu.memory_space<vmem>>, vector<1x32x32xbf16>
    %100 = vector.shape_cast %99 : vector<1x32x32xbf16> to vector<32x32xbf16>
    %cst_115 = arith.constant dense<0.000000e+00> : vector<512x32xf32>
    %101 = tpu.matmul %98, %100, %cst_115 {dimension_numbers = #tpu.dot_dimension_numbers<[1], [0], [0], [1], [0, 0, 1, 1], [], []>} : vector<512x32xbf16>, vector<32x32xbf16>, vector<512x32xf32> -> vector<512x32xf32>
    %102 = arith.addf %95, %101 : vector<512x32xf32>
    %c0_116 = arith.constant 0 : index
    %c0_117 = arith.constant 0 : index
    %c2_118 = arith.constant 2 : index
    %c0_119 = arith.constant 0 : index
    %103 = vector.load %arg6[%c0_116, %c0_117, %c2_118, %c0_119] : memref<2x18x18x64xf32, #tpu.memory_space<vmem>>, vector<2x16x16x32xf32>
    %104 = vector.shape_cast %103 : vector<2x16x16x32xf32> to vector<512x32xf32>
    %105 = arith.truncf %104 : vector<512x32xf32> to vector<512x32xbf16>
    %c2_120 = arith.constant 2 : index
    %c0_121 = arith.constant 0 : index
    %c0_122 = arith.constant 0 : index
    %106 = vector.load %arg4[%c2_120, %c0_121, %c0_122] : memref<9x32x32xbf16, #tpu.memory_space<vmem>>, vector<1x32x32xbf16>
    %107 = vector.shape_cast %106 : vector<1x32x32xbf16> to vector<32x32xbf16>
    %cst_123 = arith.constant dense<0.000000e+00> : vector<512x32xf32>
    %108 = tpu.matmul %105, %107, %cst_123 {dimension_numbers = #tpu.dot_dimension_numbers<[1], [0], [0], [1], [0, 0, 1, 1], [], []>} : vector<512x32xbf16>, vector<32x32xbf16>, vector<512x32xf32> -> vector<512x32xf32>
    %109 = arith.addf %102, %108 : vector<512x32xf32>
    %c0_124 = arith.constant 0 : index
    %c1_125 = arith.constant 1 : index
    %c0_126 = arith.constant 0 : index
    %c0_127 = arith.constant 0 : index
    %110 = vector.load %arg6[%c0_124, %c1_125, %c0_126, %c0_127] : memref<2x18x18x64xf32, #tpu.memory_space<vmem>>, vector<2x16x16x32xf32>
    %111 = vector.shape_cast %110 : vector<2x16x16x32xf32> to vector<512x32xf32>
    %112 = arith.truncf %111 : vector<512x32xf32> to vector<512x32xbf16>
    %c3_128 = arith.constant 3 : index
    %c0_129 = arith.constant 0 : index
    %c0_130 = arith.constant 0 : index
    %113 = vector.load %arg4[%c3_128, %c0_129, %c0_130] : memref<9x32x32xbf16, #tpu.memory_space<vmem>>, vector<1x32x32xbf16>
    %114 = vector.shape_cast %113 : vector<1x32x32xbf16> to vector<32x32xbf16>
    %cst_131 = arith.constant dense<0.000000e+00> : vector<512x32xf32>
    %115 = tpu.matmul %112, %114, %cst_131 {dimension_numbers = #tpu.dot_dimension_numbers<[1], [0], [0], [1], [0, 0, 1, 1], [], []>} : vector<512x32xbf16>, vector<32x32xbf16>, vector<512x32xf32> -> vector<512x32xf32>
    %116 = arith.addf %109, %115 : vector<512x32xf32>
    %c0_132 = arith.constant 0 : index
    %c1_133 = arith.constant 1 : index
    %c1_134 = arith.constant 1 : index
    %c0_135 = arith.constant 0 : index
    %117 = vector.load %arg6[%c0_132, %c1_133, %c1_134, %c0_135] : memref<2x18x18x64xf32, #tpu.memory_space<vmem>>, vector<2x16x16x32xf32>
    %118 = vector.shape_cast %117 : vector<2x16x16x32xf32> to vector<512x32xf32>
    %119 = arith.truncf %118 : vector<512x32xf32> to vector<512x32xbf16>
    %c4_136 = arith.constant 4 : index
    %c0_137 = arith.constant 0 : index
    %c0_138 = arith.constant 0 : index
    %120 = vector.load %arg4[%c4_136, %c0_137, %c0_138] : memref<9x32x32xbf16, #tpu.memory_space<vmem>>, vector<1x32x32xbf16>
    %121 = vector.shape_cast %120 : vector<1x32x32xbf16> to vector<32x32xbf16>
    %cst_139 = arith.constant dense<0.000000e+00> : vector<512x32xf32>
    %122 = tpu.matmul %119, %121, %cst_139 {dimension_numbers = #tpu.dot_dimension_numbers<[1], [0], [0], [1], [0, 0, 1, 1], [], []>} : vector<512x32xbf16>, vector<32x32xbf16>, vector<512x32xf32> -> vector<512x32xf32>
    %123 = arith.addf %116, %122 : vector<512x32xf32>
    %c0_140 = arith.constant 0 : index
    %c1_141 = arith.constant 1 : index
    %c2_142 = arith.constant 2 : index
    %c0_143 = arith.constant 0 : index
    %124 = vector.load %arg6[%c0_140, %c1_141, %c2_142, %c0_143] : memref<2x18x18x64xf32, #tpu.memory_space<vmem>>, vector<2x16x16x32xf32>
    %125 = vector.shape_cast %124 : vector<2x16x16x32xf32> to vector<512x32xf32>
    %126 = arith.truncf %125 : vector<512x32xf32> to vector<512x32xbf16>
    %c5_144 = arith.constant 5 : index
    %c0_145 = arith.constant 0 : index
    %c0_146 = arith.constant 0 : index
    %127 = vector.load %arg4[%c5_144, %c0_145, %c0_146] : memref<9x32x32xbf16, #tpu.memory_space<vmem>>, vector<1x32x32xbf16>
    %128 = vector.shape_cast %127 : vector<1x32x32xbf16> to vector<32x32xbf16>
    %cst_147 = arith.constant dense<0.000000e+00> : vector<512x32xf32>
    %129 = tpu.matmul %126, %128, %cst_147 {dimension_numbers = #tpu.dot_dimension_numbers<[1], [0], [0], [1], [0, 0, 1, 1], [], []>} : vector<512x32xbf16>, vector<32x32xbf16>, vector<512x32xf32> -> vector<512x32xf32>
    %130 = arith.addf %123, %129 : vector<512x32xf32>
    %c0_148 = arith.constant 0 : index
    %c2_149 = arith.constant 2 : index
    %c0_150 = arith.constant 0 : index
    %c0_151 = arith.constant 0 : index
    %131 = vector.load %arg6[%c0_148, %c2_149, %c0_150, %c0_151] : memref<2x18x18x64xf32, #tpu.memory_space<vmem>>, vector<2x16x16x32xf32>
    %132 = vector.shape_cast %131 : vector<2x16x16x32xf32> to vector<512x32xf32>
    %133 = arith.truncf %132 : vector<512x32xf32> to vector<512x32xbf16>
    %c6_152 = arith.constant 6 : index
    %c0_153 = arith.constant 0 : index
    %c0_154 = arith.constant 0 : index
    %134 = vector.load %arg4[%c6_152, %c0_153, %c0_154] : memref<9x32x32xbf16, #tpu.memory_space<vmem>>, vector<1x32x32xbf16>
    %135 = vector.shape_cast %134 : vector<1x32x32xbf16> to vector<32x32xbf16>
    %cst_155 = arith.constant dense<0.000000e+00> : vector<512x32xf32>
    %136 = tpu.matmul %133, %135, %cst_155 {dimension_numbers = #tpu.dot_dimension_numbers<[1], [0], [0], [1], [0, 0, 1, 1], [], []>} : vector<512x32xbf16>, vector<32x32xbf16>, vector<512x32xf32> -> vector<512x32xf32>
    %137 = arith.addf %130, %136 : vector<512x32xf32>
    %c0_156 = arith.constant 0 : index
    %c2_157 = arith.constant 2 : index
    %c1_158 = arith.constant 1 : index
    %c0_159 = arith.constant 0 : index
    %138 = vector.load %arg6[%c0_156, %c2_157, %c1_158, %c0_159] : memref<2x18x18x64xf32, #tpu.memory_space<vmem>>, vector<2x16x16x32xf32>
    %139 = vector.shape_cast %138 : vector<2x16x16x32xf32> to vector<512x32xf32>
    %140 = arith.truncf %139 : vector<512x32xf32> to vector<512x32xbf16>
    %c7_160 = arith.constant 7 : index
    %c0_161 = arith.constant 0 : index
    %c0_162 = arith.constant 0 : index
    %141 = vector.load %arg4[%c7_160, %c0_161, %c0_162] : memref<9x32x32xbf16, #tpu.memory_space<vmem>>, vector<1x32x32xbf16>
    %142 = vector.shape_cast %141 : vector<1x32x32xbf16> to vector<32x32xbf16>
    %cst_163 = arith.constant dense<0.000000e+00> : vector<512x32xf32>
    %143 = tpu.matmul %140, %142, %cst_163 {dimension_numbers = #tpu.dot_dimension_numbers<[1], [0], [0], [1], [0, 0, 1, 1], [], []>} : vector<512x32xbf16>, vector<32x32xbf16>, vector<512x32xf32> -> vector<512x32xf32>
    %144 = arith.addf %137, %143 : vector<512x32xf32>
    %c0_164 = arith.constant 0 : index
    %c2_165 = arith.constant 2 : index
    %c2_166 = arith.constant 2 : index
    %c0_167 = arith.constant 0 : index
    %145 = vector.load %arg6[%c0_164, %c2_165, %c2_166, %c0_167] : memref<2x18x18x64xf32, #tpu.memory_space<vmem>>, vector<2x16x16x32xf32>
    %146 = vector.shape_cast %145 : vector<2x16x16x32xf32> to vector<512x32xf32>
    %147 = arith.truncf %146 : vector<512x32xf32> to vector<512x32xbf16>
    %c8_168 = arith.constant 8 : index
    %c0_169 = arith.constant 0 : index
    %c0_170 = arith.constant 0 : index
    %148 = vector.load %arg4[%c8_168, %c0_169, %c0_170] : memref<9x32x32xbf16, #tpu.memory_space<vmem>>, vector<1x32x32xbf16>
    %149 = vector.shape_cast %148 : vector<1x32x32xbf16> to vector<32x32xbf16>
    %cst_171 = arith.constant dense<0.000000e+00> : vector<512x32xf32>
    %150 = tpu.matmul %147, %149, %cst_171 {dimension_numbers = #tpu.dot_dimension_numbers<[1], [0], [0], [1], [0, 0, 1, 1], [], []>} : vector<512x32xbf16>, vector<32x32xbf16>, vector<512x32xf32> -> vector<512x32xf32>
    %151 = arith.addf %144, %150 : vector<512x32xf32>
    %cst_172 = arith.constant 2.000000e-01 : f32
    %152 = vector.broadcast %cst_172 : f32 to vector<512x32xf32>
    %153 = arith.mulf %152, %151 : vector<512x32xf32>
    %154 = arith.maximumf %151, %153 : vector<512x32xf32>
    %155 = vector.extract_strided_slice %84 {offsets = [0, 0], sizes = [512, 32], strides = [1, 1]} : vector<512x64xf32> to vector<512x32xf32>
    %156 = tpu.concatenate %155, %154 in 1 : vector<512x32xf32>, vector<512x32xf32> -> vector<512x64xf32>
    %157 = arith.addf %156, %9 : vector<512x64xf32>
    %158 = vector.shape_cast %157 : vector<512x64xf32> to vector<2x16x16x64xf32>
    %c0_173 = arith.constant 0 : index
    %c0_174 = arith.constant 0 : index
    %c0_175 = arith.constant 0 : index
    %c0_176 = arith.constant 0 : index
    %159 = vector.load %arg5[%c0_173, %c0_174, %c0_175, %c0_176] : memref<2x16x16x64xf32, #tpu.memory_space<vmem>>, vector<2x16x16x64xf32>
    tpu.vector_store %arg5[%c0_173, %c0_174, %c0_175, %c0_176], %158 {strides = array<i32>} : memref<2x16x16x64xf32, #tpu.memory_space<vmem>>, vector<2x16x16x64xf32>,
    return
  }
  func.func @transform_0(%arg0: i32) -> (i32, i32, i32, i32) {
    %c0_i32 = arith.constant 0 : i32
    %c0_i32_0 = arith.constant 0 : i32
    %c0_i32_1 = arith.constant 0 : i32
    %c0_i32_2 = arith.constant 0 : i32
    return %arg0, %c0_i32, %c0_i32_0, %c0_i32_1 : i32, i32, i32, i32
  }
  func.func @transform_1(%arg0: i32) -> (i32, i32) {
    %c0_i32 = arith.constant 0 : i32
    %c0_i32_0 = arith.constant 0 : i32
    %c0_i32_1 = arith.constant 0 : i32
    return %c0_i32, %c0_i32_0 : i32, i32
  }
  func.func @transform_2(%arg0: i32) -> (i32, i32, i32) {
    %c0_i32 = arith.constant 0 : i32
    %c0_i32_0 = arith.constant 0 : i32
    %c0_i32_1 = arith.constant 0 : i32
    %c0_i32_2 = arith.constant 0 : i32
    return %c0_i32, %c0_i32_0, %c0_i32_1 : i32, i32, i32
  }
  func.func @transform_3(%arg0: i32) -> (i32, i32, i32) {
    %c0_i32 = arith.constant 0 : i32
    %c0_i32_0 = arith.constant 0 : i32
    %c0_i32_1 = arith.constant 0 : i32
    %c0_i32_2 = arith.constant 0 : i32
    return %c0_i32, %c0_i32_0, %c0_i32_1 : i32, i32, i32
  }
  func.func @transform_4(%arg0: i32) -> (i32, i32, i32, i32) {
    %c0_i32 = arith.constant 0 : i32
    %c0_i32_0 = arith.constant 0 : i32
    %c0_i32_1 = arith.constant 0 : i32
    %c0_i32_2 = arith.constant 0 : i32
    return %arg0, %c0_i32, %c0_i32_0, %c0_i32_1 : i32, i32, i32, i32
  }
}

</mosaic_0001>

<llo_original>
// kernel: tpu_custom_call.1
$region0: #{tpu_custom_call.1}
  #allocation0 [shape = 'u32[]', space=smem, size = 0x4, offset = 0x4, fixed_abs, tag = 'smem constant byte address 0x4 - core index']
  #allocation1 [shape = 'u32[144,128]{1,0:T(1,128)}', space=vmem, size = 0x12000, scoped, tag = 'internal scratch']
  #allocation2 [shape = 'f32[2,18,18,64]{3,2,1,0:T(8,128)}', space=vmem, size = 0x6c000, scoped, tag = 'scratch operand']
  %s0 = inlined_call_operand.hbm [shape: f32[4,16,16,64], index: 0, kind: input, shape index: {}]
  %s1 = inlined_call_operand.hbm [shape: bf16[64,64], index: 1, kind: input, shape index: {}]
  %s2 = inlined_call_operand.hbm [shape: bf16[9,64,64], index: 2, kind: input, shape index: {}]
  %s3 = inlined_call_operand.hbm [shape: bf16[9,32,32], index: 3, kind: input, shape index: {}]
  %s4 = inlined_call_operand.hbm [shape: f32[4,16,16,64], index: 4, kind: output, shape index: {}]
  %s5 = sld [smem:[#allocation0]]
  $region65: #{tpu_custom_call.1} parent=0
    _
  %s7 = ssub.s32 1, %s5
  %s8 = scalar_select 0, %s7, %s5
  $region1: #{tpu_custom_call.1} parent=0
    #allocation3 [shape = 'u8[524288]{0}', space=vmem, size = 0x80000, scoped, tag = 'input window, operand 0']
    #allocation4 [shape = 's32[2]{0}', space=sflag, size = 0x8, scoped, tag = 'scoped memory for tpu_custom_call.1']
    #allocation5 [shape = 's32[2]{0}', space=sflag, size = 0x8, scoped, tag = 'scoped memory for tpu_custom_call.1']
    #allocation6 [shape = 'u8[16384]{0}', space=vmem, size = 0x4000, scoped, tag = 'input window, operand 1, single buffered']
    #allocation7 [shape = 's32[1]{0}', space=sflag, size = 0x4, scoped, tag = 'scoped memory for tpu_custom_call.1']
    #allocation8 [shape = 'u8[147456]{0}', space=vmem, size = 0x24000, scoped, tag = 'input window, operand 2, single buffered']
    #allocation9 [shape = 'u8[73728]{0}', space=vmem, size = 0x12000, scoped, tag = 'input window, operand 3, single buffered']
    #allocation10 [shape = 's32[1]{0}', space=sflag, size = 0x4, scoped, tag = 'scoped memory for tpu_custom_call.1']
    #allocation11 [shape = 'u8[524288]{0}', space=vmem, size = 0x80000, scoped, tag = 'output window, operand 0']
    %9 = vsyncpa [#allocation4], 0
    %s10 = scalar_lea.sflag [#allocation4], 1
    %11 = vsyncpa %s10, 0
    %12 = vsyncpa [#allocation7], 0
    %13 = vsyncpa [#allocation10], 0
    %14 = vsyncpa [#allocation5], 0
    %s15 = scalar_lea.sflag [#allocation5], 1
    %16 = vsyncpa %s15, 0
    loop: start=0, step=1, limit=4
    $region2: #{tpu_custom_call.1} parent=1 // loop_pre_header
      _
    $region3: #{tpu_custom_call.1} parent=1 // loop_header
      %s18 = sphi 0, %s22
      %p19 = scmp.ge.s32.totalorder %s18, 4
      %s28 = sphi 0, %s30
      %s31 = sphi 0, %s28
      %s32 = sphi 0, %s31
      %s48 = sphi 0, %s32
      %s52 = sphi 0, %s52
      %s54 = sphi 0, %s52
      %s55 = sphi 0, %s54
      %s69 = sphi 0, %s55
      %s73 = sphi 0, %s73
      %s75 = sphi 0, %s73
      %s76 = sphi 0, %s75
      %s90 = sphi 0, %s76
      %s94 = sphi 0, %s94
      %s96 = sphi 0, %s94
      %s97 = sphi 0, %s96
      %s111 = sphi 0, %s97
      %s117 = sphi 0, %s119
      %s120 = sphi 0, %s117
      %s121 = sphi 0, %s120
      %s137 = sphi 0, %s121
    $region4: #{tpu_custom_call.1} parent=1 // loop_header_branch
      %21 = sbr.rel (%p19) target = $region8
    $region5: #{tpu_custom_call.1} parent=1 // loop_body
      %s23 = ssub.s32 %s18, 1
      %s24 = ssub.s32 %s18, 2
      %s25 = sadd.s32 %s18, 1
      %s26 = ssub.s32 %s18, %s25
      %p27 = scmp.eq.s32.totalorder %s26, 0
      %s29 = sadd.s32 %s28, 1
      %s30 = scalar_select %p27, %s28, %s29
      %p33 = pneg %p27
      %p34 = scmp.eq.s32.totalorder %s18, 1
      %p35 = por %p33, %p34
      %p36 = scmp.ne.s32.totalorder %s28, %s31
      %p37 = scmp.eq.s32.totalorder %s18, 0
      %p38 = por %p36, %p37
      %p39 = scmp.ne.s32.totalorder %s28, %s31
      %p40 = scmp.eq.s32.totalorder %s23, 1
      %p41 = por %p39, %p40
      %p42 = scmp.ne.s32.totalorder %s31, %s32
      %p43 = scmp.eq.s32.totalorder %s23, 0
      %p44 = por %p42, %p43
      %p45 = scmp.ne.s32.totalorder %s31, %s32
      %p46 = scmp.eq.s32.totalorder %s24, 1
      %p47 = por %p45, %p46
      %p49 = scmp.ne.s32.totalorder %s32, %s48
      %p50 = scmp.eq.s32.totalorder %s24, 0
      %p51 = por %p49, %p50
      %s53 = sadd.s32 %s52, 1
      %p56 = scmp.eq.s32.totalorder %s18, 1
      %p57 = scmp.ne.s32.totalorder %s52, %s54
      %p58 = scmp.eq.s32.totalorder %s18, 0
      %p59 = por %p57, %p58
      %p60 = scmp.ne.s32.totalorder %s52, %s54
      %p61 = scmp.eq.s32.totalorder %s23, 1
      %p62 = por %p60, %p61
      %p63 = scmp.ne.s32.totalorder %s54, %s55
      %p64 = scmp.eq.s32.totalorder %s23, 0
      %p65 = por %p63, %p64
      %p66 = scmp.ne.s32.totalorder %s54, %s55
      %p67 = scmp.eq.s32.totalorder %s24, 1
      %p68 = por %p66, %p67
      %p70 = scmp.ne.s32.totalorder %s55, %s69
      %p71 = scmp.eq.s32.totalorder %s24, 0
      %p72 = por %p70, %p71
      %s74 = sadd.s32 %s73, 1
      %p77 = scmp.eq.s32.totalorder %s18, 1
      %p78 = scmp.ne.s32.totalorder %s73, %s75
      %p79 = scmp.eq.s32.totalorder %s18, 0
      %p80 = por %p78, %p79
      %p81 = scmp.ne.s32.totalorder %s73, %s75
      %p82 = scmp.eq.s32.totalorder %s23, 1
      %p83 = por %p81, %p82
      %p84 = scmp.ne.s32.totalorder %s75, %s76
      %p85 = scmp.eq.s32.totalorder %s23, 0
      %p86 = por %p84, %p85
      %p87 = scmp.ne.s32.totalorder %s75, %s76
      %p88 = scmp.eq.s32.totalorder %s24, 1
      %p89 = por %p87, %p88
      %p91 = scmp.ne.s32.totalorder %s76, %s90
      %p92 = scmp.eq.s32.totalorder %s24, 0
      %p93 = por %p91, %p92
      %s95 = sadd.s32 %s94, 1
      %p98 = scmp.eq.s32.totalorder %s18, 1
      %p99 = scmp.ne.s32.totalorder %s94, %s96
      %p100 = scmp.eq.s32.totalorder %s18, 0
      %p101 = por %p99, %p100
      %p102 = scmp.ne.s32.totalorder %s94, %s96
      %p103 = scmp.eq.s32.totalorder %s23, 1
      %p104 = por %p102, %p103
      %p105 = scmp.ne.s32.totalorder %s96, %s97
      %p106 = scmp.eq.s32.totalorder %s23, 0
      %p107 = por %p105, %p106
      %p108 = scmp.ne.s32.totalorder %s96, %s97
      %p109 = scmp.eq.s32.totalorder %s24, 1
      %p110 = por %p108, %p109
      %p112 = scmp.ne.s32.totalorder %s97, %s111
      %p113 = scmp.eq.s32.totalorder %s24, 0
      %p114 = por %p112, %p113
      %s115 = ssub.s32 %s18, %s25
      %p116 = scmp.eq.s32.totalorder %s115, 0
      %s118 = sadd.s32 %s117, 1
      %s119 = scalar_select %p116, %s117, %s118
      %p122 = pneg %p116
      %p123 = scmp.eq.s32.totalorder %s18, 1
      %p124 = por %p122, %p123
      %p125 = scmp.ne.s32.totalorder %s117, %s120
      %p126 = scmp.eq.s32.totalorder %s18, 0
      %p127 = por %p125, %p126
      %p128 = scmp.ne.s32.totalorder %s117, %s120
      %p129 = scmp.eq.s32.totalorder %s23, 1
      %p130 = por %p128, %p129
      %p131 = scmp.ne.s32.totalorder %s120, %s121
      %p132 = scmp.eq.s32.totalorder %s23, 0
      %p133 = por %p131, %p132
      %p134 = scmp.ne.s32.totalorder %s120, %s121
      %p135 = scmp.eq.s32.totalorder %s24, 1
      %p136 = por %p134, %p135
      %p138 = scmp.ne.s32.totalorder %s121, %s137
      %p139 = scmp.eq.s32.totalorder %s24, 0
      %p140 = por %p138, %p139
      %p141 = scmp.le.s32.totalorder 1, %s18
      %p142 = scmp.lt.s32.totalorder %s18, 3
      %p143 = pnand %p141, %p142
      %p144 = pneg %p143
      // Predicated region
      $region9: #{tpu_custom_call.1} parent=5 // pred_check
        _
      $region10: #{tpu_custom_call.1} parent=5 // pred_check_branch
        %146 = sbr.rel (%p143) target = $region12
      $region11: #{tpu_custom_call.1} parent=5 // pred_region
        %s147 = ssub.s32 %s18, 1
        // Predicated region
        $region13: #{tpu_custom_call.1} parent=11 // pred_check
          %p148 = pneg %p65
        $region14: #{tpu_custom_call.1} parent=11 // pred_check_branch
          %150 = sbr.rel (%p148) target = $region16
        $region15: #{tpu_custom_call.1} parent=11 // pred_region
          %s152 = ssub.s32 512, 512
          %153 = vsyncadd [#allocation7], %s152
          %s154 = sshll.u32 [#allocation6], 4
          %s155 = int_to_ptr.vmem [resolvable:$true] %s154
          %160 = dma.hbm_to_vmem [thread:$0]  %s1, 512, %s155, [#allocation7], 64, 64, 4
        $region16: #{tpu_custom_call.1} parent=11 // pred_fallthru
          _
        // Predicated region
        $region17: #{tpu_custom_call.1} parent=11 // pred_check
          %p161 = pneg %p86
        $region18: #{tpu_custom_call.1} parent=11 // pred_check_branch
          %163 = sbr.rel (%p161) target = $region20
        $region19: #{tpu_custom_call.1} parent=11 // pred_region
          %s165 = ssub.s32 4608, 4608
          %166 = vsyncadd [#allocation7], %s165
          %s167 = sshll.u32 [#allocation8], 4
          %s168 = int_to_ptr.vmem [resolvable:$true] %s167
          %173 = dma.hbm_to_vmem [thread:$0]  %s2, 4608, %s168, [#allocation7], 64, 64, 4
        $region20: #{tpu_custom_call.1} parent=11 // pred_fallthru
          _
        // Predicated region
        $region21: #{tpu_custom_call.1} parent=11 // pred_check
          %p174 = pneg %p107
        $region22: #{tpu_custom_call.1} parent=11 // pred_check_branch
          %176 = sbr.rel (%p174) target = $region24
        $region23: #{tpu_custom_call.1} parent=11 // pred_region
          %s178 = ssub.s32 2304, 2304
          %179 = vsyncadd [#allocation10], %s178
          %s180 = sshll.u32 [#allocation9], 4
          %s181 = int_to_ptr.vmem [resolvable:$true] %s180
          %186 = dma.hbm_to_vmem [thread:$0]  %s3, 2304, %s181, [#allocation10], 64, 64, 4
        $region24: #{tpu_custom_call.1} parent=11 // pred_fallthru
          _
      $region12: #{tpu_custom_call.1} parent=5 // pred_fallthru
        _
      %p187 = scmp.lt.s32.totalorder %s18, 2
      // Predicated region
      $region25: #{tpu_custom_call.1} parent=5 // pred_check
        %p188 = pneg %p187
      $region26: #{tpu_custom_call.1} parent=5 // pred_check_branch
        %190 = sbr.rel (%p188) target = $region28
      $region27: #{tpu_custom_call.1} parent=5 // pred_region
        // Predicated region
        $region29: #{tpu_custom_call.1} parent=27 // pred_check
          %p191 = pneg %p38
        $region30: #{tpu_custom_call.1} parent=27 // pred_check_branch
          %193 = sbr.rel (%p191) target = $region32
        $region31: #{tpu_custom_call.1} parent=27 // pred_region
          %s194 = sand.u32 %s28, 1
          %s195 = scalar_lea.sflag [#allocation4], %s194
          %s196 = sand.u32 %s28, 1
          %s197 = smul.addr %s196, 512
          %s198 = scalar_lea.vmem [#allocation3], %s197
          %s199 = smul.u32 2, %s18
          %s201 = ssub.s32 8192, 8192
          %202 = vsyncadd %s195, %s201
          %s203 = smul.addr %s199, 32
          %s204 = smul.addr %s203, 128
          %s205 = scalar_lea.hbm %s0, %s204
          %s206 = sshll.u32 %s198, 4
          %s207 = int_to_ptr.vmem [resolvable:$true] %s206
          %212 = dma.hbm_to_vmem [thread:$0]  %s205, 8192, %s207, %s195, 128, 128, 8
        $region32: #{tpu_custom_call.1} parent=27 // pred_fallthru
          _
      $region28: #{tpu_custom_call.1} parent=5 // pred_fallthru
        _
      %p213 = scmp.le.s32.totalorder 1, %s18
      %p214 = scmp.lt.s32.totalorder %s18, 3
      %p215 = pnand %p213, %p214
      %p216 = pneg %p215
      // Predicated region
      $region33: #{tpu_custom_call.1} parent=5 // pred_check
        _
      $region34: #{tpu_custom_call.1} parent=5 // pred_check_branch
        %218 = sbr.rel (%p215) target = $region36
      $region35: #{tpu_custom_call.1} parent=5 // pred_region
        %s219 = ssub.s32 %s18, 1
        %s220 = sand.u32 %s31, 1
        %s221 = scalar_lea.sflag [#allocation4], %s220
        %s222 = sand.u32 %s31, 1
        %s223 = smul.addr %s222, 512
        %s224 = scalar_lea.vmem [#allocation3], %s223
        // Predicated region
        $region37: #{tpu_custom_call.1} parent=35 // pred_check
          %p225 = pneg %p44
        $region38: #{tpu_custom_call.1} parent=35 // pred_check_branch
          %227 = sbr.rel (%p225) target = $region40
        $region39: #{tpu_custom_call.1} parent=35 // pred_region
          %228 = dma.done %s221, 8192
        $region40: #{tpu_custom_call.1} parent=35 // pred_fallthru
          _
        // Predicated region
        $region41: #{tpu_custom_call.1} parent=35 // pred_check
          %p229 = pneg %p65
        $region42: #{tpu_custom_call.1} parent=35 // pred_check_branch
          %231 = sbr.rel (%p229) target = $region44
        $region43: #{tpu_custom_call.1} parent=35 // pred_region
          %232 = dma.done [#allocation7], 512
        $region44: #{tpu_custom_call.1} parent=35 // pred_fallthru
          _
        // Predicated region
        $region45: #{tpu_custom_call.1} parent=35 // pred_check
          %p233 = pneg %p86
        $region46: #{tpu_custom_call.1} parent=35 // pred_check_branch
          %235 = sbr.rel (%p233) target = $region48
        $region47: #{tpu_custom_call.1} parent=35 // pred_region
          %236 = dma.done [#allocation7], 4608
        $region48: #{tpu_custom_call.1} parent=35 // pred_fallthru
          _
        // Predicated region
        $region49: #{tpu_custom_call.1} parent=35 // pred_check
          %p237 = pneg %p107
        $region50: #{tpu_custom_call.1} parent=35 // pred_check_branch
          %239 = sbr.rel (%p237) target = $region52
        $region51: #{tpu_custom_call.1} parent=35 // pred_region
          %240 = dma.done [#allocation10], 2304
        $region52: #{tpu_custom_call.1} parent=35 // pred_fallthru
          _
        %s241 = sand.u32 %s31, 1
        %s242 = scalar_lea.sflag [#allocation4], %s241
        %s243 = sand.u32 %s31, 1
        %s244 = smul.addr %s243, 512
        %s245 = scalar_lea.vmem [#allocation3], %s244
        %p246 = pneg %p44
        %p247 = pneg %p41
        %p248 = pneg %p65
        %p249 = pneg %p62
        %p250 = pneg %p86
        %p251 = pneg %p83
        %p252 = pneg %p107
        %p253 = pneg %p104
        %p254 = pneg %p133
        %p255 = pneg %p130
        %s256 = sand.u32 %s120, 1
        %s257 = scalar_lea.sflag [#allocation5], %s256
        %s258 = sand.u32 %s120, 1
        %s259 = smul.addr %s258, 512
        %s260 = scalar_lea.vmem [#allocation11], %s259
        %s261 = smul.u32 2, %s23
        %s262 = smul.u32 2, %s23
        %vm264 = vcmask 523264
        %265 = vst.msk [vmem:[#allocation2] sm:$0xff] %vm264, 0.0
        %266 = vst.msk [vmem:[#allocation2 + $0x8] sm:$0xff] %vm264, 0.0
        %vm267 = vcmask 517120
        %268 = vst.msk [vmem:[#allocation2 + $0x10] sm:$0x3] %vm267, 0.0
        %269 = vst.msk [vmem:[#allocation2 + $0x1b0] sm:$0xff] %vm264, 0.0
        %270 = vst.msk [vmem:[#allocation2 + $0x1b8] sm:$0xff] %vm264, 0.0
        %271 = vst.msk [vmem:[#allocation2 + $0x1c0] sm:$0x3] %vm267, 0.0
        %s272 = scalar_lea.vmem [#allocation2], 408
        %273 = vst.msk [vmem:[%s272] sm:$0xff] %vm264, 0.0
        %274 = vst.msk [vmem:[%s272 + $0x8] sm:$0xff] %vm264, 0.0
        %275 = vst.msk [vmem:[%s272 + $0x10] sm:$0x3] %vm267, 0.0
        %276 = vst.msk [vmem:[%s272 + $0x1b0] sm:$0xff] %vm264, 0.0
        %277 = vst.msk [vmem:[%s272 + $0x1b8] sm:$0xff] %vm264, 0.0
        %278 = vst.msk [vmem:[%s272 + $0x1c0] sm:$0x3] %vm267, 0.0
        %s279 = scalar_lea.vmem [#allocation2], 24
        %vm280 = vcmask 516096
        %281 = vst.msk [vmem:[%s279] sm:$0x1] %vm280, 0.0
        %282 = vst.msk [vmem:[%s279 + $0x18] sm:$0x1] %vm280, 0.0
        %283 = vst.msk [vmem:[%s279 + $0x30] sm:$0x1] %vm280, 0.0
        %284 = vst.msk [vmem:[%s279 + $0x48] sm:$0x1] %vm280, 0.0
        %285 = vst.msk [vmem:[%s279 + $0x60] sm:$0x1] %vm280, 0.0
        %286 = vst.msk [vmem:[%s279 + $0x78] sm:$0x1] %vm280, 0.0
        %287 = vst.msk [vmem:[%s279 + $0x90] sm:$0x1] %vm280, 0.0
        %288 = vst.msk [vmem:[%s279 + $0xa8] sm:$0x1] %vm280, 0.0
        %289 = vst.msk [vmem:[%s279 + $0xc0] sm:$0x1] %vm280, 0.0
        %290 = vst.msk [vmem:[%s279 + $0xd8] sm:$0x1] %vm280, 0.0
        %291 = vst.msk [vmem:[%s279 + $0xf0] sm:$0x1] %vm280, 0.0
        %292 = vst.msk [vmem:[%s279 + $0x108] sm:$0x1] %vm280, 0.0
        %293 = vst.msk [vmem:[%s279 + $0x120] sm:$0x1] %vm280, 0.0
        %294 = vst.msk [vmem:[%s279 + $0x138] sm:$0x1] %vm280, 0.0
        %295 = vst.msk [vmem:[%s279 + $0x150] sm:$0x1] %vm280, 0.0
        %296 = vst.msk [vmem:[%s279 + $0x168] sm:$0x1] %vm280, 0.0
        %297 = vst.msk [vmem:[%s279 + $0x1b0] sm:$0x1] %vm280, 0.0
        %298 = vst.msk [vmem:[%s279 + $0x1c8] sm:$0x1] %vm280, 0.0
        %299 = vst.msk [vmem:[%s279 + $0x1e0] sm:$0x1] %vm280, 0.0
        %300 = vst.msk [vmem:[%s279 + $0x1f8] sm:$0x1] %vm280, 0.0
        %301 = vst.msk [vmem:[%s279 + $0x210] sm:$0x1] %vm280, 0.0
        %302 = vst.msk [vmem:[%s279 + $0x228] sm:$0x1] %vm280, 0.0
        %303 = vst.msk [vmem:[%s279 + $0x240] sm:$0x1] %vm280, 0.0
        %304 = vst.msk [vmem:[%s279 + $0x258] sm:$0x1] %vm280, 0.0
        %305 = vst.msk [vmem:[%s279 + $0x270] sm:$0x1] %vm280, 0.0
        %306 = vst.msk [vmem:[%s279 + $0x288] sm:$0x1] %vm280, 0.0
        %307 = vst.msk [vmem:[%s279 + $0x2a0] sm:$0x1] %vm280, 0.0
        %308 = vst.msk [vmem:[%s279 + $0x2b8] sm:$0x1] %vm280, 0.0
        %309 = vst.msk [vmem:[%s279 + $0x2d0] sm:$0x1] %vm280, 0.0
        %310 = vst.msk [vmem:[%s279 + $0x2e8] sm:$0x1] %vm280, 0.0
        %311 = vst.msk [vmem:[%s279 + $0x300] sm:$0x1] %vm280, 0.0
        %312 = vst.msk [vmem:[%s279 + $0x318] sm:$0x1] %vm280, 0.0
        %313 = vst.msk [vmem:[%s279 + $0x11] sm:$0x1] %vm280, 0.0
        %314 = vst.msk [vmem:[%s279 + $0x29] sm:$0x1] %vm280, 0.0
        %315 = vst.msk [vmem:[%s279 + $0x41] sm:$0x1] %vm280, 0.0
        %316 = vst.msk [vmem:[%s279 + $0x59] sm:$0x1] %vm280, 0.0
        %317 = vst.msk [vmem:[%s279 + $0x71] sm:$0x1] %vm280, 0.0
        %318 = vst.msk [vmem:[%s279 + $0x89] sm:$0x1] %vm280, 0.0
        %319 = vst.msk [vmem:[%s279 + $0xa1] sm:$0x1] %vm280, 0.0
        %320 = vst.msk [vmem:[%s279 + $0xb9] sm:$0x1] %vm280, 0.0
        %321 = vst.msk [vmem:[%s279 + $0xd1] sm:$0x1] %vm280, 0.0
        %322 = vst.msk [vmem:[%s279 + $0xe9] sm:$0x1] %vm280, 0.0
        %323 = vst.msk [vmem:[%s279 + $0x101] sm:$0x1] %vm280, 0.0
        %324 = vst.msk [vmem:[%s279 + $0x119] sm:$0x1] %vm280, 0.0
        %325 = vst.msk [vmem:[%s279 + $0x131] sm:$0x1] %vm280, 0.0
        %326 = vst.msk [vmem:[%s279 + $0x149] sm:$0x1] %vm280, 0.0
        %327 = vst.msk [vmem:[%s279 + $0x161] sm:$0x1] %vm280, 0.0
        %328 = vst.msk [vmem:[%s279 + $0x179] sm:$0x1] %vm280, 0.0
        %329 = vst.msk [vmem:[%s279 + $0x1c1] sm:$0x1] %vm280, 0.0
        %330 = vst.msk [vmem:[%s279 + $0x1d9] sm:$0x1] %vm280, 0.0
        %331 = vst.msk [vmem:[%s279 + $0x1f1] sm:$0x1] %vm280, 0.0
        %332 = vst.msk [vmem:[%s279 + $0x209] sm:$0x1] %vm280, 0.0
        %333 = vst.msk [vmem:[%s279 + $0x221] sm:$0x1] %vm280, 0.0
        %334 = vst.msk [vmem:[%s279 + $0x239] sm:$0x1] %vm280, 0.0
        %335 = vst.msk [vmem:[%s279 + $0x251] sm:$0x1] %vm280, 0.0
        %336 = vst.msk [vmem:[%s279 + $0x269] sm:$0x1] %vm280, 0.0
        %337 = vst.msk [vmem:[%s279 + $0x281] sm:$0x1] %vm280, 0.0
        %338 = vst.msk [vmem:[%s279 + $0x299] sm:$0x1] %vm280, 0.0
        %339 = vst.msk [vmem:[%s279 + $0x2b1] sm:$0x1] %vm280, 0.0
        %340 = vst.msk [vmem:[%s279 + $0x2c9] sm:$0x1] %vm280, 0.0
        %341 = vst.msk [vmem:[%s279 + $0x2e1] sm:$0x1] %vm280, 0.0
        %342 = vst.msk [vmem:[%s279 + $0x2f9] sm:$0x1] %vm280, 0.0
        %343 = vst.msk [vmem:[%s279 + $0x311] sm:$0x1] %vm280, 0.0
        %344 = vst.msk [vmem:[%s279 + $0x329] sm:$0x1] %vm280, 0.0
        %v345 = vld [vmem:[%s224] sm:$0xff]
        %v346 = vld [vmem:[%s224 + $0x8] sm:$0xff]
        %v347 = vld [vmem:[%s224 + $0x10] sm:$0xff]
        %v348 = vld [vmem:[%s224 + $0x18] sm:$0xff]
        %v349 = vld [vmem:[%s224 + $0x20] sm:$0xff]
        %v350 = vld [vmem:[%s224 + $0x28] sm:$0xff]
        %v351 = vld [vmem:[%s224 + $0x30] sm:$0xff]
        %v352 = vld [vmem:[%s224 + $0x38] sm:$0xff]
        %v353 = vld [vmem:[%s224 + $0x40] sm:$0xff]
        %v354 = vld [vmem:[%s224 + $0x48] sm:$0xff]
        %v355 = vld [vmem:[%s224 + $0x50] sm:$0xff]
        %v356 = vld [vmem:[%s224 + $0x58] sm:$0xff]
        %v357 = vld [vmem:[%s224 + $0x60] sm:$0xff]
        %v358 = vld [vmem:[%s224 + $0x68] sm:$0xff]
        %v359 = vld [vmem:[%s224 + $0x70] sm:$0xff]
        %v360 = vld [vmem:[%s224 + $0x78] sm:$0xff]
        %v361 = vld [vmem:[%s224 + $0x80] sm:$0xff]
        %v362 = vld [vmem:[%s224 + $0x88] sm:$0xff]
        %v363 = vld [vmem:[%s224 + $0x90] sm:$0xff]
        %v364 = vld [vmem:[%s224 + $0x98] sm:$0xff]
        %v365 = vld [vmem:[%s224 + $0xa0] sm:$0xff]
        %v366 = vld [vmem:[%s224 + $0xa8] sm:$0xff]
        %v367 = vld [vmem:[%s224 + $0xb0] sm:$0xff]
        %v368 = vld [vmem:[%s224 + $0xb8] sm:$0xff]
        %v369 = vld [vmem:[%s224 + $0xc0] sm:$0xff]
        %v370 = vld [vmem:[%s224 + $0xc8] sm:$0xff]
        %v371 = vld [vmem:[%s224 + $0xd0] sm:$0xff]
        %v372 = vld [vmem:[%s224 + $0xd8] sm:$0xff]
        %v373 = vld [vmem:[%s224 + $0xe0] sm:$0xff]
        %v374 = vld [vmem:[%s224 + $0xe8] sm:$0xff]
        %v375 = vld [vmem:[%s224 + $0xf0] sm:$0xff]
        %v376 = vld [vmem:[%s224 + $0xf8] sm:$0xff]
        %v377 = vld [vmem:[%s224 + $0x100] sm:$0xff]
        %v378 = vld [vmem:[%s224 + $0x108] sm:$0xff]
        %v379 = vld [vmem:[%s224 + $0x110] sm:$0xff]
        %v380 = vld [vmem:[%s224 + $0x118] sm:$0xff]
        %v381 = vld [vmem:[%s224 + $0x120] sm:$0xff]
        %v382 = vld [vmem:[%s224 + $0x128] sm:$0xff]
        %v383 = vld [vmem:[%s224 + $0x130] sm:$0xff]
        %v384 = vld [vmem:[%s224 + $0x138] sm:$0xff]
        %v385 = vld [vmem:[%s224 + $0x140] sm:$0xff]
        %v386 = vld [vmem:[%s224 + $0x148] sm:$0xff]
        %v387 = vld [vmem:[%s224 + $0x150] sm:$0xff]
        %v388 = vld [vmem:[%s224 + $0x158] sm:$0xff]
        %v389 = vld [vmem:[%s224 + $0x160] sm:$0xff]
        %v390 = vld [vmem:[%s224 + $0x168] sm:$0xff]
        %v391 = vld [vmem:[%s224 + $0x170] sm:$0xff]
        %v392 = vld [vmem:[%s224 + $0x178] sm:$0xff]
        %v393 = vld [vmem:[%s224 + $0x180] sm:$0xff]
        %v394 = vld [vmem:[%s224 + $0x188] sm:$0xff]
        %v395 = vld [vmem:[%s224 + $0x190] sm:$0xff]
        %v396 = vld [vmem:[%s224 + $0x198] sm:$0xff]
        %v397 = vld [vmem:[%s224 + $0x1a0] sm:$0xff]
        %v398 = vld [vmem:[%s224 + $0x1a8] sm:$0xff]
        %v399 = vld [vmem:[%s224 + $0x1b0] sm:$0xff]
        %v400 = vld [vmem:[%s224 + $0x1b8] sm:$0xff]
        %v401 = vld [vmem:[%s224 + $0x1c0] sm:$0xff]
        %v402 = vld [vmem:[%s224 + $0x1c8] sm:$0xff]
        %v403 = vld [vmem:[%s224 + $0x1d0] sm:$0xff]
        %v404 = vld [vmem:[%s224 + $0x1d8] sm:$0xff]
        %v405 = vld [vmem:[%s224 + $0x1e0] sm:$0xff]
        %v406 = vld [vmem:[%s224 + $0x1e8] sm:$0xff]
        %v407 = vld [vmem:[%s224 + $0x1f0] sm:$0xff]
        %v408 = vld [vmem:[%s224 + $0x1f8] sm:$0xff]
        %v409 = vpack.c.bf16 %v346, %v345
        %v410 = vpack.c.bf16 %v348, %v347
        %v411 = vpack.c.bf16 %v350, %v349
        %v412 = vpack.c.bf16 %v352, %v351
        %v413 = vpack.c.bf16 %v354, %v353
        %v414 = vpack.c.bf16 %v356, %v355
        %v415 = vpack.c.bf16 %v358, %v357
        %v416 = vpack.c.bf16 %v360, %v359
        %v417 = vpack.c.bf16 %v362, %v361
        %v418 = vpack.c.bf16 %v364, %v363
        %v419 = vpack.c.bf16 %v366, %v365
        %v420 = vpack.c.bf16 %v368, %v367
        %v421 = vpack.c.bf16 %v370, %v369
        %v422 = vpack.c.bf16 %v372, %v371
        %v423 = vpack.c.bf16 %v374, %v373
        %v424 = vpack.c.bf16 %v376, %v375
        %v425 = vpack.c.bf16 %v378, %v377
        %v426 = vpack.c.bf16 %v380, %v379
        %v427 = vpack.c.bf16 %v382, %v381
        %v428 = vpack.c.bf16 %v384, %v383
        %v429 = vpack.c.bf16 %v386, %v385
        %v430 = vpack.c.bf16 %v388, %v387
        %v431 = vpack.c.bf16 %v390, %v389
        %v432 = vpack.c.bf16 %v392, %v391
        %v433 = vpack.c.bf16 %v394, %v393
        %v434 = vpack.c.bf16 %v396, %v395
        %v435 = vpack.c.bf16 %v398, %v397
        %v436 = vpack.c.bf16 %v400, %v399
        %v437 = vpack.c.bf16 %v402, %v401
        %v438 = vpack.c.bf16 %v404, %v403
        %v439 = vpack.c.bf16 %v406, %v405
        %v440 = vpack.c.bf16 %v408, %v407
        %v441 = vld [vmem:[#allocation6] sm:$0xf]
        %v442 = vld [vmem:[#allocation6 + $0x4] sm:$0xf]
        %v443 = vld [vmem:[#allocation6 + $0x8] sm:$0xf]
        %v444 = vld [vmem:[#allocation6 + $0xc] sm:$0xf]
        %v445 = vld [vmem:[#allocation6 + $0x10] sm:$0xf]
        %v446 = vld [vmem:[#allocation6 + $0x14] sm:$0xf]
        %v447 = vld [vmem:[#allocation6 + $0x18] sm:$0xf]
        %v448 = vld [vmem:[#allocation6 + $0x1c] sm:$0xf]
        %v457 = vunpack.c.l.b16 %v441
        %v458 = vunpack.c.l.b16 %v442
        %v459 = vunpack.c.l.b16 %v443
        %v460 = vunpack.c.l.b16 %v444
        %v461 = vunpack.c.l.b16 %v445
        %v462 = vunpack.c.l.b16 %v446
        %v463 = vunpack.c.l.b16 %v447
        %v464 = vunpack.c.l.b16 %v448
        %v465 = vpack.c.b16 %v458, %v457
        %v466 = vpack.c.b16 %v460, %v459
        %v467 = vpack.c.b16 %v462, %v461
        %v468 = vpack.c.b16 %v464, %v463
        %v474 = vsel %vm264, %v409, 0
        %v477 = vsel %vm264, %v410, 0
        %v480 = vsel %vm264, %v411, 0
        %v483 = vsel %vm264, %v412, 0
        %v486 = vsel %vm264, %v413, 0
        %v489 = vsel %vm264, %v414, 0
        %v492 = vsel %vm264, %v415, 0
        %v495 = vsel %vm264, %v416, 0
        %v498 = vsel %vm264, %v417, 0
        %v501 = vsel %vm264, %v418, 0
        %v504 = vsel %vm264, %v419, 0
        %v507 = vsel %vm264, %v420, 0
        %v510 = vsel %vm264, %v421, 0
        %v513 = vsel %vm264, %v422, 0
        %v516 = vsel %vm264, %v423, 0
        %v519 = vsel %vm264, %v424, 0
        %v522 = vsel %vm264, %v425, 0
        %v525 = vsel %vm264, %v426, 0
        %v528 = vsel %vm264, %v427, 0
        %v531 = vsel %vm264, %v428, 0
        %v534 = vsel %vm264, %v429, 0
        %v537 = vsel %vm264, %v430, 0
        %v540 = vsel %vm264, %v431, 0
        %v543 = vsel %vm264, %v432, 0
        %v546 = vsel %vm264, %v433, 0
        %v549 = vsel %vm264, %v434, 0
        %v552 = vsel %vm264, %v435, 0
        %v555 = vsel %vm264, %v436, 0
        %v558 = vsel %vm264, %v437, 0
        %v561 = vsel %vm264, %v438, 0
        %v564 = vsel %vm264, %v439, 0
        %v567 = vsel %vm264, %v440, 0
        %569 = vmatprep.subr.bf16.mxu0 0
        %570 = vmatpush1.bf16.msra.mxu0 0
        %571 = vmatprep.subr.bf16.mxu0 0
        %572 = vmatpush1.bf16.msra.mxu0 0
        %573 = vmatprep.subr.bf16.mxu0 0
        %574 = vmatpush1.bf16.msra.mxu0 0
        %575 = vmatprep.subr.bf16.mxu0 0
        %576 = vmatpush1.bf16.msra.mxu0 0
        %577 = vmatprep.subr.bf16.mxu0 0
        %578 = vmatpush1.bf16.msra.mxu0 %v468
        %579 = vmatprep.subr.bf16.mxu0 0
        %580 = vmatpush1.bf16.msra.mxu0 %v467
        %581 = vmatprep.subr.bf16.mxu0 0
        %582 = vmatpush1.bf16.msra.mxu0 %v466
        %583 = vmatprep.subr.bf16.mxu0 0
        %584 = vmatpush1.bf16.msra.mxu0 %v465
        %585 = vmatprep.subr.bf16.mxu0 0
        %586 = vmatpush2.bf16.msra.mxu0 0
        %587 = vmatprep.subr.bf16.mxu0 0
        %588 = vmatpush2.bf16.msra.mxu0 0
        %589 = vmatprep.subr.bf16.mxu0 0
        %590 = vmatpush2.bf16.msra.mxu0 0
        %591 = vmatprep.subr.bf16.mxu0 0
        %592 = vmatpush2.bf16.msra.mxu0 0
        %593 = vmatprep.subr.bf16.mxu0 0
        %594 = vmatpush2.bf16.msra.mxu0 0
        %595 = vmatprep.subr.bf16.mxu0 0
        %596 = vmatpush2.bf16.msra.mxu0 0
        %597 = vmatprep.subr.bf16.mxu0 0
        %598 = vmatpush2.bf16.msra.mxu0 0
        %599 = vmatprep.subr.bf16.mxu0 0
        %600 = vmatpush2.bf16.msra.mxu0 0
        %601 = vmatprep.mubr.bf16.mxu0 0
        %602 = vmatmul.mubr.bf16.gmra.mxu0 %v474
        %v603 = vpop.f32.mrf.mxu0
        %v604 = vadd.f32 0.0, %v603
        %v605 = vpop.f32.mrf.mxu0
        %v606 = vpop.f32.mrf.mxu0
        %v607 = vadd.f32 0.0, %v606
        %v608 = vpop.f32.mrf.mxu0
        %609 = vmatprep.mubr.bf16.mxu0 0
        %610 = vmatmul.mubr.bf16.gmra.mxu0 %v477
        %v611 = vpop.f32.mrf.mxu0
        %v612 = vadd.f32 0.0, %v611
        %v613 = vpop.f32.mrf.mxu0
        %v614 = vpop.f32.mrf.mxu0
        %v615 = vadd.f32 0.0, %v614
        %v616 = vpop.f32.mrf.mxu0
        %617 = vmatprep.mubr.bf16.mxu0 0
        %618 = vmatmul.mubr.bf16.gmra.mxu0 %v480
        %v619 = vpop.f32.mrf.mxu0
        %v620 = vadd.f32 0.0, %v619
        %v621 = vpop.f32.mrf.mxu0
        %v622 = vpop.f32.mrf.mxu0
        %v623 = vadd.f32 0.0, %v622
        %v624 = vpop.f32.mrf.mxu0
        %625 = vmatprep.mubr.bf16.mxu0 0
        %626 = vmatmul.mubr.bf16.gmra.mxu0 %v483
        %v627 = vpop.f32.mrf.mxu0
        %v628 = vadd.f32 0.0, %v627
        %v629 = vpop.f32.mrf.mxu0
        %v630 = vpop.f32.mrf.mxu0
        %v631 = vadd.f32 0.0, %v630
        %v632 = vpop.f32.mrf.mxu0
        %633 = vmatprep.mubr.bf16.mxu0 0
        %634 = vmatmul.mubr.bf16.gmra.mxu0 %v486
        %v635 = vpop.f32.mrf.mxu0
        %v636 = vadd.f32 0.0, %v635
        %v637 = vpop.f32.mrf.mxu0
        %v638 = vpop.f32.mrf.mxu0
        %v639 = vadd.f32 0.0, %v638
        %v640 = vpop.f32.mrf.mxu0
        %641 = vmatprep.mubr.bf16.mxu0 0
        %642 = vmatmul.mubr.bf16.gmra.mxu0 %v489
        %v643 = vpop.f32.mrf.mxu0
        %v644 = vadd.f32 0.0, %v643
        %v645 = vpop.f32.mrf.mxu0
        %v646 = vpop.f32.mrf.mxu0
        %v647 = vadd.f32 0.0, %v646
        %v648 = vpop.f32.mrf.mxu0
        %649 = vmatprep.mubr.bf16.mxu0 0
        %650 = vmatmul.mubr.bf16.gmra.mxu0 %v492
        %v651 = vpop.f32.mrf.mxu0
        %v652 = vadd.f32 0.0, %v651
        %v653 = vpop.f32.mrf.mxu0
        %v654 = vpop.f32.mrf.mxu0
        %v655 = vadd.f32 0.0, %v654
        %v656 = vpop.f32.mrf.mxu0
        %657 = vmatprep.mubr.bf16.mxu0 0
        %658 = vmatmul.mubr.bf16.gmra.mxu0 %v495
        %v659 = vpop.f32.mrf.mxu0
        %v660 = vadd.f32 0.0, %v659
        %v661 = vpop.f32.mrf.mxu0
        %v662 = vpop.f32.mrf.mxu0
        %v663 = vadd.f32 0.0, %v662
        %v664 = vpop.f32.mrf.mxu0
        %665 = vmatprep.mubr.bf16.mxu0 0
        %666 = vmatmul.mubr.bf16.gmra.mxu0 %v498
        %v667 = vpop.f32.mrf.mxu0
        %v668 = vadd.f32 0.0, %v667
        %v669 = vpop.f32.mrf.mxu0
        %v670 = vpop.f32.mrf.mxu0
        %v671 = vadd.f32 0.0, %v670
        %v672 = vpop.f32.mrf.mxu0
        %673 = vmatprep.mubr.bf16.mxu0 0
        %674 = vmatmul.mubr.bf16.gmra.mxu0 %v501
        %v675 = vpop.f32.mrf.mxu0
        %v676 = vadd.f32 0.0, %v675
        %v677 = vpop.f32.mrf.mxu0
        %v678 = vpop.f32.mrf.mxu0
        %v679 = vadd.f32 0.0, %v678
        %v680 = vpop.f32.mrf.mxu0
        %681 = vmatprep.mubr.bf16.mxu0 0
        %682 = vmatmul.mubr.bf16.gmra.mxu0 %v504
        %v683 = vpop.f32.mrf.mxu0
        %v684 = vadd.f32 0.0, %v683
        %v685 = vpop.f32.mrf.mxu0
        %v686 = vpop.f32.mrf.mxu0
        %v687 = vadd.f32 0.0, %v686
        %v688 = vpop.f32.mrf.mxu0
        %689 = vmatprep.mubr.bf16.mxu0 0
        %690 = vmatmul.mubr.bf16.gmra.mxu0 %v507
        %v691 = vpop.f32.mrf.mxu0
        %v692 = vadd.f32 0.0, %v691
        %v693 = vpop.f32.mrf.mxu0
        %v694 = vpop.f32.mrf.mxu0
        %v695 = vadd.f32 0.0, %v694
        %v696 = vpop.f32.mrf.mxu0
        %697 = vmatprep.mubr.bf16.mxu0 0
        %698 = vmatmul.mubr.bf16.gmra.mxu0 %v510
        %v699 = vpop.f32.mrf.mxu0
        %v700 = vadd.f32 0.0, %v699
        %v701 = vpop.f32.mrf.mxu0
        %v702 = vpop.f32.mrf.mxu0
        %v703 = vadd.f32 0.0, %v702
        %v704 = vpop.f32.mrf.mxu0
        %705 = vmatprep.mubr.bf16.mxu0 0
        %706 = vmatmul.mubr.bf16.gmra.mxu0 %v513
        %v707 = vpop.f32.mrf.mxu0
        %v708 = vadd.f32 0.0, %v707
        %v709 = vpop.f32.mrf.mxu0
        %v710 = vpop.f32.mrf.mxu0
        %v711 = vadd.f32 0.0, %v710
        %v712 = vpop.f32.mrf.mxu0
        %713 = vmatprep.mubr.bf16.mxu0 0
        %714 = vmatmul.mubr.bf16.gmra.mxu0 %v516
        %v715 = vpop.f32.mrf.mxu0
        %v716 = vadd.f32 0.0, %v715
        %v717 = vpop.f32.mrf.mxu0
        %v718 = vpop.f32.mrf.mxu0
        %v719 = vadd.f32 0.0, %v718
        %v720 = vpop.f32.mrf.mxu0
        %721 = vmatprep.mubr.bf16.mxu0 0
        %722 = vmatmul.mubr.bf16.gmra.mxu0 %v519
        %v723 = vpop.f32.mrf.mxu0
        %v724 = vadd.f32 0.0, %v723
        %v725 = vpop.f32.mrf.mxu0
        %v726 = vpop.f32.mrf.mxu0
        %v727 = vadd.f32 0.0, %v726
        %v728 = vpop.f32.mrf.mxu0
        %729 = vmatprep.mubr.bf16.mxu0 0
        %730 = vmatmul.mubr.bf16.gmra.mxu0 %v522
        %v731 = vpop.f32.mrf.mxu0
        %v732 = vadd.f32 0.0, %v731
        %v733 = vpop.f32.mrf.mxu0
        %v734 = vpop.f32.mrf.mxu0
        %v735 = vadd.f32 0.0, %v734
        %v736 = vpop.f32.mrf.mxu0
        %737 = vmatprep.mubr.bf16.mxu0 0
        %738 = vmatmul.mubr.bf16.gmra.mxu0 %v525
        %v739 = vpop.f32.mrf.mxu0
        %v740 = vadd.f32 0.0, %v739
        %v741 = vpop.f32.mrf.mxu0
        %v742 = vpop.f32.mrf.mxu0
        %v743 = vadd.f32 0.0, %v742
        %v744 = vpop.f32.mrf.mxu0
        %745 = vmatprep.mubr.bf16.mxu0 0
        %746 = vmatmul.mubr.bf16.gmra.mxu0 %v528
        %v747 = vpop.f32.mrf.mxu0
        %v748 = vadd.f32 0.0, %v747
        %v749 = vpop.f32.mrf.mxu0
        %v750 = vpop.f32.mrf.mxu0
        %v751 = vadd.f32 0.0, %v750
        %v752 = vpop.f32.mrf.mxu0
        %753 = vmatprep.mubr.bf16.mxu0 0
        %754 = vmatmul.mubr.bf16.gmra.mxu0 %v531
        %v755 = vpop.f32.mrf.mxu0
        %v756 = vadd.f32 0.0, %v755
        %v757 = vpop.f32.mrf.mxu0
        %v758 = vpop.f32.mrf.mxu0
        %v759 = vadd.f32 0.0, %v758
        %v760 = vpop.f32.mrf.mxu0
        %761 = vmatprep.mubr.bf16.mxu0 0
        %762 = vmatmul.mubr.bf16.gmra.mxu0 %v534
        %v763 = vpop.f32.mrf.mxu0
        %v764 = vadd.f32 0.0, %v763
        %v765 = vpop.f32.mrf.mxu0
        %v766 = vpop.f32.mrf.mxu0
        %v767 = vadd.f32 0.0, %v766
        %v768 = vpop.f32.mrf.mxu0
        %769 = vmatprep.mubr.bf16.mxu0 0
        %770 = vmatmul.mubr.bf16.gmra.mxu0 %v537
        %v771 = vpop.f32.mrf.mxu0
        %v772 = vadd.f32 0.0, %v771
        %v773 = vpop.f32.mrf.mxu0
        %v774 = vpop.f32.mrf.mxu0
        %v775 = vadd.f32 0.0, %v774
        %v776 = vpop.f32.mrf.mxu0
        %777 = vmatprep.mubr.bf16.mxu0 0
        %778 = vmatmul.mubr.bf16.gmra.mxu0 %v540
        %v779 = vpop.f32.mrf.mxu0
        %v780 = vadd.f32 0.0, %v779
        %v781 = vpop.f32.mrf.mxu0
        %v782 = vpop.f32.mrf.mxu0
        %v783 = vadd.f32 0.0, %v782
        %v784 = vpop.f32.mrf.mxu0
        %785 = vmatprep.mubr.bf16.mxu0 0
        %786 = vmatmul.mubr.bf16.gmra.mxu0 %v543
        %v787 = vpop.f32.mrf.mxu0
        %v788 = vadd.f32 0.0, %v787
        %v789 = vpop.f32.mrf.mxu0
        %v790 = vpop.f32.mrf.mxu0
        %v791 = vadd.f32 0.0, %v790
        %v792 = vpop.f32.mrf.mxu0
        %793 = vmatprep.mubr.bf16.mxu0 0
        %794 = vmatmul.mubr.bf16.gmra.mxu0 %v546
        %v795 = vpop.f32.mrf.mxu0
        %v796 = vadd.f32 0.0, %v795
        %v797 = vpop.f32.mrf.mxu0
        %v798 = vpop.f32.mrf.mxu0
        %v799 = vadd.f32 0.0, %v798
        %v800 = vpop.f32.mrf.mxu0
        %801 = vmatprep.mubr.bf16.mxu0 0
        %802 = vmatmul.mubr.bf16.gmra.mxu0 %v549
        %v803 = vpop.f32.mrf.mxu0
        %v804 = vadd.f32 0.0, %v803
        %v805 = vpop.f32.mrf.mxu0
        %v806 = vpop.f32.mrf.mxu0
        %v807 = vadd.f32 0.0, %v806
        %v808 = vpop.f32.mrf.mxu0
        %809 = vmatprep.mubr.bf16.mxu0 0
        %810 = vmatmul.mubr.bf16.gmra.mxu0 %v552
        %v811 = vpop.f32.mrf.mxu0
        %v812 = vadd.f32 0.0, %v811
        %v813 = vpop.f32.mrf.mxu0
        %v814 = vpop.f32.mrf.mxu0
        %v815 = vadd.f32 0.0, %v814
        %v816 = vpop.f32.mrf.mxu0
        %817 = vmatprep.mubr.bf16.mxu0 0
        %818 = vmatmul.mubr.bf16.gmra.mxu0 %v555
        %v819 = vpop.f32.mrf.mxu0
        %v820 = vadd.f32 0.0, %v819
        %v821 = vpop.f32.mrf.mxu0
        %v822 = vpop.f32.mrf.mxu0
        %v823 = vadd.f32 0.0, %v822
        %v824 = vpop.f32.mrf.mxu0
        %825 = vmatprep.mubr.bf16.mxu0 0
        %826 = vmatmul.mubr.bf16.gmra.mxu0 %v558
        %v827 = vpop.f32.mrf.mxu0
        %v828 = vadd.f32 0.0, %v827
        %v829 = vpop.f32.mrf.mxu0
        %v830 = vpop.f32.mrf.mxu0
        %v831 = vadd.f32 0.0, %v830
        %v832 = vpop.f32.mrf.mxu0
        %833 = vmatprep.mubr.bf16.mxu0 0
        %834 = vmatmul.mubr.bf16.gmra.mxu0 %v561
        %v835 = vpop.f32.mrf.mxu0
        %v836 = vadd.f32 0.0, %v835
        %v837 = vpop.f32.mrf.mxu0
        %v838 = vpop.f32.mrf.mxu0
        %v839 = vadd.f32 0.0, %v838
        %v840 = vpop.f32.mrf.mxu0
        %841 = vmatprep.mubr.bf16.mxu0 0
        %842 = vmatmul.mubr.bf16.gmra.mxu0 %v564
        %v843 = vpop.f32.mrf.mxu0
        %v844 = vadd.f32 0.0, %v843
        %v845 = vpop.f32.mrf.mxu0
        %v846 = vpop.f32.mrf.mxu0
        %v847 = vadd.f32 0.0, %v846
        %v848 = vpop.f32.mrf.mxu0
        %849 = vmatprep.mubr.bf16.mxu0 0
        %850 = vmatmul.mubr.bf16.gmra.mxu0 %v567
        %v851 = vpop.f32.mrf.mxu0
        %v852 = vadd.f32 0.0, %v851
        %v853 = vpop.f32.mrf.mxu0
        %v854 = vpop.f32.mrf.mxu0
        %v855 = vadd.f32 0.0, %v854
        %v856 = vpop.f32.mrf.mxu0
        %857 = vdwg.mxu0
        %v858 = vmul.f32 %v604, 0.2
        %v859 = vmul.f32 %v607, 0.2
        %v860 = vmul.f32 %v612, 0.2
        %v861 = vmul.f32 %v615, 0.2
        %v862 = vmul.f32 %v620, 0.2
        %v863 = vmul.f32 %v623, 0.2
        %v864 = vmul.f32 %v628, 0.2
        %v865 = vmul.f32 %v631, 0.2
        %v866 = vmul.f32 %v636, 0.2
        %v867 = vmul.f32 %v639, 0.2
        %v868 = vmul.f32 %v644, 0.2
        %v869 = vmul.f32 %v647, 0.2
        %v870 = vmul.f32 %v652, 0.2
        %v871 = vmul.f32 %v655, 0.2
        %v872 = vmul.f32 %v660, 0.2
        %v873 = vmul.f32 %v663, 0.2
        %v874 = vmul.f32 %v668, 0.2
        %v875 = vmul.f32 %v671, 0.2
        %v876 = vmul.f32 %v676, 0.2
        %v877 = vmul.f32 %v679, 0.2
        %v878 = vmul.f32 %v684, 0.2
        %v879 = vmul.f32 %v687, 0.2
        %v880 = vmul.f32 %v692, 0.2
        %v881 = vmul.f32 %v695, 0.2
        %v882 = vmul.f32 %v700, 0.2
        %v883 = vmul.f32 %v703, 0.2
        %v884 = vmul.f32 %v708, 0.2
        %v885 = vmul.f32 %v711, 0.2
        %v886 = vmul.f32 %v716, 0.2
        %v887 = vmul.f32 %v719, 0.2
        %v888 = vmul.f32 %v724, 0.2
        %v889 = vmul.f32 %v727, 0.2
        %v890 = vmul.f32 %v732, 0.2
        %v891 = vmul.f32 %v735, 0.2
        %v892 = vmul.f32 %v740, 0.2
        %v893 = vmul.f32 %v743, 0.2
        %v894 = vmul.f32 %v748, 0.2
        %v895 = vmul.f32 %v751, 0.2
        %v896 = vmul.f32 %v756, 0.2
        %v897 = vmul.f32 %v759, 0.2
        %v898 = vmul.f32 %v764, 0.2
        %v899 = vmul.f32 %v767, 0.2
        %v900 = vmul.f32 %v772, 0.2
        %v901 = vmul.f32 %v775, 0.2
        %v902 = vmul.f32 %v780, 0.2
        %v903 = vmul.f32 %v783, 0.2
        %v904 = vmul.f32 %v788, 0.2
        %v905 = vmul.f32 %v791, 0.2
        %v906 = vmul.f32 %v796, 0.2
        %v907 = vmul.f32 %v799, 0.2
        %v908 = vmul.f32 %v804, 0.2
        %v909 = vmul.f32 %v807, 0.2
        %v910 = vmul.f32 %v812, 0.2
        %v911 = vmul.f32 %v815, 0.2
        %v912 = vmul.f32 %v820, 0.2
        %v913 = vmul.f32 %v823, 0.2
        %v914 = vmul.f32 %v828, 0.2
        %v915 = vmul.f32 %v831, 0.2
        %v916 = vmul.f32 %v836, 0.2
        %v917 = vmul.f32 %v839, 0.2
        %v918 = vmul.f32 %v844, 0.2
        %v919 = vmul.f32 %v847, 0.2
        %v920 = vmul.f32 %v852, 0.2
        %v921 = vmul.f32 %v855, 0.2
        %v922 = vmax.f32 %v604, %v858
        %v923 = vmax.f32 %v607, %v859
        %v924 = vmax.f32 %v612, %v860
        %v925 = vmax.f32 %v615, %v861
        %v926 = vmax.f32 %v620, %v862
        %v927 = vmax.f32 %v623, %v863
        %v928 = vmax.f32 %v628, %v864
        %v929 = vmax.f32 %v631, %v865
        %v930 = vmax.f32 %v636, %v866
        %v931 = vmax.f32 %v639, %v867
        %v932 = vmax.f32 %v644, %v868
        %v933 = vmax.f32 %v647, %v869
        %v934 = vmax.f32 %v652, %v870
        %v935 = vmax.f32 %v655, %v871
        %v936 = vmax.f32 %v660, %v872
        %v937 = vmax.f32 %v663, %v873
        %v938 = vmax.f32 %v668, %v874
        %v939 = vmax.f32 %v671, %v875
        %v940 = vmax.f32 %v676, %v876
        %v941 = vmax.f32 %v679, %v877
        %v942 = vmax.f32 %v684, %v878
        %v943 = vmax.f32 %v687, %v879
        %v944 = vmax.f32 %v692, %v880
        %v945 = vmax.f32 %v695, %v881
        %v946 = vmax.f32 %v700, %v882
        %v947 = vmax.f32 %v703, %v883
        %v948 = vmax.f32 %v708, %v884
        %v949 = vmax.f32 %v711, %v885
        %v950 = vmax.f32 %v716, %v886
        %v951 = vmax.f32 %v719, %v887
        %v952 = vmax.f32 %v724, %v888
        %v953 = vmax.f32 %v727, %v889
        %v954 = vmax.f32 %v732, %v890
        %v955 = vmax.f32 %v735, %v891
        %v956 = vmax.f32 %v740, %v892
        %v957 = vmax.f32 %v743, %v893
        %v958 = vmax.f32 %v748, %v894
        %v959 = vmax.f32 %v751, %v895
        %v960 = vmax.f32 %v756, %v896
        %v961 = vmax.f32 %v759, %v897
        %v962 = vmax.f32 %v764, %v898
        %v963 = vmax.f32 %v767, %v899
        %v964 = vmax.f32 %v772, %v900
        %v965 = vmax.f32 %v775, %v901
        %v966 = vmax.f32 %v780, %v902
        %v967 = vmax.f32 %v783, %v903
        %v968 = vmax.f32 %v788, %v904
        %v969 = vmax.f32 %v791, %v905
        %v970 = vmax.f32 %v796, %v906
        %v971 = vmax.f32 %v799, %v907
        %v972 = vmax.f32 %v804, %v908
        %v973 = vmax.f32 %v807, %v909
        %v974 = vmax.f32 %v812, %v910
        %v975 = vmax.f32 %v815, %v911
        %v976 = vmax.f32 %v820, %v912
        %v977 = vmax.f32 %v823, %v913
        %v978 = vmax.f32 %v828, %v914
        %v979 = vmax.f32 %v831, %v915
        %v980 = vmax.f32 %v836, %v916
        %v981 = vmax.f32 %v839, %v917
        %v982 = vmax.f32 %v844, %v918
        %v983 = vmax.f32 %v847, %v919
        %v984 = vmax.f32 %v852, %v920
        %v985 = vmax.f32 %v855, %v921
        %986 = vst.msk [vmem:[%s279 + $0x1] sm:$0xff] %vm264, %v922
        %987 = vst.msk [vmem:[%s279 + $0x9] sm:$0xff] %vm264, %v923
        %988 = vst.msk [vmem:[%s279 + $0x19] sm:$0xff] %vm264, %v924
        %989 = vst.msk [vmem:[%s279 + $0x21] sm:$0xff] %vm264, %v925
        %990 = vst.msk [vmem:[%s279 + $0x31] sm:$0xff] %vm264, %v926
        %991 = vst.msk [vmem:[%s279 + $0x39] sm:$0xff] %vm264, %v927
        %992 = vst.msk [vmem:[%s279 + $0x49] sm:$0xff] %vm264, %v928
        %993 = vst.msk [vmem:[%s279 + $0x51] sm:$0xff] %vm264, %v929
        %994 = vst.msk [vmem:[%s279 + $0x61] sm:$0xff] %vm264, %v930
        %995 = vst.msk [vmem:[%s279 + $0x69] sm:$0xff] %vm264, %v931
        %996 = vst.msk [vmem:[%s279 + $0x79] sm:$0xff] %vm264, %v932
        %997 = vst.msk [vmem:[%s279 + $0x81] sm:$0xff] %vm264, %v933
        %998 = vst.msk [vmem:[%s279 + $0x91] sm:$0xff] %vm264, %v934
        %999 = vst.msk [vmem:[%s279 + $0x99] sm:$0xff] %vm264, %v935
        %1000 = vst.msk [vmem:[%s279 + $0xa9] sm:$0xff] %vm264, %v936
        %1001 = vst.msk [vmem:[%s279 + $0xb1] sm:$0xff] %vm264, %v937
        %1002 = vst.msk [vmem:[%s279 + $0xc1] sm:$0xff] %vm264, %v938
        %1003 = vst.msk [vmem:[%s279 + $0xc9] sm:$0xff] %vm264, %v939
        %1004 = vst.msk [vmem:[%s279 + $0xd9] sm:$0xff] %vm264, %v940
        %1005 = vst.msk [vmem:[%s279 + $0xe1] sm:$0xff] %vm264, %v941
        %1006 = vst.msk [vmem:[%s279 + $0xf1] sm:$0xff] %vm264, %v942
        %1007 = vst.msk [vmem:[%s279 + $0xf9] sm:$0xff] %vm264, %v943
        %1008 = vst.msk [vmem:[%s279 + $0x109] sm:$0xff] %vm264, %v944
        %1009 = vst.msk [vmem:[%s279 + $0x111] sm:$0xff] %vm264, %v945
        %1010 = vst.msk [vmem:[%s279 + $0x121] sm:$0xff] %vm264, %v946
        %1011 = vst.msk [vmem:[%s279 + $0x129] sm:$0xff] %vm264, %v947
        %1012 = vst.msk [vmem:[%s279 + $0x139] sm:$0xff] %vm264, %v948
        %1013 = vst.msk [vmem:[%s279 + $0x141] sm:$0xff] %vm264, %v949
        %1014 = vst.msk [vmem:[%s279 + $0x151] sm:$0xff] %vm264, %v950
        %1015 = vst.msk [vmem:[%s279 + $0x159] sm:$0xff] %vm264, %v951
        %1016 = vst.msk [vmem:[%s279 + $0x169] sm:$0xff] %vm264, %v952
        %1017 = vst.msk [vmem:[%s279 + $0x171] sm:$0xff] %vm264, %v953
        %1018 = vst.msk [vmem:[%s279 + $0x1b1] sm:$0xff] %vm264, %v954
        %1019 = vst.msk [vmem:[%s279 + $0x1b9] sm:$0xff] %vm264, %v955
        %1020 = vst.msk [vmem:[%s279 + $0x1c9] sm:$0xff] %vm264, %v956
        %1021 = vst.msk [vmem:[%s279 + $0x1d1] sm:$0xff] %vm264, %v957
        %1022 = vst.msk [vmem:[%s279 + $0x1e1] sm:$0xff] %vm264, %v958
        %1023 = vst.msk [vmem:[%s279 + $0x1e9] sm:$0xff] %vm264, %v959
        %1024 = vst.msk [vmem:[%s279 + $0x1f9] sm:$0xff] %vm264, %v960
        %1025 = vst.msk [vmem:[%s279 + $0x201] sm:$0xff] %vm264, %v961
        %1026 = vst.msk [vmem:[%s279 + $0x211] sm:$0xff] %vm264, %v962
        %1027 = vst.msk [vmem:[%s279 + $0x219] sm:$0xff] %vm264, %v963
        %1028 = vst.msk [vmem:[%s279 + $0x229] sm:$0xff] %vm264, %v964
        %1029 = vst.msk [vmem:[%s279 + $0x231] sm:$0xff] %vm264, %v965
        %1030 = vst.msk [vmem:[%s279 + $0x241] sm:$0xff] %vm264, %v966
        %1031 = vst.msk [vmem:[%s279 + $0x249] sm:$0xff] %vm264, %v967
        %1032 = vst.msk [vmem:[%s279 + $0x259] sm:$0xff] %vm264, %v968
        %1033 = vst.msk [vmem:[%s279 + $0x261] sm:$0xff] %vm264, %v969
        %1034 = vst.msk [vmem:[%s279 + $0x271] sm:$0xff] %vm264, %v970
        %1035 = vst.msk [vmem:[%s279 + $0x279] sm:$0xff] %vm264, %v971
        %1036 = vst.msk [vmem:[%s279 + $0x289] sm:$0xff] %vm264, %v972
        %1037 = vst.msk [vmem:[%s279 + $0x291] sm:$0xff] %vm264, %v973
        %1038 = vst.msk [vmem:[%s279 + $0x2a1] sm:$0xff] %vm264, %v974
        %1039 = vst.msk [vmem:[%s279 + $0x2a9] sm:$0xff] %vm264, %v975
        %1040 = vst.msk [vmem:[%s279 + $0x2b9] sm:$0xff] %vm264, %v976
        %1041 = vst.msk [vmem:[%s279 + $0x2c1] sm:$0xff] %vm264, %v977
        %1042 = vst.msk [vmem:[%s279 + $0x2d1] sm:$0xff] %vm264, %v978
        %1043 = vst.msk [vmem:[%s279 + $0x2d9] sm:$0xff] %vm264, %v979
        %1044 = vst.msk [vmem:[%s279 + $0x2e9] sm:$0xff] %vm264, %v980
        %1045 = vst.msk [vmem:[%s279 + $0x2f1] sm:$0xff] %vm264, %v981
        %1046 = vst.msk [vmem:[%s279 + $0x301] sm:$0xff] %vm264, %v982
        %1047 = vst.msk [vmem:[%s279 + $0x309] sm:$0xff] %vm264, %v983
        %1048 = vst.msk [vmem:[%s279 + $0x319] sm:$0xff] %vm264, %v984
        %1049 = vst.msk [vmem:[%s279 + $0x321] sm:$0xff] %vm264, %v985
        %v1050 = vld [vmem:[#allocation2] sm:$0xff]
        %v1051 = vld [vmem:[#allocation2 + $0x8] sm:$0xff]
        %v1052 = vld [vmem:[#allocation2 + $0x18] sm:$0xff]
        %v1053 = vld [vmem:[#allocation2 + $0x20] sm:$0xff]
        %v1054 = vld [vmem:[#allocation2 + $0x30] sm:$0xff]
        %v1055 = vld [vmem:[#allocation2 + $0x38] sm:$0xff]
        %v1056 = vld [vmem:[#allocation2 + $0x48] sm:$0xff]
        %v1057 = vld [vmem:[#allocation2 + $0x50] sm:$0xff]
        %v1058 = vld [vmem:[#allocation2 + $0x60] sm:$0xff]
        %v1059 = vld [vmem:[#allocation2 + $0x68] sm:$0xff]
        %v1060 = vld [vmem:[#allocation2 + $0x78] sm:$0xff]
        %v1061 = vld [vmem:[#allocation2 + $0x80] sm:$0xff]
        %v1062 = vld [vmem:[#allocation2 + $0x90] sm:$0xff]
        %v1063 = vld [vmem:[#allocation2 + $0x98] sm:$0xff]
        %v1064 = vld [vmem:[#allocation2 + $0xa8] sm:$0xff]
        %v1065 = vld [vmem:[#allocation2 + $0xb0] sm:$0xff]
        %v1066 = vld [vmem:[#allocation2 + $0xc0] sm:$0xff]
        %v1067 = vld [vmem:[#allocation2 + $0xc8] sm:$0xff]
        %v1068 = vld [vmem:[#allocation2 + $0xd8] sm:$0xff]
        %v1069 = vld [vmem:[#allocation2 + $0xe0] sm:$0xff]
        %v1070 = vld [vmem:[#allocation2 + $0xf0] sm:$0xff]
        %v1071 = vld [vmem:[#allocation2 + $0xf8] sm:$0xff]
        %v1072 = vld [vmem:[#allocation2 + $0x108] sm:$0xff]
        %v1073 = vld [vmem:[#allocation2 + $0x110] sm:$0xff]
        %v1074 = vld [vmem:[#allocation2 + $0x120] sm:$0xff]
        %v1075 = vld [vmem:[#allocation2 + $0x128] sm:$0xff]
        %v1076 = vld [vmem:[#allocation2 + $0x138] sm:$0xff]
        %v1077 = vld [vmem:[#allocation2 + $0x140] sm:$0xff]
        %v1078 = vld [vmem:[#allocation2 + $0x150] sm:$0xff]
        %v1079 = vld [vmem:[#allocation2 + $0x158] sm:$0xff]
        %v1080 = vld [vmem:[#allocation2 + $0x168] sm:$0xff]
        %v1081 = vld [vmem:[#allocation2 + $0x170] sm:$0xff]
        %v1082 = vld [vmem:[#allocation2 + $0x1b0] sm:$0xff]
        %v1083 = vld [vmem:[#allocation2 + $0x1b8] sm:$0xff]
        %v1084 = vld [vmem:[#allocation2 + $0x1c8] sm:$0xff]
        %v1085 = vld [vmem:[#allocation2 + $0x1d0] sm:$0xff]
        %v1086 = vld [vmem:[#allocation2 + $0x1e0] sm:$0xff]
        %v1087 = vld [vmem:[#allocation2 + $0x1e8] sm:$0xff]
        %v1088 = vld [vmem:[#allocation2 + $0x1f8] sm:$0xff]
        %v1089 = vld [vmem:[#allocation2 + $0x200] sm:$0xff]
        %v1090 = vld [vmem:[#allocation2 + $0x210] sm:$0xff]
        %v1091 = vld [vmem:[#allocation2 + $0x218] sm:$0xff]
        %v1092 = vld [vmem:[#allocation2 + $0x228] sm:$0xff]
        %v1093 = vld [vmem:[#allocation2 + $0x230] sm:$0xff]
        %v1094 = vld [vmem:[#allocation2 + $0x240] sm:$0xff]
        %v1095 = vld [vmem:[#allocation2 + $0x248] sm:$0xff]
        %v1096 = vld [vmem:[#allocation2 + $0x258] sm:$0xff]
        %v1097 = vld [vmem:[#allocation2 + $0x260] sm:$0xff]
        %v1098 = vld [vmem:[#allocation2 + $0x270] sm:$0xff]
        %v1099 = vld [vmem:[#allocation2 + $0x278] sm:$0xff]
        %v1100 = vld [vmem:[#allocation2 + $0x288] sm:$0xff]
        %v1101 = vld [vmem:[#allocation2 + $0x290] sm:$0xff]
        %v1102 = vld [vmem:[#allocation2 + $0x2a0] sm:$0xff]
        %v1103 = vld [vmem:[#allocation2 + $0x2a8] sm:$0xff]
        %v1104 = vld [vmem:[#allocation2 + $0x2b8] sm:$0xff]
        %v1105 = vld [vmem:[#allocation2 + $0x2c0] sm:$0xff]
        %v1106 = vld [vmem:[#allocation2 + $0x2d0] sm:$0xff]
        %v1107 = vld [vmem:[#allocation2 + $0x2d8] sm:$0xff]
        %v1108 = vld [vmem:[#allocation2 + $0x2e8] sm:$0xff]
        %v1109 = vld [vmem:[#allocation2 + $0x2f0] sm:$0xff]
        %v1110 = vld [vmem:[#allocation2 + $0x300] sm:$0xff]
        %v1111 = vld [vmem:[#allocation2 + $0x308] sm:$0xff]
        %v1112 = vld [vmem:[#allocation2 + $0x318] sm:$0xff]
        %v1113 = vld [vmem:[#allocation2 + $0x320] sm:$0xff]
        %v1114 = vpack.c.bf16 %v1051, %v1050
        %v1115 = vpack.c.bf16 %v1053, %v1052
        %v1116 = vpack.c.bf16 %v1055, %v1054
        %v1117 = vpack.c.bf16 %v1057, %v1056
        %v1118 = vpack.c.bf16 %v1059, %v1058
        %v1119 = vpack.c.bf16 %v1061, %v1060
        %v1120 = vpack.c.bf16 %v1063, %v1062
        %v1121 = vpack.c.bf16 %v1065, %v1064
        %v1122 = vpack.c.bf16 %v1067, %v1066
        %v1123 = vpack.c.bf16 %v1069, %v1068
        %v1124 = vpack.c.bf16 %v1071, %v1070
        %v1125 = vpack.c.bf16 %v1073, %v1072
        %v1126 = vpack.c.bf16 %v1075, %v1074
        %v1127 = vpack.c.bf16 %v1077, %v1076
        %v1128 = vpack.c.bf16 %v1079, %v1078
        %v1129 = vpack.c.bf16 %v1081, %v1080
        %v1130 = vpack.c.bf16 %v1083, %v1082
        %v1131 = vpack.c.bf16 %v1085, %v1084
        %v1132 = vpack.c.bf16 %v1087, %v1086
        %v1133 = vpack.c.bf16 %v1089, %v1088
        %v1134 = vpack.c.bf16 %v1091, %v1090
        %v1135 = vpack.c.bf16 %v1093, %v1092
        %v1136 = vpack.c.bf16 %v1095, %v1094
        %v1137 = vpack.c.bf16 %v1097, %v1096
        %v1138 = vpack.c.bf16 %v1099, %v1098
        %v1139 = vpack.c.bf16 %v1101, %v1100
        %v1140 = vpack.c.bf16 %v1103, %v1102
        %v1141 = vpack.c.bf16 %v1105, %v1104
        %v1142 = vpack.c.bf16 %v1107, %v1106
        %v1143 = vpack.c.bf16 %v1109, %v1108
        %v1144 = vpack.c.bf16 %v1111, %v1110
        %v1145 = vpack.c.bf16 %v1113, %v1112
        %v1146 = vld [vmem:[#allocation8] sm:$0xf]
        %v1147 = vld [vmem:[#allocation8 + $0x4] sm:$0xf]
        %v1148 = vld [vmem:[#allocation8 + $0x8] sm:$0xf]
        %v1149 = vld [vmem:[#allocation8 + $0xc] sm:$0xf]
        %v1150 = vld [vmem:[#allocation8 + $0x10] sm:$0xf]
        %v1151 = vld [vmem:[#allocation8 + $0x14] sm:$0xf]
        %v1152 = vld [vmem:[#allocation8 + $0x18] sm:$0xf]
        %v1153 = vld [vmem:[#allocation8 + $0x1c] sm:$0xf]
        %v1154 = vld [vmem:[#allocation2 + $0x1] sm:$0xff]
        %v1155 = vld [vmem:[#allocation2 + $0x9] sm:$0xff]
        %v1156 = vld [vmem:[#allocation2 + $0x19] sm:$0xff]
        %v1157 = vld [vmem:[#allocation2 + $0x21] sm:$0xff]
        %v1158 = vld [vmem:[#allocation2 + $0x31] sm:$0xff]
        %v1159 = vld [vmem:[#allocation2 + $0x39] sm:$0xff]
        %v1160 = vld [vmem:[#allocation2 + $0x49] sm:$0xff]
        %v1161 = vld [vmem:[#allocation2 + $0x51] sm:$0xff]
        %v1162 = vld [vmem:[#allocation2 + $0x61] sm:$0xff]
        %v1163 = vld [vmem:[#allocation2 + $0x69] sm:$0xff]
        %v1164 = vld [vmem:[#allocation2 + $0x79] sm:$0xff]
        %v1165 = vld [vmem:[#allocation2 + $0x81] sm:$0xff]
        %v1166 = vld [vmem:[#allocation2 + $0x91] sm:$0xff]
        %v1167 = vld [vmem:[#allocation2 + $0x99] sm:$0xff]
        %v1168 = vld [vmem:[#allocation2 + $0xa9] sm:$0xff]
        %v1169 = vld [vmem:[#allocation2 + $0xb1] sm:$0xff]
        %v1170 = vld [vmem:[#allocation2 + $0xc1] sm:$0xff]
        %v1171 = vld [vmem:[#allocation2 + $0xc9] sm:$0xff]
        %v1172 = vld [vmem:[#allocation2 + $0xd9] sm:$0xff]
        %v1173 = vld [vmem:[#allocation2 + $0xe1] sm:$0xff]
        %v1174 = vld [vmem:[#allocation2 + $0xf1] sm:$0xff]
        %v1175 = vld [vmem:[#allocation2 + $0xf9] sm:$0xff]
        %v1176 = vld [vmem:[#allocation2 + $0x109] sm:$0xff]
        %v1177 = vld [vmem:[#allocation2 + $0x111] sm:$0xff]
        %v1178 = vld [vmem:[#allocation2 + $0x121] sm:$0xff]
        %v1179 = vld [vmem:[#allocation2 + $0x129] sm:$0xff]
        %v1180 = vld [vmem:[#allocation2 + $0x139] sm:$0xff]
        %v1181 = vld [vmem:[#allocation2 + $0x141] sm:$0xff]
        %v1182 = vld [vmem:[#allocation2 + $0x151] sm:$0xff]
        %v1183 = vld [vmem:[#allocation2 + $0x159] sm:$0xff]
        %v1184 = vld [vmem:[#allocation2 + $0x169] sm:$0xff]
        %v1185 = vld [vmem:[#allocation2 + $0x171] sm:$0xff]
        %v1186 = vld [vmem:[#allocation2 + $0x1b1] sm:$0xff]
        %v1187 = vld [vmem:[#allocation2 + $0x1b9] sm:$0xff]
        %v1188 = vld [vmem:[#allocation2 + $0x1c9] sm:$0xff]
        %v1189 = vld [vmem:[#allocation2 + $0x1d1] sm:$0xff]
        %v1190 = vld [vmem:[#allocation2 + $0x1e1] sm:$0xff]
        %v1191 = vld [vmem:[#allocation2 + $0x1e9] sm:$0xff]
        %v1192 = vld [vmem:[#allocation2 + $0x1f9] sm:$0xff]
        %v1193 = vld [vmem:[#allocation2 + $0x201] sm:$0xff]
        %v1194 = vld [vmem:[#allocation2 + $0x211] sm:$0xff]
        %v1195 = vld [vmem:[#allocation2 + $0x219] sm:$0xff]
        %v1196 = vld [vmem:[#allocation2 + $0x229] sm:$0xff]
        %v1197 = vld [vmem:[#allocation2 + $0x231] sm:$0xff]
        %v1198 = vld [vmem:[#allocation2 + $0x241] sm:$0xff]
        %v1199 = vld [vmem:[#allocation2 + $0x249] sm:$0xff]
        %v1200 = vld [vmem:[#allocation2 + $0x259] sm:$0xff]
        %v1201 = vld [vmem:[#allocation2 + $0x261] sm:$0xff]
        %v1202 = vld [vmem:[#allocation2 + $0x271] sm:$0xff]
        %v1203 = vld [vmem:[#allocation2 + $0x279] sm:$0xff]
        %v1204 = vld [vmem:[#allocation2 + $0x289] sm:$0xff]
        %v1205 = vld [vmem:[#allocation2 + $0x291] sm:$0xff]
        %v1206 = vld [vmem:[#allocation2 + $0x2a1] sm:$0xff]
        %v1207 = vld [vmem:[#allocation2 + $0x2a9] sm:$0xff]
        %v1208 = vld [vmem:[#allocation2 + $0x2b9] sm:$0xff]
        %v1209 = vld [vmem:[#allocation2 + $0x2c1] sm:$0xff]
        %v1210 = vld [vmem:[#allocation2 + $0x2d1] sm:$0xff]
        %v1211 = vld [vmem:[#allocation2 + $0x2d9] sm:$0xff]
        %v1212 = vld [vmem:[#allocation2 + $0x2e9] sm:$0xff]
        %v1213 = vld [vmem:[#allocation2 + $0x2f1] sm:$0xff]
        %v1214 = vld [vmem:[#allocation2 + $0x301] sm:$0xff]
        %v1215 = vld [vmem:[#allocation2 + $0x309] sm:$0xff]
        %v1216 = vld [vmem:[#allocation2 + $0x319] sm:$0xff]
        %v1217 = vld [vmem:[#allocation2 + $0x321] sm:$0xff]
        %v1218 = vpack.c.bf16 %v1155, %v1154
        %v1219 = vpack.c.bf16 %v1157, %v1156
        %v1220 = vpack.c.bf16 %v1159, %v1158
        %v1221 = vpack.c.bf16 %v1161, %v1160
        %v1222 = vpack.c.bf16 %v1163, %v1162
        %v1223 = vpack.c.bf16 %v1165, %v1164
        %v1224 = vpack.c.bf16 %v1167, %v1166
        %v1225 = vpack.c.bf16 %v1169, %v1168
        %v1226 = vpack.c.bf16 %v1171, %v1170
        %v1227 = vpack.c.bf16 %v1173, %v1172
        %v1228 = vpack.c.bf16 %v1175, %v1174
        %v1229 = vpack.c.bf16 %v1177, %v1176
        %v1230 = vpack.c.bf16 %v1179, %v1178
        %v1231 = vpack.c.bf16 %v1181, %v1180
        %v1232 = vpack.c.bf16 %v1183, %v1182
        %v1233 = vpack.c.bf16 %v1185, %v1184
        %v1234 = vpack.c.bf16 %v1187, %v1186
        %v1235 = vpack.c.bf16 %v1189, %v1188
        %v1236 = vpack.c.bf16 %v1191, %v1190
        %v1237 = vpack.c.bf16 %v1193, %v1192
        %v1238 = vpack.c.bf16 %v1195, %v1194
        %v1239 = vpack.c.bf16 %v1197, %v1196
        %v1240 = vpack.c.bf16 %v1199, %v1198
        %v1241 = vpack.c.bf16 %v1201, %v1200
        %v1242 = vpack.c.bf16 %v1203, %v1202
        %v1243 = vpack.c.bf16 %v1205, %v1204
        %v1244 = vpack.c.bf16 %v1207, %v1206
        %v1245 = vpack.c.bf16 %v1209, %v1208
        %v1246 = vpack.c.bf16 %v1211, %v1210
        %v1247 = vpack.c.bf16 %v1213, %v1212
        %v1248 = vpack.c.bf16 %v1215, %v1214
        %v1249 = vpack.c.bf16 %v1217, %v1216
        %s1250 = scalar_lea.vmem [#allocation8], 32
        %v1251 = vld [vmem:[%s1250] sm:$0xf]
        %v1252 = vld [vmem:[%s1250 + $0x4] sm:$0xf]
        %v1253 = vld [vmem:[%s1250 + $0x8] sm:$0xf]
        %v1254 = vld [vmem:[%s1250 + $0xc] sm:$0xf]
        %v1255 = vld [vmem:[%s1250 + $0x10] sm:$0xf]
        %v1256 = vld [vmem:[%s1250 + $0x14] sm:$0xf]
        %v1257 = vld [vmem:[%s1250 + $0x18] sm:$0xf]
        %v1258 = vld [vmem:[%s1250 + $0x1c] sm:$0xf]
        %v1267 = vunpack.c.l.b16 %v1251
        %v1268 = vunpack.c.l.b16 %v1252
        %v1269 = vunpack.c.l.b16 %v1253
        %v1270 = vunpack.c.l.b16 %v1254
        %v1271 = vunpack.c.l.b16 %v1255
        %v1272 = vunpack.c.l.b16 %v1256
        %v1273 = vunpack.c.l.b16 %v1257
        %v1274 = vunpack.c.l.b16 %v1258
        %v1275 = vpack.c.b16 %v1268, %v1267
        %v1276 = vpack.c.b16 %v1270, %v1269
        %v1277 = vpack.c.b16 %v1272, %v1271
        %v1278 = vpack.c.b16 %v1274, %v1273
        %v1284 = vsel %vm264, %v1218, 0
        %v1287 = vsel %vm264, %v1219, 0
        %v1290 = vsel %vm264, %v1220, 0
        %v1293 = vsel %vm264, %v1221, 0
        %v1296 = vsel %vm264, %v1222, 0
        %v1299 = vsel %vm264, %v1223, 0
        %v1302 = vsel %vm264, %v1224, 0
        %v1305 = vsel %vm264, %v1225, 0
        %v1308 = vsel %vm264, %v1226, 0
        %v1311 = vsel %vm264, %v1227, 0
        %v1314 = vsel %vm264, %v1228, 0
        %v1317 = vsel %vm264, %v1229, 0
        %v1320 = vsel %vm264, %v1230, 0
        %v1323 = vsel %vm264, %v1231, 0
        %v1326 = vsel %vm264, %v1232, 0
        %v1329 = vsel %vm264, %v1233, 0
        %v1332 = vsel %vm264, %v1234, 0
        %v1335 = vsel %vm264, %v1235, 0
        %v1338 = vsel %vm264, %v1236, 0
        %v1341 = vsel %vm264, %v1237, 0
        %v1344 = vsel %vm264, %v1238, 0
        %v1347 = vsel %vm264, %v1239, 0
        %v1350 = vsel %vm264, %v1240, 0
        %v1353 = vsel %vm264, %v1241, 0
        %v1356 = vsel %vm264, %v1242, 0
        %v1359 = vsel %vm264, %v1243, 0
        %v1362 = vsel %vm264, %v1244, 0
        %v1365 = vsel %vm264, %v1245, 0
        %v1368 = vsel %vm264, %v1246, 0
        %v1371 = vsel %vm264, %v1247, 0
        %v1374 = vsel %vm264, %v1248, 0
        %v1377 = vsel %vm264, %v1249, 0
        %1379 = vmatprep.subr.bf16.mxu0 0
        %1380 = vmatpush1.bf16.msra.mxu0 0
        %1381 = vmatprep.subr.bf16.mxu0 0
        %1382 = vmatpush1.bf16.msra.mxu0 0
        %1383 = vmatprep.subr.bf16.mxu0 0
        %1384 = vmatpush1.bf16.msra.mxu0 0
        %1385 = vmatprep.subr.bf16.mxu0 0
        %1386 = vmatpush1.bf16.msra.mxu0 0
        %1387 = vmatprep.subr.bf16.mxu0 0
        %1388 = vmatpush1.bf16.msra.mxu0 %v1278
        %1389 = vmatprep.subr.bf16.mxu0 0
        %1390 = vmatpush1.bf16.msra.mxu0 %v1277
        %1391 = vmatprep.subr.bf16.mxu0 0
        %1392 = vmatpush1.bf16.msra.mxu0 %v1276
        %1393 = vmatprep.subr.bf16.mxu0 0
        %1394 = vmatpush1.bf16.msra.mxu0 %v1275
        %1395 = vmatprep.subr.bf16.mxu0 0
        %1396 = vmatpush2.bf16.msra.mxu0 0
        %1397 = vmatprep.subr.bf16.mxu0 0
        %1398 = vmatpush2.bf16.msra.mxu0 0
        %1399 = vmatprep.subr.bf16.mxu0 0
        %1400 = vmatpush2.bf16.msra.mxu0 0
        %1401 = vmatprep.subr.bf16.mxu0 0
        %1402 = vmatpush2.bf16.msra.mxu0 0
        %1403 = vmatprep.subr.bf16.mxu0 0
        %1404 = vmatpush2.bf16.msra.mxu0 0
        %1405 = vmatprep.subr.bf16.mxu0 0
        %1406 = vmatpush2.bf16.msra.mxu0 0
        %1407 = vmatprep.subr.bf16.mxu0 0
        %1408 = vmatpush2.bf16.msra.mxu0 0
        %1409 = vmatprep.subr.bf16.mxu0 0
        %1410 = vmatpush2.bf16.msra.mxu0 0
        %1411 = vmatprep.mubr.bf16.mxu0 0
        %1412 = vmatmul.mubr.bf16.gmra.mxu0 %v1284
        %v1413 = vpop.f32.mrf.mxu0
        %v1414 = vadd.f32 0.0, %v1413
        %v1415 = vpop.f32.mrf.mxu0
        %v1416 = vpop.f32.mrf.mxu0
        %v1417 = vadd.f32 0.0, %v1416
        %v1418 = vpop.f32.mrf.mxu0
        %1419 = vmatprep.mubr.bf16.mxu0 0
        %1420 = vmatmul.mubr.bf16.gmra.mxu0 %v1287
        %v1421 = vpop.f32.mrf.mxu0
        %v1422 = vadd.f32 0.0, %v1421
        %v1423 = vpop.f32.mrf.mxu0
        %v1424 = vpop.f32.mrf.mxu0
        %v1425 = vadd.f32 0.0, %v1424
        %v1426 = vpop.f32.mrf.mxu0
        %1427 = vmatprep.mubr.bf16.mxu0 0
        %1428 = vmatmul.mubr.bf16.gmra.mxu0 %v1290
        %v1429 = vpop.f32.mrf.mxu0
        %v1430 = vadd.f32 0.0, %v1429
        %v1431 = vpop.f32.mrf.mxu0
        %v1432 = vpop.f32.mrf.mxu0
        %v1433 = vadd.f32 0.0, %v1432
        %v1434 = vpop.f32.mrf.mxu0
        %1435 = vmatprep.mubr.bf16.mxu0 0
        %1436 = vmatmul.mubr.bf16.gmra.mxu0 %v1293
        %v1437 = vpop.f32.mrf.mxu0
        %v1438 = vadd.f32 0.0, %v1437
        %v1439 = vpop.f32.mrf.mxu0
        %v1440 = vpop.f32.mrf.mxu0
        %v1441 = vadd.f32 0.0, %v1440
        %v1442 = vpop.f32.mrf.mxu0
        %1443 = vmatprep.mubr.bf16.mxu0 0
        %1444 = vmatmul.mubr.bf16.gmra.mxu0 %v1296
        %v1445 = vpop.f32.mrf.mxu0
        %v1446 = vadd.f32 0.0, %v1445
        %v1447 = vpop.f32.mrf.mxu0
        %v1448 = vpop.f32.mrf.mxu0
        %v1449 = vadd.f32 0.0, %v1448
        %v1450 = vpop.f32.mrf.mxu0
        %1451 = vmatprep.mubr.bf16.mxu0 0
        %1452 = vmatmul.mubr.bf16.gmra.mxu0 %v1299
        %v1453 = vpop.f32.mrf.mxu0
        %v1454 = vadd.f32 0.0, %v1453
        %v1455 = vpop.f32.mrf.mxu0
        %v1456 = vpop.f32.mrf.mxu0
        %v1457 = vadd.f32 0.0, %v1456
        %v1458 = vpop.f32.mrf.mxu0
        %1459 = vmatprep.mubr.bf16.mxu0 0
        %1460 = vmatmul.mubr.bf16.gmra.mxu0 %v1302
        %v1461 = vpop.f32.mrf.mxu0
        %v1462 = vadd.f32 0.0, %v1461
        %v1463 = vpop.f32.mrf.mxu0
        %v1464 = vpop.f32.mrf.mxu0
        %v1465 = vadd.f32 0.0, %v1464
        %v1466 = vpop.f32.mrf.mxu0
        %1467 = vmatprep.mubr.bf16.mxu0 0
        %1468 = vmatmul.mubr.bf16.gmra.mxu0 %v1305
        %v1469 = vpop.f32.mrf.mxu0
        %v1470 = vadd.f32 0.0, %v1469
        %v1471 = vpop.f32.mrf.mxu0
        %v1472 = vpop.f32.mrf.mxu0
        %v1473 = vadd.f32 0.0, %v1472
        %v1474 = vpop.f32.mrf.mxu0
        %1475 = vmatprep.mubr.bf16.mxu0 0
        %1476 = vmatmul.mubr.bf16.gmra.mxu0 %v1308
        %v1477 = vpop.f32.mrf.mxu0
        %v1478 = vadd.f32 0.0, %v1477
        %v1479 = vpop.f32.mrf.mxu0
        %v1480 = vpop.f32.mrf.mxu0
        %v1481 = vadd.f32 0.0, %v1480
        %v1482 = vpop.f32.mrf.mxu0
        %1483 = vmatprep.mubr.bf16.mxu0 0
        %1484 = vmatmul.mubr.bf16.gmra.mxu0 %v1311
        %v1485 = vpop.f32.mrf.mxu0
        %v1486 = vadd.f32 0.0, %v1485
        %v1487 = vpop.f32.mrf.mxu0
        %v1488 = vpop.f32.mrf.mxu0
        %v1489 = vadd.f32 0.0, %v1488
        %v1490 = vpop.f32.mrf.mxu0
        %1491 = vmatprep.mubr.bf16.mxu0 0
        %1492 = vmatmul.mubr.bf16.gmra.mxu0 %v1314
        %v1493 = vpop.f32.mrf.mxu0
        %v1494 = vadd.f32 0.0, %v1493
        %v1495 = vpop.f32.mrf.mxu0
        %v1496 = vpop.f32.mrf.mxu0
        %v1497 = vadd.f32 0.0, %v1496
        %v1498 = vpop.f32.mrf.mxu0
        %1499 = vmatprep.mubr.bf16.mxu0 0
        %1500 = vmatmul.mubr.bf16.gmra.mxu0 %v1317
        %v1501 = vpop.f32.mrf.mxu0
        %v1502 = vadd.f32 0.0, %v1501
        %v1503 = vpop.f32.mrf.mxu0
        %v1504 = vpop.f32.mrf.mxu0
        %v1505 = vadd.f32 0.0, %v1504
        %v1506 = vpop.f32.mrf.mxu0
        %1507 = vmatprep.mubr.bf16.mxu0 0
        %1508 = vmatmul.mubr.bf16.gmra.mxu0 %v1320
        %v1509 = vpop.f32.mrf.mxu0
        %v1510 = vadd.f32 0.0, %v1509
        %v1511 = vpop.f32.mrf.mxu0
        %v1512 = vpop.f32.mrf.mxu0
        %v1513 = vadd.f32 0.0, %v1512
        %v1514 = vpop.f32.mrf.mxu0
        %1515 = vmatprep.mubr.bf16.mxu0 0
        %1516 = vmatmul.mubr.bf16.gmra.mxu0 %v1323
        %v1517 = vpop.f32.mrf.mxu0
        %v1518 = vadd.f32 0.0, %v1517
        %v1519 = vpop.f32.mrf.mxu0
        %v1520 = vpop.f32.mrf.mxu0
        %v1521 = vadd.f32 0.0, %v1520
        %v1522 = vpop.f32.mrf.mxu0
        %1523 = vmatprep.mubr.bf16.mxu0 0
        %1524 = vmatmul.mubr.bf16.gmra.mxu0 %v1326
        %v1525 = vpop.f32.mrf.mxu0
        %v1526 = vadd.f32 0.0, %v1525
        %v1527 = vpop.f32.mrf.mxu0
        %v1528 = vpop.f32.mrf.mxu0
        %v1529 = vadd.f32 0.0, %v1528
        %v1530 = vpop.f32.mrf.mxu0
        %1531 = vmatprep.mubr.bf16.mxu0 0
        %1532 = vmatmul.mubr.bf16.gmra.mxu0 %v1329
        %v1533 = vpop.f32.mrf.mxu0
        %v1534 = vadd.f32 0.0, %v1533
        %v1535 = vpop.f32.mrf.mxu0
        %v1536 = vpop.f32.mrf.mxu0
        %v1537 = vadd.f32 0.0, %v1536
        %v1538 = vpop.f32.mrf.mxu0
        %1539 = vmatprep.mubr.bf16.mxu0 0
        %1540 = vmatmul.mubr.bf16.gmra.mxu0 %v1332
        %v1541 = vpop.f32.mrf.mxu0
        %v1542 = vadd.f32 0.0, %v1541
        %v1543 = vpop.f32.mrf.mxu0
        %v1544 = vpop.f32.mrf.mxu0
        %v1545 = vadd.f32 0.0, %v1544
        %v1546 = vpop.f32.mrf.mxu0
        %1547 = vmatprep.mubr.bf16.mxu0 0
        %1548 = vmatmul.mubr.bf16.gmra.mxu0 %v1335
        %v1549 = vpop.f32.mrf.mxu0
        %v1550 = vadd.f32 0.0, %v1549
        %v1551 = vpop.f32.mrf.mxu0
        %v1552 = vpop.f32.mrf.mxu0
        %v1553 = vadd.f32 0.0, %v1552
        %v1554 = vpop.f32.mrf.mxu0
        %1555 = vmatprep.mubr.bf16.mxu0 0
        %1556 = vmatmul.mubr.bf16.gmra.mxu0 %v1338
        %v1557 = vpop.f32.mrf.mxu0
        %v1558 = vadd.f32 0.0, %v1557
        %v1559 = vpop.f32.mrf.mxu0
        %v1560 = vpop.f32.mrf.mxu0
        %v1561 = vadd.f32 0.0, %v1560
        %v1562 = vpop.f32.mrf.mxu0
        %1563 = vmatprep.mubr.bf16.mxu0 0
        %1564 = vmatmul.mubr.bf16.gmra.mxu0 %v1341
        %v1565 = vpop.f32.mrf.mxu0
        %v1566 = vadd.f32 0.0, %v1565
        %v1567 = vpop.f32.mrf.mxu0
        %v1568 = vpop.f32.mrf.mxu0
        %v1569 = vadd.f32 0.0, %v1568
        %v1570 = vpop.f32.mrf.mxu0
        %1571 = vmatprep.mubr.bf16.mxu0 0
        %1572 = vmatmul.mubr.bf16.gmra.mxu0 %v1344
        %v1573 = vpop.f32.mrf.mxu0
        %v1574 = vadd.f32 0.0, %v1573
        %v1575 = vpop.f32.mrf.mxu0
        %v1576 = vpop.f32.mrf.mxu0
        %v1577 = vadd.f32 0.0, %v1576
        %v1578 = vpop.f32.mrf.mxu0
        %1579 = vmatprep.mubr.bf16.mxu0 0
        %1580 = vmatmul.mubr.bf16.gmra.mxu0 %v1347
        %v1581 = vpop.f32.mrf.mxu0
        %v1582 = vadd.f32 0.0, %v1581
        %v1583 = vpop.f32.mrf.mxu0
        %v1584 = vpop.f32.mrf.mxu0
        %v1585 = vadd.f32 0.0, %v1584
        %v1586 = vpop.f32.mrf.mxu0
        %1587 = vmatprep.mubr.bf16.mxu0 0
        %1588 = vmatmul.mubr.bf16.gmra.mxu0 %v1350
        %v1589 = vpop.f32.mrf.mxu0
        %v1590 = vadd.f32 0.0, %v1589
        %v1591 = vpop.f32.mrf.mxu0
        %v1592 = vpop.f32.mrf.mxu0
        %v1593 = vadd.f32 0.0, %v1592
        %v1594 = vpop.f32.mrf.mxu0
        %1595 = vmatprep.mubr.bf16.mxu0 0
        %1596 = vmatmul.mubr.bf16.gmra.mxu0 %v1353
        %v1597 = vpop.f32.mrf.mxu0
        %v1598 = vadd.f32 0.0, %v1597
        %v1599 = vpop.f32.mrf.mxu0
        %v1600 = vpop.f32.mrf.mxu0
        %v1601 = vadd.f32 0.0, %v1600
        %v1602 = vpop.f32.mrf.mxu0
        %1603 = vmatprep.mubr.bf16.mxu0 0
        %1604 = vmatmul.mubr.bf16.gmra.mxu0 %v1356
        %v1605 = vpop.f32.mrf.mxu0
        %v1606 = vadd.f32 0.0, %v1605
        %v1607 = vpop.f32.mrf.mxu0
        %v1608 = vpop.f32.mrf.mxu0
        %v1609 = vadd.f32 0.0, %v1608
        %v1610 = vpop.f32.mrf.mxu0
        %1611 = vmatprep.mubr.bf16.mxu0 0
        %1612 = vmatmul.mubr.bf16.gmra.mxu0 %v1359
        %v1613 = vpop.f32.mrf.mxu0
        %v1614 = vadd.f32 0.0, %v1613
        %v1615 = vpop.f32.mrf.mxu0
        %v1616 = vpop.f32.mrf.mxu0
        %v1617 = vadd.f32 0.0, %v1616
        %v1618 = vpop.f32.mrf.mxu0
        %1619 = vmatprep.mubr.bf16.mxu0 0
        %1620 = vmatmul.mubr.bf16.gmra.mxu0 %v1362
        %v1621 = vpop.f32.mrf.mxu0
        %v1622 = vadd.f32 0.0, %v1621
        %v1623 = vpop.f32.mrf.mxu0
        %v1624 = vpop.f32.mrf.mxu0
        %v1625 = vadd.f32 0.0, %v1624
        %v1626 = vpop.f32.mrf.mxu0
        %1627 = vmatprep.mubr.bf16.mxu0 0
        %1628 = vmatmul.mubr.bf16.gmra.mxu0 %v1365
        %v1629 = vpop.f32.mrf.mxu0
        %v1630 = vadd.f32 0.0, %v1629
        %v1631 = vpop.f32.mrf.mxu0
        %v1632 = vpop.f32.mrf.mxu0
        %v1633 = vadd.f32 0.0, %v1632
        %v1634 = vpop.f32.mrf.mxu0
        %1635 = vmatprep.mubr.bf16.mxu0 0
        %1636 = vmatmul.mubr.bf16.gmra.mxu0 %v1368
        %v1637 = vpop.f32.mrf.mxu0
        %v1638 = vadd.f32 0.0, %v1637
        %v1639 = vpop.f32.mrf.mxu0
        %v1640 = vpop.f32.mrf.mxu0
        %v1641 = vadd.f32 0.0, %v1640
        %v1642 = vpop.f32.mrf.mxu0
        %1643 = vmatprep.mubr.bf16.mxu0 0
        %1644 = vmatmul.mubr.bf16.gmra.mxu0 %v1371
        %v1645 = vpop.f32.mrf.mxu0
        %v1646 = vadd.f32 0.0, %v1645
        %v1647 = vpop.f32.mrf.mxu0
        %v1648 = vpop.f32.mrf.mxu0
        %v1649 = vadd.f32 0.0, %v1648
        %v1650 = vpop.f32.mrf.mxu0
        %1651 = vmatprep.mubr.bf16.mxu0 0
        %1652 = vmatmul.mubr.bf16.gmra.mxu0 %v1374
        %v1653 = vpop.f32.mrf.mxu0
        %v1654 = vadd.f32 0.0, %v1653
        %v1655 = vpop.f32.mrf.mxu0
        %v1656 = vpop.f32.mrf.mxu0
        %v1657 = vadd.f32 0.0, %v1656
        %v1658 = vpop.f32.mrf.mxu0
        %1659 = vmatprep.mubr.bf16.mxu0 0
        %1660 = vmatmul.mubr.bf16.gmra.mxu0 %v1377
        %v1661 = vpop.f32.mrf.mxu0
        %v1662 = vadd.f32 0.0, %v1661
        %v1663 = vpop.f32.mrf.mxu0
        %v1664 = vpop.f32.mrf.mxu0
        %v1665 = vadd.f32 0.0, %v1664
        %v1666 = vpop.f32.mrf.mxu0
        %1667 = vdwg.mxu0
        %v1676 = vunpack.c.l.b16 %v1146
        %v1677 = vunpack.c.l.b16 %v1147
        %v1678 = vunpack.c.l.b16 %v1148
        %v1679 = vunpack.c.l.b16 %v1149
        %v1680 = vunpack.c.l.b16 %v1150
        %v1681 = vunpack.c.l.b16 %v1151
        %v1682 = vunpack.c.l.b16 %v1152
        %v1683 = vunpack.c.l.b16 %v1153
        %v1684 = vpack.c.b16 %v1677, %v1676
        %v1685 = vpack.c.b16 %v1679, %v1678
        %v1686 = vpack.c.b16 %v1681, %v1680
        %v1687 = vpack.c.b16 %v1683, %v1682
        %v1693 = vsel %vm264, %v1114, 0
        %v1696 = vsel %vm264, %v1115, 0
        %v1699 = vsel %vm264, %v1116, 0
        %v1702 = vsel %vm264, %v1117, 0
        %v1705 = vsel %vm264, %v1118, 0
        %v1708 = vsel %vm264, %v1119, 0
        %v1711 = vsel %vm264, %v1120, 0
        %v1714 = vsel %vm264, %v1121, 0
        %v1717 = vsel %vm264, %v1122, 0
        %v1720 = vsel %vm264, %v1123, 0
        %v1723 = vsel %vm264, %v1124, 0
        %v1726 = vsel %vm264, %v1125, 0
        %v1729 = vsel %vm264, %v1126, 0
        %v1732 = vsel %vm264, %v1127, 0
        %v1735 = vsel %vm264, %v1128, 0
        %v1738 = vsel %vm264, %v1129, 0
        %v1741 = vsel %vm264, %v1130, 0
        %v1744 = vsel %vm264, %v1131, 0
        %v1747 = vsel %vm264, %v1132, 0
        %v1750 = vsel %vm264, %v1133, 0
        %v1753 = vsel %vm264, %v1134, 0
        %v1756 = vsel %vm264, %v1135, 0
        %v1759 = vsel %vm264, %v1136, 0
        %v1762 = vsel %vm264, %v1137, 0
        %v1765 = vsel %vm264, %v1138, 0
        %v1768 = vsel %vm264, %v1139, 0
        %v1771 = vsel %vm264, %v1140, 0
        %v1774 = vsel %vm264, %v1141, 0
        %v1777 = vsel %vm264, %v1142, 0
        %v1780 = vsel %vm264, %v1143, 0
        %v1783 = vsel %vm264, %v1144, 0
        %v1786 = vsel %vm264, %v1145, 0
        %1788 = vmatprep.subr.bf16.mxu0 0
        %1789 = vmatpush1.bf16.msra.mxu0 0
        %1790 = vmatprep.subr.bf16.mxu0 0
        %1791 = vmatpush1.bf16.msra.mxu0 0
        %1792 = vmatprep.subr.bf16.mxu0 0
        %1793 = vmatpush1.bf16.msra.mxu0 0
        %1794 = vmatprep.subr.bf16.mxu0 0
        %1795 = vmatpush1.bf16.msra.mxu0 0
        %1796 = vmatprep.subr.bf16.mxu0 0
        %1797 = vmatpush1.bf16.msra.mxu0 %v1687
        %1798 = vmatprep.subr.bf16.mxu0 0
        %1799 = vmatpush1.bf16.msra.mxu0 %v1686
        %1800 = vmatprep.subr.bf16.mxu0 0
        %1801 = vmatpush1.bf16.msra.mxu0 %v1685
        %1802 = vmatprep.subr.bf16.mxu0 0
        %1803 = vmatpush1.bf16.msra.mxu0 %v1684
        %1804 = vmatprep.subr.bf16.mxu0 0
        %1805 = vmatpush2.bf16.msra.mxu0 0
        %1806 = vmatprep.subr.bf16.mxu0 0
        %1807 = vmatpush2.bf16.msra.mxu0 0
        %1808 = vmatprep.subr.bf16.mxu0 0
        %1809 = vmatpush2.bf16.msra.mxu0 0
        %1810 = vmatprep.subr.bf16.mxu0 0
        %1811 = vmatpush2.bf16.msra.mxu0 0
        %1812 = vmatprep.subr.bf16.mxu0 0
        %1813 = vmatpush2.bf16.msra.mxu0 0
        %1814 = vmatprep.subr.bf16.mxu0 0
        %1815 = vmatpush2.bf16.msra.mxu0 0
        %1816 = vmatprep.subr.bf16.mxu0 0
        %1817 = vmatpush2.bf16.msra.mxu0 0
        %1818 = vmatprep.subr.bf16.mxu0 0
        %1819 = vmatpush2.bf16.msra.mxu0 0
        %1820 = vmatprep.mubr.bf16.mxu0 0
        %1821 = vmatmul.mubr.bf16.gmra.mxu0 %v1693
        %v1822 = vpop.f32.mrf.mxu0
        %v1823 = vadd.f32 %v1414, %v1822
        %v1824 = vpop.f32.mrf.mxu0
        %v1825 = vpop.f32.mrf.mxu0
        %v1826 = vadd.f32 %v1417, %v1825
        %v1827 = vpop.f32.mrf.mxu0
        %1828 = vmatprep.mubr.bf16.mxu0 0
        %1829 = vmatmul.mubr.bf16.gmra.mxu0 %v1696
        %v1830 = vpop.f32.mrf.mxu0
        %v1831 = vadd.f32 %v1422, %v1830
        %v1832 = vpop.f32.mrf.mxu0
        %v1833 = vpop.f32.mrf.mxu0
        %v1834 = vadd.f32 %v1425, %v1833
        %v1835 = vpop.f32.mrf.mxu0
        %1836 = vmatprep.mubr.bf16.mxu0 0
        %1837 = vmatmul.mubr.bf16.gmra.mxu0 %v1699
        %v1838 = vpop.f32.mrf.mxu0
        %v1839 = vadd.f32 %v1430, %v1838
        %v1840 = vpop.f32.mrf.mxu0
        %v1841 = vpop.f32.mrf.mxu0
        %v1842 = vadd.f32 %v1433, %v1841
        %v1843 = vpop.f32.mrf.mxu0
        %1844 = vmatprep.mubr.bf16.mxu0 0
        %1845 = vmatmul.mubr.bf16.gmra.mxu0 %v1702
        %v1846 = vpop.f32.mrf.mxu0
        %v1847 = vadd.f32 %v1438, %v1846
        %v1848 = vpop.f32.mrf.mxu0
        %v1849 = vpop.f32.mrf.mxu0
        %v1850 = vadd.f32 %v1441, %v1849
        %v1851 = vpop.f32.mrf.mxu0
        %1852 = vmatprep.mubr.bf16.mxu0 0
        %1853 = vmatmul.mubr.bf16.gmra.mxu0 %v1705
        %v1854 = vpop.f32.mrf.mxu0
        %v1855 = vadd.f32 %v1446, %v1854
        %v1856 = vpop.f32.mrf.mxu0
        %v1857 = vpop.f32.mrf.mxu0
        %v1858 = vadd.f32 %v1449, %v1857
        %v1859 = vpop.f32.mrf.mxu0
        %1860 = vmatprep.mubr.bf16.mxu0 0
        %1861 = vmatmul.mubr.bf16.gmra.mxu0 %v1708
        %v1862 = vpop.f32.mrf.mxu0
        %v1863 = vadd.f32 %v1454, %v1862
        %v1864 = vpop.f32.mrf.mxu0
        %v1865 = vpop.f32.mrf.mxu0
        %v1866 = vadd.f32 %v1457, %v1865
        %v1867 = vpop.f32.mrf.mxu0
        %1868 = vmatprep.mubr.bf16.mxu0 0
        %1869 = vmatmul.mubr.bf16.gmra.mxu0 %v1711
        %v1870 = vpop.f32.mrf.mxu0
        %v1871 = vadd.f32 %v1462, %v1870
        %v1872 = vpop.f32.mrf.mxu0
        %v1873 = vpop.f32.mrf.mxu0
        %v1874 = vadd.f32 %v1465, %v1873
        %v1875 = vpop.f32.mrf.mxu0
        %1876 = vmatprep.mubr.bf16.mxu0 0
        %1877 = vmatmul.mubr.bf16.gmra.mxu0 %v1714
        %v1878 = vpop.f32.mrf.mxu0
        %v1879 = vadd.f32 %v1470, %v1878
        %v1880 = vpop.f32.mrf.mxu0
        %v1881 = vpop.f32.mrf.mxu0
        %v1882 = vadd.f32 %v1473, %v1881
        %v1883 = vpop.f32.mrf.mxu0
        %1884 = vmatprep.mubr.bf16.mxu0 0
        %1885 = vmatmul.mubr.bf16.gmra.mxu0 %v1717
        %v1886 = vpop.f32.mrf.mxu0
        %v1887 = vadd.f32 %v1478, %v1886
        %v1888 = vpop.f32.mrf.mxu0
        %v1889 = vpop.f32.mrf.mxu0
        %v1890 = vadd.f32 %v1481, %v1889
        %v1891 = vpop.f32.mrf.mxu0
        %1892 = vmatprep.mubr.bf16.mxu0 0
        %1893 = vmatmul.mubr.bf16.gmra.mxu0 %v1720
        %v1894 = vpop.f32.mrf.mxu0
        %v1895 = vadd.f32 %v1486, %v1894
        %v1896 = vpop.f32.mrf.mxu0
        %v1897 = vpop.f32.mrf.mxu0
        %v1898 = vadd.f32 %v1489, %v1897
        %v1899 = vpop.f32.mrf.mxu0
        %1900 = vmatprep.mubr.bf16.mxu0 0
        %1901 = vmatmul.mubr.bf16.gmra.mxu0 %v1723
        %v1902 = vpop.f32.mrf.mxu0
        %v1903 = vadd.f32 %v1494, %v1902
        %v1904 = vpop.f32.mrf.mxu0
        %v1905 = vpop.f32.mrf.mxu0
        %v1906 = vadd.f32 %v1497, %v1905
        %v1907 = vpop.f32.mrf.mxu0
        %1908 = vmatprep.mubr.bf16.mxu0 0
        %1909 = vmatmul.mubr.bf16.gmra.mxu0 %v1726
        %v1910 = vpop.f32.mrf.mxu0
        %v1911 = vadd.f32 %v1502, %v1910
        %v1912 = vpop.f32.mrf.mxu0
        %v1913 = vpop.f32.mrf.mxu0
        %v1914 = vadd.f32 %v1505, %v1913
        %v1915 = vpop.f32.mrf.mxu0
        %1916 = vmatprep.mubr.bf16.mxu0 0
        %1917 = vmatmul.mubr.bf16.gmra.mxu0 %v1729
        %v1918 = vpop.f32.mrf.mxu0
        %v1919 = vadd.f32 %v1510, %v1918
        %v1920 = vpop.f32.mrf.mxu0
        %v1921 = vpop.f32.mrf.mxu0
        %v1922 = vadd.f32 %v1513, %v1921
        %v1923 = vpop.f32.mrf.mxu0
        %1924 = vmatprep.mubr.bf16.mxu0 0
        %1925 = vmatmul.mubr.bf16.gmra.mxu0 %v1732
        %v1926 = vpop.f32.mrf.mxu0
        %v1927 = vadd.f32 %v1518, %v1926
        %v1928 = vpop.f32.mrf.mxu0
        %v1929 = vpop.f32.mrf.mxu0
        %v1930 = vadd.f32 %v1521, %v1929
        %v1931 = vpop.f32.mrf.mxu0
        %1932 = vmatprep.mubr.bf16.mxu0 0
        %1933 = vmatmul.mubr.bf16.gmra.mxu0 %v1735
        %v1934 = vpop.f32.mrf.mxu0
        %v1935 = vadd.f32 %v1526, %v1934
        %v1936 = vpop.f32.mrf.mxu0
        %v1937 = vpop.f32.mrf.mxu0
        %v1938 = vadd.f32 %v1529, %v1937
        %v1939 = vpop.f32.mrf.mxu0
        %1940 = vmatprep.mubr.bf16.mxu0 0
        %1941 = vmatmul.mubr.bf16.gmra.mxu0 %v1738
        %v1942 = vpop.f32.mrf.mxu0
        %v1943 = vadd.f32 %v1534, %v1942
        %v1944 = vpop.f32.mrf.mxu0
        %v1945 = vpop.f32.mrf.mxu0
        %v1946 = vadd.f32 %v1537, %v1945
        %v1947 = vpop.f32.mrf.mxu0
        %1948 = vmatprep.mubr.bf16.mxu0 0
        %1949 = vmatmul.mubr.bf16.gmra.mxu0 %v1741
        %v1950 = vpop.f32.mrf.mxu0
        %v1951 = vadd.f32 %v1542, %v1950
        %v1952 = vpop.f32.mrf.mxu0
        %v1953 = vpop.f32.mrf.mxu0
        %v1954 = vadd.f32 %v1545, %v1953
        %v1955 = vpop.f32.mrf.mxu0
        %1956 = vmatprep.mubr.bf16.mxu0 0
        %1957 = vmatmul.mubr.bf16.gmra.mxu0 %v1744
        %v1958 = vpop.f32.mrf.mxu0
        %v1959 = vadd.f32 %v1550, %v1958
        %v1960 = vpop.f32.mrf.mxu0
        %v1961 = vpop.f32.mrf.mxu0
        %v1962 = vadd.f32 %v1553, %v1961
        %v1963 = vpop.f32.mrf.mxu0
        %1964 = vmatprep.mubr.bf16.mxu0 0
        %1965 = vmatmul.mubr.bf16.gmra.mxu0 %v1747
        %v1966 = vpop.f32.mrf.mxu0
        %v1967 = vadd.f32 %v1558, %v1966
        %v1968 = vpop.f32.mrf.mxu0
        %v1969 = vpop.f32.mrf.mxu0
        %v1970 = vadd.f32 %v1561, %v1969
        %v1971 = vpop.f32.mrf.mxu0
        %1972 = vmatprep.mubr.bf16.mxu0 0
        %1973 = vmatmul.mubr.bf16.gmra.mxu0 %v1750
        %v1974 = vpop.f32.mrf.mxu0
        %v1975 = vadd.f32 %v1566, %v1974
        %v1976 = vpop.f32.mrf.mxu0
        %v1977 = vpop.f32.mrf.mxu0
        %v1978 = vadd.f32 %v1569, %v1977
        %v1979 = vpop.f32.mrf.mxu0
        %1980 = vmatprep.mubr.bf16.mxu0 0
        %1981 = vmatmul.mubr.bf16.gmra.mxu0 %v1753
        %v1982 = vpop.f32.mrf.mxu0
        %v1983 = vadd.f32 %v1574, %v1982
        %v1984 = vpop.f32.mrf.mxu0
        %v1985 = vpop.f32.mrf.mxu0
        %v1986 = vadd.f32 %v1577, %v1985
        %v1987 = vpop.f32.mrf.mxu0
        %1988 = vmatprep.mubr.bf16.mxu0 0
        %1989 = vmatmul.mubr.bf16.gmra.mxu0 %v1756
        %v1990 = vpop.f32.mrf.mxu0
        %v1991 = vadd.f32 %v1582, %v1990
        %v1992 = vpop.f32.mrf.mxu0
        %v1993 = vpop.f32.mrf.mxu0
        %v1994 = vadd.f32 %v1585, %v1993
        %v1995 = vpop.f32.mrf.mxu0
        %1996 = vmatprep.mubr.bf16.mxu0 0
        %1997 = vmatmul.mubr.bf16.gmra.mxu0 %v1759
        %v1998 = vpop.f32.mrf.mxu0
        %v1999 = vadd.f32 %v1590, %v1998
        %v2000 = vpop.f32.mrf.mxu0
        %v2001 = vpop.f32.mrf.mxu0
        %v2002 = vadd.f32 %v1593, %v2001
        %v2003 = vpop.f32.mrf.mxu0
        %2004 = vmatprep.mubr.bf16.mxu0 0
        %2005 = vmatmul.mubr.bf16.gmra.mxu0 %v1762
        %v2006 = vpop.f32.mrf.mxu0
        %v2007 = vadd.f32 %v1598, %v2006
        %v2008 = vpop.f32.mrf.mxu0
        %v2009 = vpop.f32.mrf.mxu0
        %v2010 = vadd.f32 %v1601, %v2009
        %v2011 = vpop.f32.mrf.mxu0
        %2012 = vmatprep.mubr.bf16.mxu0 0
        %2013 = vmatmul.mubr.bf16.gmra.mxu0 %v1765
        %v2014 = vpop.f32.mrf.mxu0
        %v2015 = vadd.f32 %v1606, %v2014
        %v2016 = vpop.f32.mrf.mxu0
        %v2017 = vpop.f32.mrf.mxu0
        %v2018 = vadd.f32 %v1609, %v2017
        %v2019 = vpop.f32.mrf.mxu0
        %2020 = vmatprep.mubr.bf16.mxu0 0
        %2021 = vmatmul.mubr.bf16.gmra.mxu0 %v1768
        %v2022 = vpop.f32.mrf.mxu0
        %v2023 = vadd.f32 %v1614, %v2022
        %v2024 = vpop.f32.mrf.mxu0
        %v2025 = vpop.f32.mrf.mxu0
        %v2026 = vadd.f32 %v1617, %v2025
        %v2027 = vpop.f32.mrf.mxu0
        %2028 = vmatprep.mubr.bf16.mxu0 0
        %2029 = vmatmul.mubr.bf16.gmra.mxu0 %v1771
        %v2030 = vpop.f32.mrf.mxu0
        %v2031 = vadd.f32 %v1622, %v2030
        %v2032 = vpop.f32.mrf.mxu0
        %v2033 = vpop.f32.mrf.mxu0
        %v2034 = vadd.f32 %v1625, %v2033
        %v2035 = vpop.f32.mrf.mxu0
        %2036 = vmatprep.mubr.bf16.mxu0 0
        %2037 = vmatmul.mubr.bf16.gmra.mxu0 %v1774
        %v2038 = vpop.f32.mrf.mxu0
        %v2039 = vadd.f32 %v1630, %v2038
        %v2040 = vpop.f32.mrf.mxu0
        %v2041 = vpop.f32.mrf.mxu0
        %v2042 = vadd.f32 %v1633, %v2041
        %v2043 = vpop.f32.mrf.mxu0
        %2044 = vmatprep.mubr.bf16.mxu0 0
        %2045 = vmatmul.mubr.bf16.gmra.mxu0 %v1777
        %v2046 = vpop.f32.mrf.mxu0
        %v2047 = vadd.f32 %v1638, %v2046
        %v2048 = vpop.f32.mrf.mxu0
        %v2049 = vpop.f32.mrf.mxu0
        %v2050 = vadd.f32 %v1641, %v2049
        %v2051 = vpop.f32.mrf.mxu0
        %2052 = vmatprep.mubr.bf16.mxu0 0
        %2053 = vmatmul.mubr.bf16.gmra.mxu0 %v1780
        %v2054 = vpop.f32.mrf.mxu0
        %v2055 = vadd.f32 %v1646, %v2054
        %v2056 = vpop.f32.mrf.mxu0
        %v2057 = vpop.f32.mrf.mxu0
        %v2058 = vadd.f32 %v1649, %v2057
        %v2059 = vpop.f32.mrf.mxu0
        %2060 = vmatprep.mubr.bf16.mxu0 0
        %2061 = vmatmul.mubr.bf16.gmra.mxu0 %v1783
        %v2062 = vpop.f32.mrf.mxu0
        %v2063 = vadd.f32 %v1654, %v2062
        %v2064 = vpop.f32.mrf.mxu0
        %v2065 = vpop.f32.mrf.mxu0
        %v2066 = vadd.f32 %v1657, %v2065
        %v2067 = vpop.f32.mrf.mxu0
        %2068 = vmatprep.mubr.bf16.mxu0 0
        %2069 = vmatmul.mubr.bf16.gmra.mxu0 %v1786
        %v2070 = vpop.f32.mrf.mxu0
        %v2071 = vadd.f32 %v1662, %v2070
        %v2072 = vpop.f32.mrf.mxu0
        %v2073 = vpop.f32.mrf.mxu0
        %v2074 = vadd.f32 %v1665, %v2073
        %v2075 = vpop.f32.mrf.mxu0
        %2076 = vdwg.mxu0
        %v2077 = vld [vmem:[#allocation2 + $0x2] sm:$0xff]
        %v2078 = vld [vmem:[#allocation2 + $0xa] sm:$0xff]
        %v2079 = vld [vmem:[#allocation2 + $0x1a] sm:$0xff]
        %v2080 = vld [vmem:[#allocation2 + $0x22] sm:$0xff]
        %v2081 = vld [vmem:[#allocation2 + $0x32] sm:$0xff]
        %v2082 = vld [vmem:[#allocation2 + $0x3a] sm:$0xff]
        %v2083 = vld [vmem:[#allocation2 + $0x4a] sm:$0xff]
        %v2084 = vld [vmem:[#allocation2 + $0x52] sm:$0xff]
        %v2085 = vld [vmem:[#allocation2 + $0x62] sm:$0xff]
        %v2086 = vld [vmem:[#allocation2 + $0x6a] sm:$0xff]
        %v2087 = vld [vmem:[#allocation2 + $0x7a] sm:$0xff]
        %v2088 = vld [vmem:[#allocation2 + $0x82] sm:$0xff]
        %v2089 = vld [vmem:[#allocation2 + $0x92] sm:$0xff]
        %v2090 = vld [vmem:[#allocation2 + $0x9a] sm:$0xff]
        %v2091 = vld [vmem:[#allocation2 + $0xaa] sm:$0xff]
        %v2092 = vld [vmem:[#allocation2 + $0xb2] sm:$0xff]
        %v2093 = vld [vmem:[#allocation2 + $0xc2] sm:$0xff]
        %v2094 = vld [vmem:[#allocation2 + $0xca] sm:$0xff]
        %v2095 = vld [vmem:[#allocation2 + $0xda] sm:$0xff]
        %v2096 = vld [vmem:[#allocation2 + $0xe2] sm:$0xff]
        %v2097 = vld [vmem:[#allocation2 + $0xf2] sm:$0xff]
        %v2098 = vld [vmem:[#allocation2 + $0xfa] sm:$0xff]
        %v2099 = vld [vmem:[#allocation2 + $0x10a] sm:$0xff]
        %v2100 = vld [vmem:[#allocation2 + $0x112] sm:$0xff]
        %v2101 = vld [vmem:[#allocation2 + $0x122] sm:$0xff]
        %v2102 = vld [vmem:[#allocation2 + $0x12a] sm:$0xff]
        %v2103 = vld [vmem:[#allocation2 + $0x13a] sm:$0xff]
        %v2104 = vld [vmem:[#allocation2 + $0x142] sm:$0xff]
        %v2105 = vld [vmem:[#allocation2 + $0x152] sm:$0xff]
        %v2106 = vld [vmem:[#allocation2 + $0x15a] sm:$0xff]
        %v2107 = vld [vmem:[#allocation2 + $0x16a] sm:$0xff]
        %v2108 = vld [vmem:[#allocation2 + $0x172] sm:$0xff]
        %v2109 = vld [vmem:[#allocation2 + $0x1b2] sm:$0xff]
        %v2110 = vld [vmem:[#allocation2 + $0x1ba] sm:$0xff]
        %v2111 = vld [vmem:[#allocation2 + $0x1ca] sm:$0xff]
        %v2112 = vld [vmem:[#allocation2 + $0x1d2] sm:$0xff]
        %v2113 = vld [vmem:[#allocation2 + $0x1e2] sm:$0xff]
        %v2114 = vld [vmem:[#allocation2 + $0x1ea] sm:$0xff]
        %v2115 = vld [vmem:[#allocation2 + $0x1fa] sm:$0xff]
        %v2116 = vld [vmem:[#allocation2 + $0x202] sm:$0xff]
        %v2117 = vld [vmem:[#allocation2 + $0x212] sm:$0xff]
        %v2118 = vld [vmem:[#allocation2 + $0x21a] sm:$0xff]
        %v2119 = vld [vmem:[#allocation2 + $0x22a] sm:$0xff]
        %v2120 = vld [vmem:[#allocation2 + $0x232] sm:$0xff]
        %v2121 = vld [vmem:[#allocation2 + $0x242] sm:$0xff]
        %v2122 = vld [vmem:[#allocation2 + $0x24a] sm:$0xff]
        %v2123 = vld [vmem:[#allocation2 + $0x25a] sm:$0xff]
        %v2124 = vld [vmem:[#allocation2 + $0x262] sm:$0xff]
        %v2125 = vld [vmem:[#allocation2 + $0x272] sm:$0xff]
        %v2126 = vld [vmem:[#allocation2 + $0x27a] sm:$0xff]
        %v2127 = vld [vmem:[#allocation2 + $0x28a] sm:$0xff]
        %v2128 = vld [vmem:[#allocation2 + $0x292] sm:$0xff]
        %v2129 = vld [vmem:[#allocation2 + $0x2a2] sm:$0xff]
        %v2130 = vld [vmem:[#allocation2 + $0x2aa] sm:$0xff]
        %v2131 = vld [vmem:[#allocation2 + $0x2ba] sm:$0xff]
        %v2132 = vld [vmem:[#allocation2 + $0x2c2] sm:$0xff]
        %v2133 = vld [vmem:[#allocation2 + $0x2d2] sm:$0xff]
        %v2134 = vld [vmem:[#allocation2 + $0x2da] sm:$0xff]
        %v2135 = vld [vmem:[#allocation2 + $0x2ea] sm:$0xff]
        %v2136 = vld [vmem:[#allocation2 + $0x2f2] sm:$0xff]
        %v2137 = vld [vmem:[#allocation2 + $0x302] sm:$0xff]
        %v2138 = vld [vmem:[#allocation2 + $0x30a] sm:$0xff]
        %v2139 = vld [vmem:[#allocation2 + $0x31a] sm:$0xff]
        %v2140 = vld [vmem:[#allocation2 + $0x322] sm:$0xff]
        %v2141 = vpack.c.bf16 %v2078, %v2077
        %v2142 = vpack.c.bf16 %v2080, %v2079
        %v2143 = vpack.c.bf16 %v2082, %v2081
        %v2144 = vpack.c.bf16 %v2084, %v2083
        %v2145 = vpack.c.bf16 %v2086, %v2085
        %v2146 = vpack.c.bf16 %v2088, %v2087
        %v2147 = vpack.c.bf16 %v2090, %v2089
        %v2148 = vpack.c.bf16 %v2092, %v2091
        %v2149 = vpack.c.bf16 %v2094, %v2093
        %v2150 = vpack.c.bf16 %v2096, %v2095
        %v2151 = vpack.c.bf16 %v2098, %v2097
        %v2152 = vpack.c.bf16 %v2100, %v2099
        %v2153 = vpack.c.bf16 %v2102, %v2101
        %v2154 = vpack.c.bf16 %v2104, %v2103
        %v2155 = vpack.c.bf16 %v2106, %v2105
        %v2156 = vpack.c.bf16 %v2108, %v2107
        %v2157 = vpack.c.bf16 %v2110, %v2109
        %v2158 = vpack.c.bf16 %v2112, %v2111
        %v2159 = vpack.c.bf16 %v2114, %v2113
        %v2160 = vpack.c.bf16 %v2116, %v2115
        %v2161 = vpack.c.bf16 %v2118, %v2117
        %v2162 = vpack.c.bf16 %v2120, %v2119
        %v2163 = vpack.c.bf16 %v2122, %v2121
        %v2164 = vpack.c.bf16 %v2124, %v2123
        %v2165 = vpack.c.bf16 %v2126, %v2125
        %v2166 = vpack.c.bf16 %v2128, %v2127
        %v2167 = vpack.c.bf16 %v2130, %v2129
        %v2168 = vpack.c.bf16 %v2132, %v2131
        %v2169 = vpack.c.bf16 %v2134, %v2133
        %v2170 = vpack.c.bf16 %v2136, %v2135
        %v2171 = vpack.c.bf16 %v2138, %v2137
        %v2172 = vpack.c.bf16 %v2140, %v2139
        %s2173 = scalar_lea.vmem [#allocation8], 64
        %v2174 = vld [vmem:[%s2173] sm:$0xf]
        %v2175 = vld [vmem:[%s2173 + $0x4] sm:$0xf]
        %v2176 = vld [vmem:[%s2173 + $0x8] sm:$0xf]
        %v2177 = vld [vmem:[%s2173 + $0xc] sm:$0xf]
        %v2178 = vld [vmem:[%s2173 + $0x10] sm:$0xf]
        %v2179 = vld [vmem:[%s2173 + $0x14] sm:$0xf]
        %v2180 = vld [vmem:[%s2173 + $0x18] sm:$0xf]
        %v2181 = vld [vmem:[%s2173 + $0x1c] sm:$0xf]
        %v2190 = vunpack.c.l.b16 %v2174
        %v2191 = vunpack.c.l.b16 %v2175
        %v2192 = vunpack.c.l.b16 %v2176
        %v2193 = vunpack.c.l.b16 %v2177
        %v2194 = vunpack.c.l.b16 %v2178
        %v2195 = vunpack.c.l.b16 %v2179
        %v2196 = vunpack.c.l.b16 %v2180
        %v2197 = vunpack.c.l.b16 %v2181
        %v2198 = vpack.c.b16 %v2191, %v2190
        %v2199 = vpack.c.b16 %v2193, %v2192
        %v2200 = vpack.c.b16 %v2195, %v2194
        %v2201 = vpack.c.b16 %v2197, %v2196
        %v2207 = vsel %vm264, %v2141, 0
        %v2210 = vsel %vm264, %v2142, 0
        %v2213 = vsel %vm264, %v2143, 0
        %v2216 = vsel %vm264, %v2144, 0
        %v2219 = vsel %vm264, %v2145, 0
        %v2222 = vsel %vm264, %v2146, 0
        %v2225 = vsel %vm264, %v2147, 0
        %v2228 = vsel %vm264, %v2148, 0
        %v2231 = vsel %vm264, %v2149, 0
        %v2234 = vsel %vm264, %v2150, 0
        %v2237 = vsel %vm264, %v2151, 0
        %v2240 = vsel %vm264, %v2152, 0
        %v2243 = vsel %vm264, %v2153, 0
        %v2246 = vsel %vm264, %v2154, 0
        %v2249 = vsel %vm264, %v2155, 0
        %v2252 = vsel %vm264, %v2156, 0
        %v2255 = vsel %vm264, %v2157, 0
        %v2258 = vsel %vm264, %v2158, 0
        %v2261 = vsel %vm264, %v2159, 0
        %v2264 = vsel %vm264, %v2160, 0
        %v2267 = vsel %vm264, %v2161, 0
        %v2270 = vsel %vm264, %v2162, 0
        %v2273 = vsel %vm264, %v2163, 0
        %v2276 = vsel %vm264, %v2164, 0
        %v2279 = vsel %vm264, %v2165, 0
        %v2282 = vsel %vm264, %v2166, 0
        %v2285 = vsel %vm264, %v2167, 0
        %v2288 = vsel %vm264, %v2168, 0
        %v2291 = vsel %vm264, %v2169, 0
        %v2294 = vsel %vm264, %v2170, 0
        %v2297 = vsel %vm264, %v2171, 0
        %v2300 = vsel %vm264, %v2172, 0
        %2302 = vmatprep.subr.bf16.mxu0 0
        %2303 = vmatpush1.bf16.msra.mxu0 0
        %2304 = vmatprep.subr.bf16.mxu0 0
        %2305 = vmatpush1.bf16.msra.mxu0 0
        %2306 = vmatprep.subr.bf16.mxu0 0
        %2307 = vmatpush1.bf16.msra.mxu0 0
        %2308 = vmatprep.subr.bf16.mxu0 0
        %2309 = vmatpush1.bf16.msra.mxu0 0
        %2310 = vmatprep.subr.bf16.mxu0 0
        %2311 = vmatpush1.bf16.msra.mxu0 %v2201
        %2312 = vmatprep.subr.bf16.mxu0 0
        %2313 = vmatpush1.bf16.msra.mxu0 %v2200
        %2314 = vmatprep.subr.bf16.mxu0 0
        %2315 = vmatpush1.bf16.msra.mxu0 %v2199
        %2316 = vmatprep.subr.bf16.mxu0 0
        %2317 = vmatpush1.bf16.msra.mxu0 %v2198
        %2318 = vmatprep.subr.bf16.mxu0 0
        %2319 = vmatpush2.bf16.msra.mxu0 0
        %2320 = vmatprep.subr.bf16.mxu0 0
        %2321 = vmatpush2.bf16.msra.mxu0 0
        %2322 = vmatprep.subr.bf16.mxu0 0
        %2323 = vmatpush2.bf16.msra.mxu0 0
        %2324 = vmatprep.subr.bf16.mxu0 0
        %2325 = vmatpush2.bf16.msra.mxu0 0
        %2326 = vmatprep.subr.bf16.mxu0 0
        %2327 = vmatpush2.bf16.msra.mxu0 0
        %2328 = vmatprep.subr.bf16.mxu0 0
        %2329 = vmatpush2.bf16.msra.mxu0 0
        %2330 = vmatprep.subr.bf16.mxu0 0
        %2331 = vmatpush2.bf16.msra.mxu0 0
        %2332 = vmatprep.subr.bf16.mxu0 0
        %2333 = vmatpush2.bf16.msra.mxu0 0
        %2334 = vmatprep.mubr.bf16.mxu0 0
        %2335 = vmatmul.mubr.bf16.gmra.mxu0 %v2207
        %v2336 = vpop.f32.mrf.mxu0
        %v2337 = vadd.f32 0.0, %v2336
        %v2338 = vpop.f32.mrf.mxu0
        %v2339 = vpop.f32.mrf.mxu0
        %v2340 = vadd.f32 0.0, %v2339
        %v2341 = vpop.f32.mrf.mxu0
        %2342 = vmatprep.mubr.bf16.mxu0 0
        %2343 = vmatmul.mubr.bf16.gmra.mxu0 %v2210
        %v2344 = vpop.f32.mrf.mxu0
        %v2345 = vadd.f32 0.0, %v2344
        %v2346 = vpop.f32.mrf.mxu0
        %v2347 = vpop.f32.mrf.mxu0
        %v2348 = vadd.f32 0.0, %v2347
        %v2349 = vpop.f32.mrf.mxu0
        %2350 = vmatprep.mubr.bf16.mxu0 0
        %2351 = vmatmul.mubr.bf16.gmra.mxu0 %v2213
        %v2352 = vpop.f32.mrf.mxu0
        %v2353 = vadd.f32 0.0, %v2352
        %v2354 = vpop.f32.mrf.mxu0
        %v2355 = vpop.f32.mrf.mxu0
        %v2356 = vadd.f32 0.0, %v2355
        %v2357 = vpop.f32.mrf.mxu0
        %2358 = vmatprep.mubr.bf16.mxu0 0
        %2359 = vmatmul.mubr.bf16.gmra.mxu0 %v2216
        %v2360 = vpop.f32.mrf.mxu0
        %v2361 = vadd.f32 0.0, %v2360
        %v2362 = vpop.f32.mrf.mxu0
        %v2363 = vpop.f32.mrf.mxu0
        %v2364 = vadd.f32 0.0, %v2363
        %v2365 = vpop.f32.mrf.mxu0
        %2366 = vmatprep.mubr.bf16.mxu0 0
        %2367 = vmatmul.mubr.bf16.gmra.mxu0 %v2219
        %v2368 = vpop.f32.mrf.mxu0
        %v2369 = vadd.f32 0.0, %v2368
        %v2370 = vpop.f32.mrf.mxu0
        %v2371 = vpop.f32.mrf.mxu0
        %v2372 = vadd.f32 0.0, %v2371
        %v2373 = vpop.f32.mrf.mxu0
        %2374 = vmatprep.mubr.bf16.mxu0 0
        %2375 = vmatmul.mubr.bf16.gmra.mxu0 %v2222
        %v2376 = vpop.f32.mrf.mxu0
        %v2377 = vadd.f32 0.0, %v2376
        %v2378 = vpop.f32.mrf.mxu0
        %v2379 = vpop.f32.mrf.mxu0
        %v2380 = vadd.f32 0.0, %v2379
        %v2381 = vpop.f32.mrf.mxu0
        %2382 = vmatprep.mubr.bf16.mxu0 0
        %2383 = vmatmul.mubr.bf16.gmra.mxu0 %v2225
        %v2384 = vpop.f32.mrf.mxu0
        %v2385 = vadd.f32 0.0, %v2384
        %v2386 = vpop.f32.mrf.mxu0
        %v2387 = vpop.f32.mrf.mxu0
        %v2388 = vadd.f32 0.0, %v2387
        %v2389 = vpop.f32.mrf.mxu0
        %2390 = vmatprep.mubr.bf16.mxu0 0
        %2391 = vmatmul.mubr.bf16.gmra.mxu0 %v2228
        %v2392 = vpop.f32.mrf.mxu0
        %v2393 = vadd.f32 0.0, %v2392
        %v2394 = vpop.f32.mrf.mxu0
        %v2395 = vpop.f32.mrf.mxu0
        %v2396 = vadd.f32 0.0, %v2395
        %v2397 = vpop.f32.mrf.mxu0
        %2398 = vmatprep.mubr.bf16.mxu0 0
        %2399 = vmatmul.mubr.bf16.gmra.mxu0 %v2231
        %v2400 = vpop.f32.mrf.mxu0
        %v2401 = vadd.f32 0.0, %v2400
        %v2402 = vpop.f32.mrf.mxu0
        %v2403 = vpop.f32.mrf.mxu0
        %v2404 = vadd.f32 0.0, %v2403
        %v2405 = vpop.f32.mrf.mxu0
        %2406 = vmatprep.mubr.bf16.mxu0 0
        %2407 = vmatmul.mubr.bf16.gmra.mxu0 %v2234
        %v2408 = vpop.f32.mrf.mxu0
        %v2409 = vadd.f32 0.0, %v2408
        %v2410 = vpop.f32.mrf.mxu0
        %v2411 = vpop.f32.mrf.mxu0
        %v2412 = vadd.f32 0.0, %v2411
        %v2413 = vpop.f32.mrf.mxu0
        %2414 = vmatprep.mubr.bf16.mxu0 0
        %2415 = vmatmul.mubr.bf16.gmra.mxu0 %v2237
        %v2416 = vpop.f32.mrf.mxu0
        %v2417 = vadd.f32 0.0, %v2416
        %v2418 = vpop.f32.mrf.mxu0
        %v2419 = vpop.f32.mrf.mxu0
        %v2420 = vadd.f32 0.0, %v2419
        %v2421 = vpop.f32.mrf.mxu0
        %2422 = vmatprep.mubr.bf16.mxu0 0
        %2423 = vmatmul.mubr.bf16.gmra.mxu0 %v2240
        %v2424 = vpop.f32.mrf.mxu0
        %v2425 = vadd.f32 0.0, %v2424
        %v2426 = vpop.f32.mrf.mxu0
        %v2427 = vpop.f32.mrf.mxu0
        %v2428 = vadd.f32 0.0, %v2427
        %v2429 = vpop.f32.mrf.mxu0
        %2430 = vmatprep.mubr.bf16.mxu0 0
        %2431 = vmatmul.mubr.bf16.gmra.mxu0 %v2243
        %v2432 = vpop.f32.mrf.mxu0
        %v2433 = vadd.f32 0.0, %v2432
        %v2434 = vpop.f32.mrf.mxu0
        %v2435 = vpop.f32.mrf.mxu0
        %v2436 = vadd.f32 0.0, %v2435
        %v2437 = vpop.f32.mrf.mxu0
        %2438 = vmatprep.mubr.bf16.mxu0 0
        %2439 = vmatmul.mubr.bf16.gmra.mxu0 %v2246
        %v2440 = vpop.f32.mrf.mxu0
        %v2441 = vadd.f32 0.0, %v2440
        %v2442 = vpop.f32.mrf.mxu0
        %v2443 = vpop.f32.mrf.mxu0
        %v2444 = vadd.f32 0.0, %v2443
        %v2445 = vpop.f32.mrf.mxu0
        %2446 = vmatprep.mubr.bf16.mxu0 0
        %2447 = vmatmul.mubr.bf16.gmra.mxu0 %v2249
        %v2448 = vpop.f32.mrf.mxu0
        %v2449 = vadd.f32 0.0, %v2448
        %v2450 = vpop.f32.mrf.mxu0
        %v2451 = vpop.f32.mrf.mxu0
        %v2452 = vadd.f32 0.0, %v2451
        %v2453 = vpop.f32.mrf.mxu0
        %2454 = vmatprep.mubr.bf16.mxu0 0
        %2455 = vmatmul.mubr.bf16.gmra.mxu0 %v2252
        %v2456 = vpop.f32.mrf.mxu0
        %v2457 = vadd.f32 0.0, %v2456
        %v2458 = vpop.f32.mrf.mxu0
        %v2459 = vpop.f32.mrf.mxu0
        %v2460 = vadd.f32 0.0, %v2459
        %v2461 = vpop.f32.mrf.mxu0
        %2462 = vmatprep.mubr.bf16.mxu0 0
        %2463 = vmatmul.mubr.bf16.gmra.mxu0 %v2255
        %v2464 = vpop.f32.mrf.mxu0
        %v2465 = vadd.f32 0.0, %v2464
        %v2466 = vpop.f32.mrf.mxu0
        %v2467 = vpop.f32.mrf.mxu0
        %v2468 = vadd.f32 0.0, %v2467
        %v2469 = vpop.f32.mrf.mxu0
        %2470 = vmatprep.mubr.bf16.mxu0 0
        %2471 = vmatmul.mubr.bf16.gmra.mxu0 %v2258
        %v2472 = vpop.f32.mrf.mxu0
        %v2473 = vadd.f32 0.0, %v2472
        %v2474 = vpop.f32.mrf.mxu0
        %v2475 = vpop.f32.mrf.mxu0
        %v2476 = vadd.f32 0.0, %v2475
        %v2477 = vpop.f32.mrf.mxu0
        %2478 = vmatprep.mubr.bf16.mxu0 0
        %2479 = vmatmul.mubr.bf16.gmra.mxu0 %v2261
        %v2480 = vpop.f32.mrf.mxu0
        %v2481 = vadd.f32 0.0, %v2480
        %v2482 = vpop.f32.mrf.mxu0
        %v2483 = vpop.f32.mrf.mxu0
        %v2484 = vadd.f32 0.0, %v2483
        %v2485 = vpop.f32.mrf.mxu0
        %2486 = vmatprep.mubr.bf16.mxu0 0
        %2487 = vmatmul.mubr.bf16.gmra.mxu0 %v2264
        %v2488 = vpop.f32.mrf.mxu0
        %v2489 = vadd.f32 0.0, %v2488
        %v2490 = vpop.f32.mrf.mxu0
        %v2491 = vpop.f32.mrf.mxu0
        %v2492 = vadd.f32 0.0, %v2491
        %v2493 = vpop.f32.mrf.mxu0
        %2494 = vmatprep.mubr.bf16.mxu0 0
        %2495 = vmatmul.mubr.bf16.gmra.mxu0 %v2267
        %v2496 = vpop.f32.mrf.mxu0
        %v2497 = vadd.f32 0.0, %v2496
        %v2498 = vpop.f32.mrf.mxu0
        %v2499 = vpop.f32.mrf.mxu0
        %v2500 = vadd.f32 0.0, %v2499
        %v2501 = vpop.f32.mrf.mxu0
        %2502 = vmatprep.mubr.bf16.mxu0 0
        %2503 = vmatmul.mubr.bf16.gmra.mxu0 %v2270
        %v2504 = vpop.f32.mrf.mxu0
        %v2505 = vadd.f32 0.0, %v2504
        %v2506 = vpop.f32.mrf.mxu0
        %v2507 = vpop.f32.mrf.mxu0
        %v2508 = vadd.f32 0.0, %v2507
        %v2509 = vpop.f32.mrf.mxu0
        %2510 = vmatprep.mubr.bf16.mxu0 0
        %2511 = vmatmul.mubr.bf16.gmra.mxu0 %v2273
        %v2512 = vpop.f32.mrf.mxu0
        %v2513 = vadd.f32 0.0, %v2512
        %v2514 = vpop.f32.mrf.mxu0
        %v2515 = vpop.f32.mrf.mxu0
        %v2516 = vadd.f32 0.0, %v2515
        %v2517 = vpop.f32.mrf.mxu0
        %2518 = vmatprep.mubr.bf16.mxu0 0
        %2519 = vmatmul.mubr.bf16.gmra.mxu0 %v2276
        %v2520 = vpop.f32.mrf.mxu0
        %v2521 = vadd.f32 0.0, %v2520
        %v2522 = vpop.f32.mrf.mxu0
        %v2523 = vpop.f32.mrf.mxu0
        %v2524 = vadd.f32 0.0, %v2523
        %v2525 = vpop.f32.mrf.mxu0
        %2526 = vmatprep.mubr.bf16.mxu0 0
        %2527 = vmatmul.mubr.bf16.gmra.mxu0 %v2279
        %v2528 = vpop.f32.mrf.mxu0
        %v2529 = vadd.f32 0.0, %v2528
        %v2530 = vpop.f32.mrf.mxu0
        %v2531 = vpop.f32.mrf.mxu0
        %v2532 = vadd.f32 0.0, %v2531
        %v2533 = vpop.f32.mrf.mxu0
        %2534 = vmatprep.mubr.bf16.mxu0 0
        %2535 = vmatmul.mubr.bf16.gmra.mxu0 %v2282
        %v2536 = vpop.f32.mrf.mxu0
        %v2537 = vadd.f32 0.0, %v2536
        %v2538 = vpop.f32.mrf.mxu0
        %v2539 = vpop.f32.mrf.mxu0
        %v2540 = vadd.f32 0.0, %v2539
        %v2541 = vpop.f32.mrf.mxu0
        %2542 = vmatprep.mubr.bf16.mxu0 0
        %2543 = vmatmul.mubr.bf16.gmra.mxu0 %v2285
        %v2544 = vpop.f32.mrf.mxu0
        %v2545 = vadd.f32 0.0, %v2544
        %v2546 = vpop.f32.mrf.mxu0
        %v2547 = vpop.f32.mrf.mxu0
        %v2548 = vadd.f32 0.0, %v2547
        %v2549 = vpop.f32.mrf.mxu0
        %2550 = vmatprep.mubr.bf16.mxu0 0
        %2551 = vmatmul.mubr.bf16.gmra.mxu0 %v2288
        %v2552 = vpop.f32.mrf.mxu0
        %v2553 = vadd.f32 0.0, %v2552
        %v2554 = vpop.f32.mrf.mxu0
        %v2555 = vpop.f32.mrf.mxu0
        %v2556 = vadd.f32 0.0, %v2555
        %v2557 = vpop.f32.mrf.mxu0
        %2558 = vmatprep.mubr.bf16.mxu0 0
        %2559 = vmatmul.mubr.bf16.gmra.mxu0 %v2291
        %v2560 = vpop.f32.mrf.mxu0
        %v2561 = vadd.f32 0.0, %v2560
        %v2562 = vpop.f32.mrf.mxu0
        %v2563 = vpop.f32.mrf.mxu0
        %v2564 = vadd.f32 0.0, %v2563
        %v2565 = vpop.f32.mrf.mxu0
        %2566 = vmatprep.mubr.bf16.mxu0 0
        %2567 = vmatmul.mubr.bf16.gmra.mxu0 %v2294
        %v2568 = vpop.f32.mrf.mxu0
        %v2569 = vadd.f32 0.0, %v2568
        %v2570 = vpop.f32.mrf.mxu0
        %v2571 = vpop.f32.mrf.mxu0
        %v2572 = vadd.f32 0.0, %v2571
        %v2573 = vpop.f32.mrf.mxu0
        %2574 = vmatprep.mubr.bf16.mxu0 0
        %2575 = vmatmul.mubr.bf16.gmra.mxu0 %v2297
        %v2576 = vpop.f32.mrf.mxu0
        %v2577 = vadd.f32 0.0, %v2576
        %v2578 = vpop.f32.mrf.mxu0
        %v2579 = vpop.f32.mrf.mxu0
        %v2580 = vadd.f32 0.0, %v2579
        %v2581 = vpop.f32.mrf.mxu0
        %2582 = vmatprep.mubr.bf16.mxu0 0
        %2583 = vmatmul.mubr.bf16.gmra.mxu0 %v2300
        %v2584 = vpop.f32.mrf.mxu0
        %v2585 = vadd.f32 0.0, %v2584
        %v2586 = vpop.f32.mrf.mxu0
        %v2587 = vpop.f32.mrf.mxu0
        %v2588 = vadd.f32 0.0, %v2587
        %v2589 = vpop.f32.mrf.mxu0
        %2590 = vdwg.mxu0
        %v2591 = vadd.f32 %v1823, %v2337
        %v2592 = vadd.f32 %v1826, %v2340
        %v2593 = vadd.f32 %v1831, %v2345
        %v2594 = vadd.f32 %v1834, %v2348
        %v2595 = vadd.f32 %v1839, %v2353
        %v2596 = vadd.f32 %v1842, %v2356
        %v2597 = vadd.f32 %v1847, %v2361
        %v2598 = vadd.f32 %v1850, %v2364
        %v2599 = vadd.f32 %v1855, %v2369
        %v2600 = vadd.f32 %v1858, %v2372
        %v2601 = vadd.f32 %v1863, %v2377
        %v2602 = vadd.f32 %v1866, %v2380
        %v2603 = vadd.f32 %v1871, %v2385
        %v2604 = vadd.f32 %v1874, %v2388
        %v2605 = vadd.f32 %v1879, %v2393
        %v2606 = vadd.f32 %v1882, %v2396
        %v2607 = vadd.f32 %v1887, %v2401
        %v2608 = vadd.f32 %v1890, %v2404
        %v2609 = vadd.f32 %v1895, %v2409
        %v2610 = vadd.f32 %v1898, %v2412
        %v2611 = vadd.f32 %v1903, %v2417
        %v2612 = vadd.f32 %v1906, %v2420
        %v2613 = vadd.f32 %v1911, %v2425
        %v2614 = vadd.f32 %v1914, %v2428
        %v2615 = vadd.f32 %v1919, %v2433
        %v2616 = vadd.f32 %v1922, %v2436
        %v2617 = vadd.f32 %v1927, %v2441
        %v2618 = vadd.f32 %v1930, %v2444
        %v2619 = vadd.f32 %v1935, %v2449
        %v2620 = vadd.f32 %v1938, %v2452
        %v2621 = vadd.f32 %v1943, %v2457
        %v2622 = vadd.f32 %v1946, %v2460
        %v2623 = vadd.f32 %v1951, %v2465
        %v2624 = vadd.f32 %v1954, %v2468
        %v2625 = vadd.f32 %v1959, %v2473
        %v2626 = vadd.f32 %v1962, %v2476
        %v2627 = vadd.f32 %v1967, %v2481
        %v2628 = vadd.f32 %v1970, %v2484
        %v2629 = vadd.f32 %v1975, %v2489
        %v2630 = vadd.f32 %v1978, %v2492
        %v2631 = vadd.f32 %v1983, %v2497
        %v2632 = vadd.f32 %v1986, %v2500
        %v2633 = vadd.f32 %v1991, %v2505
        %v2634 = vadd.f32 %v1994, %v2508
        %v2635 = vadd.f32 %v1999, %v2513
        %v2636 = vadd.f32 %v2002, %v2516
        %v2637 = vadd.f32 %v2007, %v2521
        %v2638 = vadd.f32 %v2010, %v2524
        %v2639 = vadd.f32 %v2015, %v2529
        %v2640 = vadd.f32 %v2018, %v2532
        %v2641 = vadd.f32 %v2023, %v2537
        %v2642 = vadd.f32 %v2026, %v2540
        %v2643 = vadd.f32 %v2031, %v2545
        %v2644 = vadd.f32 %v2034, %v2548
        %v2645 = vadd.f32 %v2039, %v2553
        %v2646 = vadd.f32 %v2042, %v2556
        %v2647 = vadd.f32 %v2047, %v2561
        %v2648 = vadd.f32 %v2050, %v2564
        %v2649 = vadd.f32 %v2055, %v2569
        %v2650 = vadd.f32 %v2058, %v2572
        %v2651 = vadd.f32 %v2063, %v2577
        %v2652 = vadd.f32 %v2066, %v2580
        %v2653 = vadd.f32 %v2071, %v2585
        %v2654 = vadd.f32 %v2074, %v2588
        %v2655 = vld [vmem:[%s279] sm:$0xff]
        %v2656 = vld [vmem:[%s279 + $0x8] sm:$0xff]
        %v2657 = vld [vmem:[%s279 + $0x18] sm:$0xff]
        %v2658 = vld [vmem:[%s279 + $0x20] sm:$0xff]
        %v2659 = vld [vmem:[%s279 + $0x30] sm:$0xff]
        %v2660 = vld [vmem:[%s279 + $0x38] sm:$0xff]
        %v2661 = vld [vmem:[%s279 + $0x48] sm:$0xff]
        %v2662 = vld [vmem:[%s279 + $0x50] sm:$0xff]
        %v2663 = vld [vmem:[%s279 + $0x60] sm:$0xff]
        %v2664 = vld [vmem:[%s279 + $0x68] sm:$0xff]
        %v2665 = vld [vmem:[%s279 + $0x78] sm:$0xff]
        %v2666 = vld [vmem:[%s279 + $0x80] sm:$0xff]
        %v2667 = vld [vmem:[%s279 + $0x90] sm:$0xff]
        %v2668 = vld [vmem:[%s279 + $0x98] sm:$0xff]
        %v2669 = vld [vmem:[%s279 + $0xa8] sm:$0xff]
        %v2670 = vld [vmem:[%s279 + $0xb0] sm:$0xff]
        %v2671 = vld [vmem:[%s279 + $0xc0] sm:$0xff]
        %v2672 = vld [vmem:[%s279 + $0xc8] sm:$0xff]
        %v2673 = vld [vmem:[%s279 + $0xd8] sm:$0xff]
        %v2674 = vld [vmem:[%s279 + $0xe0] sm:$0xff]
        %v2675 = vld [vmem:[%s279 + $0xf0] sm:$0xff]
        %v2676 = vld [vmem:[%s279 + $0xf8] sm:$0xff]
        %v2677 = vld [vmem:[%s279 + $0x108] sm:$0xff]
        %v2678 = vld [vmem:[%s279 + $0x110] sm:$0xff]
        %v2679 = vld [vmem:[%s279 + $0x120] sm:$0xff]
        %v2680 = vld [vmem:[%s279 + $0x128] sm:$0xff]
        %v2681 = vld [vmem:[%s279 + $0x138] sm:$0xff]
        %v2682 = vld [vmem:[%s279 + $0x140] sm:$0xff]
        %v2683 = vld [vmem:[%s279 + $0x150] sm:$0xff]
        %v2684 = vld [vmem:[%s279 + $0x158] sm:$0xff]
        %v2685 = vld [vmem:[%s279 + $0x168] sm:$0xff]
        %v2686 = vld [vmem:[%s279 + $0x170] sm:$0xff]
        %v2687 = vld [vmem:[%s279 + $0x1b0] sm:$0xff]
        %v2688 = vld [vmem:[%s279 + $0x1b8] sm:$0xff]
        %v2689 = vld [vmem:[%s279 + $0x1c8] sm:$0xff]
        %v2690 = vld [vmem:[%s279 + $0x1d0] sm:$0xff]
        %v2691 = vld [vmem:[%s279 + $0x1e0] sm:$0xff]
        %v2692 = vld [vmem:[%s279 + $0x1e8] sm:$0xff]
        %v2693 = vld [vmem:[%s279 + $0x1f8] sm:$0xff]
        %v2694 = vld [vmem:[%s279 + $0x200] sm:$0xff]
        %v2695 = vld [vmem:[%s279 + $0x210] sm:$0xff]
        %v2696 = vld [vmem:[%s279 + $0x218] sm:$0xff]
        %v2697 = vld [vmem:[%s279 + $0x228] sm:$0xff]
        %v2698 = vld [vmem:[%s279 + $0x230] sm:$0xff]
        %v2699 = vld [vmem:[%s279 + $0x240] sm:$0xff]
        %v2700 = vld [vmem:[%s279 + $0x248] sm:$0xff]
        %v2701 = vld [vmem:[%s279 + $0x258] sm:$0xff]
        %v2702 = vld [vmem:[%s279 + $0x260] sm:$0xff]
        %v2703 = vld [vmem:[%s279 + $0x270] sm:$0xff]
        %v2704 = vld [vmem:[%s279 + $0x278] sm:$0xff]
        %v2705 = vld [vmem:[%s279 + $0x288] sm:$0xff]
        %v2706 = vld [vmem:[%s279 + $0x290] sm:$0xff]
        %v2707 = vld [vmem:[%s279 + $0x2a0] sm:$0xff]
        %v2708 = vld [vmem:[%s279 + $0x2a8] sm:$0xff]
        %v2709 = vld [vmem:[%s279 + $0x2b8] sm:$0xff]
        %v2710 = vld [vmem:[%s279 + $0x2c0] sm:$0xff]
        %v2711 = vld [vmem:[%s279 + $0x2d0] sm:$0xff]
        %v2712 = vld [vmem:[%s279 + $0x2d8] sm:$0xff]
        %v2713 = vld [vmem:[%s279 + $0x2e8] sm:$0xff]
        %v2714 = vld [vmem:[%s279 + $0x2f0] sm:$0xff]
        %v2715 = vld [vmem:[%s279 + $0x300] sm:$0xff]
        %v2716 = vld [vmem:[%s279 + $0x308] sm:$0xff]
        %v2717 = vld [vmem:[%s279 + $0x318] sm:$0xff]
        %v2718 = vld [vmem:[%s279 + $0x320] sm:$0xff]
        %v2719 = vpack.c.bf16 %v2656, %v2655
        %v2720 = vpack.c.bf16 %v2658, %v2657
        %v2721 = vpack.c.bf16 %v2660, %v2659
        %v2722 = vpack.c.bf16 %v2662, %v2661
        %v2723 = vpack.c.bf16 %v2664, %v2663
        %v2724 = vpack.c.bf16 %v2666, %v2665
        %v2725 = vpack.c.bf16 %v2668, %v2667
        %v2726 = vpack.c.bf16 %v2670, %v2669
        %v2727 = vpack.c.bf16 %v2672, %v2671
        %v2728 = vpack.c.bf16 %v2674, %v2673
        %v2729 = vpack.c.bf16 %v2676, %v2675
        %v2730 = vpack.c.bf16 %v2678, %v2677
        %v2731 = vpack.c.bf16 %v2680, %v2679
        %v2732 = vpack.c.bf16 %v2682, %v2681
        %v2733 = vpack.c.bf16 %v2684, %v2683
        %v2734 = vpack.c.bf16 %v2686, %v2685
        %v2735 = vpack.c.bf16 %v2688, %v2687
        %v2736 = vpack.c.bf16 %v2690, %v2689
        %v2737 = vpack.c.bf16 %v2692, %v2691
        %v2738 = vpack.c.bf16 %v2694, %v2693
        %v2739 = vpack.c.bf16 %v2696, %v2695
        %v2740 = vpack.c.bf16 %v2698, %v2697
        %v2741 = vpack.c.bf16 %v2700, %v2699
        %v2742 = vpack.c.bf16 %v2702, %v2701
        %v2743 = vpack.c.bf16 %v2704, %v2703
        %v2744 = vpack.c.bf16 %v2706, %v2705
        %v2745 = vpack.c.bf16 %v2708, %v2707
        %v2746 = vpack.c.bf16 %v2710, %v2709
        %v2747 = vpack.c.bf16 %v2712, %v2711
        %v2748 = vpack.c.bf16 %v2714, %v2713
        %v2749 = vpack.c.bf16 %v2716, %v2715
        %v2750 = vpack.c.bf16 %v2718, %v2717
        %s2751 = scalar_lea.vmem [#allocation8], 96
        %v2752 = vld [vmem:[%s2751] sm:$0xf]
        %v2753 = vld [vmem:[%s2751 + $0x4] sm:$0xf]
        %v2754 = vld [vmem:[%s2751 + $0x8] sm:$0xf]
        %v2755 = vld [vmem:[%s2751 + $0xc] sm:$0xf]
        %v2756 = vld [vmem:[%s2751 + $0x10] sm:$0xf]
        %v2757 = vld [vmem:[%s2751 + $0x14] sm:$0xf]
        %v2758 = vld [vmem:[%s2751 + $0x18] sm:$0xf]
        %v2759 = vld [vmem:[%s2751 + $0x1c] sm:$0xf]
        %v2768 = vunpack.c.l.b16 %v2752
        %v2769 = vunpack.c.l.b16 %v2753
        %v2770 = vunpack.c.l.b16 %v2754
        %v2771 = vunpack.c.l.b16 %v2755
        %v2772 = vunpack.c.l.b16 %v2756
        %v2773 = vunpack.c.l.b16 %v2757
        %v2774 = vunpack.c.l.b16 %v2758
        %v2775 = vunpack.c.l.b16 %v2759
        %v2776 = vpack.c.b16 %v2769, %v2768
        %v2777 = vpack.c.b16 %v2771, %v2770
        %v2778 = vpack.c.b16 %v2773, %v2772
        %v2779 = vpack.c.b16 %v2775, %v2774
        %v2785 = vsel %vm264, %v2719, 0
        %v2788 = vsel %vm264, %v2720, 0
        %v2791 = vsel %vm264, %v2721, 0
        %v2794 = vsel %vm264, %v2722, 0
        %v2797 = vsel %vm264, %v2723, 0
        %v2800 = vsel %vm264, %v2724, 0
        %v2803 = vsel %vm264, %v2725, 0
        %v2806 = vsel %vm264, %v2726, 0
        %v2809 = vsel %vm264, %v2727, 0
        %v2812 = vsel %vm264, %v2728, 0
        %v2815 = vsel %vm264, %v2729, 0
        %v2818 = vsel %vm264, %v2730, 0
        %v2821 = vsel %vm264, %v2731, 0
        %v2824 = vsel %vm264, %v2732, 0
        %v2827 = vsel %vm264, %v2733, 0
        %v2830 = vsel %vm264, %v2734, 0
        %v2833 = vsel %vm264, %v2735, 0
        %v2836 = vsel %vm264, %v2736, 0
        %v2839 = vsel %vm264, %v2737, 0
        %v2842 = vsel %vm264, %v2738, 0
        %v2845 = vsel %vm264, %v2739, 0
        %v2848 = vsel %vm264, %v2740, 0
        %v2851 = vsel %vm264, %v2741, 0
        %v2854 = vsel %vm264, %v2742, 0
        %v2857 = vsel %vm264, %v2743, 0
        %v2860 = vsel %vm264, %v2744, 0
        %v2863 = vsel %vm264, %v2745, 0
        %v2866 = vsel %vm264, %v2746, 0
        %v2869 = vsel %vm264, %v2747, 0
        %v2872 = vsel %vm264, %v2748, 0
        %v2875 = vsel %vm264, %v2749, 0
        %v2878 = vsel %vm264, %v2750, 0
        %2880 = vmatprep.subr.bf16.mxu0 0
        %2881 = vmatpush1.bf16.msra.mxu0 0
        %2882 = vmatprep.subr.bf16.mxu0 0
        %2883 = vmatpush1.bf16.msra.mxu0 0
        %2884 = vmatprep.subr.bf16.mxu0 0
        %2885 = vmatpush1.bf16.msra.mxu0 0
        %2886 = vmatprep.subr.bf16.mxu0 0
        %2887 = vmatpush1.bf16.msra.mxu0 0
        %2888 = vmatprep.subr.bf16.mxu0 0
        %2889 = vmatpush1.bf16.msra.mxu0 %v2779
        %2890 = vmatprep.subr.bf16.mxu0 0
        %2891 = vmatpush1.bf16.msra.mxu0 %v2778
        %2892 = vmatprep.subr.bf16.mxu0 0
        %2893 = vmatpush1.bf16.msra.mxu0 %v2777
        %2894 = vmatprep.subr.bf16.mxu0 0
        %2895 = vmatpush1.bf16.msra.mxu0 %v2776
        %2896 = vmatprep.subr.bf16.mxu0 0
        %2897 = vmatpush2.bf16.msra.mxu0 0
        %2898 = vmatprep.subr.bf16.mxu0 0
        %2899 = vmatpush2.bf16.msra.mxu0 0
        %2900 = vmatprep.subr.bf16.mxu0 0
        %2901 = vmatpush2.bf16.msra.mxu0 0
        %2902 = vmatprep.subr.bf16.mxu0 0
        %2903 = vmatpush2.bf16.msra.mxu0 0
        %2904 = vmatprep.subr.bf16.mxu0 0
        %2905 = vmatpush2.bf16.msra.mxu0 0
        %2906 = vmatprep.subr.bf16.mxu0 0
        %2907 = vmatpush2.bf16.msra.mxu0 0
        %2908 = vmatprep.subr.bf16.mxu0 0
        %2909 = vmatpush2.bf16.msra.mxu0 0
        %2910 = vmatprep.subr.bf16.mxu0 0
        %2911 = vmatpush2.bf16.msra.mxu0 0
        %2912 = vmatprep.mubr.bf16.mxu0 0
        %2913 = vmatmul.mubr.bf16.gmra.mxu0 %v2785
        %v2914 = vpop.f32.mrf.mxu0
        %v2915 = vadd.f32 0.0, %v2914
        %v2916 = vpop.f32.mrf.mxu0
        %v2917 = vpop.f32.mrf.mxu0
        %v2918 = vadd.f32 0.0, %v2917
        %v2919 = vpop.f32.mrf.mxu0
        %2920 = vmatprep.mubr.bf16.mxu0 0
        %2921 = vmatmul.mubr.bf16.gmra.mxu0 %v2788
        %v2922 = vpop.f32.mrf.mxu0
        %v2923 = vadd.f32 0.0, %v2922
        %v2924 = vpop.f32.mrf.mxu0
        %v2925 = vpop.f32.mrf.mxu0
        %v2926 = vadd.f32 0.0, %v2925
        %v2927 = vpop.f32.mrf.mxu0
        %2928 = vmatprep.mubr.bf16.mxu0 0
        %2929 = vmatmul.mubr.bf16.gmra.mxu0 %v2791
        %v2930 = vpop.f32.mrf.mxu0
        %v2931 = vadd.f32 0.0, %v2930
        %v2932 = vpop.f32.mrf.mxu0
        %v2933 = vpop.f32.mrf.mxu0
        %v2934 = vadd.f32 0.0, %v2933
        %v2935 = vpop.f32.mrf.mxu0
        %2936 = vmatprep.mubr.bf16.mxu0 0
        %2937 = vmatmul.mubr.bf16.gmra.mxu0 %v2794
        %v2938 = vpop.f32.mrf.mxu0
        %v2939 = vadd.f32 0.0, %v2938
        %v2940 = vpop.f32.mrf.mxu0
        %v2941 = vpop.f32.mrf.mxu0
        %v2942 = vadd.f32 0.0, %v2941
        %v2943 = vpop.f32.mrf.mxu0
        %2944 = vmatprep.mubr.bf16.mxu0 0
        %2945 = vmatmul.mubr.bf16.gmra.mxu0 %v2797
        %v2946 = vpop.f32.mrf.mxu0
        %v2947 = vadd.f32 0.0, %v2946
        %v2948 = vpop.f32.mrf.mxu0
        %v2949 = vpop.f32.mrf.mxu0
        %v2950 = vadd.f32 0.0, %v2949
        %v2951 = vpop.f32.mrf.mxu0
        %2952 = vmatprep.mubr.bf16.mxu0 0
        %2953 = vmatmul.mubr.bf16.gmra.mxu0 %v2800
        %v2954 = vpop.f32.mrf.mxu0
        %v2955 = vadd.f32 0.0, %v2954
        %v2956 = vpop.f32.mrf.mxu0
        %v2957 = vpop.f32.mrf.mxu0
        %v2958 = vadd.f32 0.0, %v2957
        %v2959 = vpop.f32.mrf.mxu0
        %2960 = vmatprep.mubr.bf16.mxu0 0
        %2961 = vmatmul.mubr.bf16.gmra.mxu0 %v2803
        %v2962 = vpop.f32.mrf.mxu0
        %v2963 = vadd.f32 0.0, %v2962
        %v2964 = vpop.f32.mrf.mxu0
        %v2965 = vpop.f32.mrf.mxu0
        %v2966 = vadd.f32 0.0, %v2965
        %v2967 = vpop.f32.mrf.mxu0
        %2968 = vmatprep.mubr.bf16.mxu0 0
        %2969 = vmatmul.mubr.bf16.gmra.mxu0 %v2806
        %v2970 = vpop.f32.mrf.mxu0
        %v2971 = vadd.f32 0.0, %v2970
        %v2972 = vpop.f32.mrf.mxu0
        %v2973 = vpop.f32.mrf.mxu0
        %v2974 = vadd.f32 0.0, %v2973
        %v2975 = vpop.f32.mrf.mxu0
        %2976 = vmatprep.mubr.bf16.mxu0 0
        %2977 = vmatmul.mubr.bf16.gmra.mxu0 %v2809
        %v2978 = vpop.f32.mrf.mxu0
        %v2979 = vadd.f32 0.0, %v2978
        %v2980 = vpop.f32.mrf.mxu0
        %v2981 = vpop.f32.mrf.mxu0
        %v2982 = vadd.f32 0.0, %v2981
        %v2983 = vpop.f32.mrf.mxu0
        %2984 = vmatprep.mubr.bf16.mxu0 0
        %2985 = vmatmul.mubr.bf16.gmra.mxu0 %v2812
        %v2986 = vpop.f32.mrf.mxu0
        %v2987 = vadd.f32 0.0, %v2986
        %v2988 = vpop.f32.mrf.mxu0
        %v2989 = vpop.f32.mrf.mxu0
        %v2990 = vadd.f32 0.0, %v2989
        %v2991 = vpop.f32.mrf.mxu0
        %2992 = vmatprep.mubr.bf16.mxu0 0
        %2993 = vmatmul.mubr.bf16.gmra.mxu0 %v2815
        %v2994 = vpop.f32.mrf.mxu0
        %v2995 = vadd.f32 0.0, %v2994
        %v2996 = vpop.f32.mrf.mxu0
        %v2997 = vpop.f32.mrf.mxu0
        %v2998 = vadd.f32 0.0, %v2997
        %v2999 = vpop.f32.mrf.mxu0
        %3000 = vmatprep.mubr.bf16.mxu0 0
        %3001 = vmatmul.mubr.bf16.gmra.mxu0 %v2818
        %v3002 = vpop.f32.mrf.mxu0
        %v3003 = vadd.f32 0.0, %v3002
        %v3004 = vpop.f32.mrf.mxu0
        %v3005 = vpop.f32.mrf.mxu0
        %v3006 = vadd.f32 0.0, %v3005
        %v3007 = vpop.f32.mrf.mxu0
        %3008 = vmatprep.mubr.bf16.mxu0 0
        %3009 = vmatmul.mubr.bf16.gmra.mxu0 %v2821
        %v3010 = vpop.f32.mrf.mxu0
        %v3011 = vadd.f32 0.0, %v3010
        %v3012 = vpop.f32.mrf.mxu0
        %v3013 = vpop.f32.mrf.mxu0
        %v3014 = vadd.f32 0.0, %v3013
        %v3015 = vpop.f32.mrf.mxu0
        %3016 = vmatprep.mubr.bf16.mxu0 0
        %3017 = vmatmul.mubr.bf16.gmra.mxu0 %v2824
        %v3018 = vpop.f32.mrf.mxu0
        %v3019 = vadd.f32 0.0, %v3018
        %v3020 = vpop.f32.mrf.mxu0
        %v3021 = vpop.f32.mrf.mxu0
        %v3022 = vadd.f32 0.0, %v3021
        %v3023 = vpop.f32.mrf.mxu0
        %3024 = vmatprep.mubr.bf16.mxu0 0
        %3025 = vmatmul.mubr.bf16.gmra.mxu0 %v2827
        %v3026 = vpop.f32.mrf.mxu0
        %v3027 = vadd.f32 0.0, %v3026
        %v3028 = vpop.f32.mrf.mxu0
        %v3029 = vpop.f32.mrf.mxu0
        %v3030 = vadd.f32 0.0, %v3029
        %v3031 = vpop.f32.mrf.mxu0
        %3032 = vmatprep.mubr.bf16.mxu0 0
        %3033 = vmatmul.mubr.bf16.gmra.mxu0 %v2830
        %v3034 = vpop.f32.mrf.mxu0
        %v3035 = vadd.f32 0.0, %v3034
        %v3036 = vpop.f32.mrf.mxu0
        %v3037 = vpop.f32.mrf.mxu0
        %v3038 = vadd.f32 0.0, %v3037
        %v3039 = vpop.f32.mrf.mxu0
        %3040 = vmatprep.mubr.bf16.mxu0 0
        %3041 = vmatmul.mubr.bf16.gmra.mxu0 %v2833
        %v3042 = vpop.f32.mrf.mxu0
        %v3043 = vadd.f32 0.0, %v3042
        %v3044 = vpop.f32.mrf.mxu0
        %v3045 = vpop.f32.mrf.mxu0
        %v3046 = vadd.f32 0.0, %v3045
        %v3047 = vpop.f32.mrf.mxu0
        %3048 = vmatprep.mubr.bf16.mxu0 0
        %3049 = vmatmul.mubr.bf16.gmra.mxu0 %v2836
        %v3050 = vpop.f32.mrf.mxu0
        %v3051 = vadd.f32 0.0, %v3050
        %v3052 = vpop.f32.mrf.mxu0
        %v3053 = vpop.f32.mrf.mxu0
        %v3054 = vadd.f32 0.0, %v3053
        %v3055 = vpop.f32.mrf.mxu0
        %3056 = vmatprep.mubr.bf16.mxu0 0
        %3057 = vmatmul.mubr.bf16.gmra.mxu0 %v2839
        %v3058 = vpop.f32.mrf.mxu0
        %v3059 = vadd.f32 0.0, %v3058
        %v3060 = vpop.f32.mrf.mxu0
        %v3061 = vpop.f32.mrf.mxu0
        %v3062 = vadd.f32 0.0, %v3061
        %v3063 = vpop.f32.mrf.mxu0
        %3064 = vmatprep.mubr.bf16.mxu0 0
        %3065 = vmatmul.mubr.bf16.gmra.mxu0 %v2842
        %v3066 = vpop.f32.mrf.mxu0
        %v3067 = vadd.f32 0.0, %v3066
        %v3068 = vpop.f32.mrf.mxu0
        %v3069 = vpop.f32.mrf.mxu0
        %v3070 = vadd.f32 0.0, %v3069
        %v3071 = vpop.f32.mrf.mxu0
        %3072 = vmatprep.mubr.bf16.mxu0 0
        %3073 = vmatmul.mubr.bf16.gmra.mxu0 %v2845
        %v3074 = vpop.f32.mrf.mxu0
        %v3075 = vadd.f32 0.0, %v3074
        %v3076 = vpop.f32.mrf.mxu0
        %v3077 = vpop.f32.mrf.mxu0
        %v3078 = vadd.f32 0.0, %v3077
        %v3079 = vpop.f32.mrf.mxu0
        %3080 = vmatprep.mubr.bf16.mxu0 0
        %3081 = vmatmul.mubr.bf16.gmra.mxu0 %v2848
        %v3082 = vpop.f32.mrf.mxu0
        %v3083 = vadd.f32 0.0, %v3082
        %v3084 = vpop.f32.mrf.mxu0
        %v3085 = vpop.f32.mrf.mxu0
        %v3086 = vadd.f32 0.0, %v3085
        %v3087 = vpop.f32.mrf.mxu0
        %3088 = vmatprep.mubr.bf16.mxu0 0
        %3089 = vmatmul.mubr.bf16.gmra.mxu0 %v2851
        %v3090 = vpop.f32.mrf.mxu0
        %v3091 = vadd.f32 0.0, %v3090
        %v3092 = vpop.f32.mrf.mxu0
        %v3093 = vpop.f32.mrf.mxu0
        %v3094 = vadd.f32 0.0, %v3093
        %v3095 = vpop.f32.mrf.mxu0
        %3096 = vmatprep.mubr.bf16.mxu0 0
        %3097 = vmatmul.mubr.bf16.gmra.mxu0 %v2854
        %v3098 = vpop.f32.mrf.mxu0
        %v3099 = vadd.f32 0.0, %v3098
        %v3100 = vpop.f32.mrf.mxu0
        %v3101 = vpop.f32.mrf.mxu0
        %v3102 = vadd.f32 0.0, %v3101
        %v3103 = vpop.f32.mrf.mxu0
        %3104 = vmatprep.mubr.bf16.mxu0 0
        %3105 = vmatmul.mubr.bf16.gmra.mxu0 %v2857
        %v3106 = vpop.f32.mrf.mxu0
        %v3107 = vadd.f32 0.0, %v3106
        %v3108 = vpop.f32.mrf.mxu0
        %v3109 = vpop.f32.mrf.mxu0
        %v3110 = vadd.f32 0.0, %v3109
        %v3111 = vpop.f32.mrf.mxu0
        %3112 = vmatprep.mubr.bf16.mxu0 0
        %3113 = vmatmul.mubr.bf16.gmra.mxu0 %v2860
        %v3114 = vpop.f32.mrf.mxu0
        %v3115 = vadd.f32 0.0, %v3114
        %v3116 = vpop.f32.mrf.mxu0
        %v3117 = vpop.f32.mrf.mxu0
        %v3118 = vadd.f32 0.0, %v3117
        %v3119 = vpop.f32.mrf.mxu0
        %3120 = vmatprep.mubr.bf16.mxu0 0
        %3121 = vmatmul.mubr.bf16.gmra.mxu0 %v2863
        %v3122 = vpop.f32.mrf.mxu0
        %v3123 = vadd.f32 0.0, %v3122
        %v3124 = vpop.f32.mrf.mxu0
        %v3125 = vpop.f32.mrf.mxu0
        %v3126 = vadd.f32 0.0, %v3125
        %v3127 = vpop.f32.mrf.mxu0
        %3128 = vmatprep.mubr.bf16.mxu0 0
        %3129 = vmatmul.mubr.bf16.gmra.mxu0 %v2866
        %v3130 = vpop.f32.mrf.mxu0
        %v3131 = vadd.f32 0.0, %v3130
        %v3132 = vpop.f32.mrf.mxu0
        %v3133 = vpop.f32.mrf.mxu0
        %v3134 = vadd.f32 0.0, %v3133
        %v3135 = vpop.f32.mrf.mxu0
        %3136 = vmatprep.mubr.bf16.mxu0 0
        %3137 = vmatmul.mubr.bf16.gmra.mxu0 %v2869
        %v3138 = vpop.f32.mrf.mxu0
        %v3139 = vadd.f32 0.0, %v3138
        %v3140 = vpop.f32.mrf.mxu0
        %v3141 = vpop.f32.mrf.mxu0
        %v3142 = vadd.f32 0.0, %v3141
        %v3143 = vpop.f32.mrf.mxu0
        %3144 = vmatprep.mubr.bf16.mxu0 0
        %3145 = vmatmul.mubr.bf16.gmra.mxu0 %v2872
        %v3146 = vpop.f32.mrf.mxu0
        %v3147 = vadd.f32 0.0, %v3146
        %v3148 = vpop.f32.mrf.mxu0
        %v3149 = vpop.f32.mrf.mxu0
        %v3150 = vadd.f32 0.0, %v3149
        %v3151 = vpop.f32.mrf.mxu0
        %3152 = vmatprep.mubr.bf16.mxu0 0
        %3153 = vmatmul.mubr.bf16.gmra.mxu0 %v2875
        %v3154 = vpop.f32.mrf.mxu0
        %v3155 = vadd.f32 0.0, %v3154
        %v3156 = vpop.f32.mrf.mxu0
        %v3157 = vpop.f32.mrf.mxu0
        %v3158 = vadd.f32 0.0, %v3157
        %v3159 = vpop.f32.mrf.mxu0
        %3160 = vmatprep.mubr.bf16.mxu0 0
        %3161 = vmatmul.mubr.bf16.gmra.mxu0 %v2878
        %v3162 = vpop.f32.mrf.mxu0
        %v3163 = vadd.f32 0.0, %v3162
        %v3164 = vpop.f32.mrf.mxu0
        %v3165 = vpop.f32.mrf.mxu0
        %v3166 = vadd.f32 0.0, %v3165
        %v3167 = vpop.f32.mrf.mxu0
        %3168 = vdwg.mxu0
        %v3169 = vadd.f32 %v2591, %v2915
        %v3170 = vadd.f32 %v2592, %v2918
        %v3171 = vadd.f32 %v2593, %v2923
        %v3172 = vadd.f32 %v2594, %v2926
        %v3173 = vadd.f32 %v2595, %v2931
        %v3174 = vadd.f32 %v2596, %v2934
        %v3175 = vadd.f32 %v2597, %v2939
        %v3176 = vadd.f32 %v2598, %v2942
        %v3177 = vadd.f32 %v2599, %v2947
        %v3178 = vadd.f32 %v2600, %v2950
        %v3179 = vadd.f32 %v2601, %v2955
        %v3180 = vadd.f32 %v2602, %v2958
        %v3181 = vadd.f32 %v2603, %v2963
        %v3182 = vadd.f32 %v2604, %v2966
        %v3183 = vadd.f32 %v2605, %v2971
        %v3184 = vadd.f32 %v2606, %v2974
        %v3185 = vadd.f32 %v2607, %v2979
        %v3186 = vadd.f32 %v2608, %v2982
        %v3187 = vadd.f32 %v2609, %v2987
        %v3188 = vadd.f32 %v2610, %v2990
        %v3189 = vadd.f32 %v2611, %v2995
        %v3190 = vadd.f32 %v2612, %v2998
        %v3191 = vadd.f32 %v2613, %v3003
        %v3192 = vadd.f32 %v2614, %v3006
        %v3193 = vadd.f32 %v2615, %v3011
        %v3194 = vadd.f32 %v2616, %v3014
        %v3195 = vadd.f32 %v2617, %v3019
        %v3196 = vadd.f32 %v2618, %v3022
        %v3197 = vadd.f32 %v2619, %v3027
        %v3198 = vadd.f32 %v2620, %v3030
        %v3199 = vadd.f32 %v2621, %v3035
        %v3200 = vadd.f32 %v2622, %v3038
        %v3201 = vadd.f32 %v2623, %v3043
        %v3202 = vadd.f32 %v2624, %v3046
        %v3203 = vadd.f32 %v2625, %v3051
        %v3204 = vadd.f32 %v2626, %v3054
        %v3205 = vadd.f32 %v2627, %v3059
        %v3206 = vadd.f32 %v2628, %v3062
        %v3207 = vadd.f32 %v2629, %v3067
        %v3208 = vadd.f32 %v2630, %v3070
        %v3209 = vadd.f32 %v2631, %v3075
        %v3210 = vadd.f32 %v2632, %v3078
        %v3211 = vadd.f32 %v2633, %v3083
        %v3212 = vadd.f32 %v2634, %v3086
        %v3213 = vadd.f32 %v2635, %v3091
        %v3214 = vadd.f32 %v2636, %v3094
        %v3215 = vadd.f32 %v2637, %v3099
        %v3216 = vadd.f32 %v2638, %v3102
        %v3217 = vadd.f32 %v2639, %v3107
        %v3218 = vadd.f32 %v2640, %v3110
        %v3219 = vadd.f32 %v2641, %v3115
        %v3220 = vadd.f32 %v2642, %v3118
        %v3221 = vadd.f32 %v2643, %v3123
        %v3222 = vadd.f32 %v2644, %v3126
        %v3223 = vadd.f32 %v2645, %v3131
        %v3224 = vadd.f32 %v2646, %v3134
        %v3225 = vadd.f32 %v2647, %v3139
        %v3226 = vadd.f32 %v2648, %v3142
        %v3227 = vadd.f32 %v2649, %v3147
        %v3228 = vadd.f32 %v2650, %v3150
        %v3229 = vadd.f32 %v2651, %v3155
        %v3230 = vadd.f32 %v2652, %v3158
        %v3231 = vadd.f32 %v2653, %v3163
        %v3232 = vadd.f32 %v2654, %v3166
        %v3233 = vld [vmem:[%s279 + $0x1] sm:$0xff]
        %v3234 = vld [vmem:[%s279 + $0x9] sm:$0xff]
        %v3235 = vld [vmem:[%s279 + $0x19] sm:$0xff]
        %v3236 = vld [vmem:[%s279 + $0x21] sm:$0xff]
        %v3237 = vld [vmem:[%s279 + $0x31] sm:$0xff]
        %v3238 = vld [vmem:[%s279 + $0x39] sm:$0xff]
        %v3239 = vld [vmem:[%s279 + $0x49] sm:$0xff]
        %v3240 = vld [vmem:[%s279 + $0x51] sm:$0xff]
        %v3241 = vld [vmem:[%s279 + $0x61] sm:$0xff]
        %v3242 = vld [vmem:[%s279 + $0x69] sm:$0xff]
        %v3243 = vld [vmem:[%s279 + $0x79] sm:$0xff]
        %v3244 = vld [vmem:[%s279 + $0x81] sm:$0xff]
        %v3245 = vld [vmem:[%s279 + $0x91] sm:$0xff]
        %v3246 = vld [vmem:[%s279 + $0x99] sm:$0xff]
        %v3247 = vld [vmem:[%s279 + $0xa9] sm:$0xff]
        %v3248 = vld [vmem:[%s279 + $0xb1] sm:$0xff]
        %v3249 = vld [vmem:[%s279 + $0xc1] sm:$0xff]
        %v3250 = vld [vmem:[%s279 + $0xc9] sm:$0xff]
        %v3251 = vld [vmem:[%s279 + $0xd9] sm:$0xff]
        %v3252 = vld [vmem:[%s279 + $0xe1] sm:$0xff]
        %v3253 = vld [vmem:[%s279 + $0xf1] sm:$0xff]
        %v3254 = vld [vmem:[%s279 + $0xf9] sm:$0xff]
        %v3255 = vld [vmem:[%s279 + $0x109] sm:$0xff]
        %v3256 = vld [vmem:[%s279 + $0x111] sm:$0xff]
        %v3257 = vld [vmem:[%s279 + $0x121] sm:$0xff]
        %v3258 = vld [vmem:[%s279 + $0x129] sm:$0xff]
        %v3259 = vld [vmem:[%s279 + $0x139] sm:$0xff]
        %v3260 = vld [vmem:[%s279 + $0x141] sm:$0xff]
        %v3261 = vld [vmem:[%s279 + $0x151] sm:$0xff]
        %v3262 = vld [vmem:[%s279 + $0x159] sm:$0xff]
        %v3263 = vld [vmem:[%s279 + $0x169] sm:$0xff]
        %v3264 = vld [vmem:[%s279 + $0x171] sm:$0xff]
        %v3265 = vld [vmem:[%s279 + $0x1b1] sm:$0xff]
        %v3266 = vld [vmem:[%s279 + $0x1b9] sm:$0xff]
        %v3267 = vld [vmem:[%s279 + $0x1c9] sm:$0xff]
        %v3268 = vld [vmem:[%s279 + $0x1d1] sm:$0xff]
        %v3269 = vld [vmem:[%s279 + $0x1e1] sm:$0xff]
        %v3270 = vld [vmem:[%s279 + $0x1e9] sm:$0xff]
        %v3271 = vld [vmem:[%s279 + $0x1f9] sm:$0xff]
        %v3272 = vld [vmem:[%s279 + $0x201] sm:$0xff]
        %v3273 = vld [vmem:[%s279 + $0x211] sm:$0xff]
        %v3274 = vld [vmem:[%s279 + $0x219] sm:$0xff]
        %v3275 = vld [vmem:[%s279 + $0x229] sm:$0xff]
        %v3276 = vld [vmem:[%s279 + $0x231] sm:$0xff]
        %v3277 = vld [vmem:[%s279 + $0x241] sm:$0xff]
        %v3278 = vld [vmem:[%s279 + $0x249] sm:$0xff]
        %v3279 = vld [vmem:[%s279 + $0x259] sm:$0xff]
        %v3280 = vld [vmem:[%s279 + $0x261] sm:$0xff]
        %v3281 = vld [vmem:[%s279 + $0x271] sm:$0xff]
        %v3282 = vld [vmem:[%s279 + $0x279] sm:$0xff]
        %v3283 = vld [vmem:[%s279 + $0x289] sm:$0xff]
        %v3284 = vld [vmem:[%s279 + $0x291] sm:$0xff]
        %v3285 = vld [vmem:[%s279 + $0x2a1] sm:$0xff]
        %v3286 = vld [vmem:[%s279 + $0x2a9] sm:$0xff]
        %v3287 = vld [vmem:[%s279 + $0x2b9] sm:$0xff]
        %v3288 = vld [vmem:[%s279 + $0x2c1] sm:$0xff]
        %v3289 = vld [vmem:[%s279 + $0x2d1] sm:$0xff]
        %v3290 = vld [vmem:[%s279 + $0x2d9] sm:$0xff]
        %v3291 = vld [vmem:[%s279 + $0x2e9] sm:$0xff]
        %v3292 = vld [vmem:[%s279 + $0x2f1] sm:$0xff]
        %v3293 = vld [vmem:[%s279 + $0x301] sm:$0xff]
        %v3294 = vld [vmem:[%s279 + $0x309] sm:$0xff]
        %v3295 = vld [vmem:[%s279 + $0x319] sm:$0xff]
        %v3296 = vld [vmem:[%s279 + $0x321] sm:$0xff]
        %v3297 = vpack.c.bf16 %v3234, %v3233
        %v3298 = vpack.c.bf16 %v3236, %v3235
        %v3299 = vpack.c.bf16 %v3238, %v3237
        %v3300 = vpack.c.bf16 %v3240, %v3239
        %v3301 = vpack.c.bf16 %v3242, %v3241
        %v3302 = vpack.c.bf16 %v3244, %v3243
        %v3303 = vpack.c.bf16 %v3246, %v3245
        %v3304 = vpack.c.bf16 %v3248, %v3247
        %v3305 = vpack.c.bf16 %v3250, %v3249
        %v3306 = vpack.c.bf16 %v3252, %v3251
        %v3307 = vpack.c.bf16 %v3254, %v3253
        %v3308 = vpack.c.bf16 %v3256, %v3255
        %v3309 = vpack.c.bf16 %v3258, %v3257
        %v3310 = vpack.c.bf16 %v3260, %v3259
        %v3311 = vpack.c.bf16 %v3262, %v3261
        %v3312 = vpack.c.bf16 %v3264, %v3263
        %v3313 = vpack.c.bf16 %v3266, %v3265
        %v3314 = vpack.c.bf16 %v3268, %v3267
        %v3315 = vpack.c.bf16 %v3270, %v3269
        %v3316 = vpack.c.bf16 %v3272, %v3271
        %v3317 = vpack.c.bf16 %v3274, %v3273
        %v3318 = vpack.c.bf16 %v3276, %v3275
        %v3319 = vpack.c.bf16 %v3278, %v3277
        %v3320 = vpack.c.bf16 %v3280, %v3279
        %v3321 = vpack.c.bf16 %v3282, %v3281
        %v3322 = vpack.c.bf16 %v3284, %v3283
        %v3323 = vpack.c.bf16 %v3286, %v3285
        %v3324 = vpack.c.bf16 %v3288, %v3287
        %v3325 = vpack.c.bf16 %v3290, %v3289
        %v3326 = vpack.c.bf16 %v3292, %v3291
        %v3327 = vpack.c.bf16 %v3294, %v3293
        %v3328 = vpack.c.bf16 %v3296, %v3295
        %s3329 = scalar_lea.vmem [#allocation8], 128
        %v3330 = vld [vmem:[%s3329] sm:$0xf]
        %v3331 = vld [vmem:[%s3329 + $0x4] sm:$0xf]
        %v3332 = vld [vmem:[%s3329 + $0x8] sm:$0xf]
        %v3333 = vld [vmem:[%s3329 + $0xc] sm:$0xf]
        %v3334 = vld [vmem:[%s3329 + $0x10] sm:$0xf]
        %v3335 = vld [vmem:[%s3329 + $0x14] sm:$0xf]
        %v3336 = vld [vmem:[%s3329 + $0x18] sm:$0xf]
        %v3337 = vld [vmem:[%s3329 + $0x1c] sm:$0xf]
        %v3346 = vunpack.c.l.b16 %v3330
        %v3347 = vunpack.c.l.b16 %v3331
        %v3348 = vunpack.c.l.b16 %v3332
        %v3349 = vunpack.c.l.b16 %v3333
        %v3350 = vunpack.c.l.b16 %v3334
        %v3351 = vunpack.c.l.b16 %v3335
        %v3352 = vunpack.c.l.b16 %v3336
        %v3353 = vunpack.c.l.b16 %v3337
        %v3354 = vpack.c.b16 %v3347, %v3346
        %v3355 = vpack.c.b16 %v3349, %v3348
        %v3356 = vpack.c.b16 %v3351, %v3350
        %v3357 = vpack.c.b16 %v3353, %v3352
        %v3363 = vsel %vm264, %v3297, 0
        %v3366 = vsel %vm264, %v3298, 0
        %v3369 = vsel %vm264, %v3299, 0
        %v3372 = vsel %vm264, %v3300, 0
        %v3375 = vsel %vm264, %v3301, 0
        %v3378 = vsel %vm264, %v3302, 0
        %v3381 = vsel %vm264, %v3303, 0
        %v3384 = vsel %vm264, %v3304, 0
        %v3387 = vsel %vm264, %v3305, 0
        %v3390 = vsel %vm264, %v3306, 0
        %v3393 = vsel %vm264, %v3307, 0
        %v3396 = vsel %vm264, %v3308, 0
        %v3399 = vsel %vm264, %v3309, 0
        %v3402 = vsel %vm264, %v3310, 0
        %v3405 = vsel %vm264, %v3311, 0
        %v3408 = vsel %vm264, %v3312, 0
        %v3411 = vsel %vm264, %v3313, 0
        %v3414 = vsel %vm264, %v3314, 0
        %v3417 = vsel %vm264, %v3315, 0
        %v3420 = vsel %vm264, %v3316, 0
        %v3423 = vsel %vm264, %v3317, 0
        %v3426 = vsel %vm264, %v3318, 0
        %v3429 = vsel %vm264, %v3319, 0
        %v3432 = vsel %vm264, %v3320, 0
        %v3435 = vsel %vm264, %v3321, 0
        %v3438 = vsel %vm264, %v3322, 0
        %v3441 = vsel %vm264, %v3323, 0
        %v3444 = vsel %vm264, %v3324, 0
        %v3447 = vsel %vm264, %v3325, 0
        %v3450 = vsel %vm264, %v3326, 0
        %v3453 = vsel %vm264, %v3327, 0
        %v3456 = vsel %vm264, %v3328, 0
        %3458 = vmatprep.subr.bf16.mxu0 0
        %3459 = vmatpush1.bf16.msra.mxu0 0
        %3460 = vmatprep.subr.bf16.mxu0 0
        %3461 = vmatpush1.bf16.msra.mxu0 0
        %3462 = vmatprep.subr.bf16.mxu0 0
        %3463 = vmatpush1.bf16.msra.mxu0 0
        %3464 = vmatprep.subr.bf16.mxu0 0
        %3465 = vmatpush1.bf16.msra.mxu0 0
        %3466 = vmatprep.subr.bf16.mxu0 0
        %3467 = vmatpush1.bf16.msra.mxu0 %v3357
        %3468 = vmatprep.subr.bf16.mxu0 0
        %3469 = vmatpush1.bf16.msra.mxu0 %v3356
        %3470 = vmatprep.subr.bf16.mxu0 0
        %3471 = vmatpush1.bf16.msra.mxu0 %v3355
        %3472 = vmatprep.subr.bf16.mxu0 0
        %3473 = vmatpush1.bf16.msra.mxu0 %v3354
        %3474 = vmatprep.subr.bf16.mxu0 0
        %3475 = vmatpush2.bf16.msra.mxu0 0
        %3476 = vmatprep.subr.bf16.mxu0 0
        %3477 = vmatpush2.bf16.msra.mxu0 0
        %3478 = vmatprep.subr.bf16.mxu0 0
        %3479 = vmatpush2.bf16.msra.mxu0 0
        %3480 = vmatprep.subr.bf16.mxu0 0
        %3481 = vmatpush2.bf16.msra.mxu0 0
        %3482 = vmatprep.subr.bf16.mxu0 0
        %3483 = vmatpush2.bf16.msra.mxu0 0
        %3484 = vmatprep.subr.bf16.mxu0 0
        %3485 = vmatpush2.bf16.msra.mxu0 0
        %3486 = vmatprep.subr.bf16.mxu0 0
        %3487 = vmatpush2.bf16.msra.mxu0 0
        %3488 = vmatprep.subr.bf16.mxu0 0
        %3489 = vmatpush2.bf16.msra.mxu0 0
        %3490 = vmatprep.mubr.bf16.mxu0 0
        %3491 = vmatmul.mubr.bf16.gmra.mxu0 %v3363
        %v3492 = vpop.f32.mrf.mxu0
        %v3493 = vadd.f32 0.0, %v3492
        %v3494 = vpop.f32.mrf.mxu0
        %v3495 = vpop.f32.mrf.mxu0
        %v3496 = vadd.f32 0.0, %v3495
        %v3497 = vpop.f32.mrf.mxu0
        %3498 = vmatprep.mubr.bf16.mxu0 0
        %3499 = vmatmul.mubr.bf16.gmra.mxu0 %v3366
        %v3500 = vpop.f32.mrf.mxu0
        %v3501 = vadd.f32 0.0, %v3500
        %v3502 = vpop.f32.mrf.mxu0
        %v3503 = vpop.f32.mrf.mxu0
        %v3504 = vadd.f32 0.0, %v3503
        %v3505 = vpop.f32.mrf.mxu0
        %3506 = vmatprep.mubr.bf16.mxu0 0
        %3507 = vmatmul.mubr.bf16.gmra.mxu0 %v3369
        %v3508 = vpop.f32.mrf.mxu0
        %v3509 = vadd.f32 0.0, %v3508
        %v3510 = vpop.f32.mrf.mxu0
        %v3511 = vpop.f32.mrf.mxu0
        %v3512 = vadd.f32 0.0, %v3511
        %v3513 = vpop.f32.mrf.mxu0
        %3514 = vmatprep.mubr.bf16.mxu0 0
        %3515 = vmatmul.mubr.bf16.gmra.mxu0 %v3372
        %v3516 = vpop.f32.mrf.mxu0
        %v3517 = vadd.f32 0.0, %v3516
        %v3518 = vpop.f32.mrf.mxu0
        %v3519 = vpop.f32.mrf.mxu0
        %v3520 = vadd.f32 0.0, %v3519
        %v3521 = vpop.f32.mrf.mxu0
        %3522 = vmatprep.mubr.bf16.mxu0 0
        %3523 = vmatmul.mubr.bf16.gmra.mxu0 %v3375
        %v3524 = vpop.f32.mrf.mxu0
        %v3525 = vadd.f32 0.0, %v3524
        %v3526 = vpop.f32.mrf.mxu0
        %v3527 = vpop.f32.mrf.mxu0
        %v3528 = vadd.f32 0.0, %v3527
        %v3529 = vpop.f32.mrf.mxu0
        %3530 = vmatprep.mubr.bf16.mxu0 0
        %3531 = vmatmul.mubr.bf16.gmra.mxu0 %v3378
        %v3532 = vpop.f32.mrf.mxu0
        %v3533 = vadd.f32 0.0, %v3532
        %v3534 = vpop.f32.mrf.mxu0
        %v3535 = vpop.f32.mrf.mxu0
        %v3536 = vadd.f32 0.0, %v3535
        %v3537 = vpop.f32.mrf.mxu0
        %3538 = vmatprep.mubr.bf16.mxu0 0
        %3539 = vmatmul.mubr.bf16.gmra.mxu0 %v3381
        %v3540 = vpop.f32.mrf.mxu0
        %v3541 = vadd.f32 0.0, %v3540
        %v3542 = vpop.f32.mrf.mxu0
        %v3543 = vpop.f32.mrf.mxu0
        %v3544 = vadd.f32 0.0, %v3543
        %v3545 = vpop.f32.mrf.mxu0
        %3546 = vmatprep.mubr.bf16.mxu0 0
        %3547 = vmatmul.mubr.bf16.gmra.mxu0 %v3384
        %v3548 = vpop.f32.mrf.mxu0
        %v3549 = vadd.f32 0.0, %v3548
        %v3550 = vpop.f32.mrf.mxu0
        %v3551 = vpop.f32.mrf.mxu0
        %v3552 = vadd.f32 0.0, %v3551
        %v3553 = vpop.f32.mrf.mxu0
        %3554 = vmatprep.mubr.bf16.mxu0 0
        %3555 = vmatmul.mubr.bf16.gmra.mxu0 %v3387
        %v3556 = vpop.f32.mrf.mxu0
        %v3557 = vadd.f32 0.0, %v3556
        %v3558 = vpop.f32.mrf.mxu0
        %v3559 = vpop.f32.mrf.mxu0
        %v3560 = vadd.f32 0.0, %v3559
        %v3561 = vpop.f32.mrf.mxu0
        %3562 = vmatprep.mubr.bf16.mxu0 0
        %3563 = vmatmul.mubr.bf16.gmra.mxu0 %v3390
        %v3564 = vpop.f32.mrf.mxu0
        %v3565 = vadd.f32 0.0, %v3564
        %v3566 = vpop.f32.mrf.mxu0
        %v3567 = vpop.f32.mrf.mxu0
        %v3568 = vadd.f32 0.0, %v3567
        %v3569 = vpop.f32.mrf.mxu0
        %3570 = vmatprep.mubr.bf16.mxu0 0
        %3571 = vmatmul.mubr.bf16.gmra.mxu0 %v3393
        %v3572 = vpop.f32.mrf.mxu0
        %v3573 = vadd.f32 0.0, %v3572
        %v3574 = vpop.f32.mrf.mxu0
        %v3575 = vpop.f32.mrf.mxu0
        %v3576 = vadd.f32 0.0, %v3575
        %v3577 = vpop.f32.mrf.mxu0
        %3578 = vmatprep.mubr.bf16.mxu0 0
        %3579 = vmatmul.mubr.bf16.gmra.mxu0 %v3396
        %v3580 = vpop.f32.mrf.mxu0
        %v3581 = vadd.f32 0.0, %v3580
        %v3582 = vpop.f32.mrf.mxu0
        %v3583 = vpop.f32.mrf.mxu0
        %v3584 = vadd.f32 0.0, %v3583
        %v3585 = vpop.f32.mrf.mxu0
        %3586 = vmatprep.mubr.bf16.mxu0 0
        %3587 = vmatmul.mubr.bf16.gmra.mxu0 %v3399
        %v3588 = vpop.f32.mrf.mxu0
        %v3589 = vadd.f32 0.0, %v3588
        %v3590 = vpop.f32.mrf.mxu0
        %v3591 = vpop.f32.mrf.mxu0
        %v3592 = vadd.f32 0.0, %v3591
        %v3593 = vpop.f32.mrf.mxu0
        %3594 = vmatprep.mubr.bf16.mxu0 0
        %3595 = vmatmul.mubr.bf16.gmra.mxu0 %v3402
        %v3596 = vpop.f32.mrf.mxu0
        %v3597 = vadd.f32 0.0, %v3596
        %v3598 = vpop.f32.mrf.mxu0
        %v3599 = vpop.f32.mrf.mxu0
        %v3600 = vadd.f32 0.0, %v3599
        %v3601 = vpop.f32.mrf.mxu0
        %3602 = vmatprep.mubr.bf16.mxu0 0
        %3603 = vmatmul.mubr.bf16.gmra.mxu0 %v3405
        %v3604 = vpop.f32.mrf.mxu0
        %v3605 = vadd.f32 0.0, %v3604
        %v3606 = vpop.f32.mrf.mxu0
        %v3607 = vpop.f32.mrf.mxu0
        %v3608 = vadd.f32 0.0, %v3607
        %v3609 = vpop.f32.mrf.mxu0
        %3610 = vmatprep.mubr.bf16.mxu0 0
        %3611 = vmatmul.mubr.bf16.gmra.mxu0 %v3408
        %v3612 = vpop.f32.mrf.mxu0
        %v3613 = vadd.f32 0.0, %v3612
        %v3614 = vpop.f32.mrf.mxu0
        %v3615 = vpop.f32.mrf.mxu0
        %v3616 = vadd.f32 0.0, %v3615
        %v3617 = vpop.f32.mrf.mxu0
        %3618 = vmatprep.mubr.bf16.mxu0 0
        %3619 = vmatmul.mubr.bf16.gmra.mxu0 %v3411
        %v3620 = vpop.f32.mrf.mxu0
        %v3621 = vadd.f32 0.0, %v3620
        %v3622 = vpop.f32.mrf.mxu0
        %v3623 = vpop.f32.mrf.mxu0
        %v3624 = vadd.f32 0.0, %v3623
        %v3625 = vpop.f32.mrf.mxu0
        %3626 = vmatprep.mubr.bf16.mxu0 0
        %3627 = vmatmul.mubr.bf16.gmra.mxu0 %v3414
        %v3628 = vpop.f32.mrf.mxu0
        %v3629 = vadd.f32 0.0, %v3628
        %v3630 = vpop.f32.mrf.mxu0
        %v3631 = vpop.f32.mrf.mxu0
        %v3632 = vadd.f32 0.0, %v3631
        %v3633 = vpop.f32.mrf.mxu0
        %3634 = vmatprep.mubr.bf16.mxu0 0
        %3635 = vmatmul.mubr.bf16.gmra.mxu0 %v3417
        %v3636 = vpop.f32.mrf.mxu0
        %v3637 = vadd.f32 0.0, %v3636
        %v3638 = vpop.f32.mrf.mxu0
        %v3639 = vpop.f32.mrf.mxu0
        %v3640 = vadd.f32 0.0, %v3639
        %v3641 = vpop.f32.mrf.mxu0
        %3642 = vmatprep.mubr.bf16.mxu0 0
        %3643 = vmatmul.mubr.bf16.gmra.mxu0 %v3420
        %v3644 = vpop.f32.mrf.mxu0
        %v3645 = vadd.f32 0.0, %v3644
        %v3646 = vpop.f32.mrf.mxu0
        %v3647 = vpop.f32.mrf.mxu0
        %v3648 = vadd.f32 0.0, %v3647
        %v3649 = vpop.f32.mrf.mxu0
        %3650 = vmatprep.mubr.bf16.mxu0 0
        %3651 = vmatmul.mubr.bf16.gmra.mxu0 %v3423
        %v3652 = vpop.f32.mrf.mxu0
        %v3653 = vadd.f32 0.0, %v3652
        %v3654 = vpop.f32.mrf.mxu0
        %v3655 = vpop.f32.mrf.mxu0
        %v3656 = vadd.f32 0.0, %v3655
        %v3657 = vpop.f32.mrf.mxu0
        %3658 = vmatprep.mubr.bf16.mxu0 0
        %3659 = vmatmul.mubr.bf16.gmra.mxu0 %v3426
        %v3660 = vpop.f32.mrf.mxu0
        %v3661 = vadd.f32 0.0, %v3660
        %v3662 = vpop.f32.mrf.mxu0
        %v3663 = vpop.f32.mrf.mxu0
        %v3664 = vadd.f32 0.0, %v3663
        %v3665 = vpop.f32.mrf.mxu0
        %3666 = vmatprep.mubr.bf16.mxu0 0
        %3667 = vmatmul.mubr.bf16.gmra.mxu0 %v3429
        %v3668 = vpop.f32.mrf.mxu0
        %v3669 = vadd.f32 0.0, %v3668
        %v3670 = vpop.f32.mrf.mxu0
        %v3671 = vpop.f32.mrf.mxu0
        %v3672 = vadd.f32 0.0, %v3671
        %v3673 = vpop.f32.mrf.mxu0
        %3674 = vmatprep.mubr.bf16.mxu0 0
        %3675 = vmatmul.mubr.bf16.gmra.mxu0 %v3432
        %v3676 = vpop.f32.mrf.mxu0
        %v3677 = vadd.f32 0.0, %v3676
        %v3678 = vpop.f32.mrf.mxu0
        %v3679 = vpop.f32.mrf.mxu0
        %v3680 = vadd.f32 0.0, %v3679
        %v3681 = vpop.f32.mrf.mxu0
        %3682 = vmatprep.mubr.bf16.mxu0 0
        %3683 = vmatmul.mubr.bf16.gmra.mxu0 %v3435
        %v3684 = vpop.f32.mrf.mxu0
        %v3685 = vadd.f32 0.0, %v3684
        %v3686 = vpop.f32.mrf.mxu0
        %v3687 = vpop.f32.mrf.mxu0
        %v3688 = vadd.f32 0.0, %v3687
        %v3689 = vpop.f32.mrf.mxu0
        %3690 = vmatprep.mubr.bf16.mxu0 0
        %3691 = vmatmul.mubr.bf16.gmra.mxu0 %v3438
        %v3692 = vpop.f32.mrf.mxu0
        %v3693 = vadd.f32 0.0, %v3692
        %v3694 = vpop.f32.mrf.mxu0
        %v3695 = vpop.f32.mrf.mxu0
        %v3696 = vadd.f32 0.0, %v3695
        %v3697 = vpop.f32.mrf.mxu0
        %3698 = vmatprep.mubr.bf16.mxu0 0
        %3699 = vmatmul.mubr.bf16.gmra.mxu0 %v3441
        %v3700 = vpop.f32.mrf.mxu0
        %v3701 = vadd.f32 0.0, %v3700
        %v3702 = vpop.f32.mrf.mxu0
        %v3703 = vpop.f32.mrf.mxu0
        %v3704 = vadd.f32 0.0, %v3703
        %v3705 = vpop.f32.mrf.mxu0
        %3706 = vmatprep.mubr.bf16.mxu0 0
        %3707 = vmatmul.mubr.bf16.gmra.mxu0 %v3444
        %v3708 = vpop.f32.mrf.mxu0
        %v3709 = vadd.f32 0.0, %v3708
        %v3710 = vpop.f32.mrf.mxu0
        %v3711 = vpop.f32.mrf.mxu0
        %v3712 = vadd.f32 0.0, %v3711
        %v3713 = vpop.f32.mrf.mxu0
        %3714 = vmatprep.mubr.bf16.mxu0 0
        %3715 = vmatmul.mubr.bf16.gmra.mxu0 %v3447
        %v3716 = vpop.f32.mrf.mxu0
        %v3717 = vadd.f32 0.0, %v3716
        %v3718 = vpop.f32.mrf.mxu0
        %v3719 = vpop.f32.mrf.mxu0
        %v3720 = vadd.f32 0.0, %v3719
        %v3721 = vpop.f32.mrf.mxu0
        %3722 = vmatprep.mubr.bf16.mxu0 0
        %3723 = vmatmul.mubr.bf16.gmra.mxu0 %v3450
        %v3724 = vpop.f32.mrf.mxu0
        %v3725 = vadd.f32 0.0, %v3724
        %v3726 = vpop.f32.mrf.mxu0
        %v3727 = vpop.f32.mrf.mxu0
        %v3728 = vadd.f32 0.0, %v3727
        %v3729 = vpop.f32.mrf.mxu0
        %3730 = vmatprep.mubr.bf16.mxu0 0
        %3731 = vmatmul.mubr.bf16.gmra.mxu0 %v3453
        %v3732 = vpop.f32.mrf.mxu0
        %v3733 = vadd.f32 0.0, %v3732
        %v3734 = vpop.f32.mrf.mxu0
        %v3735 = vpop.f32.mrf.mxu0
        %v3736 = vadd.f32 0.0, %v3735
        %v3737 = vpop.f32.mrf.mxu0
        %3738 = vmatprep.mubr.bf16.mxu0 0
        %3739 = vmatmul.mubr.bf16.gmra.mxu0 %v3456
        %v3740 = vpop.f32.mrf.mxu0
        %v3741 = vadd.f32 0.0, %v3740
        %v3742 = vpop.f32.mrf.mxu0
        %v3743 = vpop.f32.mrf.mxu0
        %v3744 = vadd.f32 0.0, %v3743
        %v3745 = vpop.f32.mrf.mxu0
        %3746 = vdwg.mxu0
        %v3747 = vadd.f32 %v3169, %v3493
        %v3748 = vadd.f32 %v3170, %v3496
        %v3749 = vadd.f32 %v3171, %v3501
        %v3750 = vadd.f32 %v3172, %v3504
        %v3751 = vadd.f32 %v3173, %v3509
        %v3752 = vadd.f32 %v3174, %v3512
        %v3753 = vadd.f32 %v3175, %v3517
        %v3754 = vadd.f32 %v3176, %v3520
        %v3755 = vadd.f32 %v3177, %v3525
        %v3756 = vadd.f32 %v3178, %v3528
        %v3757 = vadd.f32 %v3179, %v3533
        %v3758 = vadd.f32 %v3180, %v3536
        %v3759 = vadd.f32 %v3181, %v3541
        %v3760 = vadd.f32 %v3182, %v3544
        %v3761 = vadd.f32 %v3183, %v3549
        %v3762 = vadd.f32 %v3184, %v3552
        %v3763 = vadd.f32 %v3185, %v3557
        %v3764 = vadd.f32 %v3186, %v3560
        %v3765 = vadd.f32 %v3187, %v3565
        %v3766 = vadd.f32 %v3188, %v3568
        %v3767 = vadd.f32 %v3189, %v3573
        %v3768 = vadd.f32 %v3190, %v3576
        %v3769 = vadd.f32 %v3191, %v3581
        %v3770 = vadd.f32 %v3192, %v3584
        %v3771 = vadd.f32 %v3193, %v3589
        %v3772 = vadd.f32 %v3194, %v3592
        %v3773 = vadd.f32 %v3195, %v3597
        %v3774 = vadd.f32 %v3196, %v3600
        %v3775 = vadd.f32 %v3197, %v3605
        %v3776 = vadd.f32 %v3198, %v3608
        %v3777 = vadd.f32 %v3199, %v3613
        %v3778 = vadd.f32 %v3200, %v3616
        %v3779 = vadd.f32 %v3201, %v3621
        %v3780 = vadd.f32 %v3202, %v3624
        %v3781 = vadd.f32 %v3203, %v3629
        %v3782 = vadd.f32 %v3204, %v3632
        %v3783 = vadd.f32 %v3205, %v3637
        %v3784 = vadd.f32 %v3206, %v3640
        %v3785 = vadd.f32 %v3207, %v3645
        %v3786 = vadd.f32 %v3208, %v3648
        %v3787 = vadd.f32 %v3209, %v3653
        %v3788 = vadd.f32 %v3210, %v3656
        %v3789 = vadd.f32 %v3211, %v3661
        %v3790 = vadd.f32 %v3212, %v3664
        %v3791 = vadd.f32 %v3213, %v3669
        %v3792 = vadd.f32 %v3214, %v3672
        %v3793 = vadd.f32 %v3215, %v3677
        %v3794 = vadd.f32 %v3216, %v3680
        %v3795 = vadd.f32 %v3217, %v3685
        %v3796 = vadd.f32 %v3218, %v3688
        %v3797 = vadd.f32 %v3219, %v3693
        %v3798 = vadd.f32 %v3220, %v3696
        %v3799 = vadd.f32 %v3221, %v3701
        %v3800 = vadd.f32 %v3222, %v3704
        %v3801 = vadd.f32 %v3223, %v3709
        %v3802 = vadd.f32 %v3224, %v3712
        %v3803 = vadd.f32 %v3225, %v3717
        %v3804 = vadd.f32 %v3226, %v3720
        %v3805 = vadd.f32 %v3227, %v3725
        %v3806 = vadd.f32 %v3228, %v3728
        %v3807 = vadd.f32 %v3229, %v3733
        %v3808 = vadd.f32 %v3230, %v3736
        %v3809 = vadd.f32 %v3231, %v3741
        %v3810 = vadd.f32 %v3232, %v3744
        %v3811 = vld [vmem:[%s279 + $0x2] sm:$0xff]
        %v3812 = vld [vmem:[%s279 + $0xa] sm:$0xff]
        %v3813 = vld [vmem:[%s279 + $0x1a] sm:$0xff]
        %v3814 = vld [vmem:[%s279 + $0x22] sm:$0xff]
        %v3815 = vld [vmem:[%s279 + $0x32] sm:$0xff]
        %v3816 = vld [vmem:[%s279 + $0x3a] sm:$0xff]
        %v3817 = vld [vmem:[%s279 + $0x4a] sm:$0xff]
        %v3818 = vld [vmem:[%s279 + $0x52] sm:$0xff]
        %v3819 = vld [vmem:[%s279 + $0x62] sm:$0xff]
        %v3820 = vld [vmem:[%s279 + $0x6a] sm:$0xff]
        %v3821 = vld [vmem:[%s279 + $0x7a] sm:$0xff]
        %v3822 = vld [vmem:[%s279 + $0x82] sm:$0xff]
        %v3823 = vld [vmem:[%s279 + $0x92] sm:$0xff]
        %v3824 = vld [vmem:[%s279 + $0x9a] sm:$0xff]
        %v3825 = vld [vmem:[%s279 + $0xaa] sm:$0xff]
        %v3826 = vld [vmem:[%s279 + $0xb2] sm:$0xff]
        %v3827 = vld [vmem:[%s279 + $0xc2] sm:$0xff]
        %v3828 = vld [vmem:[%s279 + $0xca] sm:$0xff]
        %v3829 = vld [vmem:[%s279 + $0xda] sm:$0xff]
        %v3830 = vld [vmem:[%s279 + $0xe2] sm:$0xff]
        %v3831 = vld [vmem:[%s279 + $0xf2] sm:$0xff]
        %v3832 = vld [vmem:[%s279 + $0xfa] sm:$0xff]
        %v3833 = vld [vmem:[%s279 + $0x10a] sm:$0xff]
        %v3834 = vld [vmem:[%s279 + $0x112] sm:$0xff]
        %v3835 = vld [vmem:[%s279 + $0x122] sm:$0xff]
        %v3836 = vld [vmem:[%s279 + $0x12a] sm:$0xff]
        %v3837 = vld [vmem:[%s279 + $0x13a] sm:$0xff]
        %v3838 = vld [vmem:[%s279 + $0x142] sm:$0xff]
        %v3839 = vld [vmem:[%s279 + $0x152] sm:$0xff]
        %v3840 = vld [vmem:[%s279 + $0x15a] sm:$0xff]
        %v3841 = vld [vmem:[%s279 + $0x16a] sm:$0xff]
        %v3842 = vld [vmem:[%s279 + $0x172] sm:$0xff]
        %v3843 = vld [vmem:[%s279 + $0x1b2] sm:$0xff]
        %v3844 = vld [vmem:[%s279 + $0x1ba] sm:$0xff]
        %v3845 = vld [vmem:[%s279 + $0x1ca] sm:$0xff]
        %v3846 = vld [vmem:[%s279 + $0x1d2] sm:$0xff]
        %v3847 = vld [vmem:[%s279 + $0x1e2] sm:$0xff]
        %v3848 = vld [vmem:[%s279 + $0x1ea] sm:$0xff]
        %v3849 = vld [vmem:[%s279 + $0x1fa] sm:$0xff]
        %v3850 = vld [vmem:[%s279 + $0x202] sm:$0xff]
        %v3851 = vld [vmem:[%s279 + $0x212] sm:$0xff]
        %v3852 = vld [vmem:[%s279 + $0x21a] sm:$0xff]
        %v3853 = vld [vmem:[%s279 + $0x22a] sm:$0xff]
        %v3854 = vld [vmem:[%s279 + $0x232] sm:$0xff]
        %v3855 = vld [vmem:[%s279 + $0x242] sm:$0xff]
        %v3856 = vld [vmem:[%s279 + $0x24a] sm:$0xff]
        %v3857 = vld [vmem:[%s279 + $0x25a] sm:$0xff]
        %v3858 = vld [vmem:[%s279 + $0x262] sm:$0xff]
        %v3859 = vld [vmem:[%s279 + $0x272] sm:$0xff]
        %v3860 = vld [vmem:[%s279 + $0x27a] sm:$0xff]
        %v3861 = vld [vmem:[%s279 + $0x28a] sm:$0xff]
        %v3862 = vld [vmem:[%s279 + $0x292] sm:$0xff]
        %v3863 = vld [vmem:[%s279 + $0x2a2] sm:$0xff]
        %v3864 = vld [vmem:[%s279 + $0x2aa] sm:$0xff]
        %v3865 = vld [vmem:[%s279 + $0x2ba] sm:$0xff]
        %v3866 = vld [vmem:[%s279 + $0x2c2] sm:$0xff]
        %v3867 = vld [vmem:[%s279 + $0x2d2] sm:$0xff]
        %v3868 = vld [vmem:[%s279 + $0x2da] sm:$0xff]
        %v3869 = vld [vmem:[%s279 + $0x2ea] sm:$0xff]
        %v3870 = vld [vmem:[%s279 + $0x2f2] sm:$0xff]
        %v3871 = vld [vmem:[%s279 + $0x302] sm:$0xff]
        %v3872 = vld [vmem:[%s279 + $0x30a] sm:$0xff]
        %v3873 = vld [vmem:[%s279 + $0x31a] sm:$0xff]
        %v3874 = vld [vmem:[%s279 + $0x322] sm:$0xff]
        %v3875 = vpack.c.bf16 %v3812, %v3811
        %v3876 = vpack.c.bf16 %v3814, %v3813
        %v3877 = vpack.c.bf16 %v3816, %v3815
        %v3878 = vpack.c.bf16 %v3818, %v3817
        %v3879 = vpack.c.bf16 %v3820, %v3819
        %v3880 = vpack.c.bf16 %v3822, %v3821
        %v3881 = vpack.c.bf16 %v3824, %v3823
        %v3882 = vpack.c.bf16 %v3826, %v3825
        %v3883 = vpack.c.bf16 %v3828, %v3827
        %v3884 = vpack.c.bf16 %v3830, %v3829
        %v3885 = vpack.c.bf16 %v3832, %v3831
        %v3886 = vpack.c.bf16 %v3834, %v3833
        %v3887 = vpack.c.bf16 %v3836, %v3835
        %v3888 = vpack.c.bf16 %v3838, %v3837
        %v3889 = vpack.c.bf16 %v3840, %v3839
        %v3890 = vpack.c.bf16 %v3842, %v3841
        %v3891 = vpack.c.bf16 %v3844, %v3843
        %v3892 = vpack.c.bf16 %v3846, %v3845
        %v3893 = vpack.c.bf16 %v3848, %v3847
        %v3894 = vpack.c.bf16 %v3850, %v3849
        %v3895 = vpack.c.bf16 %v3852, %v3851
        %v3896 = vpack.c.bf16 %v3854, %v3853
        %v3897 = vpack.c.bf16 %v3856, %v3855
        %v3898 = vpack.c.bf16 %v3858, %v3857
        %v3899 = vpack.c.bf16 %v3860, %v3859
        %v3900 = vpack.c.bf16 %v3862, %v3861
        %v3901 = vpack.c.bf16 %v3864, %v3863
        %v3902 = vpack.c.bf16 %v3866, %v3865
        %v3903 = vpack.c.bf16 %v3868, %v3867
        %v3904 = vpack.c.bf16 %v3870, %v3869
        %v3905 = vpack.c.bf16 %v3872, %v3871
        %v3906 = vpack.c.bf16 %v3874, %v3873
        %s3907 = scalar_lea.vmem [#allocation8], 160
        %v3908 = vld [vmem:[%s3907] sm:$0xf]
        %v3909 = vld [vmem:[%s3907 + $0x4] sm:$0xf]
        %v3910 = vld [vmem:[%s3907 + $0x8] sm:$0xf]
        %v3911 = vld [vmem:[%s3907 + $0xc] sm:$0xf]
        %v3912 = vld [vmem:[%s3907 + $0x10] sm:$0xf]
        %v3913 = vld [vmem:[%s3907 + $0x14] sm:$0xf]
        %v3914 = vld [vmem:[%s3907 + $0x18] sm:$0xf]
        %v3915 = vld [vmem:[%s3907 + $0x1c] sm:$0xf]
        %v3924 = vunpack.c.l.b16 %v3908
        %v3925 = vunpack.c.l.b16 %v3909
        %v3926 = vunpack.c.l.b16 %v3910
        %v3927 = vunpack.c.l.b16 %v3911
        %v3928 = vunpack.c.l.b16 %v3912
        %v3929 = vunpack.c.l.b16 %v3913
        %v3930 = vunpack.c.l.b16 %v3914
        %v3931 = vunpack.c.l.b16 %v3915
        %v3932 = vpack.c.b16 %v3925, %v3924
        %v3933 = vpack.c.b16 %v3927, %v3926
        %v3934 = vpack.c.b16 %v3929, %v3928
        %v3935 = vpack.c.b16 %v3931, %v3930
        %v3941 = vsel %vm264, %v3875, 0
        %v3944 = vsel %vm264, %v3876, 0
        %v3947 = vsel %vm264, %v3877, 0
        %v3950 = vsel %vm264, %v3878, 0
        %v3953 = vsel %vm264, %v3879, 0
        %v3956 = vsel %vm264, %v3880, 0
        %v3959 = vsel %vm264, %v3881, 0
        %v3962 = vsel %vm264, %v3882, 0
        %v3965 = vsel %vm264, %v3883, 0
        %v3968 = vsel %vm264, %v3884, 0
        %v3971 = vsel %vm264, %v3885, 0
        %v3974 = vsel %vm264, %v3886, 0
        %v3977 = vsel %vm264, %v3887, 0
        %v3980 = vsel %vm264, %v3888, 0
        %v3983 = vsel %vm264, %v3889, 0
        %v3986 = vsel %vm264, %v3890, 0
        %v3989 = vsel %vm264, %v3891, 0
        %v3992 = vsel %vm264, %v3892, 0
        %v3995 = vsel %vm264, %v3893, 0
        %v3998 = vsel %vm264, %v3894, 0
        %v4001 = vsel %vm264, %v3895, 0
        %v4004 = vsel %vm264, %v3896, 0
        %v4007 = vsel %vm264, %v3897, 0
        %v4010 = vsel %vm264, %v3898, 0
        %v4013 = vsel %vm264, %v3899, 0
        %v4016 = vsel %vm264, %v3900, 0
        %v4019 = vsel %vm264, %v3901, 0
        %v4022 = vsel %vm264, %v3902, 0
        %v4025 = vsel %vm264, %v3903, 0
        %v4028 = vsel %vm264, %v3904, 0
        %v4031 = vsel %vm264, %v3905, 0
        %v4034 = vsel %vm264, %v3906, 0
        %4036 = vmatprep.subr.bf16.mxu0 0
        %4037 = vmatpush1.bf16.msra.mxu0 0
        %4038 = vmatprep.subr.bf16.mxu0 0
        %4039 = vmatpush1.bf16.msra.mxu0 0
        %4040 = vmatprep.subr.bf16.mxu0 0
        %4041 = vmatpush1.bf16.msra.mxu0 0
        %4042 = vmatprep.subr.bf16.mxu0 0
        %4043 = vmatpush1.bf16.msra.mxu0 0
        %4044 = vmatprep.subr.bf16.mxu0 0
        %4045 = vmatpush1.bf16.msra.mxu0 %v3935
        %4046 = vmatprep.subr.bf16.mxu0 0
        %4047 = vmatpush1.bf16.msra.mxu0 %v3934
        %4048 = vmatprep.subr.bf16.mxu0 0
        %4049 = vmatpush1.bf16.msra.mxu0 %v3933
        %4050 = vmatprep.subr.bf16.mxu0 0
        %4051 = vmatpush1.bf16.msra.mxu0 %v3932
        %4052 = vmatprep.subr.bf16.mxu0 0
        %4053 = vmatpush2.bf16.msra.mxu0 0
        %4054 = vmatprep.subr.bf16.mxu0 0
        %4055 = vmatpush2.bf16.msra.mxu0 0
        %4056 = vmatprep.subr.bf16.mxu0 0
        %4057 = vmatpush2.bf16.msra.mxu0 0
        %4058 = vmatprep.subr.bf16.mxu0 0
        %4059 = vmatpush2.bf16.msra.mxu0 0
        %4060 = vmatprep.subr.bf16.mxu0 0
        %4061 = vmatpush2.bf16.msra.mxu0 0
        %4062 = vmatprep.subr.bf16.mxu0 0
        %4063 = vmatpush2.bf16.msra.mxu0 0
        %4064 = vmatprep.subr.bf16.mxu0 0
        %4065 = vmatpush2.bf16.msra.mxu0 0
        %4066 = vmatprep.subr.bf16.mxu0 0
        %4067 = vmatpush2.bf16.msra.mxu0 0
        %4068 = vmatprep.mubr.bf16.mxu0 0
        %4069 = vmatmul.mubr.bf16.gmra.mxu0 %v3941
        %v4070 = vpop.f32.mrf.mxu0
        %v4071 = vadd.f32 0.0, %v4070
        %v4072 = vpop.f32.mrf.mxu0
        %v4073 = vpop.f32.mrf.mxu0
        %v4074 = vadd.f32 0.0, %v4073
        %v4075 = vpop.f32.mrf.mxu0
        %4076 = vmatprep.mubr.bf16.mxu0 0
        %4077 = vmatmul.mubr.bf16.gmra.mxu0 %v3944
        %v4078 = vpop.f32.mrf.mxu0
        %v4079 = vadd.f32 0.0, %v4078
        %v4080 = vpop.f32.mrf.mxu0
        %v4081 = vpop.f32.mrf.mxu0
        %v4082 = vadd.f32 0.0, %v4081
        %v4083 = vpop.f32.mrf.mxu0
        %4084 = vmatprep.mubr.bf16.mxu0 0
        %4085 = vmatmul.mubr.bf16.gmra.mxu0 %v3947
        %v4086 = vpop.f32.mrf.mxu0
        %v4087 = vadd.f32 0.0, %v4086
        %v4088 = vpop.f32.mrf.mxu0
        %v4089 = vpop.f32.mrf.mxu0
        %v4090 = vadd.f32 0.0, %v4089
        %v4091 = vpop.f32.mrf.mxu0
        %4092 = vmatprep.mubr.bf16.mxu0 0
        %4093 = vmatmul.mubr.bf16.gmra.mxu0 %v3950
        %v4094 = vpop.f32.mrf.mxu0
        %v4095 = vadd.f32 0.0, %v4094
        %v4096 = vpop.f32.mrf.mxu0
        %v4097 = vpop.f32.mrf.mxu0
        %v4098 = vadd.f32 0.0, %v4097
        %v4099 = vpop.f32.mrf.mxu0
        %4100 = vmatprep.mubr.bf16.mxu0 0
        %4101 = vmatmul.mubr.bf16.gmra.mxu0 %v3953
        %v4102 = vpop.f32.mrf.mxu0
        %v4103 = vadd.f32 0.0, %v4102
        %v4104 = vpop.f32.mrf.mxu0
        %v4105 = vpop.f32.mrf.mxu0
        %v4106 = vadd.f32 0.0, %v4105
        %v4107 = vpop.f32.mrf.mxu0
        %4108 = vmatprep.mubr.bf16.mxu0 0
        %4109 = vmatmul.mubr.bf16.gmra.mxu0 %v3956
        %v4110 = vpop.f32.mrf.mxu0
        %v4111 = vadd.f32 0.0, %v4110
        %v4112 = vpop.f32.mrf.mxu0
        %v4113 = vpop.f32.mrf.mxu0
        %v4114 = vadd.f32 0.0, %v4113
        %v4115 = vpop.f32.mrf.mxu0
        %4116 = vmatprep.mubr.bf16.mxu0 0
        %4117 = vmatmul.mubr.bf16.gmra.mxu0 %v3959
        %v4118 = vpop.f32.mrf.mxu0
        %v4119 = vadd.f32 0.0, %v4118
        %v4120 = vpop.f32.mrf.mxu0
        %v4121 = vpop.f32.mrf.mxu0
        %v4122 = vadd.f32 0.0, %v4121
        %v4123 = vpop.f32.mrf.mxu0
        %4124 = vmatprep.mubr.bf16.mxu0 0
        %4125 = vmatmul.mubr.bf16.gmra.mxu0 %v3962
        %v4126 = vpop.f32.mrf.mxu0
        %v4127 = vadd.f32 0.0, %v4126
        %v4128 = vpop.f32.mrf.mxu0
        %v4129 = vpop.f32.mrf.mxu0
        %v4130 = vadd.f32 0.0, %v4129
        %v4131 = vpop.f32.mrf.mxu0
        %4132 = vmatprep.mubr.bf16.mxu0 0
        %4133 = vmatmul.mubr.bf16.gmra.mxu0 %v3965
        %v4134 = vpop.f32.mrf.mxu0
        %v4135 = vadd.f32 0.0, %v4134
        %v4136 = vpop.f32.mrf.mxu0
        %v4137 = vpop.f32.mrf.mxu0
        %v4138 = vadd.f32 0.0, %v4137
        %v4139 = vpop.f32.mrf.mxu0
        %4140 = vmatprep.mubr.bf16.mxu0 0
        %4141 = vmatmul.mubr.bf16.gmra.mxu0 %v3968
        %v4142 = vpop.f32.mrf.mxu0
        %v4143 = vadd.f32 0.0, %v4142
        %v4144 = vpop.f32.mrf.mxu0
        %v4145 = vpop.f32.mrf.mxu0
        %v4146 = vadd.f32 0.0, %v4145
        %v4147 = vpop.f32.mrf.mxu0
        %4148 = vmatprep.mubr.bf16.mxu0 0
        %4149 = vmatmul.mubr.bf16.gmra.mxu0 %v3971
        %v4150 = vpop.f32.mrf.mxu0
        %v4151 = vadd.f32 0.0, %v4150
        %v4152 = vpop.f32.mrf.mxu0
        %v4153 = vpop.f32.mrf.mxu0
        %v4154 = vadd.f32 0.0, %v4153
        %v4155 = vpop.f32.mrf.mxu0
        %4156 = vmatprep.mubr.bf16.mxu0 0
        %4157 = vmatmul.mubr.bf16.gmra.mxu0 %v3974
        %v4158 = vpop.f32.mrf.mxu0
        %v4159 = vadd.f32 0.0, %v4158
        %v4160 = vpop.f32.mrf.mxu0
        %v4161 = vpop.f32.mrf.mxu0
        %v4162 = vadd.f32 0.0, %v4161
        %v4163 = vpop.f32.mrf.mxu0
        %4164 = vmatprep.mubr.bf16.mxu0 0
        %4165 = vmatmul.mubr.bf16.gmra.mxu0 %v3977
        %v4166 = vpop.f32.mrf.mxu0
        %v4167 = vadd.f32 0.0, %v4166
        %v4168 = vpop.f32.mrf.mxu0
        %v4169 = vpop.f32.mrf.mxu0
        %v4170 = vadd.f32 0.0, %v4169
        %v4171 = vpop.f32.mrf.mxu0
        %4172 = vmatprep.mubr.bf16.mxu0 0
        %4173 = vmatmul.mubr.bf16.gmra.mxu0 %v3980
        %v4174 = vpop.f32.mrf.mxu0
        %v4175 = vadd.f32 0.0, %v4174
        %v4176 = vpop.f32.mrf.mxu0
        %v4177 = vpop.f32.mrf.mxu0
        %v4178 = vadd.f32 0.0, %v4177
        %v4179 = vpop.f32.mrf.mxu0
        %4180 = vmatprep.mubr.bf16.mxu0 0
        %4181 = vmatmul.mubr.bf16.gmra.mxu0 %v3983
        %v4182 = vpop.f32.mrf.mxu0
        %v4183 = vadd.f32 0.0, %v4182
        %v4184 = vpop.f32.mrf.mxu0
        %v4185 = vpop.f32.mrf.mxu0
        %v4186 = vadd.f32 0.0, %v4185
        %v4187 = vpop.f32.mrf.mxu0
        %4188 = vmatprep.mubr.bf16.mxu0 0
        %4189 = vmatmul.mubr.bf16.gmra.mxu0 %v3986
        %v4190 = vpop.f32.mrf.mxu0
        %v4191 = vadd.f32 0.0, %v4190
        %v4192 = vpop.f32.mrf.mxu0
        %v4193 = vpop.f32.mrf.mxu0
        %v4194 = vadd.f32 0.0, %v4193
        %v4195 = vpop.f32.mrf.mxu0
        %4196 = vmatprep.mubr.bf16.mxu0 0
        %4197 = vmatmul.mubr.bf16.gmra.mxu0 %v3989
        %v4198 = vpop.f32.mrf.mxu0
        %v4199 = vadd.f32 0.0, %v4198
        %v4200 = vpop.f32.mrf.mxu0
        %v4201 = vpop.f32.mrf.mxu0
        %v4202 = vadd.f32 0.0, %v4201
        %v4203 = vpop.f32.mrf.mxu0
        %4204 = vmatprep.mubr.bf16.mxu0 0
        %4205 = vmatmul.mubr.bf16.gmra.mxu0 %v3992
        %v4206 = vpop.f32.mrf.mxu0
        %v4207 = vadd.f32 0.0, %v4206
        %v4208 = vpop.f32.mrf.mxu0
        %v4209 = vpop.f32.mrf.mxu0
        %v4210 = vadd.f32 0.0, %v4209
        %v4211 = vpop.f32.mrf.mxu0
        %4212 = vmatprep.mubr.bf16.mxu0 0
        %4213 = vmatmul.mubr.bf16.gmra.mxu0 %v3995
        %v4214 = vpop.f32.mrf.mxu0
        %v4215 = vadd.f32 0.0, %v4214
        %v4216 = vpop.f32.mrf.mxu0
        %v4217 = vpop.f32.mrf.mxu0
        %v4218 = vadd.f32 0.0, %v4217
        %v4219 = vpop.f32.mrf.mxu0
        %4220 = vmatprep.mubr.bf16.mxu0 0
        %4221 = vmatmul.mubr.bf16.gmra.mxu0 %v3998
        %v4222 = vpop.f32.mrf.mxu0
        %v4223 = vadd.f32 0.0, %v4222
        %v4224 = vpop.f32.mrf.mxu0
        %v4225 = vpop.f32.mrf.mxu0
        %v4226 = vadd.f32 0.0, %v4225
        %v4227 = vpop.f32.mrf.mxu0
        %4228 = vmatprep.mubr.bf16.mxu0 0
        %4229 = vmatmul.mubr.bf16.gmra.mxu0 %v4001
        %v4230 = vpop.f32.mrf.mxu0
        %v4231 = vadd.f32 0.0, %v4230
        %v4232 = vpop.f32.mrf.mxu0
        %v4233 = vpop.f32.mrf.mxu0
        %v4234 = vadd.f32 0.0, %v4233
        %v4235 = vpop.f32.mrf.mxu0
        %4236 = vmatprep.mubr.bf16.mxu0 0
        %4237 = vmatmul.mubr.bf16.gmra.mxu0 %v4004
        %v4238 = vpop.f32.mrf.mxu0
        %v4239 = vadd.f32 0.0, %v4238
        %v4240 = vpop.f32.mrf.mxu0
        %v4241 = vpop.f32.mrf.mxu0
        %v4242 = vadd.f32 0.0, %v4241
        %v4243 = vpop.f32.mrf.mxu0
        %4244 = vmatprep.mubr.bf16.mxu0 0
        %4245 = vmatmul.mubr.bf16.gmra.mxu0 %v4007
        %v4246 = vpop.f32.mrf.mxu0
        %v4247 = vadd.f32 0.0, %v4246
        %v4248 = vpop.f32.mrf.mxu0
        %v4249 = vpop.f32.mrf.mxu0
        %v4250 = vadd.f32 0.0, %v4249
        %v4251 = vpop.f32.mrf.mxu0
        %4252 = vmatprep.mubr.bf16.mxu0 0
        %4253 = vmatmul.mubr.bf16.gmra.mxu0 %v4010
        %v4254 = vpop.f32.mrf.mxu0
        %v4255 = vadd.f32 0.0, %v4254
        %v4256 = vpop.f32.mrf.mxu0
        %v4257 = vpop.f32.mrf.mxu0
        %v4258 = vadd.f32 0.0, %v4257
        %v4259 = vpop.f32.mrf.mxu0
        %4260 = vmatprep.mubr.bf16.mxu0 0
        %4261 = vmatmul.mubr.bf16.gmra.mxu0 %v4013
        %v4262 = vpop.f32.mrf.mxu0
        %v4263 = vadd.f32 0.0, %v4262
        %v4264 = vpop.f32.mrf.mxu0
        %v4265 = vpop.f32.mrf.mxu0
        %v4266 = vadd.f32 0.0, %v4265
        %v4267 = vpop.f32.mrf.mxu0
        %4268 = vmatprep.mubr.bf16.mxu0 0
        %4269 = vmatmul.mubr.bf16.gmra.mxu0 %v4016
        %v4270 = vpop.f32.mrf.mxu0
        %v4271 = vadd.f32 0.0, %v4270
        %v4272 = vpop.f32.mrf.mxu0
        %v4273 = vpop.f32.mrf.mxu0
        %v4274 = vadd.f32 0.0, %v4273
        %v4275 = vpop.f32.mrf.mxu0
        %4276 = vmatprep.mubr.bf16.mxu0 0
        %4277 = vmatmul.mubr.bf16.gmra.mxu0 %v4019
        %v4278 = vpop.f32.mrf.mxu0
        %v4279 = vadd.f32 0.0, %v4278
        %v4280 = vpop.f32.mrf.mxu0
        %v4281 = vpop.f32.mrf.mxu0
        %v4282 = vadd.f32 0.0, %v4281
        %v4283 = vpop.f32.mrf.mxu0
        %4284 = vmatprep.mubr.bf16.mxu0 0
        %4285 = vmatmul.mubr.bf16.gmra.mxu0 %v4022
        %v4286 = vpop.f32.mrf.mxu0
        %v4287 = vadd.f32 0.0, %v4286
        %v4288 = vpop.f32.mrf.mxu0
        %v4289 = vpop.f32.mrf.mxu0
        %v4290 = vadd.f32 0.0, %v4289
        %v4291 = vpop.f32.mrf.mxu0
        %4292 = vmatprep.mubr.bf16.mxu0 0
        %4293 = vmatmul.mubr.bf16.gmra.mxu0 %v4025
        %v4294 = vpop.f32.mrf.mxu0
        %v4295 = vadd.f32 0.0, %v4294
        %v4296 = vpop.f32.mrf.mxu0
        %v4297 = vpop.f32.mrf.mxu0
        %v4298 = vadd.f32 0.0, %v4297
        %v4299 = vpop.f32.mrf.mxu0
        %4300 = vmatprep.mubr.bf16.mxu0 0
        %4301 = vmatmul.mubr.bf16.gmra.mxu0 %v4028
        %v4302 = vpop.f32.mrf.mxu0
        %v4303 = vadd.f32 0.0, %v4302
        %v4304 = vpop.f32.mrf.mxu0
        %v4305 = vpop.f32.mrf.mxu0
        %v4306 = vadd.f32 0.0, %v4305
        %v4307 = vpop.f32.mrf.mxu0
        %4308 = vmatprep.mubr.bf16.mxu0 0
        %4309 = vmatmul.mubr.bf16.gmra.mxu0 %v4031
        %v4310 = vpop.f32.mrf.mxu0
        %v4311 = vadd.f32 0.0, %v4310
        %v4312 = vpop.f32.mrf.mxu0
        %v4313 = vpop.f32.mrf.mxu0
        %v4314 = vadd.f32 0.0, %v4313
        %v4315 = vpop.f32.mrf.mxu0
        %4316 = vmatprep.mubr.bf16.mxu0 0
        %4317 = vmatmul.mubr.bf16.gmra.mxu0 %v4034
        %v4318 = vpop.f32.mrf.mxu0
        %v4319 = vadd.f32 0.0, %v4318
        %v4320 = vpop.f32.mrf.mxu0
        %v4321 = vpop.f32.mrf.mxu0
        %v4322 = vadd.f32 0.0, %v4321
        %v4323 = vpop.f32.mrf.mxu0
        %4324 = vdwg.mxu0
        %v4325 = vadd.f32 %v3747, %v4071
        %v4326 = vadd.f32 %v3748, %v4074
        %v4327 = vadd.f32 %v3749, %v4079
        %v4328 = vadd.f32 %v3750, %v4082
        %v4329 = vadd.f32 %v3751, %v4087
        %v4330 = vadd.f32 %v3752, %v4090
        %v4331 = vadd.f32 %v3753, %v4095
        %v4332 = vadd.f32 %v3754, %v4098
        %v4333 = vadd.f32 %v3755, %v4103
        %v4334 = vadd.f32 %v3756, %v4106
        %v4335 = vadd.f32 %v3757, %v4111
        %v4336 = vadd.f32 %v3758, %v4114
        %v4337 = vadd.f32 %v3759, %v4119
        %v4338 = vadd.f32 %v3760, %v4122
        %v4339 = vadd.f32 %v3761, %v4127
        %v4340 = vadd.f32 %v3762, %v4130
        %v4341 = vadd.f32 %v3763, %v4135
        %v4342 = vadd.f32 %v3764, %v4138
        %v4343 = vadd.f32 %v3765, %v4143
        %v4344 = vadd.f32 %v3766, %v4146
        %v4345 = vadd.f32 %v3767, %v4151
        %v4346 = vadd.f32 %v3768, %v4154
        %v4347 = vadd.f32 %v3769, %v4159
        %v4348 = vadd.f32 %v3770, %v4162
        %v4349 = vadd.f32 %v3771, %v4167
        %v4350 = vadd.f32 %v3772, %v4170
        %v4351 = vadd.f32 %v3773, %v4175
        %v4352 = vadd.f32 %v3774, %v4178
        %v4353 = vadd.f32 %v3775, %v4183
        %v4354 = vadd.f32 %v3776, %v4186
        %v4355 = vadd.f32 %v3777, %v4191
        %v4356 = vadd.f32 %v3778, %v4194
        %v4357 = vadd.f32 %v3779, %v4199
        %v4358 = vadd.f32 %v3780, %v4202
        %v4359 = vadd.f32 %v3781, %v4207
        %v4360 = vadd.f32 %v3782, %v4210
        %v4361 = vadd.f32 %v3783, %v4215
        %v4362 = vadd.f32 %v3784, %v4218
        %v4363 = vadd.f32 %v3785, %v4223
        %v4364 = vadd.f32 %v3786, %v4226
        %v4365 = vadd.f32 %v3787, %v4231
        %v4366 = vadd.f32 %v3788, %v4234
        %v4367 = vadd.f32 %v3789, %v4239
        %v4368 = vadd.f32 %v3790, %v4242
        %v4369 = vadd.f32 %v3791, %v4247
        %v4370 = vadd.f32 %v3792, %v4250
        %v4371 = vadd.f32 %v3793, %v4255
        %v4372 = vadd.f32 %v3794, %v4258
        %v4373 = vadd.f32 %v3795, %v4263
        %v4374 = vadd.f32 %v3796, %v4266
        %v4375 = vadd.f32 %v3797, %v4271
        %v4376 = vadd.f32 %v3798, %v4274
        %v4377 = vadd.f32 %v3799, %v4279
        %v4378 = vadd.f32 %v3800, %v4282
        %v4379 = vadd.f32 %v3801, %v4287
        %v4380 = vadd.f32 %v3802, %v4290
        %v4381 = vadd.f32 %v3803, %v4295
        %v4382 = vadd.f32 %v3804, %v4298
        %v4383 = vadd.f32 %v3805, %v4303
        %v4384 = vadd.f32 %v3806, %v4306
        %v4385 = vadd.f32 %v3807, %v4311
        %v4386 = vadd.f32 %v3808, %v4314
        %v4387 = vadd.f32 %v3809, %v4319
        %v4388 = vadd.f32 %v3810, %v4322
        %s4389 = scalar_lea.vmem [#allocation2], 48
        %v4390 = vld [vmem:[%s4389] sm:$0xff]
        %v4391 = vld [vmem:[%s4389 + $0x8] sm:$0xff]
        %v4392 = vld [vmem:[%s4389 + $0x18] sm:$0xff]
        %v4393 = vld [vmem:[%s4389 + $0x20] sm:$0xff]
        %v4394 = vld [vmem:[%s4389 + $0x30] sm:$0xff]
        %v4395 = vld [vmem:[%s4389 + $0x38] sm:$0xff]
        %v4396 = vld [vmem:[%s4389 + $0x48] sm:$0xff]
        %v4397 = vld [vmem:[%s4389 + $0x50] sm:$0xff]
        %v4398 = vld [vmem:[%s4389 + $0x60] sm:$0xff]
        %v4399 = vld [vmem:[%s4389 + $0x68] sm:$0xff]
        %v4400 = vld [vmem:[%s4389 + $0x78] sm:$0xff]
        %v4401 = vld [vmem:[%s4389 + $0x80] sm:$0xff]
        %v4402 = vld [vmem:[%s4389 + $0x90] sm:$0xff]
        %v4403 = vld [vmem:[%s4389 + $0x98] sm:$0xff]
        %v4404 = vld [vmem:[%s4389 + $0xa8] sm:$0xff]
        %v4405 = vld [vmem:[%s4389 + $0xb0] sm:$0xff]
        %v4406 = vld [vmem:[%s4389 + $0xc0] sm:$0xff]
        %v4407 = vld [vmem:[%s4389 + $0xc8] sm:$0xff]
        %v4408 = vld [vmem:[%s4389 + $0xd8] sm:$0xff]
        %v4409 = vld [vmem:[%s4389 + $0xe0] sm:$0xff]
        %v4410 = vld [vmem:[%s4389 + $0xf0] sm:$0xff]
        %v4411 = vld [vmem:[%s4389 + $0xf8] sm:$0xff]
        %v4412 = vld [vmem:[%s4389 + $0x108] sm:$0xff]
        %v4413 = vld [vmem:[%s4389 + $0x110] sm:$0xff]
        %v4414 = vld [vmem:[%s4389 + $0x120] sm:$0xff]
        %v4415 = vld [vmem:[%s4389 + $0x128] sm:$0xff]
        %v4416 = vld [vmem:[%s4389 + $0x138] sm:$0xff]
        %v4417 = vld [vmem:[%s4389 + $0x140] sm:$0xff]
        %v4418 = vld [vmem:[%s4389 + $0x150] sm:$0xff]
        %v4419 = vld [vmem:[%s4389 + $0x158] sm:$0xff]
        %v4420 = vld [vmem:[%s4389 + $0x168] sm:$0xff]
        %v4421 = vld [vmem:[%s4389 + $0x170] sm:$0xff]
        %v4422 = vld [vmem:[%s4389 + $0x1b0] sm:$0xff]
        %v4423 = vld [vmem:[%s4389 + $0x1b8] sm:$0xff]
        %v4424 = vld [vmem:[%s4389 + $0x1c8] sm:$0xff]
        %v4425 = vld [vmem:[%s4389 + $0x1d0] sm:$0xff]
        %v4426 = vld [vmem:[%s4389 + $0x1e0] sm:$0xff]
        %v4427 = vld [vmem:[%s4389 + $0x1e8] sm:$0xff]
        %v4428 = vld [vmem:[%s4389 + $0x1f8] sm:$0xff]
        %v4429 = vld [vmem:[%s4389 + $0x200] sm:$0xff]
        %v4430 = vld [vmem:[%s4389 + $0x210] sm:$0xff]
        %v4431 = vld [vmem:[%s4389 + $0x218] sm:$0xff]
        %v4432 = vld [vmem:[%s4389 + $0x228] sm:$0xff]
        %v4433 = vld [vmem:[%s4389 + $0x230] sm:$0xff]
        %v4434 = vld [vmem:[%s4389 + $0x240] sm:$0xff]
        %v4435 = vld [vmem:[%s4389 + $0x248] sm:$0xff]
        %v4436 = vld [vmem:[%s4389 + $0x258] sm:$0xff]
        %v4437 = vld [vmem:[%s4389 + $0x260] sm:$0xff]
        %v4438 = vld [vmem:[%s4389 + $0x270] sm:$0xff]
        %v4439 = vld [vmem:[%s4389 + $0x278] sm:$0xff]
        %v4440 = vld [vmem:[%s4389 + $0x288] sm:$0xff]
        %v4441 = vld [vmem:[%s4389 + $0x290] sm:$0xff]
        %v4442 = vld [vmem:[%s4389 + $0x2a0] sm:$0xff]
        %v4443 = vld [vmem:[%s4389 + $0x2a8] sm:$0xff]
        %v4444 = vld [vmem:[%s4389 + $0x2b8] sm:$0xff]
        %v4445 = vld [vmem:[%s4389 + $0x2c0] sm:$0xff]
        %v4446 = vld [vmem:[%s4389 + $0x2d0] sm:$0xff]
        %v4447 = vld [vmem:[%s4389 + $0x2d8] sm:$0xff]
        %v4448 = vld [vmem:[%s4389 + $0x2e8] sm:$0xff]
        %v4449 = vld [vmem:[%s4389 + $0x2f0] sm:$0xff]
        %v4450 = vld [vmem:[%s4389 + $0x300] sm:$0xff]
        %v4451 = vld [vmem:[%s4389 + $0x308] sm:$0xff]
        %v4452 = vld [vmem:[%s4389 + $0x318] sm:$0xff]
        %v4453 = vld [vmem:[%s4389 + $0x320] sm:$0xff]
        %v4454 = vpack.c.bf16 %v4391, %v4390
        %v4455 = vpack.c.bf16 %v4393, %v4392
        %v4456 = vpack.c.bf16 %v4395, %v4394
        %v4457 = vpack.c.bf16 %v4397, %v4396
        %v4458 = vpack.c.bf16 %v4399, %v4398
        %v4459 = vpack.c.bf16 %v4401, %v4400
        %v4460 = vpack.c.bf16 %v4403, %v4402
        %v4461 = vpack.c.bf16 %v4405, %v4404
        %v4462 = vpack.c.bf16 %v4407, %v4406
        %v4463 = vpack.c.bf16 %v4409, %v4408
        %v4464 = vpack.c.bf16 %v4411, %v4410
        %v4465 = vpack.c.bf16 %v4413, %v4412
        %v4466 = vpack.c.bf16 %v4415, %v4414
        %v4467 = vpack.c.bf16 %v4417, %v4416
        %v4468 = vpack.c.bf16 %v4419, %v4418
        %v4469 = vpack.c.bf16 %v4421, %v4420
        %v4470 = vpack.c.bf16 %v4423, %v4422
        %v4471 = vpack.c.bf16 %v4425, %v4424
        %v4472 = vpack.c.bf16 %v4427, %v4426
        %v4473 = vpack.c.bf16 %v4429, %v4428
        %v4474 = vpack.c.bf16 %v4431, %v4430
        %v4475 = vpack.c.bf16 %v4433, %v4432
        %v4476 = vpack.c.bf16 %v4435, %v4434
        %v4477 = vpack.c.bf16 %v4437, %v4436
        %v4478 = vpack.c.bf16 %v4439, %v4438
        %v4479 = vpack.c.bf16 %v4441, %v4440
        %v4480 = vpack.c.bf16 %v4443, %v4442
        %v4481 = vpack.c.bf16 %v4445, %v4444
        %v4482 = vpack.c.bf16 %v4447, %v4446
        %v4483 = vpack.c.bf16 %v4449, %v4448
        %v4484 = vpack.c.bf16 %v4451, %v4450
        %v4485 = vpack.c.bf16 %v4453, %v4452
        %s4486 = scalar_lea.vmem [#allocation8], 192
        %v4487 = vld [vmem:[%s4486] sm:$0xf]
        %v4488 = vld [vmem:[%s4486 + $0x4] sm:$0xf]
        %v4489 = vld [vmem:[%s4486 + $0x8] sm:$0xf]
        %v4490 = vld [vmem:[%s4486 + $0xc] sm:$0xf]
        %v4491 = vld [vmem:[%s4486 + $0x10] sm:$0xf]
        %v4492 = vld [vmem:[%s4486 + $0x14] sm:$0xf]
        %v4493 = vld [vmem:[%s4486 + $0x18] sm:$0xf]
        %v4494 = vld [vmem:[%s4486 + $0x1c] sm:$0xf]
        %v4503 = vunpack.c.l.b16 %v4487
        %v4504 = vunpack.c.l.b16 %v4488
        %v4505 = vunpack.c.l.b16 %v4489
        %v4506 = vunpack.c.l.b16 %v4490
        %v4507 = vunpack.c.l.b16 %v4491
        %v4508 = vunpack.c.l.b16 %v4492
        %v4509 = vunpack.c.l.b16 %v4493
        %v4510 = vunpack.c.l.b16 %v4494
        %v4511 = vpack.c.b16 %v4504, %v4503
        %v4512 = vpack.c.b16 %v4506, %v4505
        %v4513 = vpack.c.b16 %v4508, %v4507
        %v4514 = vpack.c.b16 %v4510, %v4509
        %v4520 = vsel %vm264, %v4454, 0
        %v4523 = vsel %vm264, %v4455, 0
        %v4526 = vsel %vm264, %v4456, 0
        %v4529 = vsel %vm264, %v4457, 0
        %v4532 = vsel %vm264, %v4458, 0
        %v4535 = vsel %vm264, %v4459, 0
        %v4538 = vsel %vm264, %v4460, 0
        %v4541 = vsel %vm264, %v4461, 0
        %v4544 = vsel %vm264, %v4462, 0
        %v4547 = vsel %vm264, %v4463, 0
        %v4550 = vsel %vm264, %v4464, 0
        %v4553 = vsel %vm264, %v4465, 0
        %v4556 = vsel %vm264, %v4466, 0
        %v4559 = vsel %vm264, %v4467, 0
        %v4562 = vsel %vm264, %v4468, 0
        %v4565 = vsel %vm264, %v4469, 0
        %v4568 = vsel %vm264, %v4470, 0
        %v4571 = vsel %vm264, %v4471, 0
        %v4574 = vsel %vm264, %v4472, 0
        %v4577 = vsel %vm264, %v4473, 0
        %v4580 = vsel %vm264, %v4474, 0
        %v4583 = vsel %vm264, %v4475, 0
        %v4586 = vsel %vm264, %v4476, 0
        %v4589 = vsel %vm264, %v4477, 0
        %v4592 = vsel %vm264, %v4478, 0
        %v4595 = vsel %vm264, %v4479, 0
        %v4598 = vsel %vm264, %v4480, 0
        %v4601 = vsel %vm264, %v4481, 0
        %v4604 = vsel %vm264, %v4482, 0
        %v4607 = vsel %vm264, %v4483, 0
        %v4610 = vsel %vm264, %v4484, 0
        %v4613 = vsel %vm264, %v4485, 0
        %4615 = vmatprep.subr.bf16.mxu0 0
        %4616 = vmatpush1.bf16.msra.mxu0 0
        %4617 = vmatprep.subr.bf16.mxu0 0
        %4618 = vmatpush1.bf16.msra.mxu0 0
        %4619 = vmatprep.subr.bf16.mxu0 0
        %4620 = vmatpush1.bf16.msra.mxu0 0
        %4621 = vmatprep.subr.bf16.mxu0 0
        %4622 = vmatpush1.bf16.msra.mxu0 0
        %4623 = vmatprep.subr.bf16.mxu0 0
        %4624 = vmatpush1.bf16.msra.mxu0 %v4514
        %4625 = vmatprep.subr.bf16.mxu0 0
        %4626 = vmatpush1.bf16.msra.mxu0 %v4513
        %4627 = vmatprep.subr.bf16.mxu0 0
        %4628 = vmatpush1.bf16.msra.mxu0 %v4512
        %4629 = vmatprep.subr.bf16.mxu0 0
        %4630 = vmatpush1.bf16.msra.mxu0 %v4511
        %4631 = vmatprep.subr.bf16.mxu0 0
        %4632 = vmatpush2.bf16.msra.mxu0 0
        %4633 = vmatprep.subr.bf16.mxu0 0
        %4634 = vmatpush2.bf16.msra.mxu0 0
        %4635 = vmatprep.subr.bf16.mxu0 0
        %4636 = vmatpush2.bf16.msra.mxu0 0
        %4637 = vmatprep.subr.bf16.mxu0 0
        %4638 = vmatpush2.bf16.msra.mxu0 0
        %4639 = vmatprep.subr.bf16.mxu0 0
        %4640 = vmatpush2.bf16.msra.mxu0 0
        %4641 = vmatprep.subr.bf16.mxu0 0
        %4642 = vmatpush2.bf16.msra.mxu0 0
        %4643 = vmatprep.subr.bf16.mxu0 0
        %4644 = vmatpush2.bf16.msra.mxu0 0
        %4645 = vmatprep.subr.bf16.mxu0 0
        %4646 = vmatpush2.bf16.msra.mxu0 0
        %4647 = vmatprep.mubr.bf16.mxu0 0
        %4648 = vmatmul.mubr.bf16.gmra.mxu0 %v4520
        %v4649 = vpop.f32.mrf.mxu0
        %v4650 = vadd.f32 0.0, %v4649
        %v4651 = vpop.f32.mrf.mxu0
        %v4652 = vpop.f32.mrf.mxu0
        %v4653 = vadd.f32 0.0, %v4652
        %v4654 = vpop.f32.mrf.mxu0
        %4655 = vmatprep.mubr.bf16.mxu0 0
        %4656 = vmatmul.mubr.bf16.gmra.mxu0 %v4523
        %v4657 = vpop.f32.mrf.mxu0
        %v4658 = vadd.f32 0.0, %v4657
        %v4659 = vpop.f32.mrf.mxu0
        %v4660 = vpop.f32.mrf.mxu0
        %v4661 = vadd.f32 0.0, %v4660
        %v4662 = vpop.f32.mrf.mxu0
        %4663 = vmatprep.mubr.bf16.mxu0 0
        %4664 = vmatmul.mubr.bf16.gmra.mxu0 %v4526
        %v4665 = vpop.f32.mrf.mxu0
        %v4666 = vadd.f32 0.0, %v4665
        %v4667 = vpop.f32.mrf.mxu0
        %v4668 = vpop.f32.mrf.mxu0
        %v4669 = vadd.f32 0.0, %v4668
        %v4670 = vpop.f32.mrf.mxu0
        %4671 = vmatprep.mubr.bf16.mxu0 0
        %4672 = vmatmul.mubr.bf16.gmra.mxu0 %v4529
        %v4673 = vpop.f32.mrf.mxu0
        %v4674 = vadd.f32 0.0, %v4673
        %v4675 = vpop.f32.mrf.mxu0
        %v4676 = vpop.f32.mrf.mxu0
        %v4677 = vadd.f32 0.0, %v4676
        %v4678 = vpop.f32.mrf.mxu0
        %4679 = vmatprep.mubr.bf16.mxu0 0
        %4680 = vmatmul.mubr.bf16.gmra.mxu0 %v4532
        %v4681 = vpop.f32.mrf.mxu0
        %v4682 = vadd.f32 0.0, %v4681
        %v4683 = vpop.f32.mrf.mxu0
        %v4684 = vpop.f32.mrf.mxu0
        %v4685 = vadd.f32 0.0, %v4684
        %v4686 = vpop.f32.mrf.mxu0
        %4687 = vmatprep.mubr.bf16.mxu0 0
        %4688 = vmatmul.mubr.bf16.gmra.mxu0 %v4535
        %v4689 = vpop.f32.mrf.mxu0
        %v4690 = vadd.f32 0.0, %v4689
        %v4691 = vpop.f32.mrf.mxu0
        %v4692 = vpop.f32.mrf.mxu0
        %v4693 = vadd.f32 0.0, %v4692
        %v4694 = vpop.f32.mrf.mxu0
        %4695 = vmatprep.mubr.bf16.mxu0 0
        %4696 = vmatmul.mubr.bf16.gmra.mxu0 %v4538
        %v4697 = vpop.f32.mrf.mxu0
        %v4698 = vadd.f32 0.0, %v4697
        %v4699 = vpop.f32.mrf.mxu0
        %v4700 = vpop.f32.mrf.mxu0
        %v4701 = vadd.f32 0.0, %v4700
        %v4702 = vpop.f32.mrf.mxu0
        %4703 = vmatprep.mubr.bf16.mxu0 0
        %4704 = vmatmul.mubr.bf16.gmra.mxu0 %v4541
        %v4705 = vpop.f32.mrf.mxu0
        %v4706 = vadd.f32 0.0, %v4705
        %v4707 = vpop.f32.mrf.mxu0
        %v4708 = vpop.f32.mrf.mxu0
        %v4709 = vadd.f32 0.0, %v4708
        %v4710 = vpop.f32.mrf.mxu0
        %4711 = vmatprep.mubr.bf16.mxu0 0
        %4712 = vmatmul.mubr.bf16.gmra.mxu0 %v4544
        %v4713 = vpop.f32.mrf.mxu0
        %v4714 = vadd.f32 0.0, %v4713
        %v4715 = vpop.f32.mrf.mxu0
        %v4716 = vpop.f32.mrf.mxu0
        %v4717 = vadd.f32 0.0, %v4716
        %v4718 = vpop.f32.mrf.mxu0
        %4719 = vmatprep.mubr.bf16.mxu0 0
        %4720 = vmatmul.mubr.bf16.gmra.mxu0 %v4547
        %v4721 = vpop.f32.mrf.mxu0
        %v4722 = vadd.f32 0.0, %v4721
        %v4723 = vpop.f32.mrf.mxu0
        %v4724 = vpop.f32.mrf.mxu0
        %v4725 = vadd.f32 0.0, %v4724
        %v4726 = vpop.f32.mrf.mxu0
        %4727 = vmatprep.mubr.bf16.mxu0 0
        %4728 = vmatmul.mubr.bf16.gmra.mxu0 %v4550
        %v4729 = vpop.f32.mrf.mxu0
        %v4730 = vadd.f32 0.0, %v4729
        %v4731 = vpop.f32.mrf.mxu0
        %v4732 = vpop.f32.mrf.mxu0
        %v4733 = vadd.f32 0.0, %v4732
        %v4734 = vpop.f32.mrf.mxu0
        %4735 = vmatprep.mubr.bf16.mxu0 0
        %4736 = vmatmul.mubr.bf16.gmra.mxu0 %v4553
        %v4737 = vpop.f32.mrf.mxu0
        %v4738 = vadd.f32 0.0, %v4737
        %v4739 = vpop.f32.mrf.mxu0
        %v4740 = vpop.f32.mrf.mxu0
        %v4741 = vadd.f32 0.0, %v4740
        %v4742 = vpop.f32.mrf.mxu0
        %4743 = vmatprep.mubr.bf16.mxu0 0
        %4744 = vmatmul.mubr.bf16.gmra.mxu0 %v4556
        %v4745 = vpop.f32.mrf.mxu0
        %v4746 = vadd.f32 0.0, %v4745
        %v4747 = vpop.f32.mrf.mxu0
        %v4748 = vpop.f32.mrf.mxu0
        %v4749 = vadd.f32 0.0, %v4748
        %v4750 = vpop.f32.mrf.mxu0
        %4751 = vmatprep.mubr.bf16.mxu0 0
        %4752 = vmatmul.mubr.bf16.gmra.mxu0 %v4559
        %v4753 = vpop.f32.mrf.mxu0
        %v4754 = vadd.f32 0.0, %v4753
        %v4755 = vpop.f32.mrf.mxu0
        %v4756 = vpop.f32.mrf.mxu0
        %v4757 = vadd.f32 0.0, %v4756
        %v4758 = vpop.f32.mrf.mxu0
        %4759 = vmatprep.mubr.bf16.mxu0 0
        %4760 = vmatmul.mubr.bf16.gmra.mxu0 %v4562
        %v4761 = vpop.f32.mrf.mxu0
        %v4762 = vadd.f32 0.0, %v4761
        %v4763 = vpop.f32.mrf.mxu0
        %v4764 = vpop.f32.mrf.mxu0
        %v4765 = vadd.f32 0.0, %v4764
        %v4766 = vpop.f32.mrf.mxu0
        %4767 = vmatprep.mubr.bf16.mxu0 0
        %4768 = vmatmul.mubr.bf16.gmra.mxu0 %v4565
        %v4769 = vpop.f32.mrf.mxu0
        %v4770 = vadd.f32 0.0, %v4769
        %v4771 = vpop.f32.mrf.mxu0
        %v4772 = vpop.f32.mrf.mxu0
        %v4773 = vadd.f32 0.0, %v4772
        %v4774 = vpop.f32.mrf.mxu0
        %4775 = vmatprep.mubr.bf16.mxu0 0
        %4776 = vmatmul.mubr.bf16.gmra.mxu0 %v4568
        %v4777 = vpop.f32.mrf.mxu0
        %v4778 = vadd.f32 0.0, %v4777
        %v4779 = vpop.f32.mrf.mxu0
        %v4780 = vpop.f32.mrf.mxu0
        %v4781 = vadd.f32 0.0, %v4780
        %v4782 = vpop.f32.mrf.mxu0
        %4783 = vmatprep.mubr.bf16.mxu0 0
        %4784 = vmatmul.mubr.bf16.gmra.mxu0 %v4571
        %v4785 = vpop.f32.mrf.mxu0
        %v4786 = vadd.f32 0.0, %v4785
        %v4787 = vpop.f32.mrf.mxu0
        %v4788 = vpop.f32.mrf.mxu0
        %v4789 = vadd.f32 0.0, %v4788
        %v4790 = vpop.f32.mrf.mxu0
        %4791 = vmatprep.mubr.bf16.mxu0 0
        %4792 = vmatmul.mubr.bf16.gmra.mxu0 %v4574
        %v4793 = vpop.f32.mrf.mxu0
        %v4794 = vadd.f32 0.0, %v4793
        %v4795 = vpop.f32.mrf.mxu0
        %v4796 = vpop.f32.mrf.mxu0
        %v4797 = vadd.f32 0.0, %v4796
        %v4798 = vpop.f32.mrf.mxu0
        %4799 = vmatprep.mubr.bf16.mxu0 0
        %4800 = vmatmul.mubr.bf16.gmra.mxu0 %v4577
        %v4801 = vpop.f32.mrf.mxu0
        %v4802 = vadd.f32 0.0, %v4801
        %v4803 = vpop.f32.mrf.mxu0
        %v4804 = vpop.f32.mrf.mxu0
        %v4805 = vadd.f32 0.0, %v4804
        %v4806 = vpop.f32.mrf.mxu0
        %4807 = vmatprep.mubr.bf16.mxu0 0
        %4808 = vmatmul.mubr.bf16.gmra.mxu0 %v4580
        %v4809 = vpop.f32.mrf.mxu0
        %v4810 = vadd.f32 0.0, %v4809
        %v4811 = vpop.f32.mrf.mxu0
        %v4812 = vpop.f32.mrf.mxu0
        %v4813 = vadd.f32 0.0, %v4812
        %v4814 = vpop.f32.mrf.mxu0
        %4815 = vmatprep.mubr.bf16.mxu0 0
        %4816 = vmatmul.mubr.bf16.gmra.mxu0 %v4583
        %v4817 = vpop.f32.mrf.mxu0
        %v4818 = vadd.f32 0.0, %v4817
        %v4819 = vpop.f32.mrf.mxu0
        %v4820 = vpop.f32.mrf.mxu0
        %v4821 = vadd.f32 0.0, %v4820
        %v4822 = vpop.f32.mrf.mxu0
        %4823 = vmatprep.mubr.bf16.mxu0 0
        %4824 = vmatmul.mubr.bf16.gmra.mxu0 %v4586
        %v4825 = vpop.f32.mrf.mxu0
        %v4826 = vadd.f32 0.0, %v4825
        %v4827 = vpop.f32.mrf.mxu0
        %v4828 = vpop.f32.mrf.mxu0
        %v4829 = vadd.f32 0.0, %v4828
        %v4830 = vpop.f32.mrf.mxu0
        %4831 = vmatprep.mubr.bf16.mxu0 0
        %4832 = vmatmul.mubr.bf16.gmra.mxu0 %v4589
        %v4833 = vpop.f32.mrf.mxu0
        %v4834 = vadd.f32 0.0, %v4833
        %v4835 = vpop.f32.mrf.mxu0
        %v4836 = vpop.f32.mrf.mxu0
        %v4837 = vadd.f32 0.0, %v4836
        %v4838 = vpop.f32.mrf.mxu0
        %4839 = vmatprep.mubr.bf16.mxu0 0
        %4840 = vmatmul.mubr.bf16.gmra.mxu0 %v4592
        %v4841 = vpop.f32.mrf.mxu0
        %v4842 = vadd.f32 0.0, %v4841
        %v4843 = vpop.f32.mrf.mxu0
        %v4844 = vpop.f32.mrf.mxu0
        %v4845 = vadd.f32 0.0, %v4844
        %v4846 = vpop.f32.mrf.mxu0
        %4847 = vmatprep.mubr.bf16.mxu0 0
        %4848 = vmatmul.mubr.bf16.gmra.mxu0 %v4595
        %v4849 = vpop.f32.mrf.mxu0
        %v4850 = vadd.f32 0.0, %v4849
        %v4851 = vpop.f32.mrf.mxu0
        %v4852 = vpop.f32.mrf.mxu0
        %v4853 = vadd.f32 0.0, %v4852
        %v4854 = vpop.f32.mrf.mxu0
        %4855 = vmatprep.mubr.bf16.mxu0 0
        %4856 = vmatmul.mubr.bf16.gmra.mxu0 %v4598
        %v4857 = vpop.f32.mrf.mxu0
        %v4858 = vadd.f32 0.0, %v4857
        %v4859 = vpop.f32.mrf.mxu0
        %v4860 = vpop.f32.mrf.mxu0
        %v4861 = vadd.f32 0.0, %v4860
        %v4862 = vpop.f32.mrf.mxu0
        %4863 = vmatprep.mubr.bf16.mxu0 0
        %4864 = vmatmul.mubr.bf16.gmra.mxu0 %v4601
        %v4865 = vpop.f32.mrf.mxu0
        %v4866 = vadd.f32 0.0, %v4865
        %v4867 = vpop.f32.mrf.mxu0
        %v4868 = vpop.f32.mrf.mxu0
        %v4869 = vadd.f32 0.0, %v4868
        %v4870 = vpop.f32.mrf.mxu0
        %4871 = vmatprep.mubr.bf16.mxu0 0
        %4872 = vmatmul.mubr.bf16.gmra.mxu0 %v4604
        %v4873 = vpop.f32.mrf.mxu0
        %v4874 = vadd.f32 0.0, %v4873
        %v4875 = vpop.f32.mrf.mxu0
        %v4876 = vpop.f32.mrf.mxu0
        %v4877 = vadd.f32 0.0, %v4876
        %v4878 = vpop.f32.mrf.mxu0
        %4879 = vmatprep.mubr.bf16.mxu0 0
        %4880 = vmatmul.mubr.bf16.gmra.mxu0 %v4607
        %v4881 = vpop.f32.mrf.mxu0
        %v4882 = vadd.f32 0.0, %v4881
        %v4883 = vpop.f32.mrf.mxu0
        %v4884 = vpop.f32.mrf.mxu0
        %v4885 = vadd.f32 0.0, %v4884
        %v4886 = vpop.f32.mrf.mxu0
        %4887 = vmatprep.mubr.bf16.mxu0 0
        %4888 = vmatmul.mubr.bf16.gmra.mxu0 %v4610
        %v4889 = vpop.f32.mrf.mxu0
        %v4890 = vadd.f32 0.0, %v4889
        %v4891 = vpop.f32.mrf.mxu0
        %v4892 = vpop.f32.mrf.mxu0
        %v4893 = vadd.f32 0.0, %v4892
        %v4894 = vpop.f32.mrf.mxu0
        %4895 = vmatprep.mubr.bf16.mxu0 0
        %4896 = vmatmul.mubr.bf16.gmra.mxu0 %v4613
        %v4897 = vpop.f32.mrf.mxu0
        %v4898 = vadd.f32 0.0, %v4897
        %v4899 = vpop.f32.mrf.mxu0
        %v4900 = vpop.f32.mrf.mxu0
        %v4901 = vadd.f32 0.0, %v4900
        %v4902 = vpop.f32.mrf.mxu0
        %4903 = vdwg.mxu0
        %v4904 = vadd.f32 %v4325, %v4650
        %v4905 = vadd.f32 %v4326, %v4653
        %v4906 = vadd.f32 %v4327, %v4658
        %v4907 = vadd.f32 %v4328, %v4661
        %v4908 = vadd.f32 %v4329, %v4666
        %v4909 = vadd.f32 %v4330, %v4669
        %v4910 = vadd.f32 %v4331, %v4674
        %v4911 = vadd.f32 %v4332, %v4677
        %v4912 = vadd.f32 %v4333, %v4682
        %v4913 = vadd.f32 %v4334, %v4685
        %v4914 = vadd.f32 %v4335, %v4690
        %v4915 = vadd.f32 %v4336, %v4693
        %v4916 = vadd.f32 %v4337, %v4698
        %v4917 = vadd.f32 %v4338, %v4701
        %v4918 = vadd.f32 %v4339, %v4706
        %v4919 = vadd.f32 %v4340, %v4709
        %v4920 = vadd.f32 %v4341, %v4714
        %v4921 = vadd.f32 %v4342, %v4717
        %v4922 = vadd.f32 %v4343, %v4722
        %v4923 = vadd.f32 %v4344, %v4725
        %v4924 = vadd.f32 %v4345, %v4730
        %v4925 = vadd.f32 %v4346, %v4733
        %v4926 = vadd.f32 %v4347, %v4738
        %v4927 = vadd.f32 %v4348, %v4741
        %v4928 = vadd.f32 %v4349, %v4746
        %v4929 = vadd.f32 %v4350, %v4749
        %v4930 = vadd.f32 %v4351, %v4754
        %v4931 = vadd.f32 %v4352, %v4757
        %v4932 = vadd.f32 %v4353, %v4762
        %v4933 = vadd.f32 %v4354, %v4765
        %v4934 = vadd.f32 %v4355, %v4770
        %v4935 = vadd.f32 %v4356, %v4773
        %v4936 = vadd.f32 %v4357, %v4778
        %v4937 = vadd.f32 %v4358, %v4781
        %v4938 = vadd.f32 %v4359, %v4786
        %v4939 = vadd.f32 %v4360, %v4789
        %v4940 = vadd.f32 %v4361, %v4794
        %v4941 = vadd.f32 %v4362, %v4797
        %v4942 = vadd.f32 %v4363, %v4802
        %v4943 = vadd.f32 %v4364, %v4805
        %v4944 = vadd.f32 %v4365, %v4810
        %v4945 = vadd.f32 %v4366, %v4813
        %v4946 = vadd.f32 %v4367, %v4818
        %v4947 = vadd.f32 %v4368, %v4821
        %v4948 = vadd.f32 %v4369, %v4826
        %v4949 = vadd.f32 %v4370, %v4829
        %v4950 = vadd.f32 %v4371, %v4834
        %v4951 = vadd.f32 %v4372, %v4837
        %v4952 = vadd.f32 %v4373, %v4842
        %v4953 = vadd.f32 %v4374, %v4845
        %v4954 = vadd.f32 %v4375, %v4850
        %v4955 = vadd.f32 %v4376, %v4853
        %v4956 = vadd.f32 %v4377, %v4858
        %v4957 = vadd.f32 %v4378, %v4861
        %v4958 = vadd.f32 %v4379, %v4866
        %v4959 = vadd.f32 %v4380, %v4869
        %v4960 = vadd.f32 %v4381, %v4874
        %v4961 = vadd.f32 %v4382, %v4877
        %v4962 = vadd.f32 %v4383, %v4882
        %v4963 = vadd.f32 %v4384, %v4885
        %v4964 = vadd.f32 %v4385, %v4890
        %v4965 = vadd.f32 %v4386, %v4893
        %v4966 = vadd.f32 %v4387, %v4898
        %v4967 = vadd.f32 %v4388, %v4901
        %v4968 = vld [vmem:[%s4389 + $0x1] sm:$0xff]
        %v4969 = vld [vmem:[%s4389 + $0x9] sm:$0xff]
        %v4970 = vld [vmem:[%s4389 + $0x19] sm:$0xff]
        %v4971 = vld [vmem:[%s4389 + $0x21] sm:$0xff]
        %v4972 = vld [vmem:[%s4389 + $0x31] sm:$0xff]
        %v4973 = vld [vmem:[%s4389 + $0x39] sm:$0xff]
        %v4974 = vld [vmem:[%s4389 + $0x49] sm:$0xff]
        %v4975 = vld [vmem:[%s4389 + $0x51] sm:$0xff]
        %v4976 = vld [vmem:[%s4389 + $0x61] sm:$0xff]
        %v4977 = vld [vmem:[%s4389 + $0x69] sm:$0xff]
        %v4978 = vld [vmem:[%s4389 + $0x79] sm:$0xff]
        %v4979 = vld [vmem:[%s4389 + $0x81] sm:$0xff]
        %v4980 = vld [vmem:[%s4389 + $0x91] sm:$0xff]
        %v4981 = vld [vmem:[%s4389 + $0x99] sm:$0xff]
        %v4982 = vld [vmem:[%s4389 + $0xa9] sm:$0xff]
        %v4983 = vld [vmem:[%s4389 + $0xb1] sm:$0xff]
        %v4984 = vld [vmem:[%s4389 + $0xc1] sm:$0xff]
        %v4985 = vld [vmem:[%s4389 + $0xc9] sm:$0xff]
        %v4986 = vld [vmem:[%s4389 + $0xd9] sm:$0xff]
        %v4987 = vld [vmem:[%s4389 + $0xe1] sm:$0xff]
        %v4988 = vld [vmem:[%s4389 + $0xf1] sm:$0xff]
        %v4989 = vld [vmem:[%s4389 + $0xf9] sm:$0xff]
        %v4990 = vld [vmem:[%s4389 + $0x109] sm:$0xff]
        %v4991 = vld [vmem:[%s4389 + $0x111] sm:$0xff]
        %v4992 = vld [vmem:[%s4389 + $0x121] sm:$0xff]
        %v4993 = vld [vmem:[%s4389 + $0x129] sm:$0xff]
        %v4994 = vld [vmem:[%s4389 + $0x139] sm:$0xff]
        %v4995 = vld [vmem:[%s4389 + $0x141] sm:$0xff]
        %v4996 = vld [vmem:[%s4389 + $0x151] sm:$0xff]
        %v4997 = vld [vmem:[%s4389 + $0x159] sm:$0xff]
        %v4998 = vld [vmem:[%s4389 + $0x169] sm:$0xff]
        %v4999 = vld [vmem:[%s4389 + $0x171] sm:$0xff]
        %v5000 = vld [vmem:[%s4389 + $0x1b1] sm:$0xff]
        %v5001 = vld [vmem:[%s4389 + $0x1b9] sm:$0xff]
        %v5002 = vld [vmem:[%s4389 + $0x1c9] sm:$0xff]
        %v5003 = vld [vmem:[%s4389 + $0x1d1] sm:$0xff]
        %v5004 = vld [vmem:[%s4389 + $0x1e1] sm:$0xff]
        %v5005 = vld [vmem:[%s4389 + $0x1e9] sm:$0xff]
        %v5006 = vld [vmem:[%s4389 + $0x1f9] sm:$0xff]
        %v5007 = vld [vmem:[%s4389 + $0x201] sm:$0xff]
        %v5008 = vld [vmem:[%s4389 + $0x211] sm:$0xff]
        %v5009 = vld [vmem:[%s4389 + $0x219] sm:$0xff]
        %v5010 = vld [vmem:[%s4389 + $0x229] sm:$0xff]
        %v5011 = vld [vmem:[%s4389 + $0x231] sm:$0xff]
        %v5012 = vld [vmem:[%s4389 + $0x241] sm:$0xff]
        %v5013 = vld [vmem:[%s4389 + $0x249] sm:$0xff]
        %v5014 = vld [vmem:[%s4389 + $0x259] sm:$0xff]
        %v5015 = vld [vmem:[%s4389 + $0x261] sm:$0xff]
        %v5016 = vld [vmem:[%s4389 + $0x271] sm:$0xff]
        %v5017 = vld [vmem:[%s4389 + $0x279] sm:$0xff]
        %v5018 = vld [vmem:[%s4389 + $0x289] sm:$0xff]
        %v5019 = vld [vmem:[%s4389 + $0x291] sm:$0xff]
        %v5020 = vld [vmem:[%s4389 + $0x2a1] sm:$0xff]
        %v5021 = vld [vmem:[%s4389 + $0x2a9] sm:$0xff]
        %v5022 = vld [vmem:[%s4389 + $0x2b9] sm:$0xff]
        %v5023 = vld [vmem:[%s4389 + $0x2c1] sm:$0xff]
        %v5024 = vld [vmem:[%s4389 + $0x2d1] sm:$0xff]
        %v5025 = vld [vmem:[%s4389 + $0x2d9] sm:$0xff]
        %v5026 = vld [vmem:[%s4389 + $0x2e9] sm:$0xff]
        %v5027 = vld [vmem:[%s4389 + $0x2f1] sm:$0xff]
        %v5028 = vld [vmem:[%s4389 + $0x301] sm:$0xff]
        %v5029 = vld [vmem:[%s4389 + $0x309] sm:$0xff]
        %v5030 = vld [vmem:[%s4389 + $0x319] sm:$0xff]
        %v5031 = vld [vmem:[%s4389 + $0x321] sm:$0xff]
        %v5032 = vpack.c.bf16 %v4969, %v4968
        %v5033 = vpack.c.bf16 %v4971, %v4970
        %v5034 = vpack.c.bf16 %v4973, %v4972
        %v5035 = vpack.c.bf16 %v4975, %v4974
        %v5036 = vpack.c.bf16 %v4977, %v4976
        %v5037 = vpack.c.bf16 %v4979, %v4978
        %v5038 = vpack.c.bf16 %v4981, %v4980
        %v5039 = vpack.c.bf16 %v4983, %v4982
        %v5040 = vpack.c.bf16 %v4985, %v4984
        %v5041 = vpack.c.bf16 %v4987, %v4986
        %v5042 = vpack.c.bf16 %v4989, %v4988
        %v5043 = vpack.c.bf16 %v4991, %v4990
        %v5044 = vpack.c.bf16 %v4993, %v4992
        %v5045 = vpack.c.bf16 %v4995, %v4994
        %v5046 = vpack.c.bf16 %v4997, %v4996
        %v5047 = vpack.c.bf16 %v4999, %v4998
        %v5048 = vpack.c.bf16 %v5001, %v5000
        %v5049 = vpack.c.bf16 %v5003, %v5002
        %v5050 = vpack.c.bf16 %v5005, %v5004
        %v5051 = vpack.c.bf16 %v5007, %v5006
        %v5052 = vpack.c.bf16 %v5009, %v5008
        %v5053 = vpack.c.bf16 %v5011, %v5010
        %v5054 = vpack.c.bf16 %v5013, %v5012
        %v5055 = vpack.c.bf16 %v5015, %v5014
        %v5056 = vpack.c.bf16 %v5017, %v5016
        %v5057 = vpack.c.bf16 %v5019, %v5018
        %v5058 = vpack.c.bf16 %v5021, %v5020
        %v5059 = vpack.c.bf16 %v5023, %v5022
        %v5060 = vpack.c.bf16 %v5025, %v5024
        %v5061 = vpack.c.bf16 %v5027, %v5026
        %v5062 = vpack.c.bf16 %v5029, %v5028
        %v5063 = vpack.c.bf16 %v5031, %v5030
        %s5064 = scalar_lea.vmem [#allocation8], 224
        %v5065 = vld [vmem:[%s5064] sm:$0xf]
        %v5066 = vld [vmem:[%s5064 + $0x4] sm:$0xf]
        %v5067 = vld [vmem:[%s5064 + $0x8] sm:$0xf]
        %v5068 = vld [vmem:[%s5064 + $0xc] sm:$0xf]
        %v5069 = vld [vmem:[%s5064 + $0x10] sm:$0xf]
        %v5070 = vld [vmem:[%s5064 + $0x14] sm:$0xf]
        %v5071 = vld [vmem:[%s5064 + $0x18] sm:$0xf]
        %v5072 = vld [vmem:[%s5064 + $0x1c] sm:$0xf]
        %v5081 = vunpack.c.l.b16 %v5065
        %v5082 = vunpack.c.l.b16 %v5066
        %v5083 = vunpack.c.l.b16 %v5067
        %v5084 = vunpack.c.l.b16 %v5068
        %v5085 = vunpack.c.l.b16 %v5069
        %v5086 = vunpack.c.l.b16 %v5070
        %v5087 = vunpack.c.l.b16 %v5071
        %v5088 = vunpack.c.l.b16 %v5072
        %v5089 = vpack.c.b16 %v5082, %v5081
        %v5090 = vpack.c.b16 %v5084, %v5083
        %v5091 = vpack.c.b16 %v5086, %v5085
        %v5092 = vpack.c.b16 %v5088, %v5087
        %v5098 = vsel %vm264, %v5032, 0
        %v5101 = vsel %vm264, %v5033, 0
        %v5104 = vsel %vm264, %v5034, 0
        %v5107 = vsel %vm264, %v5035, 0
        %v5110 = vsel %vm264, %v5036, 0
        %v5113 = vsel %vm264, %v5037, 0
        %v5116 = vsel %vm264, %v5038, 0
        %v5119 = vsel %vm264, %v5039, 0
        %v5122 = vsel %vm264, %v5040, 0
        %v5125 = vsel %vm264, %v5041, 0
        %v5128 = vsel %vm264, %v5042, 0
        %v5131 = vsel %vm264, %v5043, 0
        %v5134 = vsel %vm264, %v5044, 0
        %v5137 = vsel %vm264, %v5045, 0
        %v5140 = vsel %vm264, %v5046, 0
        %v5143 = vsel %vm264, %v5047, 0
        %v5146 = vsel %vm264, %v5048, 0
        %v5149 = vsel %vm264, %v5049, 0
        %v5152 = vsel %vm264, %v5050, 0
        %v5155 = vsel %vm264, %v5051, 0
        %v5158 = vsel %vm264, %v5052, 0
        %v5161 = vsel %vm264, %v5053, 0
        %v5164 = vsel %vm264, %v5054, 0
        %v5167 = vsel %vm264, %v5055, 0
        %v5170 = vsel %vm264, %v5056, 0
        %v5173 = vsel %vm264, %v5057, 0
        %v5176 = vsel %vm264, %v5058, 0
        %v5179 = vsel %vm264, %v5059, 0
        %v5182 = vsel %vm264, %v5060, 0
        %v5185 = vsel %vm264, %v5061, 0
        %v5188 = vsel %vm264, %v5062, 0
        %v5191 = vsel %vm264, %v5063, 0
        %5193 = vmatprep.subr.bf16.mxu0 0
        %5194 = vmatpush1.bf16.msra.mxu0 0
        %5195 = vmatprep.subr.bf16.mxu0 0
        %5196 = vmatpush1.bf16.msra.mxu0 0
        %5197 = vmatprep.subr.bf16.mxu0 0
        %5198 = vmatpush1.bf16.msra.mxu0 0
        %5199 = vmatprep.subr.bf16.mxu0 0
        %5200 = vmatpush1.bf16.msra.mxu0 0
        %5201 = vmatprep.subr.bf16.mxu0 0
        %5202 = vmatpush1.bf16.msra.mxu0 %v5092
        %5203 = vmatprep.subr.bf16.mxu0 0
        %5204 = vmatpush1.bf16.msra.mxu0 %v5091
        %5205 = vmatprep.subr.bf16.mxu0 0
        %5206 = vmatpush1.bf16.msra.mxu0 %v5090
        %5207 = vmatprep.subr.bf16.mxu0 0
        %5208 = vmatpush1.bf16.msra.mxu0 %v5089
        %5209 = vmatprep.subr.bf16.mxu0 0
        %5210 = vmatpush2.bf16.msra.mxu0 0
        %5211 = vmatprep.subr.bf16.mxu0 0
        %5212 = vmatpush2.bf16.msra.mxu0 0
        %5213 = vmatprep.subr.bf16.mxu0 0
        %5214 = vmatpush2.bf16.msra.mxu0 0
        %5215 = vmatprep.subr.bf16.mxu0 0
        %5216 = vmatpush2.bf16.msra.mxu0 0
        %5217 = vmatprep.subr.bf16.mxu0 0
        %5218 = vmatpush2.bf16.msra.mxu0 0
        %5219 = vmatprep.subr.bf16.mxu0 0
        %5220 = vmatpush2.bf16.msra.mxu0 0
        %5221 = vmatprep.subr.bf16.mxu0 0
        %5222 = vmatpush2.bf16.msra.mxu0 0
        %5223 = vmatprep.subr.bf16.mxu0 0
        %5224 = vmatpush2.bf16.msra.mxu0 0
        %5225 = vmatprep.mubr.bf16.mxu0 0
        %5226 = vmatmul.mubr.bf16.gmra.mxu0 %v5098
        %v5227 = vpop.f32.mrf.mxu0
        %v5228 = vadd.f32 0.0, %v5227
        %v5229 = vpop.f32.mrf.mxu0
        %v5230 = vpop.f32.mrf.mxu0
        %v5231 = vadd.f32 0.0, %v5230
        %v5232 = vpop.f32.mrf.mxu0
        %5233 = vmatprep.mubr.bf16.mxu0 0
        %5234 = vmatmul.mubr.bf16.gmra.mxu0 %v5101
        %v5235 = vpop.f32.mrf.mxu0
        %v5236 = vadd.f32 0.0, %v5235
        %v5237 = vpop.f32.mrf.mxu0
        %v5238 = vpop.f32.mrf.mxu0
        %v5239 = vadd.f32 0.0, %v5238
        %v5240 = vpop.f32.mrf.mxu0
        %5241 = vmatprep.mubr.bf16.mxu0 0
        %5242 = vmatmul.mubr.bf16.gmra.mxu0 %v5104
        %v5243 = vpop.f32.mrf.mxu0
        %v5244 = vadd.f32 0.0, %v5243
        %v5245 = vpop.f32.mrf.mxu0
        %v5246 = vpop.f32.mrf.mxu0
        %v5247 = vadd.f32 0.0, %v5246
        %v5248 = vpop.f32.mrf.mxu0
        %5249 = vmatprep.mubr.bf16.mxu0 0
        %5250 = vmatmul.mubr.bf16.gmra.mxu0 %v5107
        %v5251 = vpop.f32.mrf.mxu0
        %v5252 = vadd.f32 0.0, %v5251
        %v5253 = vpop.f32.mrf.mxu0
        %v5254 = vpop.f32.mrf.mxu0
        %v5255 = vadd.f32 0.0, %v5254
        %v5256 = vpop.f32.mrf.mxu0
        %5257 = vmatprep.mubr.bf16.mxu0 0
        %5258 = vmatmul.mubr.bf16.gmra.mxu0 %v5110
        %v5259 = vpop.f32.mrf.mxu0
        %v5260 = vadd.f32 0.0, %v5259
        %v5261 = vpop.f32.mrf.mxu0
        %v5262 = vpop.f32.mrf.mxu0
        %v5263 = vadd.f32 0.0, %v5262
        %v5264 = vpop.f32.mrf.mxu0
        %5265 = vmatprep.mubr.bf16.mxu0 0
        %5266 = vmatmul.mubr.bf16.gmra.mxu0 %v5113
        %v5267 = vpop.f32.mrf.mxu0
        %v5268 = vadd.f32 0.0, %v5267
        %v5269 = vpop.f32.mrf.mxu0
        %v5270 = vpop.f32.mrf.mxu0
        %v5271 = vadd.f32 0.0, %v5270
        %v5272 = vpop.f32.mrf.mxu0
        %5273 = vmatprep.mubr.bf16.mxu0 0
        %5274 = vmatmul.mubr.bf16.gmra.mxu0 %v5116
        %v5275 = vpop.f32.mrf.mxu0
        %v5276 = vadd.f32 0.0, %v5275
        %v5277 = vpop.f32.mrf.mxu0
        %v5278 = vpop.f32.mrf.mxu0
        %v5279 = vadd.f32 0.0, %v5278
        %v5280 = vpop.f32.mrf.mxu0
        %5281 = vmatprep.mubr.bf16.mxu0 0
        %5282 = vmatmul.mubr.bf16.gmra.mxu0 %v5119
        %v5283 = vpop.f32.mrf.mxu0
        %v5284 = vadd.f32 0.0, %v5283
        %v5285 = vpop.f32.mrf.mxu0
        %v5286 = vpop.f32.mrf.mxu0
        %v5287 = vadd.f32 0.0, %v5286
        %v5288 = vpop.f32.mrf.mxu0
        %5289 = vmatprep.mubr.bf16.mxu0 0
        %5290 = vmatmul.mubr.bf16.gmra.mxu0 %v5122
        %v5291 = vpop.f32.mrf.mxu0
        %v5292 = vadd.f32 0.0, %v5291
        %v5293 = vpop.f32.mrf.mxu0
        %v5294 = vpop.f32.mrf.mxu0
        %v5295 = vadd.f32 0.0, %v5294
        %v5296 = vpop.f32.mrf.mxu0
        %5297 = vmatprep.mubr.bf16.mxu0 0
        %5298 = vmatmul.mubr.bf16.gmra.mxu0 %v5125
        %v5299 = vpop.f32.mrf.mxu0
        %v5300 = vadd.f32 0.0, %v5299
        %v5301 = vpop.f32.mrf.mxu0
        %v5302 = vpop.f32.mrf.mxu0
        %v5303 = vadd.f32 0.0, %v5302
        %v5304 = vpop.f32.mrf.mxu0
        %5305 = vmatprep.mubr.bf16.mxu0 0
        %5306 = vmatmul.mubr.bf16.gmra.mxu0 %v5128
        %v5307 = vpop.f32.mrf.mxu0
        %v5308 = vadd.f32 0.0, %v5307
        %v5309 = vpop.f32.mrf.mxu0
        %v5310 = vpop.f32.mrf.mxu0
        %v5311 = vadd.f32 0.0, %v5310
        %v5312 = vpop.f32.mrf.mxu0
        %5313 = vmatprep.mubr.bf16.mxu0 0
        %5314 = vmatmul.mubr.bf16.gmra.mxu0 %v5131
        %v5315 = vpop.f32.mrf.mxu0
        %v5316 = vadd.f32 0.0, %v5315
        %v5317 = vpop.f32.mrf.mxu0
        %v5318 = vpop.f32.mrf.mxu0
        %v5319 = vadd.f32 0.0, %v5318
        %v5320 = vpop.f32.mrf.mxu0
        %5321 = vmatprep.mubr.bf16.mxu0 0
        %5322 = vmatmul.mubr.bf16.gmra.mxu0 %v5134
        %v5323 = vpop.f32.mrf.mxu0
        %v5324 = vadd.f32 0.0, %v5323
        %v5325 = vpop.f32.mrf.mxu0
        %v5326 = vpop.f32.mrf.mxu0
        %v5327 = vadd.f32 0.0, %v5326
        %v5328 = vpop.f32.mrf.mxu0
        %5329 = vmatprep.mubr.bf16.mxu0 0
        %5330 = vmatmul.mubr.bf16.gmra.mxu0 %v5137
        %v5331 = vpop.f32.mrf.mxu0
        %v5332 = vadd.f32 0.0, %v5331
        %v5333 = vpop.f32.mrf.mxu0
        %v5334 = vpop.f32.mrf.mxu0
        %v5335 = vadd.f32 0.0, %v5334
        %v5336 = vpop.f32.mrf.mxu0
        %5337 = vmatprep.mubr.bf16.mxu0 0
        %5338 = vmatmul.mubr.bf16.gmra.mxu0 %v5140
        %v5339 = vpop.f32.mrf.mxu0
        %v5340 = vadd.f32 0.0, %v5339
        %v5341 = vpop.f32.mrf.mxu0
        %v5342 = vpop.f32.mrf.mxu0
        %v5343 = vadd.f32 0.0, %v5342
        %v5344 = vpop.f32.mrf.mxu0
        %5345 = vmatprep.mubr.bf16.mxu0 0
        %5346 = vmatmul.mubr.bf16.gmra.mxu0 %v5143
        %v5347 = vpop.f32.mrf.mxu0
        %v5348 = vadd.f32 0.0, %v5347
        %v5349 = vpop.f32.mrf.mxu0
        %v5350 = vpop.f32.mrf.mxu0
        %v5351 = vadd.f32 0.0, %v5350
        %v5352 = vpop.f32.mrf.mxu0
        %5353 = vmatprep.mubr.bf16.mxu0 0
        %5354 = vmatmul.mubr.bf16.gmra.mxu0 %v5146
        %v5355 = vpop.f32.mrf.mxu0
        %v5356 = vadd.f32 0.0, %v5355
        %v5357 = vpop.f32.mrf.mxu0
        %v5358 = vpop.f32.mrf.mxu0
        %v5359 = vadd.f32 0.0, %v5358
        %v5360 = vpop.f32.mrf.mxu0
        %5361 = vmatprep.mubr.bf16.mxu0 0
        %5362 = vmatmul.mubr.bf16.gmra.mxu0 %v5149
        %v5363 = vpop.f32.mrf.mxu0
        %v5364 = vadd.f32 0.0, %v5363
        %v5365 = vpop.f32.mrf.mxu0
        %v5366 = vpop.f32.mrf.mxu0
        %v5367 = vadd.f32 0.0, %v5366
        %v5368 = vpop.f32.mrf.mxu0
        %5369 = vmatprep.mubr.bf16.mxu0 0
        %5370 = vmatmul.mubr.bf16.gmra.mxu0 %v5152
        %v5371 = vpop.f32.mrf.mxu0
        %v5372 = vadd.f32 0.0, %v5371
        %v5373 = vpop.f32.mrf.mxu0
        %v5374 = vpop.f32.mrf.mxu0
        %v5375 = vadd.f32 0.0, %v5374
        %v5376 = vpop.f32.mrf.mxu0
        %5377 = vmatprep.mubr.bf16.mxu0 0
        %5378 = vmatmul.mubr.bf16.gmra.mxu0 %v5155
        %v5379 = vpop.f32.mrf.mxu0
        %v5380 = vadd.f32 0.0, %v5379
        %v5381 = vpop.f32.mrf.mxu0
        %v5382 = vpop.f32.mrf.mxu0
        %v5383 = vadd.f32 0.0, %v5382
        %v5384 = vpop.f32.mrf.mxu0
        %5385 = vmatprep.mubr.bf16.mxu0 0
        %5386 = vmatmul.mubr.bf16.gmra.mxu0 %v5158
        %v5387 = vpop.f32.mrf.mxu0
        %v5388 = vadd.f32 0.0, %v5387
        %v5389 = vpop.f32.mrf.mxu0
        %v5390 = vpop.f32.mrf.mxu0
        %v5391 = vadd.f32 0.0, %v5390
        %v5392 = vpop.f32.mrf.mxu0
        %5393 = vmatprep.mubr.bf16.mxu0 0
        %5394 = vmatmul.mubr.bf16.gmra.mxu0 %v5161
        %v5395 = vpop.f32.mrf.mxu0
        %v5396 = vadd.f32 0.0, %v5395
        %v5397 = vpop.f32.mrf.mxu0
        %v5398 = vpop.f32.mrf.mxu0
        %v5399 = vadd.f32 0.0, %v5398
        %v5400 = vpop.f32.mrf.mxu0
        %5401 = vmatprep.mubr.bf16.mxu0 0
        %5402 = vmatmul.mubr.bf16.gmra.mxu0 %v5164
        %v5403 = vpop.f32.mrf.mxu0
        %v5404 = vadd.f32 0.0, %v5403
        %v5405 = vpop.f32.mrf.mxu0
        %v5406 = vpop.f32.mrf.mxu0
        %v5407 = vadd.f32 0.0, %v5406
        %v5408 = vpop.f32.mrf.mxu0
        %5409 = vmatprep.mubr.bf16.mxu0 0
        %5410 = vmatmul.mubr.bf16.gmra.mxu0 %v5167
        %v5411 = vpop.f32.mrf.mxu0
        %v5412 = vadd.f32 0.0, %v5411
        %v5413 = vpop.f32.mrf.mxu0
        %v5414 = vpop.f32.mrf.mxu0
        %v5415 = vadd.f32 0.0, %v5414
        %v5416 = vpop.f32.mrf.mxu0
        %5417 = vmatprep.mubr.bf16.mxu0 0
        %5418 = vmatmul.mubr.bf16.gmra.mxu0 %v5170
        %v5419 = vpop.f32.mrf.mxu0
        %v5420 = vadd.f32 0.0, %v5419
        %v5421 = vpop.f32.mrf.mxu0
        %v5422 = vpop.f32.mrf.mxu0
        %v5423 = vadd.f32 0.0, %v5422
        %v5424 = vpop.f32.mrf.mxu0
        %5425 = vmatprep.mubr.bf16.mxu0 0
        %5426 = vmatmul.mubr.bf16.gmra.mxu0 %v5173
        %v5427 = vpop.f32.mrf.mxu0
        %v5428 = vadd.f32 0.0, %v5427
        %v5429 = vpop.f32.mrf.mxu0
        %v5430 = vpop.f32.mrf.mxu0
        %v5431 = vadd.f32 0.0, %v5430
        %v5432 = vpop.f32.mrf.mxu0
        %5433 = vmatprep.mubr.bf16.mxu0 0
        %5434 = vmatmul.mubr.bf16.gmra.mxu0 %v5176
        %v5435 = vpop.f32.mrf.mxu0
        %v5436 = vadd.f32 0.0, %v5435
        %v5437 = vpop.f32.mrf.mxu0
        %v5438 = vpop.f32.mrf.mxu0
        %v5439 = vadd.f32 0.0, %v5438
        %v5440 = vpop.f32.mrf.mxu0
        %5441 = vmatprep.mubr.bf16.mxu0 0
        %5442 = vmatmul.mubr.bf16.gmra.mxu0 %v5179
        %v5443 = vpop.f32.mrf.mxu0
        %v5444 = vadd.f32 0.0, %v5443
        %v5445 = vpop.f32.mrf.mxu0
        %v5446 = vpop.f32.mrf.mxu0
        %v5447 = vadd.f32 0.0, %v5446
        %v5448 = vpop.f32.mrf.mxu0
        %5449 = vmatprep.mubr.bf16.mxu0 0
        %5450 = vmatmul.mubr.bf16.gmra.mxu0 %v5182
        %v5451 = vpop.f32.mrf.mxu0
        %v5452 = vadd.f32 0.0, %v5451
        %v5453 = vpop.f32.mrf.mxu0
        %v5454 = vpop.f32.mrf.mxu0
        %v5455 = vadd.f32 0.0, %v5454
        %v5456 = vpop.f32.mrf.mxu0
        %5457 = vmatprep.mubr.bf16.mxu0 0
        %5458 = vmatmul.mubr.bf16.gmra.mxu0 %v5185
        %v5459 = vpop.f32.mrf.mxu0
        %v5460 = vadd.f32 0.0, %v5459
        %v5461 = vpop.f32.mrf.mxu0
        %v5462 = vpop.f32.mrf.mxu0
        %v5463 = vadd.f32 0.0, %v5462
        %v5464 = vpop.f32.mrf.mxu0
        %5465 = vmatprep.mubr.bf16.mxu0 0
        %5466 = vmatmul.mubr.bf16.gmra.mxu0 %v5188
        %v5467 = vpop.f32.mrf.mxu0
        %v5468 = vadd.f32 0.0, %v5467
        %v5469 = vpop.f32.mrf.mxu0
        %v5470 = vpop.f32.mrf.mxu0
        %v5471 = vadd.f32 0.0, %v5470
        %v5472 = vpop.f32.mrf.mxu0
        %5473 = vmatprep.mubr.bf16.mxu0 0
        %5474 = vmatmul.mubr.bf16.gmra.mxu0 %v5191
        %v5475 = vpop.f32.mrf.mxu0
        %v5476 = vadd.f32 0.0, %v5475
        %v5477 = vpop.f32.mrf.mxu0
        %v5478 = vpop.f32.mrf.mxu0
        %v5479 = vadd.f32 0.0, %v5478
        %v5480 = vpop.f32.mrf.mxu0
        %5481 = vdwg.mxu0
        %v5482 = vadd.f32 %v4904, %v5228
        %v5483 = vadd.f32 %v4905, %v5231
        %v5484 = vadd.f32 %v4906, %v5236
        %v5485 = vadd.f32 %v4907, %v5239
        %v5486 = vadd.f32 %v4908, %v5244
        %v5487 = vadd.f32 %v4909, %v5247
        %v5488 = vadd.f32 %v4910, %v5252
        %v5489 = vadd.f32 %v4911, %v5255
        %v5490 = vadd.f32 %v4912, %v5260
        %v5491 = vadd.f32 %v4913, %v5263
        %v5492 = vadd.f32 %v4914, %v5268
        %v5493 = vadd.f32 %v4915, %v5271
        %v5494 = vadd.f32 %v4916, %v5276
        %v5495 = vadd.f32 %v4917, %v5279
        %v5496 = vadd.f32 %v4918, %v5284
        %v5497 = vadd.f32 %v4919, %v5287
        %v5498 = vadd.f32 %v4920, %v5292
        %v5499 = vadd.f32 %v4921, %v5295
        %v5500 = vadd.f32 %v4922, %v5300
        %v5501 = vadd.f32 %v4923, %v5303
        %v5502 = vadd.f32 %v4924, %v5308
        %v5503 = vadd.f32 %v4925, %v5311
        %v5504 = vadd.f32 %v4926, %v5316
        %v5505 = vadd.f32 %v4927, %v5319
        %v5506 = vadd.f32 %v4928, %v5324
        %v5507 = vadd.f32 %v4929, %v5327
        %v5508 = vadd.f32 %v4930, %v5332
        %v5509 = vadd.f32 %v4931, %v5335
        %v5510 = vadd.f32 %v4932, %v5340
        %v5511 = vadd.f32 %v4933, %v5343
        %v5512 = vadd.f32 %v4934, %v5348
        %v5513 = vadd.f32 %v4935, %v5351
        %v5514 = vadd.f32 %v4936, %v5356
        %v5515 = vadd.f32 %v4937, %v5359
        %v5516 = vadd.f32 %v4938, %v5364
        %v5517 = vadd.f32 %v4939, %v5367
        %v5518 = vadd.f32 %v4940, %v5372
        %v5519 = vadd.f32 %v4941, %v5375
        %v5520 = vadd.f32 %v4942, %v5380
        %v5521 = vadd.f32 %v4943, %v5383
        %v5522 = vadd.f32 %v4944, %v5388
        %v5523 = vadd.f32 %v4945, %v5391
        %v5524 = vadd.f32 %v4946, %v5396
        %v5525 = vadd.f32 %v4947, %v5399
        %v5526 = vadd.f32 %v4948, %v5404
        %v5527 = vadd.f32 %v4949, %v5407
        %v5528 = vadd.f32 %v4950, %v5412
        %v5529 = vadd.f32 %v4951, %v5415
        %v5530 = vadd.f32 %v4952, %v5420
        %v5531 = vadd.f32 %v4953, %v5423
        %v5532 = vadd.f32 %v4954, %v5428
        %v5533 = vadd.f32 %v4955, %v5431
        %v5534 = vadd.f32 %v4956, %v5436
        %v5535 = vadd.f32 %v4957, %v5439
        %v5536 = vadd.f32 %v4958, %v5444
        %v5537 = vadd.f32 %v4959, %v5447
        %v5538 = vadd.f32 %v4960, %v5452
        %v5539 = vadd.f32 %v4961, %v5455
        %v5540 = vadd.f32 %v4962, %v5460
        %v5541 = vadd.f32 %v4963, %v5463
        %v5542 = vadd.f32 %v4964, %v5468
        %v5543 = vadd.f32 %v4965, %v5471
        %v5544 = vadd.f32 %v4966, %v5476
        %v5545 = vadd.f32 %v4967, %v5479
        %v5546 = vld [vmem:[%s4389 + $0x2] sm:$0xff]
        %v5547 = vld [vmem:[%s4389 + $0xa] sm:$0xff]
        %v5548 = vld [vmem:[%s4389 + $0x1a] sm:$0xff]
        %v5549 = vld [vmem:[%s4389 + $0x22] sm:$0xff]
        %v5550 = vld [vmem:[%s4389 + $0x32] sm:$0xff]
        %v5551 = vld [vmem:[%s4389 + $0x3a] sm:$0xff]
        %v5552 = vld [vmem:[%s4389 + $0x4a] sm:$0xff]
        %v5553 = vld [vmem:[%s4389 + $0x52] sm:$0xff]
        %v5554 = vld [vmem:[%s4389 + $0x62] sm:$0xff]
        %v5555 = vld [vmem:[%s4389 + $0x6a] sm:$0xff]
        %v5556 = vld [vmem:[%s4389 + $0x7a] sm:$0xff]
        %v5557 = vld [vmem:[%s4389 + $0x82] sm:$0xff]
        %v5558 = vld [vmem:[%s4389 + $0x92] sm:$0xff]
        %v5559 = vld [vmem:[%s4389 + $0x9a] sm:$0xff]
        %v5560 = vld [vmem:[%s4389 + $0xaa] sm:$0xff]
        %v5561 = vld [vmem:[%s4389 + $0xb2] sm:$0xff]
        %v5562 = vld [vmem:[%s4389 + $0xc2] sm:$0xff]
        %v5563 = vld [vmem:[%s4389 + $0xca] sm:$0xff]
        %v5564 = vld [vmem:[%s4389 + $0xda] sm:$0xff]
        %v5565 = vld [vmem:[%s4389 + $0xe2] sm:$0xff]
        %v5566 = vld [vmem:[%s4389 + $0xf2] sm:$0xff]
        %v5567 = vld [vmem:[%s4389 + $0xfa] sm:$0xff]
        %v5568 = vld [vmem:[%s4389 + $0x10a] sm:$0xff]
        %v5569 = vld [vmem:[%s4389 + $0x112] sm:$0xff]
        %v5570 = vld [vmem:[%s4389 + $0x122] sm:$0xff]
        %v5571 = vld [vmem:[%s4389 + $0x12a] sm:$0xff]
        %v5572 = vld [vmem:[%s4389 + $0x13a] sm:$0xff]
        %v5573 = vld [vmem:[%s4389 + $0x142] sm:$0xff]
        %v5574 = vld [vmem:[%s4389 + $0x152] sm:$0xff]
        %v5575 = vld [vmem:[%s4389 + $0x15a] sm:$0xff]
        %v5576 = vld [vmem:[%s4389 + $0x16a] sm:$0xff]
        %v5577 = vld [vmem:[%s4389 + $0x172] sm:$0xff]
        %v5578 = vld [vmem:[%s4389 + $0x1b2] sm:$0xff]
        %v5579 = vld [vmem:[%s4389 + $0x1ba] sm:$0xff]
        %v5580 = vld [vmem:[%s4389 + $0x1ca] sm:$0xff]
        %v5581 = vld [vmem:[%s4389 + $0x1d2] sm:$0xff]
        %v5582 = vld [vmem:[%s4389 + $0x1e2] sm:$0xff]
        %v5583 = vld [vmem:[%s4389 + $0x1ea] sm:$0xff]
        %v5584 = vld [vmem:[%s4389 + $0x1fa] sm:$0xff]
        %v5585 = vld [vmem:[%s4389 + $0x202] sm:$0xff]
        %v5586 = vld [vmem:[%s4389 + $0x212] sm:$0xff]
        %v5587 = vld [vmem:[%s4389 + $0x21a] sm:$0xff]
        %v5588 = vld [vmem:[%s4389 + $0x22a] sm:$0xff]
        %v5589 = vld [vmem:[%s4389 + $0x232] sm:$0xff]
        %v5590 = vld [vmem:[%s4389 + $0x242] sm:$0xff]
        %v5591 = vld [vmem:[%s4389 + $0x24a] sm:$0xff]
        %v5592 = vld [vmem:[%s4389 + $0x25a] sm:$0xff]
        %v5593 = vld [vmem:[%s4389 + $0x262] sm:$0xff]
        %v5594 = vld [vmem:[%s4389 + $0x272] sm:$0xff]
        %v5595 = vld [vmem:[%s4389 + $0x27a] sm:$0xff]
        %v5596 = vld [vmem:[%s4389 + $0x28a] sm:$0xff]
        %v5597 = vld [vmem:[%s4389 + $0x292] sm:$0xff]
        %v5598 = vld [vmem:[%s4389 + $0x2a2] sm:$0xff]
        %v5599 = vld [vmem:[%s4389 + $0x2aa] sm:$0xff]
        %v5600 = vld [vmem:[%s4389 + $0x2ba] sm:$0xff]
        %v5601 = vld [vmem:[%s4389 + $0x2c2] sm:$0xff]
        %v5602 = vld [vmem:[%s4389 + $0x2d2] sm:$0xff]
        %v5603 = vld [vmem:[%s4389 + $0x2da] sm:$0xff]
        %v5604 = vld [vmem:[%s4389 + $0x2ea] sm:$0xff]
        %v5605 = vld [vmem:[%s4389 + $0x2f2] sm:$0xff]
        %v5606 = vld [vmem:[%s4389 + $0x302] sm:$0xff]
        %v5607 = vld [vmem:[%s4389 + $0x30a] sm:$0xff]
        %v5608 = vld [vmem:[%s4389 + $0x31a] sm:$0xff]
        %v5609 = vld [vmem:[%s4389 + $0x322] sm:$0xff]
        %v5610 = vpack.c.bf16 %v5547, %v5546
        %v5611 = vpack.c.bf16 %v5549, %v5548
        %v5612 = vpack.c.bf16 %v5551, %v5550
        %v5613 = vpack.c.bf16 %v5553, %v5552
        %v5614 = vpack.c.bf16 %v5555, %v5554
        %v5615 = vpack.c.bf16 %v5557, %v5556
        %v5616 = vpack.c.bf16 %v5559, %v5558
        %v5617 = vpack.c.bf16 %v5561, %v5560
        %v5618 = vpack.c.bf16 %v5563, %v5562
        %v5619 = vpack.c.bf16 %v5565, %v5564
        %v5620 = vpack.c.bf16 %v5567, %v5566
        %v5621 = vpack.c.bf16 %v5569, %v5568
        %v5622 = vpack.c.bf16 %v5571, %v5570
        %v5623 = vpack.c.bf16 %v5573, %v5572
        %v5624 = vpack.c.bf16 %v5575, %v5574
        %v5625 = vpack.c.bf16 %v5577, %v5576
        %v5626 = vpack.c.bf16 %v5579, %v5578
        %v5627 = vpack.c.bf16 %v5581, %v5580
        %v5628 = vpack.c.bf16 %v5583, %v5582
        %v5629 = vpack.c.bf16 %v5585, %v5584
        %v5630 = vpack.c.bf16 %v5587, %v5586
        %v5631 = vpack.c.bf16 %v5589, %v5588
        %v5632 = vpack.c.bf16 %v5591, %v5590
        %v5633 = vpack.c.bf16 %v5593, %v5592
        %v5634 = vpack.c.bf16 %v5595, %v5594
        %v5635 = vpack.c.bf16 %v5597, %v5596
        %v5636 = vpack.c.bf16 %v5599, %v5598
        %v5637 = vpack.c.bf16 %v5601, %v5600
        %v5638 = vpack.c.bf16 %v5603, %v5602
        %v5639 = vpack.c.bf16 %v5605, %v5604
        %v5640 = vpack.c.bf16 %v5607, %v5606
        %v5641 = vpack.c.bf16 %v5609, %v5608
        %s5642 = scalar_lea.vmem [#allocation8], 256
        %v5643 = vld [vmem:[%s5642] sm:$0xf]
        %v5644 = vld [vmem:[%s5642 + $0x4] sm:$0xf]
        %v5645 = vld [vmem:[%s5642 + $0x8] sm:$0xf]
        %v5646 = vld [vmem:[%s5642 + $0xc] sm:$0xf]
        %v5647 = vld [vmem:[%s5642 + $0x10] sm:$0xf]
        %v5648 = vld [vmem:[%s5642 + $0x14] sm:$0xf]
        %v5649 = vld [vmem:[%s5642 + $0x18] sm:$0xf]
        %v5650 = vld [vmem:[%s5642 + $0x1c] sm:$0xf]
        %v5659 = vunpack.c.l.b16 %v5643
        %v5660 = vunpack.c.l.b16 %v5644
        %v5661 = vunpack.c.l.b16 %v5645
        %v5662 = vunpack.c.l.b16 %v5646
        %v5663 = vunpack.c.l.b16 %v5647
        %v5664 = vunpack.c.l.b16 %v5648
        %v5665 = vunpack.c.l.b16 %v5649
        %v5666 = vunpack.c.l.b16 %v5650
        %v5667 = vpack.c.b16 %v5660, %v5659
        %v5668 = vpack.c.b16 %v5662, %v5661
        %v5669 = vpack.c.b16 %v5664, %v5663
        %v5670 = vpack.c.b16 %v5666, %v5665
        %v5676 = vsel %vm264, %v5610, 0
        %v5679 = vsel %vm264, %v5611, 0
        %v5682 = vsel %vm264, %v5612, 0
        %v5685 = vsel %vm264, %v5613, 0
        %v5688 = vsel %vm264, %v5614, 0
        %v5691 = vsel %vm264, %v5615, 0
        %v5694 = vsel %vm264, %v5616, 0
        %v5697 = vsel %vm264, %v5617, 0
        %v5700 = vsel %vm264, %v5618, 0
        %v5703 = vsel %vm264, %v5619, 0
        %v5706 = vsel %vm264, %v5620, 0
        %v5709 = vsel %vm264, %v5621, 0
        %v5712 = vsel %vm264, %v5622, 0
        %v5715 = vsel %vm264, %v5623, 0
        %v5718 = vsel %vm264, %v5624, 0
        %v5721 = vsel %vm264, %v5625, 0
        %v5724 = vsel %vm264, %v5626, 0
        %v5727 = vsel %vm264, %v5627, 0
        %v5730 = vsel %vm264, %v5628, 0
        %v5733 = vsel %vm264, %v5629, 0
        %v5736 = vsel %vm264, %v5630, 0
        %v5739 = vsel %vm264, %v5631, 0
        %v5742 = vsel %vm264, %v5632, 0
        %v5745 = vsel %vm264, %v5633, 0
        %v5748 = vsel %vm264, %v5634, 0
        %v5751 = vsel %vm264, %v5635, 0
        %v5754 = vsel %vm264, %v5636, 0
        %v5757 = vsel %vm264, %v5637, 0
        %v5760 = vsel %vm264, %v5638, 0
        %v5763 = vsel %vm264, %v5639, 0
        %v5766 = vsel %vm264, %v5640, 0
        %v5769 = vsel %vm264, %v5641, 0
        %5771 = vmatprep.subr.bf16.mxu0 0
        %5772 = vmatpush1.bf16.msra.mxu0 0
        %5773 = vmatprep.subr.bf16.mxu0 0
        %5774 = vmatpush1.bf16.msra.mxu0 0
        %5775 = vmatprep.subr.bf16.mxu0 0
        %5776 = vmatpush1.bf16.msra.mxu0 0
        %5777 = vmatprep.subr.bf16.mxu0 0
        %5778 = vmatpush1.bf16.msra.mxu0 0
        %5779 = vmatprep.subr.bf16.mxu0 0
        %5780 = vmatpush1.bf16.msra.mxu0 %v5670
        %5781 = vmatprep.subr.bf16.mxu0 0
        %5782 = vmatpush1.bf16.msra.mxu0 %v5669
        %5783 = vmatprep.subr.bf16.mxu0 0
        %5784 = vmatpush1.bf16.msra.mxu0 %v5668
        %5785 = vmatprep.subr.bf16.mxu0 0
        %5786 = vmatpush1.bf16.msra.mxu0 %v5667
        %5787 = vmatprep.subr.bf16.mxu0 0
        %5788 = vmatpush2.bf16.msra.mxu0 0
        %5789 = vmatprep.subr.bf16.mxu0 0
        %5790 = vmatpush2.bf16.msra.mxu0 0
        %5791 = vmatprep.subr.bf16.mxu0 0
        %5792 = vmatpush2.bf16.msra.mxu0 0
        %5793 = vmatprep.subr.bf16.mxu0 0
        %5794 = vmatpush2.bf16.msra.mxu0 0
        %5795 = vmatprep.subr.bf16.mxu0 0
        %5796 = vmatpush2.bf16.msra.mxu0 0
        %5797 = vmatprep.subr.bf16.mxu0 0
        %5798 = vmatpush2.bf16.msra.mxu0 0
        %5799 = vmatprep.subr.bf16.mxu0 0
        %5800 = vmatpush2.bf16.msra.mxu0 0
        %5801 = vmatprep.subr.bf16.mxu0 0
        %5802 = vmatpush2.bf16.msra.mxu0 0
        %5803 = vmatprep.mubr.bf16.mxu0 0
        %5804 = vmatmul.mubr.bf16.gmra.mxu0 %v5676
        %v5805 = vpop.f32.mrf.mxu0
        %v5806 = vadd.f32 0.0, %v5805
        %v5807 = vpop.f32.mrf.mxu0
        %v5808 = vpop.f32.mrf.mxu0
        %v5809 = vadd.f32 0.0, %v5808
        %v5810 = vpop.f32.mrf.mxu0
        %5811 = vmatprep.mubr.bf16.mxu0 0
        %5812 = vmatmul.mubr.bf16.gmra.mxu0 %v5679
        %v5813 = vpop.f32.mrf.mxu0
        %v5814 = vadd.f32 0.0, %v5813
        %v5815 = vpop.f32.mrf.mxu0
        %v5816 = vpop.f32.mrf.mxu0
        %v5817 = vadd.f32 0.0, %v5816
        %v5818 = vpop.f32.mrf.mxu0
        %5819 = vmatprep.mubr.bf16.mxu0 0
        %5820 = vmatmul.mubr.bf16.gmra.mxu0 %v5682
        %v5821 = vpop.f32.mrf.mxu0
        %v5822 = vadd.f32 0.0, %v5821
        %v5823 = vpop.f32.mrf.mxu0
        %v5824 = vpop.f32.mrf.mxu0
        %v5825 = vadd.f32 0.0, %v5824
        %v5826 = vpop.f32.mrf.mxu0
        %5827 = vmatprep.mubr.bf16.mxu0 0
        %5828 = vmatmul.mubr.bf16.gmra.mxu0 %v5685
        %v5829 = vpop.f32.mrf.mxu0
        %v5830 = vadd.f32 0.0, %v5829
        %v5831 = vpop.f32.mrf.mxu0
        %v5832 = vpop.f32.mrf.mxu0
        %v5833 = vadd.f32 0.0, %v5832
        %v5834 = vpop.f32.mrf.mxu0
        %5835 = vmatprep.mubr.bf16.mxu0 0
        %5836 = vmatmul.mubr.bf16.gmra.mxu0 %v5688
        %v5837 = vpop.f32.mrf.mxu0
        %v5838 = vadd.f32 0.0, %v5837
        %v5839 = vpop.f32.mrf.mxu0
        %v5840 = vpop.f32.mrf.mxu0
        %v5841 = vadd.f32 0.0, %v5840
        %v5842 = vpop.f32.mrf.mxu0
        %5843 = vmatprep.mubr.bf16.mxu0 0
        %5844 = vmatmul.mubr.bf16.gmra.mxu0 %v5691
        %v5845 = vpop.f32.mrf.mxu0
        %v5846 = vadd.f32 0.0, %v5845
        %v5847 = vpop.f32.mrf.mxu0
        %v5848 = vpop.f32.mrf.mxu0
        %v5849 = vadd.f32 0.0, %v5848
        %v5850 = vpop.f32.mrf.mxu0
        %5851 = vmatprep.mubr.bf16.mxu0 0
        %5852 = vmatmul.mubr.bf16.gmra.mxu0 %v5694
        %v5853 = vpop.f32.mrf.mxu0
        %v5854 = vadd.f32 0.0, %v5853
        %v5855 = vpop.f32.mrf.mxu0
        %v5856 = vpop.f32.mrf.mxu0
        %v5857 = vadd.f32 0.0, %v5856
        %v5858 = vpop.f32.mrf.mxu0
        %5859 = vmatprep.mubr.bf16.mxu0 0
        %5860 = vmatmul.mubr.bf16.gmra.mxu0 %v5697
        %v5861 = vpop.f32.mrf.mxu0
        %v5862 = vadd.f32 0.0, %v5861
        %v5863 = vpop.f32.mrf.mxu0
        %v5864 = vpop.f32.mrf.mxu0
        %v5865 = vadd.f32 0.0, %v5864
        %v5866 = vpop.f32.mrf.mxu0
        %5867 = vmatprep.mubr.bf16.mxu0 0
        %5868 = vmatmul.mubr.bf16.gmra.mxu0 %v5700
        %v5869 = vpop.f32.mrf.mxu0
        %v5870 = vadd.f32 0.0, %v5869
        %v5871 = vpop.f32.mrf.mxu0
        %v5872 = vpop.f32.mrf.mxu0
        %v5873 = vadd.f32 0.0, %v5872
        %v5874 = vpop.f32.mrf.mxu0
        %5875 = vmatprep.mubr.bf16.mxu0 0
        %5876 = vmatmul.mubr.bf16.gmra.mxu0 %v5703
        %v5877 = vpop.f32.mrf.mxu0
        %v5878 = vadd.f32 0.0, %v5877
        %v5879 = vpop.f32.mrf.mxu0
        %v5880 = vpop.f32.mrf.mxu0
        %v5881 = vadd.f32 0.0, %v5880
        %v5882 = vpop.f32.mrf.mxu0
        %5883 = vmatprep.mubr.bf16.mxu0 0
        %5884 = vmatmul.mubr.bf16.gmra.mxu0 %v5706
        %v5885 = vpop.f32.mrf.mxu0
        %v5886 = vadd.f32 0.0, %v5885
        %v5887 = vpop.f32.mrf.mxu0
        %v5888 = vpop.f32.mrf.mxu0
        %v5889 = vadd.f32 0.0, %v5888
        %v5890 = vpop.f32.mrf.mxu0
        %5891 = vmatprep.mubr.bf16.mxu0 0
        %5892 = vmatmul.mubr.bf16.gmra.mxu0 %v5709
        %v5893 = vpop.f32.mrf.mxu0
        %v5894 = vadd.f32 0.0, %v5893
        %v5895 = vpop.f32.mrf.mxu0
        %v5896 = vpop.f32.mrf.mxu0
        %v5897 = vadd.f32 0.0, %v5896
        %v5898 = vpop.f32.mrf.mxu0
        %5899 = vmatprep.mubr.bf16.mxu0 0
        %5900 = vmatmul.mubr.bf16.gmra.mxu0 %v5712
        %v5901 = vpop.f32.mrf.mxu0
        %v5902 = vadd.f32 0.0, %v5901
        %v5903 = vpop.f32.mrf.mxu0
        %v5904 = vpop.f32.mrf.mxu0
        %v5905 = vadd.f32 0.0, %v5904
        %v5906 = vpop.f32.mrf.mxu0
        %5907 = vmatprep.mubr.bf16.mxu0 0
        %5908 = vmatmul.mubr.bf16.gmra.mxu0 %v5715
        %v5909 = vpop.f32.mrf.mxu0
        %v5910 = vadd.f32 0.0, %v5909
        %v5911 = vpop.f32.mrf.mxu0
        %v5912 = vpop.f32.mrf.mxu0
        %v5913 = vadd.f32 0.0, %v5912
        %v5914 = vpop.f32.mrf.mxu0
        %5915 = vmatprep.mubr.bf16.mxu0 0
        %5916 = vmatmul.mubr.bf16.gmra.mxu0 %v5718
        %v5917 = vpop.f32.mrf.mxu0
        %v5918 = vadd.f32 0.0, %v5917
        %v5919 = vpop.f32.mrf.mxu0
        %v5920 = vpop.f32.mrf.mxu0
        %v5921 = vadd.f32 0.0, %v5920
        %v5922 = vpop.f32.mrf.mxu0
        %5923 = vmatprep.mubr.bf16.mxu0 0
        %5924 = vmatmul.mubr.bf16.gmra.mxu0 %v5721
        %v5925 = vpop.f32.mrf.mxu0
        %v5926 = vadd.f32 0.0, %v5925
        %v5927 = vpop.f32.mrf.mxu0
        %v5928 = vpop.f32.mrf.mxu0
        %v5929 = vadd.f32 0.0, %v5928
        %v5930 = vpop.f32.mrf.mxu0
        %5931 = vmatprep.mubr.bf16.mxu0 0
        %5932 = vmatmul.mubr.bf16.gmra.mxu0 %v5724
        %v5933 = vpop.f32.mrf.mxu0
        %v5934 = vadd.f32 0.0, %v5933
        %v5935 = vpop.f32.mrf.mxu0
        %v5936 = vpop.f32.mrf.mxu0
        %v5937 = vadd.f32 0.0, %v5936
        %v5938 = vpop.f32.mrf.mxu0
        %5939 = vmatprep.mubr.bf16.mxu0 0
        %5940 = vmatmul.mubr.bf16.gmra.mxu0 %v5727
        %v5941 = vpop.f32.mrf.mxu0
        %v5942 = vadd.f32 0.0, %v5941
        %v5943 = vpop.f32.mrf.mxu0
        %v5944 = vpop.f32.mrf.mxu0
        %v5945 = vadd.f32 0.0, %v5944
        %v5946 = vpop.f32.mrf.mxu0
        %5947 = vmatprep.mubr.bf16.mxu0 0
        %5948 = vmatmul.mubr.bf16.gmra.mxu0 %v5730
        %v5949 = vpop.f32.mrf.mxu0
        %v5950 = vadd.f32 0.0, %v5949
        %v5951 = vpop.f32.mrf.mxu0
        %v5952 = vpop.f32.mrf.mxu0
        %v5953 = vadd.f32 0.0, %v5952
        %v5954 = vpop.f32.mrf.mxu0
        %5955 = vmatprep.mubr.bf16.mxu0 0
        %5956 = vmatmul.mubr.bf16.gmra.mxu0 %v5733
        %v5957 = vpop.f32.mrf.mxu0
        %v5958 = vadd.f32 0.0, %v5957
        %v5959 = vpop.f32.mrf.mxu0
        %v5960 = vpop.f32.mrf.mxu0
        %v5961 = vadd.f32 0.0, %v5960
        %v5962 = vpop.f32.mrf.mxu0
        %5963 = vmatprep.mubr.bf16.mxu0 0
        %5964 = vmatmul.mubr.bf16.gmra.mxu0 %v5736
        %v5965 = vpop.f32.mrf.mxu0
        %v5966 = vadd.f32 0.0, %v5965
        %v5967 = vpop.f32.mrf.mxu0
        %v5968 = vpop.f32.mrf.mxu0
        %v5969 = vadd.f32 0.0, %v5968
        %v5970 = vpop.f32.mrf.mxu0
        %5971 = vmatprep.mubr.bf16.mxu0 0
        %5972 = vmatmul.mubr.bf16.gmra.mxu0 %v5739
        %v5973 = vpop.f32.mrf.mxu0
        %v5974 = vadd.f32 0.0, %v5973
        %v5975 = vpop.f32.mrf.mxu0
        %v5976 = vpop.f32.mrf.mxu0
        %v5977 = vadd.f32 0.0, %v5976
        %v5978 = vpop.f32.mrf.mxu0
        %5979 = vmatprep.mubr.bf16.mxu0 0
        %5980 = vmatmul.mubr.bf16.gmra.mxu0 %v5742
        %v5981 = vpop.f32.mrf.mxu0
        %v5982 = vadd.f32 0.0, %v5981
        %v5983 = vpop.f32.mrf.mxu0
        %v5984 = vpop.f32.mrf.mxu0
        %v5985 = vadd.f32 0.0, %v5984
        %v5986 = vpop.f32.mrf.mxu0
        %5987 = vmatprep.mubr.bf16.mxu0 0
        %5988 = vmatmul.mubr.bf16.gmra.mxu0 %v5745
        %v5989 = vpop.f32.mrf.mxu0
        %v5990 = vadd.f32 0.0, %v5989
        %v5991 = vpop.f32.mrf.mxu0
        %v5992 = vpop.f32.mrf.mxu0
        %v5993 = vadd.f32 0.0, %v5992
        %v5994 = vpop.f32.mrf.mxu0
        %5995 = vmatprep.mubr.bf16.mxu0 0
        %5996 = vmatmul.mubr.bf16.gmra.mxu0 %v5748
        %v5997 = vpop.f32.mrf.mxu0
        %v5998 = vadd.f32 0.0, %v5997
        %v5999 = vpop.f32.mrf.mxu0
        %v6000 = vpop.f32.mrf.mxu0
        %v6001 = vadd.f32 0.0, %v6000
        %v6002 = vpop.f32.mrf.mxu0
        %6003 = vmatprep.mubr.bf16.mxu0 0
        %6004 = vmatmul.mubr.bf16.gmra.mxu0 %v5751
        %v6005 = vpop.f32.mrf.mxu0
        %v6006 = vadd.f32 0.0, %v6005
        %v6007 = vpop.f32.mrf.mxu0
        %v6008 = vpop.f32.mrf.mxu0
        %v6009 = vadd.f32 0.0, %v6008
        %v6010 = vpop.f32.mrf.mxu0
        %6011 = vmatprep.mubr.bf16.mxu0 0
        %6012 = vmatmul.mubr.bf16.gmra.mxu0 %v5754
        %v6013 = vpop.f32.mrf.mxu0
        %v6014 = vadd.f32 0.0, %v6013
        %v6015 = vpop.f32.mrf.mxu0
        %v6016 = vpop.f32.mrf.mxu0
        %v6017 = vadd.f32 0.0, %v6016
        %v6018 = vpop.f32.mrf.mxu0
        %6019 = vmatprep.mubr.bf16.mxu0 0
        %6020 = vmatmul.mubr.bf16.gmra.mxu0 %v5757
        %v6021 = vpop.f32.mrf.mxu0
        %v6022 = vadd.f32 0.0, %v6021
        %v6023 = vpop.f32.mrf.mxu0
        %v6024 = vpop.f32.mrf.mxu0
        %v6025 = vadd.f32 0.0, %v6024
        %v6026 = vpop.f32.mrf.mxu0
        %6027 = vmatprep.mubr.bf16.mxu0 0
        %6028 = vmatmul.mubr.bf16.gmra.mxu0 %v5760
        %v6029 = vpop.f32.mrf.mxu0
        %v6030 = vadd.f32 0.0, %v6029
        %v6031 = vpop.f32.mrf.mxu0
        %v6032 = vpop.f32.mrf.mxu0
        %v6033 = vadd.f32 0.0, %v6032
        %v6034 = vpop.f32.mrf.mxu0
        %6035 = vmatprep.mubr.bf16.mxu0 0
        %6036 = vmatmul.mubr.bf16.gmra.mxu0 %v5763
        %v6037 = vpop.f32.mrf.mxu0
        %v6038 = vadd.f32 0.0, %v6037
        %v6039 = vpop.f32.mrf.mxu0
        %v6040 = vpop.f32.mrf.mxu0
        %v6041 = vadd.f32 0.0, %v6040
        %v6042 = vpop.f32.mrf.mxu0
        %6043 = vmatprep.mubr.bf16.mxu0 0
        %6044 = vmatmul.mubr.bf16.gmra.mxu0 %v5766
        %v6045 = vpop.f32.mrf.mxu0
        %v6046 = vadd.f32 0.0, %v6045
        %v6047 = vpop.f32.mrf.mxu0
        %v6048 = vpop.f32.mrf.mxu0
        %v6049 = vadd.f32 0.0, %v6048
        %v6050 = vpop.f32.mrf.mxu0
        %6051 = vmatprep.mubr.bf16.mxu0 0
        %6052 = vmatmul.mubr.bf16.gmra.mxu0 %v5769
        %v6053 = vpop.f32.mrf.mxu0
        %v6054 = vadd.f32 0.0, %v6053
        %v6055 = vpop.f32.mrf.mxu0
        %v6056 = vpop.f32.mrf.mxu0
        %v6057 = vadd.f32 0.0, %v6056
        %v6058 = vpop.f32.mrf.mxu0
        %6059 = vdwg.mxu0
        %v6060 = vadd.f32 %v5482, %v5806
        %v6061 = vadd.f32 %v5483, %v5809
        %v6062 = vadd.f32 %v5484, %v5814
        %v6063 = vadd.f32 %v5485, %v5817
        %v6064 = vadd.f32 %v5486, %v5822
        %v6065 = vadd.f32 %v5487, %v5825
        %v6066 = vadd.f32 %v5488, %v5830
        %v6067 = vadd.f32 %v5489, %v5833
        %v6068 = vadd.f32 %v5490, %v5838
        %v6069 = vadd.f32 %v5491, %v5841
        %v6070 = vadd.f32 %v5492, %v5846
        %v6071 = vadd.f32 %v5493, %v5849
        %v6072 = vadd.f32 %v5494, %v5854
        %v6073 = vadd.f32 %v5495, %v5857
        %v6074 = vadd.f32 %v5496, %v5862
        %v6075 = vadd.f32 %v5497, %v5865
        %v6076 = vadd.f32 %v5498, %v5870
        %v6077 = vadd.f32 %v5499, %v5873
        %v6078 = vadd.f32 %v5500, %v5878
        %v6079 = vadd.f32 %v5501, %v5881
        %v6080 = vadd.f32 %v5502, %v5886
        %v6081 = vadd.f32 %v5503, %v5889
        %v6082 = vadd.f32 %v5504, %v5894
        %v6083 = vadd.f32 %v5505, %v5897
        %v6084 = vadd.f32 %v5506, %v5902
        %v6085 = vadd.f32 %v5507, %v5905
        %v6086 = vadd.f32 %v5508, %v5910
        %v6087 = vadd.f32 %v5509, %v5913
        %v6088 = vadd.f32 %v5510, %v5918
        %v6089 = vadd.f32 %v5511, %v5921
        %v6090 = vadd.f32 %v5512, %v5926
        %v6091 = vadd.f32 %v5513, %v5929
        %v6092 = vadd.f32 %v5514, %v5934
        %v6093 = vadd.f32 %v5515, %v5937
        %v6094 = vadd.f32 %v5516, %v5942
        %v6095 = vadd.f32 %v5517, %v5945
        %v6096 = vadd.f32 %v5518, %v5950
        %v6097 = vadd.f32 %v5519, %v5953
        %v6098 = vadd.f32 %v5520, %v5958
        %v6099 = vadd.f32 %v5521, %v5961
        %v6100 = vadd.f32 %v5522, %v5966
        %v6101 = vadd.f32 %v5523, %v5969
        %v6102 = vadd.f32 %v5524, %v5974
        %v6103 = vadd.f32 %v5525, %v5977
        %v6104 = vadd.f32 %v5526, %v5982
        %v6105 = vadd.f32 %v5527, %v5985
        %v6106 = vadd.f32 %v5528, %v5990
        %v6107 = vadd.f32 %v5529, %v5993
        %v6108 = vadd.f32 %v5530, %v5998
        %v6109 = vadd.f32 %v5531, %v6001
        %v6110 = vadd.f32 %v5532, %v6006
        %v6111 = vadd.f32 %v5533, %v6009
        %v6112 = vadd.f32 %v5534, %v6014
        %v6113 = vadd.f32 %v5535, %v6017
        %v6114 = vadd.f32 %v5536, %v6022
        %v6115 = vadd.f32 %v5537, %v6025
        %v6116 = vadd.f32 %v5538, %v6030
        %v6117 = vadd.f32 %v5539, %v6033
        %v6118 = vadd.f32 %v5540, %v6038
        %v6119 = vadd.f32 %v5541, %v6041
        %v6120 = vadd.f32 %v5542, %v6046
        %v6121 = vadd.f32 %v5543, %v6049
        %v6122 = vadd.f32 %v5544, %v6054
        %v6123 = vadd.f32 %v5545, %v6057
        %v6124 = vmul.f32 %v6060, 0.2
        %v6125 = vmul.f32 %v6061, 0.2
        %v6126 = vmul.f32 %v6062, 0.2
        %v6127 = vmul.f32 %v6063, 0.2
        %v6128 = vmul.f32 %v6064, 0.2
        %v6129 = vmul.f32 %v6065, 0.2
        %v6130 = vmul.f32 %v6066, 0.2
        %v6131 = vmul.f32 %v6067, 0.2
        %v6132 = vmul.f32 %v6068, 0.2
        %v6133 = vmul.f32 %v6069, 0.2
        %v6134 = vmul.f32 %v6070, 0.2
        %v6135 = vmul.f32 %v6071, 0.2
        %v6136 = vmul.f32 %v6072, 0.2
        %v6137 = vmul.f32 %v6073, 0.2
        %v6138 = vmul.f32 %v6074, 0.2
        %v6139 = vmul.f32 %v6075, 0.2
        %v6140 = vmul.f32 %v6076, 0.2
        %v6141 = vmul.f32 %v6077, 0.2
        %v6142 = vmul.f32 %v6078, 0.2
        %v6143 = vmul.f32 %v6079, 0.2
        %v6144 = vmul.f32 %v6080, 0.2
        %v6145 = vmul.f32 %v6081, 0.2
        %v6146 = vmul.f32 %v6082, 0.2
        %v6147 = vmul.f32 %v6083, 0.2
        %v6148 = vmul.f32 %v6084, 0.2
        %v6149 = vmul.f32 %v6085, 0.2
        %v6150 = vmul.f32 %v6086, 0.2
        %v6151 = vmul.f32 %v6087, 0.2
        %v6152 = vmul.f32 %v6088, 0.2
        %v6153 = vmul.f32 %v6089, 0.2
        %v6154 = vmul.f32 %v6090, 0.2
        %v6155 = vmul.f32 %v6091, 0.2
        %v6156 = vmul.f32 %v6092, 0.2
        %v6157 = vmul.f32 %v6093, 0.2
        %v6158 = vmul.f32 %v6094, 0.2
        %v6159 = vmul.f32 %v6095, 0.2
        %v6160 = vmul.f32 %v6096, 0.2
        %v6161 = vmul.f32 %v6097, 0.2
        %v6162 = vmul.f32 %v6098, 0.2
        %v6163 = vmul.f32 %v6099, 0.2
        %v6164 = vmul.f32 %v6100, 0.2
        %v6165 = vmul.f32 %v6101, 0.2
        %v6166 = vmul.f32 %v6102, 0.2
        %v6167 = vmul.f32 %v6103, 0.2
        %v6168 = vmul.f32 %v6104, 0.2
        %v6169 = vmul.f32 %v6105, 0.2
        %v6170 = vmul.f32 %v6106, 0.2
        %v6171 = vmul.f32 %v6107, 0.2
        %v6172 = vmul.f32 %v6108, 0.2
        %v6173 = vmul.f32 %v6109, 0.2
        %v6174 = vmul.f32 %v6110, 0.2
        %v6175 = vmul.f32 %v6111, 0.2
        %v6176 = vmul.f32 %v6112, 0.2
        %v6177 = vmul.f32 %v6113, 0.2
        %v6178 = vmul.f32 %v6114, 0.2
        %v6179 = vmul.f32 %v6115, 0.2
        %v6180 = vmul.f32 %v6116, 0.2
        %v6181 = vmul.f32 %v6117, 0.2
        %v6182 = vmul.f32 %v6118, 0.2
        %v6183 = vmul.f32 %v6119, 0.2
        %v6184 = vmul.f32 %v6120, 0.2
        %v6185 = vmul.f32 %v6121, 0.2
        %v6186 = vmul.f32 %v6122, 0.2
        %v6187 = vmul.f32 %v6123, 0.2
        %v6188 = vmax.f32 %v6060, %v6124
        %v6189 = vmax.f32 %v6061, %v6125
        %v6190 = vmax.f32 %v6062, %v6126
        %v6191 = vmax.f32 %v6063, %v6127
        %v6192 = vmax.f32 %v6064, %v6128
        %v6193 = vmax.f32 %v6065, %v6129
        %v6194 = vmax.f32 %v6066, %v6130
        %v6195 = vmax.f32 %v6067, %v6131
        %v6196 = vmax.f32 %v6068, %v6132
        %v6197 = vmax.f32 %v6069, %v6133
        %v6198 = vmax.f32 %v6070, %v6134
        %v6199 = vmax.f32 %v6071, %v6135
        %v6200 = vmax.f32 %v6072, %v6136
        %v6201 = vmax.f32 %v6073, %v6137
        %v6202 = vmax.f32 %v6074, %v6138
        %v6203 = vmax.f32 %v6075, %v6139
        %v6204 = vmax.f32 %v6076, %v6140
        %v6205 = vmax.f32 %v6077, %v6141
        %v6206 = vmax.f32 %v6078, %v6142
        %v6207 = vmax.f32 %v6079, %v6143
        %v6208 = vmax.f32 %v6080, %v6144
        %v6209 = vmax.f32 %v6081, %v6145
        %v6210 = vmax.f32 %v6082, %v6146
        %v6211 = vmax.f32 %v6083, %v6147
        %v6212 = vmax.f32 %v6084, %v6148
        %v6213 = vmax.f32 %v6085, %v6149
        %v6214 = vmax.f32 %v6086, %v6150
        %v6215 = vmax.f32 %v6087, %v6151
        %v6216 = vmax.f32 %v6088, %v6152
        %v6217 = vmax.f32 %v6089, %v6153
        %v6218 = vmax.f32 %v6090, %v6154
        %v6219 = vmax.f32 %v6091, %v6155
        %v6220 = vmax.f32 %v6092, %v6156
        %v6221 = vmax.f32 %v6093, %v6157
        %v6222 = vmax.f32 %v6094, %v6158
        %v6223 = vmax.f32 %v6095, %v6159
        %v6224 = vmax.f32 %v6096, %v6160
        %v6225 = vmax.f32 %v6097, %v6161
        %v6226 = vmax.f32 %v6098, %v6162
        %v6227 = vmax.f32 %v6099, %v6163
        %v6228 = vmax.f32 %v6100, %v6164
        %v6229 = vmax.f32 %v6101, %v6165
        %v6230 = vmax.f32 %v6102, %v6166
        %v6231 = vmax.f32 %v6103, %v6167
        %v6232 = vmax.f32 %v6104, %v6168
        %v6233 = vmax.f32 %v6105, %v6169
        %v6234 = vmax.f32 %v6106, %v6170
        %v6235 = vmax.f32 %v6107, %v6171
        %v6236 = vmax.f32 %v6108, %v6172
        %v6237 = vmax.f32 %v6109, %v6173
        %v6238 = vmax.f32 %v6110, %v6174
        %v6239 = vmax.f32 %v6111, %v6175
        %v6240 = vmax.f32 %v6112, %v6176
        %v6241 = vmax.f32 %v6113, %v6177
        %v6242 = vmax.f32 %v6114, %v6178
        %v6243 = vmax.f32 %v6115, %v6179
        %v6244 = vmax.f32 %v6116, %v6180
        %v6245 = vmax.f32 %v6117, %v6181
        %v6246 = vmax.f32 %v6118, %v6182
        %v6247 = vmax.f32 %v6119, %v6183
        %v6248 = vmax.f32 %v6120, %v6184
        %v6249 = vmax.f32 %v6121, %v6185
        %v6250 = vmax.f32 %v6122, %v6186
        %v6251 = vmax.f32 %v6123, %v6187
        %6316 = vrot.lane.b32.xlu0 %v6188, 96
        %v6317 = vpop.permute.xlu0 %6316
        %6318 = vrot.lane.b32.xlu0 %v6189, 96
        %v6319 = vpop.permute.xlu0 %6318
        %6320 = vrot.lane.b32.xlu0 %v6190, 96
        %v6321 = vpop.permute.xlu0 %6320
        %6322 = vrot.lane.b32.xlu0 %v6191, 96
        %v6323 = vpop.permute.xlu0 %6322
        %6324 = vrot.lane.b32.xlu0 %v6192, 96
        %v6325 = vpop.permute.xlu0 %6324
        %6326 = vrot.lane.b32.xlu0 %v6193, 96
        %v6327 = vpop.permute.xlu0 %6326
        %6328 = vrot.lane.b32.xlu0 %v6194, 96
        %v6329 = vpop.permute.xlu0 %6328
        %6330 = vrot.lane.b32.xlu0 %v6195, 96
        %v6331 = vpop.permute.xlu0 %6330
        %6332 = vrot.lane.b32.xlu0 %v6196, 96
        %v6333 = vpop.permute.xlu0 %6332
        %6334 = vrot.lane.b32.xlu0 %v6197, 96
        %v6335 = vpop.permute.xlu0 %6334
        %6336 = vrot.lane.b32.xlu0 %v6198, 96
        %v6337 = vpop.permute.xlu0 %6336
        %6338 = vrot.lane.b32.xlu0 %v6199, 96
        %v6339 = vpop.permute.xlu0 %6338
        %6340 = vrot.lane.b32.xlu0 %v6200, 96
        %v6341 = vpop.permute.xlu0 %6340
        %6342 = vrot.lane.b32.xlu0 %v6201, 96
        %v6343 = vpop.permute.xlu0 %6342
        %6344 = vrot.lane.b32.xlu0 %v6202, 96
        %v6345 = vpop.permute.xlu0 %6344
        %6346 = vrot.lane.b32.xlu0 %v6203, 96
        %v6347 = vpop.permute.xlu0 %6346
        %6348 = vrot.lane.b32.xlu0 %v6204, 96
        %v6349 = vpop.permute.xlu0 %6348
        %6350 = vrot.lane.b32.xlu0 %v6205, 96
        %v6351 = vpop.permute.xlu0 %6350
        %6352 = vrot.lane.b32.xlu0 %v6206, 96
        %v6353 = vpop.permute.xlu0 %6352
        %6354 = vrot.lane.b32.xlu0 %v6207, 96
        %v6355 = vpop.permute.xlu0 %6354
        %6356 = vrot.lane.b32.xlu0 %v6208, 96
        %v6357 = vpop.permute.xlu0 %6356
        %6358 = vrot.lane.b32.xlu0 %v6209, 96
        %v6359 = vpop.permute.xlu0 %6358
        %6360 = vrot.lane.b32.xlu0 %v6210, 96
        %v6361 = vpop.permute.xlu0 %6360
        %6362 = vrot.lane.b32.xlu0 %v6211, 96
        %v6363 = vpop.permute.xlu0 %6362
        %6364 = vrot.lane.b32.xlu0 %v6212, 96
        %v6365 = vpop.permute.xlu0 %6364
        %6366 = vrot.lane.b32.xlu0 %v6213, 96
        %v6367 = vpop.permute.xlu0 %6366
        %6368 = vrot.lane.b32.xlu0 %v6214, 96
        %v6369 = vpop.permute.xlu0 %6368
        %6370 = vrot.lane.b32.xlu0 %v6215, 96
        %v6371 = vpop.permute.xlu0 %6370
        %6372 = vrot.lane.b32.xlu0 %v6216, 96
        %v6373 = vpop.permute.xlu0 %6372
        %6374 = vrot.lane.b32.xlu0 %v6217, 96
        %v6375 = vpop.permute.xlu0 %6374
        %6376 = vrot.lane.b32.xlu0 %v6218, 96
        %v6377 = vpop.permute.xlu0 %6376
        %6378 = vrot.lane.b32.xlu0 %v6219, 96
        %v6379 = vpop.permute.xlu0 %6378
        %6380 = vrot.lane.b32.xlu0 %v6220, 96
        %v6381 = vpop.permute.xlu0 %6380
        %6382 = vrot.lane.b32.xlu0 %v6221, 96
        %v6383 = vpop.permute.xlu0 %6382
        %6384 = vrot.lane.b32.xlu0 %v6222, 96
        %v6385 = vpop.permute.xlu0 %6384
        %6386 = vrot.lane.b32.xlu0 %v6223, 96
        %v6387 = vpop.permute.xlu0 %6386
        %6388 = vrot.lane.b32.xlu0 %v6224, 96
        %v6389 = vpop.permute.xlu0 %6388
        %6390 = vrot.lane.b32.xlu0 %v6225, 96
        %v6391 = vpop.permute.xlu0 %6390
        %6392 = vrot.lane.b32.xlu0 %v6226, 96
        %v6393 = vpop.permute.xlu0 %6392
        %6394 = vrot.lane.b32.xlu0 %v6227, 96
        %v6395 = vpop.permute.xlu0 %6394
        %6396 = vrot.lane.b32.xlu0 %v6228, 96
        %v6397 = vpop.permute.xlu0 %6396
        %6398 = vrot.lane.b32.xlu0 %v6229, 96
        %v6399 = vpop.permute.xlu0 %6398
        %6400 = vrot.lane.b32.xlu0 %v6230, 96
        %v6401 = vpop.permute.xlu0 %6400
        %6402 = vrot.lane.b32.xlu0 %v6231, 96
        %v6403 = vpop.permute.xlu0 %6402
        %6404 = vrot.lane.b32.xlu0 %v6232, 96
        %v6405 = vpop.permute.xlu0 %6404
        %6406 = vrot.lane.b32.xlu0 %v6233, 96
        %v6407 = vpop.permute.xlu0 %6406
        %6408 = vrot.lane.b32.xlu0 %v6234, 96
        %v6409 = vpop.permute.xlu0 %6408
        %6410 = vrot.lane.b32.xlu0 %v6235, 96
        %v6411 = vpop.permute.xlu0 %6410
        %6412 = vrot.lane.b32.xlu0 %v6236, 96
        %v6413 = vpop.permute.xlu0 %6412
        %6414 = vrot.lane.b32.xlu0 %v6237, 96
        %v6415 = vpop.permute.xlu0 %6414
        %6416 = vrot.lane.b32.xlu0 %v6238, 96
        %v6417 = vpop.permute.xlu0 %6416
        %6418 = vrot.lane.b32.xlu0 %v6239, 96
        %v6419 = vpop.permute.xlu0 %6418
        %6420 = vrot.lane.b32.xlu0 %v6240, 96
        %v6421 = vpop.permute.xlu0 %6420
        %6422 = vrot.lane.b32.xlu0 %v6241, 96
        %v6423 = vpop.permute.xlu0 %6422
        %6424 = vrot.lane.b32.xlu0 %v6242, 96
        %v6425 = vpop.permute.xlu0 %6424
        %6426 = vrot.lane.b32.xlu0 %v6243, 96
        %v6427 = vpop.permute.xlu0 %6426
        %6428 = vrot.lane.b32.xlu0 %v6244, 96
        %v6429 = vpop.permute.xlu0 %6428
        %6430 = vrot.lane.b32.xlu0 %v6245, 96
        %v6431 = vpop.permute.xlu0 %6430
        %6432 = vrot.lane.b32.xlu0 %v6246, 96
        %v6433 = vpop.permute.xlu0 %6432
        %6434 = vrot.lane.b32.xlu0 %v6247, 96
        %v6435 = vpop.permute.xlu0 %6434
        %6436 = vrot.lane.b32.xlu0 %v6248, 96
        %v6437 = vpop.permute.xlu0 %6436
        %6438 = vrot.lane.b32.xlu0 %v6249, 96
        %v6439 = vpop.permute.xlu0 %6438
        %6440 = vrot.lane.b32.xlu0 %v6250, 96
        %v6441 = vpop.permute.xlu0 %6440
        %6442 = vrot.lane.b32.xlu0 %v6251, 96
        %v6443 = vpop.permute.xlu0 %6442
        %vm6508 = vcmask 261120
        %6509 = vst.msk [vmem:[%s279 + $0x1] sm:$0xff] %vm6508, %v6317
        %6510 = vst.msk [vmem:[%s279 + $0x9] sm:$0xff] %vm6508, %v6319
        %6511 = vst.msk [vmem:[%s279 + $0x19] sm:$0xff] %vm6508, %v6321
        %6512 = vst.msk [vmem:[%s279 + $0x21] sm:$0xff] %vm6508, %v6323
        %6513 = vst.msk [vmem:[%s279 + $0x31] sm:$0xff] %vm6508, %v6325
        %6514 = vst.msk [vmem:[%s279 + $0x39] sm:$0xff] %vm6508, %v6327
        %6515 = vst.msk [vmem:[%s279 + $0x49] sm:$0xff] %vm6508, %v6329
        %6516 = vst.msk [vmem:[%s279 + $0x51] sm:$0xff] %vm6508, %v6331
        %6517 = vst.msk [vmem:[%s279 + $0x61] sm:$0xff] %vm6508, %v6333
        %6518 = vst.msk [vmem:[%s279 + $0x69] sm:$0xff] %vm6508, %v6335
        %6519 = vst.msk [vmem:[%s279 + $0x79] sm:$0xff] %vm6508, %v6337
        %6520 = vst.msk [vmem:[%s279 + $0x81] sm:$0xff] %vm6508, %v6339
        %6521 = vst.msk [vmem:[%s279 + $0x91] sm:$0xff] %vm6508, %v6341
        %6522 = vst.msk [vmem:[%s279 + $0x99] sm:$0xff] %vm6508, %v6343
        %6523 = vst.msk [vmem:[%s279 + $0xa9] sm:$0xff] %vm6508, %v6345
        %6524 = vst.msk [vmem:[%s279 + $0xb1] sm:$0xff] %vm6508, %v6347
        %6525 = vst.msk [vmem:[%s279 + $0xc1] sm:$0xff] %vm6508, %v6349
        %6526 = vst.msk [vmem:[%s279 + $0xc9] sm:$0xff] %vm6508, %v6351
        %6527 = vst.msk [vmem:[%s279 + $0xd9] sm:$0xff] %vm6508, %v6353
        %6528 = vst.msk [vmem:[%s279 + $0xe1] sm:$0xff] %vm6508, %v6355
        %6529 = vst.msk [vmem:[%s279 + $0xf1] sm:$0xff] %vm6508, %v6357
        %6530 = vst.msk [vmem:[%s279 + $0xf9] sm:$0xff] %vm6508, %v6359
        %6531 = vst.msk [vmem:[%s279 + $0x109] sm:$0xff] %vm6508, %v6361
        %6532 = vst.msk [vmem:[%s279 + $0x111] sm:$0xff] %vm6508, %v6363
        %6533 = vst.msk [vmem:[%s279 + $0x121] sm:$0xff] %vm6508, %v6365
        %6534 = vst.msk [vmem:[%s279 + $0x129] sm:$0xff] %vm6508, %v6367
        %6535 = vst.msk [vmem:[%s279 + $0x139] sm:$0xff] %vm6508, %v6369
        %6536 = vst.msk [vmem:[%s279 + $0x141] sm:$0xff] %vm6508, %v6371
        %6537 = vst.msk [vmem:[%s279 + $0x151] sm:$0xff] %vm6508, %v6373
        %6538 = vst.msk [vmem:[%s279 + $0x159] sm:$0xff] %vm6508, %v6375
        %6539 = vst.msk [vmem:[%s279 + $0x169] sm:$0xff] %vm6508, %v6377
        %6540 = vst.msk [vmem:[%s279 + $0x171] sm:$0xff] %vm6508, %v6379
        %6541 = vst.msk [vmem:[%s279 + $0x1b1] sm:$0xff] %vm6508, %v6381
        %6542 = vst.msk [vmem:[%s279 + $0x1b9] sm:$0xff] %vm6508, %v6383
        %6543 = vst.msk [vmem:[%s279 + $0x1c9] sm:$0xff] %vm6508, %v6385
        %6544 = vst.msk [vmem:[%s279 + $0x1d1] sm:$0xff] %vm6508, %v6387
        %6545 = vst.msk [vmem:[%s279 + $0x1e1] sm:$0xff] %vm6508, %v6389
        %6546 = vst.msk [vmem:[%s279 + $0x1e9] sm:$0xff] %vm6508, %v6391
        %6547 = vst.msk [vmem:[%s279 + $0x1f9] sm:$0xff] %vm6508, %v6393
        %6548 = vst.msk [vmem:[%s279 + $0x201] sm:$0xff] %vm6508, %v6395
        %6549 = vst.msk [vmem:[%s279 + $0x211] sm:$0xff] %vm6508, %v6397
        %6550 = vst.msk [vmem:[%s279 + $0x219] sm:$0xff] %vm6508, %v6399
        %6551 = vst.msk [vmem:[%s279 + $0x229] sm:$0xff] %vm6508, %v6401
        %6552 = vst.msk [vmem:[%s279 + $0x231] sm:$0xff] %vm6508, %v6403
        %6553 = vst.msk [vmem:[%s279 + $0x241] sm:$0xff] %vm6508, %v6405
        %6554 = vst.msk [vmem:[%s279 + $0x249] sm:$0xff] %vm6508, %v6407
        %6555 = vst.msk [vmem:[%s279 + $0x259] sm:$0xff] %vm6508, %v6409
        %6556 = vst.msk [vmem:[%s279 + $0x261] sm:$0xff] %vm6508, %v6411
        %6557 = vst.msk [vmem:[%s279 + $0x271] sm:$0xff] %vm6508, %v6413
        %6558 = vst.msk [vmem:[%s279 + $0x279] sm:$0xff] %vm6508, %v6415
        %6559 = vst.msk [vmem:[%s279 + $0x289] sm:$0xff] %vm6508, %v6417
        %6560 = vst.msk [vmem:[%s279 + $0x291] sm:$0xff] %vm6508, %v6419
        %6561 = vst.msk [vmem:[%s279 + $0x2a1] sm:$0xff] %vm6508, %v6421
        %6562 = vst.msk [vmem:[%s279 + $0x2a9] sm:$0xff] %vm6508, %v6423
        %6563 = vst.msk [vmem:[%s279 + $0x2b9] sm:$0xff] %vm6508, %v6425
        %6564 = vst.msk [vmem:[%s279 + $0x2c1] sm:$0xff] %vm6508, %v6427
        %6565 = vst.msk [vmem:[%s279 + $0x2d1] sm:$0xff] %vm6508, %v6429
        %6566 = vst.msk [vmem:[%s279 + $0x2d9] sm:$0xff] %vm6508, %v6431
        %6567 = vst.msk [vmem:[%s279 + $0x2e9] sm:$0xff] %vm6508, %v6433
        %6568 = vst.msk [vmem:[%s279 + $0x2f1] sm:$0xff] %vm6508, %v6435
        %6569 = vst.msk [vmem:[%s279 + $0x301] sm:$0xff] %vm6508, %v6437
        %6570 = vst.msk [vmem:[%s279 + $0x309] sm:$0xff] %vm6508, %v6439
        %6571 = vst.msk [vmem:[%s279 + $0x319] sm:$0xff] %vm6508, %v6441
        %6572 = vst.msk [vmem:[%s279 + $0x321] sm:$0xff] %vm6508, %v6443
        %v6573 = vld [vmem:[#allocation2] sm:$0xff]
        %v6574 = vld [vmem:[#allocation2 + $0x8] sm:$0xff]
        %v6575 = vld [vmem:[#allocation2 + $0x18] sm:$0xff]
        %v6576 = vld [vmem:[#allocation2 + $0x20] sm:$0xff]
        %v6577 = vld [vmem:[#allocation2 + $0x30] sm:$0xff]
        %v6578 = vld [vmem:[#allocation2 + $0x38] sm:$0xff]
        %v6579 = vld [vmem:[#allocation2 + $0x48] sm:$0xff]
        %v6580 = vld [vmem:[#allocation2 + $0x50] sm:$0xff]
        %v6581 = vld [vmem:[#allocation2 + $0x60] sm:$0xff]
        %v6582 = vld [vmem:[#allocation2 + $0x68] sm:$0xff]
        %v6583 = vld [vmem:[#allocation2 + $0x78] sm:$0xff]
        %v6584 = vld [vmem:[#allocation2 + $0x80] sm:$0xff]
        %v6585 = vld [vmem:[#allocation2 + $0x90] sm:$0xff]
        %v6586 = vld [vmem:[#allocation2 + $0x98] sm:$0xff]
        %v6587 = vld [vmem:[#allocation2 + $0xa8] sm:$0xff]
        %v6588 = vld [vmem:[#allocation2 + $0xb0] sm:$0xff]
        %v6589 = vld [vmem:[#allocation2 + $0xc0] sm:$0xff]
        %v6590 = vld [vmem:[#allocation2 + $0xc8] sm:$0xff]
        %v6591 = vld [vmem:[#allocation2 + $0xd8] sm:$0xff]
        %v6592 = vld [vmem:[#allocation2 + $0xe0] sm:$0xff]
        %v6593 = vld [vmem:[#allocation2 + $0xf0] sm:$0xff]
        %v6594 = vld [vmem:[#allocation2 + $0xf8] sm:$0xff]
        %v6595 = vld [vmem:[#allocation2 + $0x108] sm:$0xff]
        %v6596 = vld [vmem:[#allocation2 + $0x110] sm:$0xff]
        %v6597 = vld [vmem:[#allocation2 + $0x120] sm:$0xff]
        %v6598 = vld [vmem:[#allocation2 + $0x128] sm:$0xff]
        %v6599 = vld [vmem:[#allocation2 + $0x138] sm:$0xff]
        %v6600 = vld [vmem:[#allocation2 + $0x140] sm:$0xff]
        %v6601 = vld [vmem:[#allocation2 + $0x150] sm:$0xff]
        %v6602 = vld [vmem:[#allocation2 + $0x158] sm:$0xff]
        %v6603 = vld [vmem:[#allocation2 + $0x168] sm:$0xff]
        %v6604 = vld [vmem:[#allocation2 + $0x170] sm:$0xff]
        %v6605 = vld [vmem:[#allocation2 + $0x1b0] sm:$0xff]
        %v6606 = vld [vmem:[#allocation2 + $0x1b8] sm:$0xff]
        %v6607 = vld [vmem:[#allocation2 + $0x1c8] sm:$0xff]
        %v6608 = vld [vmem:[#allocation2 + $0x1d0] sm:$0xff]
        %v6609 = vld [vmem:[#allocation2 + $0x1e0] sm:$0xff]
        %v6610 = vld [vmem:[#allocation2 + $0x1e8] sm:$0xff]
        %v6611 = vld [vmem:[#allocation2 + $0x1f8] sm:$0xff]
        %v6612 = vld [vmem:[#allocation2 + $0x200] sm:$0xff]
        %v6613 = vld [vmem:[#allocation2 + $0x210] sm:$0xff]
        %v6614 = vld [vmem:[#allocation2 + $0x218] sm:$0xff]
        %v6615 = vld [vmem:[#allocation2 + $0x228] sm:$0xff]
        %v6616 = vld [vmem:[#allocation2 + $0x230] sm:$0xff]
        %v6617 = vld [vmem:[#allocation2 + $0x240] sm:$0xff]
        %v6618 = vld [vmem:[#allocation2 + $0x248] sm:$0xff]
        %v6619 = vld [vmem:[#allocation2 + $0x258] sm:$0xff]
        %v6620 = vld [vmem:[#allocation2 + $0x260] sm:$0xff]
        %v6621 = vld [vmem:[#allocation2 + $0x270] sm:$0xff]
        %v6622 = vld [vmem:[#allocation2 + $0x278] sm:$0xff]
        %v6623 = vld [vmem:[#allocation2 + $0x288] sm:$0xff]
        %v6624 = vld [vmem:[#allocation2 + $0x290] sm:$0xff]
        %v6625 = vld [vmem:[#allocation2 + $0x2a0] sm:$0xff]
        %v6626 = vld [vmem:[#allocation2 + $0x2a8] sm:$0xff]
        %v6627 = vld [vmem:[#allocation2 + $0x2b8] sm:$0xff]
        %v6628 = vld [vmem:[#allocation2 + $0x2c0] sm:$0xff]
        %v6629 = vld [vmem:[#allocation2 + $0x2d0] sm:$0xff]
        %v6630 = vld [vmem:[#allocation2 + $0x2d8] sm:$0xff]
        %v6631 = vld [vmem:[#allocation2 + $0x2e8] sm:$0xff]
        %v6632 = vld [vmem:[#allocation2 + $0x2f0] sm:$0xff]
        %v6633 = vld [vmem:[#allocation2 + $0x300] sm:$0xff]
        %v6634 = vld [vmem:[#allocation2 + $0x308] sm:$0xff]
        %v6635 = vld [vmem:[#allocation2 + $0x318] sm:$0xff]
        %v6636 = vld [vmem:[#allocation2 + $0x320] sm:$0xff]
        %v6637 = vpack.c.bf16 %v6574, %v6573
        %v6638 = vpack.c.bf16 %v6576, %v6575
        %v6639 = vpack.c.bf16 %v6578, %v6577
        %v6640 = vpack.c.bf16 %v6580, %v6579
        %v6641 = vpack.c.bf16 %v6582, %v6581
        %v6642 = vpack.c.bf16 %v6584, %v6583
        %v6643 = vpack.c.bf16 %v6586, %v6585
        %v6644 = vpack.c.bf16 %v6588, %v6587
        %v6645 = vpack.c.bf16 %v6590, %v6589
        %v6646 = vpack.c.bf16 %v6592, %v6591
        %v6647 = vpack.c.bf16 %v6594, %v6593
        %v6648 = vpack.c.bf16 %v6596, %v6595
        %v6649 = vpack.c.bf16 %v6598, %v6597
        %v6650 = vpack.c.bf16 %v6600, %v6599
        %v6651 = vpack.c.bf16 %v6602, %v6601
        %v6652 = vpack.c.bf16 %v6604, %v6603
        %v6653 = vpack.c.bf16 %v6606, %v6605
        %v6654 = vpack.c.bf16 %v6608, %v6607
        %v6655 = vpack.c.bf16 %v6610, %v6609
        %v6656 = vpack.c.bf16 %v6612, %v6611
        %v6657 = vpack.c.bf16 %v6614, %v6613
        %v6658 = vpack.c.bf16 %v6616, %v6615
        %v6659 = vpack.c.bf16 %v6618, %v6617
        %v6660 = vpack.c.bf16 %v6620, %v6619
        %v6661 = vpack.c.bf16 %v6622, %v6621
        %v6662 = vpack.c.bf16 %v6624, %v6623
        %v6663 = vpack.c.bf16 %v6626, %v6625
        %v6664 = vpack.c.bf16 %v6628, %v6627
        %v6665 = vpack.c.bf16 %v6630, %v6629
        %v6666 = vpack.c.bf16 %v6632, %v6631
        %v6667 = vpack.c.bf16 %v6634, %v6633
        %v6668 = vpack.c.bf16 %v6636, %v6635
        %v6669 = vld [vmem:[#allocation9] sm:$0xf]
        %v6670 = vld [vmem:[#allocation9 + $0x4] sm:$0xf]
        %v6671 = vld [vmem:[#allocation9 + $0x8] sm:$0xf]
        %v6672 = vld [vmem:[#allocation9 + $0xc] sm:$0xf]
        %v6673 = vld [vmem:[#allocation2 + $0x1] sm:$0xff]
        %v6674 = vld [vmem:[#allocation2 + $0x9] sm:$0xff]
        %v6675 = vld [vmem:[#allocation2 + $0x19] sm:$0xff]
        %v6676 = vld [vmem:[#allocation2 + $0x21] sm:$0xff]
        %v6677 = vld [vmem:[#allocation2 + $0x31] sm:$0xff]
        %v6678 = vld [vmem:[#allocation2 + $0x39] sm:$0xff]
        %v6679 = vld [vmem:[#allocation2 + $0x49] sm:$0xff]
        %v6680 = vld [vmem:[#allocation2 + $0x51] sm:$0xff]
        %v6681 = vld [vmem:[#allocation2 + $0x61] sm:$0xff]
        %v6682 = vld [vmem:[#allocation2 + $0x69] sm:$0xff]
        %v6683 = vld [vmem:[#allocation2 + $0x79] sm:$0xff]
        %v6684 = vld [vmem:[#allocation2 + $0x81] sm:$0xff]
        %v6685 = vld [vmem:[#allocation2 + $0x91] sm:$0xff]
        %v6686 = vld [vmem:[#allocation2 + $0x99] sm:$0xff]
        %v6687 = vld [vmem:[#allocation2 + $0xa9] sm:$0xff]
        %v6688 = vld [vmem:[#allocation2 + $0xb1] sm:$0xff]
        %v6689 = vld [vmem:[#allocation2 + $0xc1] sm:$0xff]
        %v6690 = vld [vmem:[#allocation2 + $0xc9] sm:$0xff]
        %v6691 = vld [vmem:[#allocation2 + $0xd9] sm:$0xff]
        %v6692 = vld [vmem:[#allocation2 + $0xe1] sm:$0xff]
        %v6693 = vld [vmem:[#allocation2 + $0xf1] sm:$0xff]
        %v6694 = vld [vmem:[#allocation2 + $0xf9] sm:$0xff]
        %v6695 = vld [vmem:[#allocation2 + $0x109] sm:$0xff]
        %v6696 = vld [vmem:[#allocation2 + $0x111] sm:$0xff]
        %v6697 = vld [vmem:[#allocation2 + $0x121] sm:$0xff]
        %v6698 = vld [vmem:[#allocation2 + $0x129] sm:$0xff]
        %v6699 = vld [vmem:[#allocation2 + $0x139] sm:$0xff]
        %v6700 = vld [vmem:[#allocation2 + $0x141] sm:$0xff]
        %v6701 = vld [vmem:[#allocation2 + $0x151] sm:$0xff]
        %v6702 = vld [vmem:[#allocation2 + $0x159] sm:$0xff]
        %v6703 = vld [vmem:[#allocation2 + $0x169] sm:$0xff]
        %v6704 = vld [vmem:[#allocation2 + $0x171] sm:$0xff]
        %v6705 = vld [vmem:[#allocation2 + $0x1b1] sm:$0xff]
        %v6706 = vld [vmem:[#allocation2 + $0x1b9] sm:$0xff]
        %v6707 = vld [vmem:[#allocation2 + $0x1c9] sm:$0xff]
        %v6708 = vld [vmem:[#allocation2 + $0x1d1] sm:$0xff]
        %v6709 = vld [vmem:[#allocation2 + $0x1e1] sm:$0xff]
        %v6710 = vld [vmem:[#allocation2 + $0x1e9] sm:$0xff]
        %v6711 = vld [vmem:[#allocation2 + $0x1f9] sm:$0xff]
        %v6712 = vld [vmem:[#allocation2 + $0x201] sm:$0xff]
        %v6713 = vld [vmem:[#allocation2 + $0x211] sm:$0xff]
        %v6714 = vld [vmem:[#allocation2 + $0x219] sm:$0xff]
        %v6715 = vld [vmem:[#allocation2 + $0x229] sm:$0xff]
        %v6716 = vld [vmem:[#allocation2 + $0x231] sm:$0xff]
        %v6717 = vld [vmem:[#allocation2 + $0x241] sm:$0xff]
        %v6718 = vld [vmem:[#allocation2 + $0x249] sm:$0xff]
        %v6719 = vld [vmem:[#allocation2 + $0x259] sm:$0xff]
        %v6720 = vld [vmem:[#allocation2 + $0x261] sm:$0xff]
        %v6721 = vld [vmem:[#allocation2 + $0x271] sm:$0xff]
        %v6722 = vld [vmem:[#allocation2 + $0x279] sm:$0xff]
        %v6723 = vld [vmem:[#allocation2 + $0x289] sm:$0xff]
        %v6724 = vld [vmem:[#allocation2 + $0x291] sm:$0xff]
        %v6725 = vld [vmem:[#allocation2 + $0x2a1] sm:$0xff]
        %v6726 = vld [vmem:[#allocation2 + $0x2a9] sm:$0xff]
        %v6727 = vld [vmem:[#allocation2 + $0x2b9] sm:$0xff]
        %v6728 = vld [vmem:[#allocation2 + $0x2c1] sm:$0xff]
        %v6729 = vld [vmem:[#allocation2 + $0x2d1] sm:$0xff]
        %v6730 = vld [vmem:[#allocation2 + $0x2d9] sm:$0xff]
        %v6731 = vld [vmem:[#allocation2 + $0x2e9] sm:$0xff]
        %v6732 = vld [vmem:[#allocation2 + $0x2f1] sm:$0xff]
        %v6733 = vld [vmem:[#allocation2 + $0x301] sm:$0xff]
        %v6734 = vld [vmem:[#allocation2 + $0x309] sm:$0xff]
        %v6735 = vld [vmem:[#allocation2 + $0x319] sm:$0xff]
        %v6736 = vld [vmem:[#allocation2 + $0x321] sm:$0xff]
        %v6737 = vpack.c.bf16 %v6674, %v6673
        %v6738 = vpack.c.bf16 %v6676, %v6675
        %v6739 = vpack.c.bf16 %v6678, %v6677
        %v6740 = vpack.c.bf16 %v6680, %v6679
        %v6741 = vpack.c.bf16 %v6682, %v6681
        %v6742 = vpack.c.bf16 %v6684, %v6683
        %v6743 = vpack.c.bf16 %v6686, %v6685
        %v6744 = vpack.c.bf16 %v6688, %v6687
        %v6745 = vpack.c.bf16 %v6690, %v6689
        %v6746 = vpack.c.bf16 %v6692, %v6691
        %v6747 = vpack.c.bf16 %v6694, %v6693
        %v6748 = vpack.c.bf16 %v6696, %v6695
        %v6749 = vpack.c.bf16 %v6698, %v6697
        %v6750 = vpack.c.bf16 %v6700, %v6699
        %v6751 = vpack.c.bf16 %v6702, %v6701
        %v6752 = vpack.c.bf16 %v6704, %v6703
        %v6753 = vpack.c.bf16 %v6706, %v6705
        %v6754 = vpack.c.bf16 %v6708, %v6707
        %v6755 = vpack.c.bf16 %v6710, %v6709
        %v6756 = vpack.c.bf16 %v6712, %v6711
        %v6757 = vpack.c.bf16 %v6714, %v6713
        %v6758 = vpack.c.bf16 %v6716, %v6715
        %v6759 = vpack.c.bf16 %v6718, %v6717
        %v6760 = vpack.c.bf16 %v6720, %v6719
        %v6761 = vpack.c.bf16 %v6722, %v6721
        %v6762 = vpack.c.bf16 %v6724, %v6723
        %v6763 = vpack.c.bf16 %v6726, %v6725
        %v6764 = vpack.c.bf16 %v6728, %v6727
        %v6765 = vpack.c.bf16 %v6730, %v6729
        %v6766 = vpack.c.bf16 %v6732, %v6731
        %v6767 = vpack.c.bf16 %v6734, %v6733
        %v6768 = vpack.c.bf16 %v6736, %v6735
        %s6769 = scalar_lea.vmem [#allocation9], 16
        %v6770 = vld [vmem:[%s6769] sm:$0xf]
        %v6771 = vld [vmem:[%s6769 + $0x4] sm:$0xf]
        %v6772 = vld [vmem:[%s6769 + $0x8] sm:$0xf]
        %v6773 = vld [vmem:[%s6769 + $0xc] sm:$0xf]
        %v6778 = vunpack.c.l.b16 %v6770
        %v6779 = vunpack.c.l.b16 %v6771
        %v6780 = vunpack.c.l.b16 %v6772
        %v6781 = vunpack.c.l.b16 %v6773
        %v6782 = vpack.c.b16 %v6779, %v6778
        %v6783 = vpack.c.b16 %v6781, %v6780
        %v6787 = vsel %vm6508, %v6737, 0
        %v6790 = vsel %vm6508, %v6738, 0
        %v6793 = vsel %vm6508, %v6739, 0
        %v6796 = vsel %vm6508, %v6740, 0
        %v6799 = vsel %vm6508, %v6741, 0
        %v6802 = vsel %vm6508, %v6742, 0
        %v6805 = vsel %vm6508, %v6743, 0
        %v6808 = vsel %vm6508, %v6744, 0
        %v6811 = vsel %vm6508, %v6745, 0
        %v6814 = vsel %vm6508, %v6746, 0
        %v6817 = vsel %vm6508, %v6747, 0
        %v6820 = vsel %vm6508, %v6748, 0
        %v6823 = vsel %vm6508, %v6749, 0
        %v6826 = vsel %vm6508, %v6750, 0
        %v6829 = vsel %vm6508, %v6751, 0
        %v6832 = vsel %vm6508, %v6752, 0
        %v6835 = vsel %vm6508, %v6753, 0
        %v6838 = vsel %vm6508, %v6754, 0
        %v6841 = vsel %vm6508, %v6755, 0
        %v6844 = vsel %vm6508, %v6756, 0
        %v6847 = vsel %vm6508, %v6757, 0
        %v6850 = vsel %vm6508, %v6758, 0
        %v6853 = vsel %vm6508, %v6759, 0
        %v6856 = vsel %vm6508, %v6760, 0
        %v6859 = vsel %vm6508, %v6761, 0
        %v6862 = vsel %vm6508, %v6762, 0
        %v6865 = vsel %vm6508, %v6763, 0
        %v6868 = vsel %vm6508, %v6764, 0
        %v6871 = vsel %vm6508, %v6765, 0
        %v6874 = vsel %vm6508, %v6766, 0
        %v6877 = vsel %vm6508, %v6767, 0
        %v6880 = vsel %vm6508, %v6768, 0
        %6882 = vmatprep.subr.bf16.mxu0 0
        %6883 = vmatpush1.bf16.msra.mxu0 0
        %6884 = vmatprep.subr.bf16.mxu0 0
        %6885 = vmatpush1.bf16.msra.mxu0 0
        %6886 = vmatprep.subr.bf16.mxu0 0
        %6887 = vmatpush1.bf16.msra.mxu0 0
        %6888 = vmatprep.subr.bf16.mxu0 0
        %6889 = vmatpush1.bf16.msra.mxu0 0
        %6890 = vmatprep.subr.bf16.mxu0 0
        %6891 = vmatpush1.bf16.msra.mxu0 0
        %6892 = vmatprep.subr.bf16.mxu0 0
        %6893 = vmatpush1.bf16.msra.mxu0 0
        %6894 = vmatprep.subr.bf16.mxu0 0
        %6895 = vmatpush1.bf16.msra.mxu0 %v6783
        %6896 = vmatprep.subr.bf16.mxu0 0
        %6897 = vmatpush1.bf16.msra.mxu0 %v6782
        %6898 = vmatprep.subr.bf16.mxu0 0
        %6899 = vmatpush2.bf16.msra.mxu0 0
        %6900 = vmatprep.subr.bf16.mxu0 0
        %6901 = vmatpush2.bf16.msra.mxu0 0
        %6902 = vmatprep.subr.bf16.mxu0 0
        %6903 = vmatpush2.bf16.msra.mxu0 0
        %6904 = vmatprep.subr.bf16.mxu0 0
        %6905 = vmatpush2.bf16.msra.mxu0 0
        %6906 = vmatprep.subr.bf16.mxu0 0
        %6907 = vmatpush2.bf16.msra.mxu0 0
        %6908 = vmatprep.subr.bf16.mxu0 0
        %6909 = vmatpush2.bf16.msra.mxu0 0
        %6910 = vmatprep.subr.bf16.mxu0 0
        %6911 = vmatpush2.bf16.msra.mxu0 0
        %6912 = vmatprep.subr.bf16.mxu0 0
        %6913 = vmatpush2.bf16.msra.mxu0 0
        %6914 = vmatprep.mubr.bf16.mxu0 0
        %6915 = vmatmul.mubr.bf16.gmra.mxu0 %v6787
        %v6916 = vpop.f32.mrf.mxu0
        %v6917 = vadd.f32 0.0, %v6916
        %v6918 = vpop.f32.mrf.mxu0
        %v6919 = vpop.f32.mrf.mxu0
        %v6920 = vadd.f32 0.0, %v6919
        %v6921 = vpop.f32.mrf.mxu0
        %6922 = vmatprep.mubr.bf16.mxu0 0
        %6923 = vmatmul.mubr.bf16.gmra.mxu0 %v6790
        %v6924 = vpop.f32.mrf.mxu0
        %v6925 = vadd.f32 0.0, %v6924
        %v6926 = vpop.f32.mrf.mxu0
        %v6927 = vpop.f32.mrf.mxu0
        %v6928 = vadd.f32 0.0, %v6927
        %v6929 = vpop.f32.mrf.mxu0
        %6930 = vmatprep.mubr.bf16.mxu0 0
        %6931 = vmatmul.mubr.bf16.gmra.mxu0 %v6793
        %v6932 = vpop.f32.mrf.mxu0
        %v6933 = vadd.f32 0.0, %v6932
        %v6934 = vpop.f32.mrf.mxu0
        %v6935 = vpop.f32.mrf.mxu0
        %v6936 = vadd.f32 0.0, %v6935
        %v6937 = vpop.f32.mrf.mxu0
        %6938 = vmatprep.mubr.bf16.mxu0 0
        %6939 = vmatmul.mubr.bf16.gmra.mxu0 %v6796
        %v6940 = vpop.f32.mrf.mxu0
        %v6941 = vadd.f32 0.0, %v6940
        %v6942 = vpop.f32.mrf.mxu0
        %v6943 = vpop.f32.mrf.mxu0
        %v6944 = vadd.f32 0.0, %v6943
        %v6945 = vpop.f32.mrf.mxu0
        %6946 = vmatprep.mubr.bf16.mxu0 0
        %6947 = vmatmul.mubr.bf16.gmra.mxu0 %v6799
        %v6948 = vpop.f32.mrf.mxu0
        %v6949 = vadd.f32 0.0, %v6948
        %v6950 = vpop.f32.mrf.mxu0
        %v6951 = vpop.f32.mrf.mxu0
        %v6952 = vadd.f32 0.0, %v6951
        %v6953 = vpop.f32.mrf.mxu0
        %6954 = vmatprep.mubr.bf16.mxu0 0
        %6955 = vmatmul.mubr.bf16.gmra.mxu0 %v6802
        %v6956 = vpop.f32.mrf.mxu0
        %v6957 = vadd.f32 0.0, %v6956
        %v6958 = vpop.f32.mrf.mxu0
        %v6959 = vpop.f32.mrf.mxu0
        %v6960 = vadd.f32 0.0, %v6959
        %v6961 = vpop.f32.mrf.mxu0
        %6962 = vmatprep.mubr.bf16.mxu0 0
        %6963 = vmatmul.mubr.bf16.gmra.mxu0 %v6805
        %v6964 = vpop.f32.mrf.mxu0
        %v6965 = vadd.f32 0.0, %v6964
        %v6966 = vpop.f32.mrf.mxu0
        %v6967 = vpop.f32.mrf.mxu0
        %v6968 = vadd.f32 0.0, %v6967
        %v6969 = vpop.f32.mrf.mxu0
        %6970 = vmatprep.mubr.bf16.mxu0 0
        %6971 = vmatmul.mubr.bf16.gmra.mxu0 %v6808
        %v6972 = vpop.f32.mrf.mxu0
        %v6973 = vadd.f32 0.0, %v6972
        %v6974 = vpop.f32.mrf.mxu0
        %v6975 = vpop.f32.mrf.mxu0
        %v6976 = vadd.f32 0.0, %v6975
        %v6977 = vpop.f32.mrf.mxu0
        %6978 = vmatprep.mubr.bf16.mxu0 0
        %6979 = vmatmul.mubr.bf16.gmra.mxu0 %v6811
        %v6980 = vpop.f32.mrf.mxu0
        %v6981 = vadd.f32 0.0, %v6980
        %v6982 = vpop.f32.mrf.mxu0
        %v6983 = vpop.f32.mrf.mxu0
        %v6984 = vadd.f32 0.0, %v6983
        %v6985 = vpop.f32.mrf.mxu0
        %6986 = vmatprep.mubr.bf16.mxu0 0
        %6987 = vmatmul.mubr.bf16.gmra.mxu0 %v6814
        %v6988 = vpop.f32.mrf.mxu0
        %v6989 = vadd.f32 0.0, %v6988
        %v6990 = vpop.f32.mrf.mxu0
        %v6991 = vpop.f32.mrf.mxu0
        %v6992 = vadd.f32 0.0, %v6991
        %v6993 = vpop.f32.mrf.mxu0
        %6994 = vmatprep.mubr.bf16.mxu0 0
        %6995 = vmatmul.mubr.bf16.gmra.mxu0 %v6817
        %v6996 = vpop.f32.mrf.mxu0
        %v6997 = vadd.f32 0.0, %v6996
        %v6998 = vpop.f32.mrf.mxu0
        %v6999 = vpop.f32.mrf.mxu0
        %v7000 = vadd.f32 0.0, %v6999
        %v7001 = vpop.f32.mrf.mxu0
        %7002 = vmatprep.mubr.bf16.mxu0 0
        %7003 = vmatmul.mubr.bf16.gmra.mxu0 %v6820
        %v7004 = vpop.f32.mrf.mxu0
        %v7005 = vadd.f32 0.0, %v7004
        %v7006 = vpop.f32.mrf.mxu0
        %v7007 = vpop.f32.mrf.mxu0
        %v7008 = vadd.f32 0.0, %v7007
        %v7009 = vpop.f32.mrf.mxu0
        %7010 = vmatprep.mubr.bf16.mxu0 0
        %7011 = vmatmul.mubr.bf16.gmra.mxu0 %v6823
        %v7012 = vpop.f32.mrf.mxu0
        %v7013 = vadd.f32 0.0, %v7012
        %v7014 = vpop.f32.mrf.mxu0
        %v7015 = vpop.f32.mrf.mxu0
        %v7016 = vadd.f32 0.0, %v7015
        %v7017 = vpop.f32.mrf.mxu0
        %7018 = vmatprep.mubr.bf16.mxu0 0
        %7019 = vmatmul.mubr.bf16.gmra.mxu0 %v6826
        %v7020 = vpop.f32.mrf.mxu0
        %v7021 = vadd.f32 0.0, %v7020
        %v7022 = vpop.f32.mrf.mxu0
        %v7023 = vpop.f32.mrf.mxu0
        %v7024 = vadd.f32 0.0, %v7023
        %v7025 = vpop.f32.mrf.mxu0
        %7026 = vmatprep.mubr.bf16.mxu0 0
        %7027 = vmatmul.mubr.bf16.gmra.mxu0 %v6829
        %v7028 = vpop.f32.mrf.mxu0
        %v7029 = vadd.f32 0.0, %v7028
        %v7030 = vpop.f32.mrf.mxu0
        %v7031 = vpop.f32.mrf.mxu0
        %v7032 = vadd.f32 0.0, %v7031
        %v7033 = vpop.f32.mrf.mxu0
        %7034 = vmatprep.mubr.bf16.mxu0 0
        %7035 = vmatmul.mubr.bf16.gmra.mxu0 %v6832
        %v7036 = vpop.f32.mrf.mxu0
        %v7037 = vadd.f32 0.0, %v7036
        %v7038 = vpop.f32.mrf.mxu0
        %v7039 = vpop.f32.mrf.mxu0
        %v7040 = vadd.f32 0.0, %v7039
        %v7041 = vpop.f32.mrf.mxu0
        %7042 = vmatprep.mubr.bf16.mxu0 0
        %7043 = vmatmul.mubr.bf16.gmra.mxu0 %v6835
        %v7044 = vpop.f32.mrf.mxu0
        %v7045 = vadd.f32 0.0, %v7044
        %v7046 = vpop.f32.mrf.mxu0
        %v7047 = vpop.f32.mrf.mxu0
        %v7048 = vadd.f32 0.0, %v7047
        %v7049 = vpop.f32.mrf.mxu0
        %7050 = vmatprep.mubr.bf16.mxu0 0
        %7051 = vmatmul.mubr.bf16.gmra.mxu0 %v6838
        %v7052 = vpop.f32.mrf.mxu0
        %v7053 = vadd.f32 0.0, %v7052
        %v7054 = vpop.f32.mrf.mxu0
        %v7055 = vpop.f32.mrf.mxu0
        %v7056 = vadd.f32 0.0, %v7055
        %v7057 = vpop.f32.mrf.mxu0
        %7058 = vmatprep.mubr.bf16.mxu0 0
        %7059 = vmatmul.mubr.bf16.gmra.mxu0 %v6841
        %v7060 = vpop.f32.mrf.mxu0
        %v7061 = vadd.f32 0.0, %v7060
        %v7062 = vpop.f32.mrf.mxu0
        %v7063 = vpop.f32.mrf.mxu0
        %v7064 = vadd.f32 0.0, %v7063
        %v7065 = vpop.f32.mrf.mxu0
        %7066 = vmatprep.mubr.bf16.mxu0 0
        %7067 = vmatmul.mubr.bf16.gmra.mxu0 %v6844
        %v7068 = vpop.f32.mrf.mxu0
        %v7069 = vadd.f32 0.0, %v7068
        %v7070 = vpop.f32.mrf.mxu0
        %v7071 = vpop.f32.mrf.mxu0
        %v7072 = vadd.f32 0.0, %v7071
        %v7073 = vpop.f32.mrf.mxu0
        %7074 = vmatprep.mubr.bf16.mxu0 0
        %7075 = vmatmul.mubr.bf16.gmra.mxu0 %v6847
        %v7076 = vpop.f32.mrf.mxu0
        %v7077 = vadd.f32 0.0, %v7076
        %v7078 = vpop.f32.mrf.mxu0
        %v7079 = vpop.f32.mrf.mxu0
        %v7080 = vadd.f32 0.0, %v7079
        %v7081 = vpop.f32.mrf.mxu0
        %7082 = vmatprep.mubr.bf16.mxu0 0
        %7083 = vmatmul.mubr.bf16.gmra.mxu0 %v6850
        %v7084 = vpop.f32.mrf.mxu0
        %v7085 = vadd.f32 0.0, %v7084
        %v7086 = vpop.f32.mrf.mxu0
        %v7087 = vpop.f32.mrf.mxu0
        %v7088 = vadd.f32 0.0, %v7087
        %v7089 = vpop.f32.mrf.mxu0
        %7090 = vmatprep.mubr.bf16.mxu0 0
        %7091 = vmatmul.mubr.bf16.gmra.mxu0 %v6853
        %v7092 = vpop.f32.mrf.mxu0
        %v7093 = vadd.f32 0.0, %v7092
        %v7094 = vpop.f32.mrf.mxu0
        %v7095 = vpop.f32.mrf.mxu0
        %v7096 = vadd.f32 0.0, %v7095
        %v7097 = vpop.f32.mrf.mxu0
        %7098 = vmatprep.mubr.bf16.mxu0 0
        %7099 = vmatmul.mubr.bf16.gmra.mxu0 %v6856
        %v7100 = vpop.f32.mrf.mxu0
        %v7101 = vadd.f32 0.0, %v7100
        %v7102 = vpop.f32.mrf.mxu0
        %v7103 = vpop.f32.mrf.mxu0
        %v7104 = vadd.f32 0.0, %v7103
        %v7105 = vpop.f32.mrf.mxu0
        %7106 = vmatprep.mubr.bf16.mxu0 0
        %7107 = vmatmul.mubr.bf16.gmra.mxu0 %v6859
        %v7108 = vpop.f32.mrf.mxu0
        %v7109 = vadd.f32 0.0, %v7108
        %v7110 = vpop.f32.mrf.mxu0
        %v7111 = vpop.f32.mrf.mxu0
        %v7112 = vadd.f32 0.0, %v7111
        %v7113 = vpop.f32.mrf.mxu0
        %7114 = vmatprep.mubr.bf16.mxu0 0
        %7115 = vmatmul.mubr.bf16.gmra.mxu0 %v6862
        %v7116 = vpop.f32.mrf.mxu0
        %v7117 = vadd.f32 0.0, %v7116
        %v7118 = vpop.f32.mrf.mxu0
        %v7119 = vpop.f32.mrf.mxu0
        %v7120 = vadd.f32 0.0, %v7119
        %v7121 = vpop.f32.mrf.mxu0
        %7122 = vmatprep.mubr.bf16.mxu0 0
        %7123 = vmatmul.mubr.bf16.gmra.mxu0 %v6865
        %v7124 = vpop.f32.mrf.mxu0
        %v7125 = vadd.f32 0.0, %v7124
        %v7126 = vpop.f32.mrf.mxu0
        %v7127 = vpop.f32.mrf.mxu0
        %v7128 = vadd.f32 0.0, %v7127
        %v7129 = vpop.f32.mrf.mxu0
        %7130 = vmatprep.mubr.bf16.mxu0 0
        %7131 = vmatmul.mubr.bf16.gmra.mxu0 %v6868
        %v7132 = vpop.f32.mrf.mxu0
        %v7133 = vadd.f32 0.0, %v7132
        %v7134 = vpop.f32.mrf.mxu0
        %v7135 = vpop.f32.mrf.mxu0
        %v7136 = vadd.f32 0.0, %v7135
        %v7137 = vpop.f32.mrf.mxu0
        %7138 = vmatprep.mubr.bf16.mxu0 0
        %7139 = vmatmul.mubr.bf16.gmra.mxu0 %v6871
        %v7140 = vpop.f32.mrf.mxu0
        %v7141 = vadd.f32 0.0, %v7140
        %v7142 = vpop.f32.mrf.mxu0
        %v7143 = vpop.f32.mrf.mxu0
        %v7144 = vadd.f32 0.0, %v7143
        %v7145 = vpop.f32.mrf.mxu0
        %7146 = vmatprep.mubr.bf16.mxu0 0
        %7147 = vmatmul.mubr.bf16.gmra.mxu0 %v6874
        %v7148 = vpop.f32.mrf.mxu0
        %v7149 = vadd.f32 0.0, %v7148
        %v7150 = vpop.f32.mrf.mxu0
        %v7151 = vpop.f32.mrf.mxu0
        %v7152 = vadd.f32 0.0, %v7151
        %v7153 = vpop.f32.mrf.mxu0
        %7154 = vmatprep.mubr.bf16.mxu0 0
        %7155 = vmatmul.mubr.bf16.gmra.mxu0 %v6877
        %v7156 = vpop.f32.mrf.mxu0
        %v7157 = vadd.f32 0.0, %v7156
        %v7158 = vpop.f32.mrf.mxu0
        %v7159 = vpop.f32.mrf.mxu0
        %v7160 = vadd.f32 0.0, %v7159
        %v7161 = vpop.f32.mrf.mxu0
        %7162 = vmatprep.mubr.bf16.mxu0 0
        %7163 = vmatmul.mubr.bf16.gmra.mxu0 %v6880
        %v7164 = vpop.f32.mrf.mxu0
        %v7165 = vadd.f32 0.0, %v7164
        %v7166 = vpop.f32.mrf.mxu0
        %v7167 = vpop.f32.mrf.mxu0
        %v7168 = vadd.f32 0.0, %v7167
        %v7169 = vpop.f32.mrf.mxu0
        %7170 = vdwg.mxu0
        %v7175 = vunpack.c.l.b16 %v6669
        %v7176 = vunpack.c.l.b16 %v6670
        %v7177 = vunpack.c.l.b16 %v6671
        %v7178 = vunpack.c.l.b16 %v6672
        %v7179 = vpack.c.b16 %v7176, %v7175
        %v7180 = vpack.c.b16 %v7178, %v7177
        %v7184 = vsel %vm6508, %v6637, 0
        %v7187 = vsel %vm6508, %v6638, 0
        %v7190 = vsel %vm6508, %v6639, 0
        %v7193 = vsel %vm6508, %v6640, 0
        %v7196 = vsel %vm6508, %v6641, 0
        %v7199 = vsel %vm6508, %v6642, 0
        %v7202 = vsel %vm6508, %v6643, 0
        %v7205 = vsel %vm6508, %v6644, 0
        %v7208 = vsel %vm6508, %v6645, 0
        %v7211 = vsel %vm6508, %v6646, 0
        %v7214 = vsel %vm6508, %v6647, 0
        %v7217 = vsel %vm6508, %v6648, 0
        %v7220 = vsel %vm6508, %v6649, 0
        %v7223 = vsel %vm6508, %v6650, 0
        %v7226 = vsel %vm6508, %v6651, 0
        %v7229 = vsel %vm6508, %v6652, 0
        %v7232 = vsel %vm6508, %v6653, 0
        %v7235 = vsel %vm6508, %v6654, 0
        %v7238 = vsel %vm6508, %v6655, 0
        %v7241 = vsel %vm6508, %v6656, 0
        %v7244 = vsel %vm6508, %v6657, 0
        %v7247 = vsel %vm6508, %v6658, 0
        %v7250 = vsel %vm6508, %v6659, 0
        %v7253 = vsel %vm6508, %v6660, 0
        %v7256 = vsel %vm6508, %v6661, 0
        %v7259 = vsel %vm6508, %v6662, 0
        %v7262 = vsel %vm6508, %v6663, 0
        %v7265 = vsel %vm6508, %v6664, 0
        %v7268 = vsel %vm6508, %v6665, 0
        %v7271 = vsel %vm6508, %v6666, 0
        %v7274 = vsel %vm6508, %v6667, 0
        %v7277 = vsel %vm6508, %v6668, 0
        %7279 = vmatprep.subr.bf16.mxu0 0
        %7280 = vmatpush1.bf16.msra.mxu0 0
        %7281 = vmatprep.subr.bf16.mxu0 0
        %7282 = vmatpush1.bf16.msra.mxu0 0
        %7283 = vmatprep.subr.bf16.mxu0 0
        %7284 = vmatpush1.bf16.msra.mxu0 0
        %7285 = vmatprep.subr.bf16.mxu0 0
        %7286 = vmatpush1.bf16.msra.mxu0 0
        %7287 = vmatprep.subr.bf16.mxu0 0
        %7288 = vmatpush1.bf16.msra.mxu0 0
        %7289 = vmatprep.subr.bf16.mxu0 0
        %7290 = vmatpush1.bf16.msra.mxu0 0
        %7291 = vmatprep.subr.bf16.mxu0 0
        %7292 = vmatpush1.bf16.msra.mxu0 %v7180
        %7293 = vmatprep.subr.bf16.mxu0 0
        %7294 = vmatpush1.bf16.msra.mxu0 %v7179
        %7295 = vmatprep.subr.bf16.mxu0 0
        %7296 = vmatpush2.bf16.msra.mxu0 0
        %7297 = vmatprep.subr.bf16.mxu0 0
        %7298 = vmatpush2.bf16.msra.mxu0 0
        %7299 = vmatprep.subr.bf16.mxu0 0
        %7300 = vmatpush2.bf16.msra.mxu0 0
        %7301 = vmatprep.subr.bf16.mxu0 0
        %7302 = vmatpush2.bf16.msra.mxu0 0
        %7303 = vmatprep.subr.bf16.mxu0 0
        %7304 = vmatpush2.bf16.msra.mxu0 0
        %7305 = vmatprep.subr.bf16.mxu0 0
        %7306 = vmatpush2.bf16.msra.mxu0 0
        %7307 = vmatprep.subr.bf16.mxu0 0
        %7308 = vmatpush2.bf16.msra.mxu0 0
        %7309 = vmatprep.subr.bf16.mxu0 0
        %7310 = vmatpush2.bf16.msra.mxu0 0
        %7311 = vmatprep.mubr.bf16.mxu0 0
        %7312 = vmatmul.mubr.bf16.gmra.mxu0 %v7184
        %v7313 = vpop.f32.mrf.mxu0
        %v7314 = vadd.f32 %v6917, %v7313
        %v7315 = vpop.f32.mrf.mxu0
        %v7316 = vpop.f32.mrf.mxu0
        %v7317 = vadd.f32 %v6920, %v7316
        %v7318 = vpop.f32.mrf.mxu0
        %7319 = vmatprep.mubr.bf16.mxu0 0
        %7320 = vmatmul.mubr.bf16.gmra.mxu0 %v7187
        %v7321 = vpop.f32.mrf.mxu0
        %v7322 = vadd.f32 %v6925, %v7321
        %v7323 = vpop.f32.mrf.mxu0
        %v7324 = vpop.f32.mrf.mxu0
        %v7325 = vadd.f32 %v6928, %v7324
        %v7326 = vpop.f32.mrf.mxu0
        %7327 = vmatprep.mubr.bf16.mxu0 0
        %7328 = vmatmul.mubr.bf16.gmra.mxu0 %v7190
        %v7329 = vpop.f32.mrf.mxu0
        %v7330 = vadd.f32 %v6933, %v7329
        %v7331 = vpop.f32.mrf.mxu0
        %v7332 = vpop.f32.mrf.mxu0
        %v7333 = vadd.f32 %v6936, %v7332
        %v7334 = vpop.f32.mrf.mxu0
        %7335 = vmatprep.mubr.bf16.mxu0 0
        %7336 = vmatmul.mubr.bf16.gmra.mxu0 %v7193
        %v7337 = vpop.f32.mrf.mxu0
        %v7338 = vadd.f32 %v6941, %v7337
        %v7339 = vpop.f32.mrf.mxu0
        %v7340 = vpop.f32.mrf.mxu0
        %v7341 = vadd.f32 %v6944, %v7340
        %v7342 = vpop.f32.mrf.mxu0
        %7343 = vmatprep.mubr.bf16.mxu0 0
        %7344 = vmatmul.mubr.bf16.gmra.mxu0 %v7196
        %v7345 = vpop.f32.mrf.mxu0
        %v7346 = vadd.f32 %v6949, %v7345
        %v7347 = vpop.f32.mrf.mxu0
        %v7348 = vpop.f32.mrf.mxu0
        %v7349 = vadd.f32 %v6952, %v7348
        %v7350 = vpop.f32.mrf.mxu0
        %7351 = vmatprep.mubr.bf16.mxu0 0
        %7352 = vmatmul.mubr.bf16.gmra.mxu0 %v7199
        %v7353 = vpop.f32.mrf.mxu0
        %v7354 = vadd.f32 %v6957, %v7353
        %v7355 = vpop.f32.mrf.mxu0
        %v7356 = vpop.f32.mrf.mxu0
        %v7357 = vadd.f32 %v6960, %v7356
        %v7358 = vpop.f32.mrf.mxu0
        %7359 = vmatprep.mubr.bf16.mxu0 0
        %7360 = vmatmul.mubr.bf16.gmra.mxu0 %v7202
        %v7361 = vpop.f32.mrf.mxu0
        %v7362 = vadd.f32 %v6965, %v7361
        %v7363 = vpop.f32.mrf.mxu0
        %v7364 = vpop.f32.mrf.mxu0
        %v7365 = vadd.f32 %v6968, %v7364
        %v7366 = vpop.f32.mrf.mxu0
        %7367 = vmatprep.mubr.bf16.mxu0 0
        %7368 = vmatmul.mubr.bf16.gmra.mxu0 %v7205
        %v7369 = vpop.f32.mrf.mxu0
        %v7370 = vadd.f32 %v6973, %v7369
        %v7371 = vpop.f32.mrf.mxu0
        %v7372 = vpop.f32.mrf.mxu0
        %v7373 = vadd.f32 %v6976, %v7372
        %v7374 = vpop.f32.mrf.mxu0
        %7375 = vmatprep.mubr.bf16.mxu0 0
        %7376 = vmatmul.mubr.bf16.gmra.mxu0 %v7208
        %v7377 = vpop.f32.mrf.mxu0
        %v7378 = vadd.f32 %v6981, %v7377
        %v7379 = vpop.f32.mrf.mxu0
        %v7380 = vpop.f32.mrf.mxu0
        %v7381 = vadd.f32 %v6984, %v7380
        %v7382 = vpop.f32.mrf.mxu0
        %7383 = vmatprep.mubr.bf16.mxu0 0
        %7384 = vmatmul.mubr.bf16.gmra.mxu0 %v7211
        %v7385 = vpop.f32.mrf.mxu0
        %v7386 = vadd.f32 %v6989, %v7385
        %v7387 = vpop.f32.mrf.mxu0
        %v7388 = vpop.f32.mrf.mxu0
        %v7389 = vadd.f32 %v6992, %v7388
        %v7390 = vpop.f32.mrf.mxu0
        %7391 = vmatprep.mubr.bf16.mxu0 0
        %7392 = vmatmul.mubr.bf16.gmra.mxu0 %v7214
        %v7393 = vpop.f32.mrf.mxu0
        %v7394 = vadd.f32 %v6997, %v7393
        %v7395 = vpop.f32.mrf.mxu0
        %v7396 = vpop.f32.mrf.mxu0
        %v7397 = vadd.f32 %v7000, %v7396
        %v7398 = vpop.f32.mrf.mxu0
        %7399 = vmatprep.mubr.bf16.mxu0 0
        %7400 = vmatmul.mubr.bf16.gmra.mxu0 %v7217
        %v7401 = vpop.f32.mrf.mxu0
        %v7402 = vadd.f32 %v7005, %v7401
        %v7403 = vpop.f32.mrf.mxu0
        %v7404 = vpop.f32.mrf.mxu0
        %v7405 = vadd.f32 %v7008, %v7404
        %v7406 = vpop.f32.mrf.mxu0
        %7407 = vmatprep.mubr.bf16.mxu0 0
        %7408 = vmatmul.mubr.bf16.gmra.mxu0 %v7220
        %v7409 = vpop.f32.mrf.mxu0
        %v7410 = vadd.f32 %v7013, %v7409
        %v7411 = vpop.f32.mrf.mxu0
        %v7412 = vpop.f32.mrf.mxu0
        %v7413 = vadd.f32 %v7016, %v7412
        %v7414 = vpop.f32.mrf.mxu0
        %7415 = vmatprep.mubr.bf16.mxu0 0
        %7416 = vmatmul.mubr.bf16.gmra.mxu0 %v7223
        %v7417 = vpop.f32.mrf.mxu0
        %v7418 = vadd.f32 %v7021, %v7417
        %v7419 = vpop.f32.mrf.mxu0
        %v7420 = vpop.f32.mrf.mxu0
        %v7421 = vadd.f32 %v7024, %v7420
        %v7422 = vpop.f32.mrf.mxu0
        %7423 = vmatprep.mubr.bf16.mxu0 0
        %7424 = vmatmul.mubr.bf16.gmra.mxu0 %v7226
        %v7425 = vpop.f32.mrf.mxu0
        %v7426 = vadd.f32 %v7029, %v7425
        %v7427 = vpop.f32.mrf.mxu0
        %v7428 = vpop.f32.mrf.mxu0
        %v7429 = vadd.f32 %v7032, %v7428
        %v7430 = vpop.f32.mrf.mxu0
        %7431 = vmatprep.mubr.bf16.mxu0 0
        %7432 = vmatmul.mubr.bf16.gmra.mxu0 %v7229
        %v7433 = vpop.f32.mrf.mxu0
        %v7434 = vadd.f32 %v7037, %v7433
        %v7435 = vpop.f32.mrf.mxu0
        %v7436 = vpop.f32.mrf.mxu0
        %v7437 = vadd.f32 %v7040, %v7436
        %v7438 = vpop.f32.mrf.mxu0
        %7439 = vmatprep.mubr.bf16.mxu0 0
        %7440 = vmatmul.mubr.bf16.gmra.mxu0 %v7232
        %v7441 = vpop.f32.mrf.mxu0
        %v7442 = vadd.f32 %v7045, %v7441
        %v7443 = vpop.f32.mrf.mxu0
        %v7444 = vpop.f32.mrf.mxu0
        %v7445 = vadd.f32 %v7048, %v7444
        %v7446 = vpop.f32.mrf.mxu0
        %7447 = vmatprep.mubr.bf16.mxu0 0
        %7448 = vmatmul.mubr.bf16.gmra.mxu0 %v7235
        %v7449 = vpop.f32.mrf.mxu0
        %v7450 = vadd.f32 %v7053, %v7449
        %v7451 = vpop.f32.mrf.mxu0
        %v7452 = vpop.f32.mrf.mxu0
        %v7453 = vadd.f32 %v7056, %v7452
        %v7454 = vpop.f32.mrf.mxu0
        %7455 = vmatprep.mubr.bf16.mxu0 0
        %7456 = vmatmul.mubr.bf16.gmra.mxu0 %v7238
        %v7457 = vpop.f32.mrf.mxu0
        %v7458 = vadd.f32 %v7061, %v7457
        %v7459 = vpop.f32.mrf.mxu0
        %v7460 = vpop.f32.mrf.mxu0
        %v7461 = vadd.f32 %v7064, %v7460
        %v7462 = vpop.f32.mrf.mxu0
        %7463 = vmatprep.mubr.bf16.mxu0 0
        %7464 = vmatmul.mubr.bf16.gmra.mxu0 %v7241
        %v7465 = vpop.f32.mrf.mxu0
        %v7466 = vadd.f32 %v7069, %v7465
        %v7467 = vpop.f32.mrf.mxu0
        %v7468 = vpop.f32.mrf.mxu0
        %v7469 = vadd.f32 %v7072, %v7468
        %v7470 = vpop.f32.mrf.mxu0
        %7471 = vmatprep.mubr.bf16.mxu0 0
        %7472 = vmatmul.mubr.bf16.gmra.mxu0 %v7244
        %v7473 = vpop.f32.mrf.mxu0
        %v7474 = vadd.f32 %v7077, %v7473
        %v7475 = vpop.f32.mrf.mxu0
        %v7476 = vpop.f32.mrf.mxu0
        %v7477 = vadd.f32 %v7080, %v7476
        %v7478 = vpop.f32.mrf.mxu0
        %7479 = vmatprep.mubr.bf16.mxu0 0
        %7480 = vmatmul.mubr.bf16.gmra.mxu0 %v7247
        %v7481 = vpop.f32.mrf.mxu0
        %v7482 = vadd.f32 %v7085, %v7481
        %v7483 = vpop.f32.mrf.mxu0
        %v7484 = vpop.f32.mrf.mxu0
        %v7485 = vadd.f32 %v7088, %v7484
        %v7486 = vpop.f32.mrf.mxu0
        %7487 = vmatprep.mubr.bf16.mxu0 0
        %7488 = vmatmul.mubr.bf16.gmra.mxu0 %v7250
        %v7489 = vpop.f32.mrf.mxu0
        %v7490 = vadd.f32 %v7093, %v7489
        %v7491 = vpop.f32.mrf.mxu0
        %v7492 = vpop.f32.mrf.mxu0
        %v7493 = vadd.f32 %v7096, %v7492
        %v7494 = vpop.f32.mrf.mxu0
        %7495 = vmatprep.mubr.bf16.mxu0 0
        %7496 = vmatmul.mubr.bf16.gmra.mxu0 %v7253
        %v7497 = vpop.f32.mrf.mxu0
        %v7498 = vadd.f32 %v7101, %v7497
        %v7499 = vpop.f32.mrf.mxu0
        %v7500 = vpop.f32.mrf.mxu0
        %v7501 = vadd.f32 %v7104, %v7500
        %v7502 = vpop.f32.mrf.mxu0
        %7503 = vmatprep.mubr.bf16.mxu0 0
        %7504 = vmatmul.mubr.bf16.gmra.mxu0 %v7256
        %v7505 = vpop.f32.mrf.mxu0
        %v7506 = vadd.f32 %v7109, %v7505
        %v7507 = vpop.f32.mrf.mxu0
        %v7508 = vpop.f32.mrf.mxu0
        %v7509 = vadd.f32 %v7112, %v7508
        %v7510 = vpop.f32.mrf.mxu0
        %7511 = vmatprep.mubr.bf16.mxu0 0
        %7512 = vmatmul.mubr.bf16.gmra.mxu0 %v7259
        %v7513 = vpop.f32.mrf.mxu0
        %v7514 = vadd.f32 %v7117, %v7513
        %v7515 = vpop.f32.mrf.mxu0
        %v7516 = vpop.f32.mrf.mxu0
        %v7517 = vadd.f32 %v7120, %v7516
        %v7518 = vpop.f32.mrf.mxu0
        %7519 = vmatprep.mubr.bf16.mxu0 0
        %7520 = vmatmul.mubr.bf16.gmra.mxu0 %v7262
        %v7521 = vpop.f32.mrf.mxu0
        %v7522 = vadd.f32 %v7125, %v7521
        %v7523 = vpop.f32.mrf.mxu0
        %v7524 = vpop.f32.mrf.mxu0
        %v7525 = vadd.f32 %v7128, %v7524
        %v7526 = vpop.f32.mrf.mxu0
        %7527 = vmatprep.mubr.bf16.mxu0 0
        %7528 = vmatmul.mubr.bf16.gmra.mxu0 %v7265
        %v7529 = vpop.f32.mrf.mxu0
        %v7530 = vadd.f32 %v7133, %v7529
        %v7531 = vpop.f32.mrf.mxu0
        %v7532 = vpop.f32.mrf.mxu0
        %v7533 = vadd.f32 %v7136, %v7532
        %v7534 = vpop.f32.mrf.mxu0
        %7535 = vmatprep.mubr.bf16.mxu0 0
        %7536 = vmatmul.mubr.bf16.gmra.mxu0 %v7268
        %v7537 = vpop.f32.mrf.mxu0
        %v7538 = vadd.f32 %v7141, %v7537
        %v7539 = vpop.f32.mrf.mxu0
        %v7540 = vpop.f32.mrf.mxu0
        %v7541 = vadd.f32 %v7144, %v7540
        %v7542 = vpop.f32.mrf.mxu0
        %7543 = vmatprep.mubr.bf16.mxu0 0
        %7544 = vmatmul.mubr.bf16.gmra.mxu0 %v7271
        %v7545 = vpop.f32.mrf.mxu0
        %v7546 = vadd.f32 %v7149, %v7545
        %v7547 = vpop.f32.mrf.mxu0
        %v7548 = vpop.f32.mrf.mxu0
        %v7549 = vadd.f32 %v7152, %v7548
        %v7550 = vpop.f32.mrf.mxu0
        %7551 = vmatprep.mubr.bf16.mxu0 0
        %7552 = vmatmul.mubr.bf16.gmra.mxu0 %v7274
        %v7553 = vpop.f32.mrf.mxu0
        %v7554 = vadd.f32 %v7157, %v7553
        %v7555 = vpop.f32.mrf.mxu0
        %v7556 = vpop.f32.mrf.mxu0
        %v7557 = vadd.f32 %v7160, %v7556
        %v7558 = vpop.f32.mrf.mxu0
        %7559 = vmatprep.mubr.bf16.mxu0 0
        %7560 = vmatmul.mubr.bf16.gmra.mxu0 %v7277
        %v7561 = vpop.f32.mrf.mxu0
        %v7562 = vadd.f32 %v7165, %v7561
        %v7563 = vpop.f32.mrf.mxu0
        %v7564 = vpop.f32.mrf.mxu0
        %v7565 = vadd.f32 %v7168, %v7564
        %v7566 = vpop.f32.mrf.mxu0
        %7567 = vdwg.mxu0
        %v7568 = vld [vmem:[#allocation2 + $0x2] sm:$0xff]
        %v7569 = vld [vmem:[#allocation2 + $0xa] sm:$0xff]
        %v7570 = vld [vmem:[#allocation2 + $0x1a] sm:$0xff]
        %v7571 = vld [vmem:[#allocation2 + $0x22] sm:$0xff]
        %v7572 = vld [vmem:[#allocation2 + $0x32] sm:$0xff]
        %v7573 = vld [vmem:[#allocation2 + $0x3a] sm:$0xff]
        %v7574 = vld [vmem:[#allocation2 + $0x4a] sm:$0xff]
        %v7575 = vld [vmem:[#allocation2 + $0x52] sm:$0xff]
        %v7576 = vld [vmem:[#allocation2 + $0x62] sm:$0xff]
        %v7577 = vld [vmem:[#allocation2 + $0x6a] sm:$0xff]
        %v7578 = vld [vmem:[#allocation2 + $0x7a] sm:$0xff]
        %v7579 = vld [vmem:[#allocation2 + $0x82] sm:$0xff]
        %v7580 = vld [vmem:[#allocation2 + $0x92] sm:$0xff]
        %v7581 = vld [vmem:[#allocation2 + $0x9a] sm:$0xff]
        %v7582 = vld [vmem:[#allocation2 + $0xaa] sm:$0xff]
        %v7583 = vld [vmem:[#allocation2 + $0xb2] sm:$0xff]
        %v7584 = vld [vmem:[#allocation2 + $0xc2] sm:$0xff]
        %v7585 = vld [vmem:[#allocation2 + $0xca] sm:$0xff]
        %v7586 = vld [vmem:[#allocation2 + $0xda] sm:$0xff]
        %v7587 = vld [vmem:[#allocation2 + $0xe2] sm:$0xff]
        %v7588 = vld [vmem:[#allocation2 + $0xf2] sm:$0xff]
        %v7589 = vld [vmem:[#allocation2 + $0xfa] sm:$0xff]
        %v7590 = vld [vmem:[#allocation2 + $0x10a] sm:$0xff]
        %v7591 = vld [vmem:[#allocation2 + $0x112] sm:$0xff]
        %v7592 = vld [vmem:[#allocation2 + $0x122] sm:$0xff]
        %v7593 = vld [vmem:[#allocation2 + $0x12a] sm:$0xff]
        %v7594 = vld [vmem:[#allocation2 + $0x13a] sm:$0xff]
        %v7595 = vld [vmem:[#allocation2 + $0x142] sm:$0xff]
        %v7596 = vld [vmem:[#allocation2 + $0x152] sm:$0xff]
        %v7597 = vld [vmem:[#allocation2 + $0x15a] sm:$0xff]
        %v7598 = vld [vmem:[#allocation2 + $0x16a] sm:$0xff]
        %v7599 = vld [vmem:[#allocation2 + $0x172] sm:$0xff]
        %v7600 = vld [vmem:[#allocation2 + $0x1b2] sm:$0xff]
        %v7601 = vld [vmem:[#allocation2 + $0x1ba] sm:$0xff]
        %v7602 = vld [vmem:[#allocation2 + $0x1ca] sm:$0xff]
        %v7603 = vld [vmem:[#allocation2 + $0x1d2] sm:$0xff]
        %v7604 = vld [vmem:[#allocation2 + $0x1e2] sm:$0xff]
        %v7605 = vld [vmem:[#allocation2 + $0x1ea] sm:$0xff]
        %v7606 = vld [vmem:[#allocation2 + $0x1fa] sm:$0xff]
        %v7607 = vld [vmem:[#allocation2 + $0x202] sm:$0xff]
        %v7608 = vld [vmem:[#allocation2 + $0x212] sm:$0xff]
        %v7609 = vld [vmem:[#allocation2 + $0x21a] sm:$0xff]
        %v7610 = vld [vmem:[#allocation2 + $0x22a] sm:$0xff]
        %v7611 = vld [vmem:[#allocation2 + $0x232] sm:$0xff]
        %v7612 = vld [vmem:[#allocation2 + $0x242] sm:$0xff]
        %v7613 = vld [vmem:[#allocation2 + $0x24a] sm:$0xff]
        %v7614 = vld [vmem:[#allocation2 + $0x25a] sm:$0xff]
        %v7615 = vld [vmem:[#allocation2 + $0x262] sm:$0xff]
        %v7616 = vld [vmem:[#allocation2 + $0x272] sm:$0xff]
        %v7617 = vld [vmem:[#allocation2 + $0x27a] sm:$0xff]
        %v7618 = vld [vmem:[#allocation2 + $0x28a] sm:$0xff]
        %v7619 = vld [vmem:[#allocation2 + $0x292] sm:$0xff]
        %v7620 = vld [vmem:[#allocation2 + $0x2a2] sm:$0xff]
        %v7621 = vld [vmem:[#allocation2 + $0x2aa] sm:$0xff]
        %v7622 = vld [vmem:[#allocation2 + $0x2ba] sm:$0xff]
        %v7623 = vld [vmem:[#allocation2 + $0x2c2] sm:$0xff]
        %v7624 = vld [vmem:[#allocation2 + $0x2d2] sm:$0xff]
        %v7625 = vld [vmem:[#allocation2 + $0x2da] sm:$0xff]
        %v7626 = vld [vmem:[#allocation2 + $0x2ea] sm:$0xff]
        %v7627 = vld [vmem:[#allocation2 + $0x2f2] sm:$0xff]
        %v7628 = vld [vmem:[#allocation2 + $0x302] sm:$0xff]
        %v7629 = vld [vmem:[#allocation2 + $0x30a] sm:$0xff]
        %v7630 = vld [vmem:[#allocation2 + $0x31a] sm:$0xff]
        %v7631 = vld [vmem:[#allocation2 + $0x322] sm:$0xff]
        %v7632 = vpack.c.bf16 %v7569, %v7568
        %v7633 = vpack.c.bf16 %v7571, %v7570
        %v7634 = vpack.c.bf16 %v7573, %v7572
        %v7635 = vpack.c.bf16 %v7575, %v7574
        %v7636 = vpack.c.bf16 %v7577, %v7576
        %v7637 = vpack.c.bf16 %v7579, %v7578
        %v7638 = vpack.c.bf16 %v7581, %v7580
        %v7639 = vpack.c.bf16 %v7583, %v7582
        %v7640 = vpack.c.bf16 %v7585, %v7584
        %v7641 = vpack.c.bf16 %v7587, %v7586
        %v7642 = vpack.c.bf16 %v7589, %v7588
        %v7643 = vpack.c.bf16 %v7591, %v7590
        %v7644 = vpack.c.bf16 %v7593, %v7592
        %v7645 = vpack.c.bf16 %v7595, %v7594
        %v7646 = vpack.c.bf16 %v7597, %v7596
        %v7647 = vpack.c.bf16 %v7599, %v7598
        %v7648 = vpack.c.bf16 %v7601, %v7600
        %v7649 = vpack.c.bf16 %v7603, %v7602
        %v7650 = vpack.c.bf16 %v7605, %v7604
        %v7651 = vpack.c.bf16 %v7607, %v7606
        %v7652 = vpack.c.bf16 %v7609, %v7608
        %v7653 = vpack.c.bf16 %v7611, %v7610
        %v7654 = vpack.c.bf16 %v7613, %v7612
        %v7655 = vpack.c.bf16 %v7615, %v7614
        %v7656 = vpack.c.bf16 %v7617, %v7616
        %v7657 = vpack.c.bf16 %v7619, %v7618
        %v7658 = vpack.c.bf16 %v7621, %v7620
        %v7659 = vpack.c.bf16 %v7623, %v7622
        %v7660 = vpack.c.bf16 %v7625, %v7624
        %v7661 = vpack.c.bf16 %v7627, %v7626
        %v7662 = vpack.c.bf16 %v7629, %v7628
        %v7663 = vpack.c.bf16 %v7631, %v7630
        %s7664 = scalar_lea.vmem [#allocation9], 32
        %v7665 = vld [vmem:[%s7664] sm:$0xf]
        %v7666 = vld [vmem:[%s7664 + $0x4] sm:$0xf]
        %v7667 = vld [vmem:[%s7664 + $0x8] sm:$0xf]
        %v7668 = vld [vmem:[%s7664 + $0xc] sm:$0xf]
        %v7673 = vunpack.c.l.b16 %v7665
        %v7674 = vunpack.c.l.b16 %v7666
        %v7675 = vunpack.c.l.b16 %v7667
        %v7676 = vunpack.c.l.b16 %v7668
        %v7677 = vpack.c.b16 %v7674, %v7673
        %v7678 = vpack.c.b16 %v7676, %v7675
        %v7682 = vsel %vm6508, %v7632, 0
        %v7685 = vsel %vm6508, %v7633, 0
        %v7688 = vsel %vm6508, %v7634, 0
        %v7691 = vsel %vm6508, %v7635, 0
        %v7694 = vsel %vm6508, %v7636, 0
        %v7697 = vsel %vm6508, %v7637, 0
        %v7700 = vsel %vm6508, %v7638, 0
        %v7703 = vsel %vm6508, %v7639, 0
        %v7706 = vsel %vm6508, %v7640, 0
        %v7709 = vsel %vm6508, %v7641, 0
        %v7712 = vsel %vm6508, %v7642, 0
        %v7715 = vsel %vm6508, %v7643, 0
        %v7718 = vsel %vm6508, %v7644, 0
        %v7721 = vsel %vm6508, %v7645, 0
        %v7724 = vsel %vm6508, %v7646, 0
        %v7727 = vsel %vm6508, %v7647, 0
        %v7730 = vsel %vm6508, %v7648, 0
        %v7733 = vsel %vm6508, %v7649, 0
        %v7736 = vsel %vm6508, %v7650, 0
        %v7739 = vsel %vm6508, %v7651, 0
        %v7742 = vsel %vm6508, %v7652, 0
        %v7745 = vsel %vm6508, %v7653, 0
        %v7748 = vsel %vm6508, %v7654, 0
        %v7751 = vsel %vm6508, %v7655, 0
        %v7754 = vsel %vm6508, %v7656, 0
        %v7757 = vsel %vm6508, %v7657, 0
        %v7760 = vsel %vm6508, %v7658, 0
        %v7763 = vsel %vm6508, %v7659, 0
        %v7766 = vsel %vm6508, %v7660, 0
        %v7769 = vsel %vm6508, %v7661, 0
        %v7772 = vsel %vm6508, %v7662, 0
        %v7775 = vsel %vm6508, %v7663, 0
        %7777 = vmatprep.subr.bf16.mxu0 0
        %7778 = vmatpush1.bf16.msra.mxu0 0
        %7779 = vmatprep.subr.bf16.mxu0 0
        %7780 = vmatpush1.bf16.msra.mxu0 0
        %7781 = vmatprep.subr.bf16.mxu0 0
        %7782 = vmatpush1.bf16.msra.mxu0 0
        %7783 = vmatprep.subr.bf16.mxu0 0
        %7784 = vmatpush1.bf16.msra.mxu0 0
        %7785 = vmatprep.subr.bf16.mxu0 0
        %7786 = vmatpush1.bf16.msra.mxu0 0
        %7787 = vmatprep.subr.bf16.mxu0 0
        %7788 = vmatpush1.bf16.msra.mxu0 0
        %7789 = vmatprep.subr.bf16.mxu0 0
        %7790 = vmatpush1.bf16.msra.mxu0 %v7678
        %7791 = vmatprep.subr.bf16.mxu0 0
        %7792 = vmatpush1.bf16.msra.mxu0 %v7677
        %7793 = vmatprep.subr.bf16.mxu0 0
        %7794 = vmatpush2.bf16.msra.mxu0 0
        %7795 = vmatprep.subr.bf16.mxu0 0
        %7796 = vmatpush2.bf16.msra.mxu0 0
        %7797 = vmatprep.subr.bf16.mxu0 0
        %7798 = vmatpush2.bf16.msra.mxu0 0
        %7799 = vmatprep.subr.bf16.mxu0 0
        %7800 = vmatpush2.bf16.msra.mxu0 0
        %7801 = vmatprep.subr.bf16.mxu0 0
        %7802 = vmatpush2.bf16.msra.mxu0 0
        %7803 = vmatprep.subr.bf16.mxu0 0
        %7804 = vmatpush2.bf16.msra.mxu0 0
        %7805 = vmatprep.subr.bf16.mxu0 0
        %7806 = vmatpush2.bf16.msra.mxu0 0
        %7807 = vmatprep.subr.bf16.mxu0 0
        %7808 = vmatpush2.bf16.msra.mxu0 0
        %7809 = vmatprep.mubr.bf16.mxu0 0
        %7810 = vmatmul.mubr.bf16.gmra.mxu0 %v7682
        %v7811 = vpop.f32.mrf.mxu0
        %v7812 = vadd.f32 0.0, %v7811
        %v7813 = vpop.f32.mrf.mxu0
        %v7814 = vpop.f32.mrf.mxu0
        %v7815 = vadd.f32 0.0, %v7814
        %v7816 = vpop.f32.mrf.mxu0
        %7817 = vmatprep.mubr.bf16.mxu0 0
        %7818 = vmatmul.mubr.bf16.gmra.mxu0 %v7685
        %v7819 = vpop.f32.mrf.mxu0
        %v7820 = vadd.f32 0.0, %v7819
        %v7821 = vpop.f32.mrf.mxu0
        %v7822 = vpop.f32.mrf.mxu0
        %v7823 = vadd.f32 0.0, %v7822
        %v7824 = vpop.f32.mrf.mxu0
        %7825 = vmatprep.mubr.bf16.mxu0 0
        %7826 = vmatmul.mubr.bf16.gmra.mxu0 %v7688
        %v7827 = vpop.f32.mrf.mxu0
        %v7828 = vadd.f32 0.0, %v7827
        %v7829 = vpop.f32.mrf.mxu0
        %v7830 = vpop.f32.mrf.mxu0
        %v7831 = vadd.f32 0.0, %v7830
        %v7832 = vpop.f32.mrf.mxu0
        %7833 = vmatprep.mubr.bf16.mxu0 0
        %7834 = vmatmul.mubr.bf16.gmra.mxu0 %v7691
        %v7835 = vpop.f32.mrf.mxu0
        %v7836 = vadd.f32 0.0, %v7835
        %v7837 = vpop.f32.mrf.mxu0
        %v7838 = vpop.f32.mrf.mxu0
        %v7839 = vadd.f32 0.0, %v7838
        %v7840 = vpop.f32.mrf.mxu0
        %7841 = vmatprep.mubr.bf16.mxu0 0
        %7842 = vmatmul.mubr.bf16.gmra.mxu0 %v7694
        %v7843 = vpop.f32.mrf.mxu0
        %v7844 = vadd.f32 0.0, %v7843
        %v7845 = vpop.f32.mrf.mxu0
        %v7846 = vpop.f32.mrf.mxu0
        %v7847 = vadd.f32 0.0, %v7846
        %v7848 = vpop.f32.mrf.mxu0
        %7849 = vmatprep.mubr.bf16.mxu0 0
        %7850 = vmatmul.mubr.bf16.gmra.mxu0 %v7697
        %v7851 = vpop.f32.mrf.mxu0
        %v7852 = vadd.f32 0.0, %v7851
        %v7853 = vpop.f32.mrf.mxu0
        %v7854 = vpop.f32.mrf.mxu0
        %v7855 = vadd.f32 0.0, %v7854
        %v7856 = vpop.f32.mrf.mxu0
        %7857 = vmatprep.mubr.bf16.mxu0 0
        %7858 = vmatmul.mubr.bf16.gmra.mxu0 %v7700
        %v7859 = vpop.f32.mrf.mxu0
        %v7860 = vadd.f32 0.0, %v7859
        %v7861 = vpop.f32.mrf.mxu0
        %v7862 = vpop.f32.mrf.mxu0
        %v7863 = vadd.f32 0.0, %v7862
        %v7864 = vpop.f32.mrf.mxu0
        %7865 = vmatprep.mubr.bf16.mxu0 0
        %7866 = vmatmul.mubr.bf16.gmra.mxu0 %v7703
        %v7867 = vpop.f32.mrf.mxu0
        %v7868 = vadd.f32 0.0, %v7867
        %v7869 = vpop.f32.mrf.mxu0
        %v7870 = vpop.f32.mrf.mxu0
        %v7871 = vadd.f32 0.0, %v7870
        %v7872 = vpop.f32.mrf.mxu0
        %7873 = vmatprep.mubr.bf16.mxu0 0
        %7874 = vmatmul.mubr.bf16.gmra.mxu0 %v7706
        %v7875 = vpop.f32.mrf.mxu0
        %v7876 = vadd.f32 0.0, %v7875
        %v7877 = vpop.f32.mrf.mxu0
        %v7878 = vpop.f32.mrf.mxu0
        %v7879 = vadd.f32 0.0, %v7878
        %v7880 = vpop.f32.mrf.mxu0
        %7881 = vmatprep.mubr.bf16.mxu0 0
        %7882 = vmatmul.mubr.bf16.gmra.mxu0 %v7709
        %v7883 = vpop.f32.mrf.mxu0
        %v7884 = vadd.f32 0.0, %v7883
        %v7885 = vpop.f32.mrf.mxu0
        %v7886 = vpop.f32.mrf.mxu0
        %v7887 = vadd.f32 0.0, %v7886
        %v7888 = vpop.f32.mrf.mxu0
        %7889 = vmatprep.mubr.bf16.mxu0 0
        %7890 = vmatmul.mubr.bf16.gmra.mxu0 %v7712
        %v7891 = vpop.f32.mrf.mxu0
        %v7892 = vadd.f32 0.0, %v7891
        %v7893 = vpop.f32.mrf.mxu0
        %v7894 = vpop.f32.mrf.mxu0
        %v7895 = vadd.f32 0.0, %v7894
        %v7896 = vpop.f32.mrf.mxu0
        %7897 = vmatprep.mubr.bf16.mxu0 0
        %7898 = vmatmul.mubr.bf16.gmra.mxu0 %v7715
        %v7899 = vpop.f32.mrf.mxu0
        %v7900 = vadd.f32 0.0, %v7899
        %v7901 = vpop.f32.mrf.mxu0
        %v7902 = vpop.f32.mrf.mxu0
        %v7903 = vadd.f32 0.0, %v7902
        %v7904 = vpop.f32.mrf.mxu0
        %7905 = vmatprep.mubr.bf16.mxu0 0
        %7906 = vmatmul.mubr.bf16.gmra.mxu0 %v7718
        %v7907 = vpop.f32.mrf.mxu0
        %v7908 = vadd.f32 0.0, %v7907
        %v7909 = vpop.f32.mrf.mxu0
        %v7910 = vpop.f32.mrf.mxu0
        %v7911 = vadd.f32 0.0, %v7910
        %v7912 = vpop.f32.mrf.mxu0
        %7913 = vmatprep.mubr.bf16.mxu0 0
        %7914 = vmatmul.mubr.bf16.gmra.mxu0 %v7721
        %v7915 = vpop.f32.mrf.mxu0
        %v7916 = vadd.f32 0.0, %v7915
        %v7917 = vpop.f32.mrf.mxu0
        %v7918 = vpop.f32.mrf.mxu0
        %v7919 = vadd.f32 0.0, %v7918
        %v7920 = vpop.f32.mrf.mxu0
        %7921 = vmatprep.mubr.bf16.mxu0 0
        %7922 = vmatmul.mubr.bf16.gmra.mxu0 %v7724
        %v7923 = vpop.f32.mrf.mxu0
        %v7924 = vadd.f32 0.0, %v7923
        %v7925 = vpop.f32.mrf.mxu0
        %v7926 = vpop.f32.mrf.mxu0
        %v7927 = vadd.f32 0.0, %v7926
        %v7928 = vpop.f32.mrf.mxu0
        %7929 = vmatprep.mubr.bf16.mxu0 0
        %7930 = vmatmul.mubr.bf16.gmra.mxu0 %v7727
        %v7931 = vpop.f32.mrf.mxu0
        %v7932 = vadd.f32 0.0, %v7931
        %v7933 = vpop.f32.mrf.mxu0
        %v7934 = vpop.f32.mrf.mxu0
        %v7935 = vadd.f32 0.0, %v7934
        %v7936 = vpop.f32.mrf.mxu0
        %7937 = vmatprep.mubr.bf16.mxu0 0
        %7938 = vmatmul.mubr.bf16.gmra.mxu0 %v7730
        %v7939 = vpop.f32.mrf.mxu0
        %v7940 = vadd.f32 0.0, %v7939
        %v7941 = vpop.f32.mrf.mxu0
        %v7942 = vpop.f32.mrf.mxu0
        %v7943 = vadd.f32 0.0, %v7942
        %v7944 = vpop.f32.mrf.mxu0
        %7945 = vmatprep.mubr.bf16.mxu0 0
        %7946 = vmatmul.mubr.bf16.gmra.mxu0 %v7733
        %v7947 = vpop.f32.mrf.mxu0
        %v7948 = vadd.f32 0.0, %v7947
        %v7949 = vpop.f32.mrf.mxu0
        %v7950 = vpop.f32.mrf.mxu0
        %v7951 = vadd.f32 0.0, %v7950
        %v7952 = vpop.f32.mrf.mxu0
        %7953 = vmatprep.mubr.bf16.mxu0 0
        %7954 = vmatmul.mubr.bf16.gmra.mxu0 %v7736
        %v7955 = vpop.f32.mrf.mxu0
        %v7956 = vadd.f32 0.0, %v7955
        %v7957 = vpop.f32.mrf.mxu0
        %v7958 = vpop.f32.mrf.mxu0
        %v7959 = vadd.f32 0.0, %v7958
        %v7960 = vpop.f32.mrf.mxu0
        %7961 = vmatprep.mubr.bf16.mxu0 0
        %7962 = vmatmul.mubr.bf16.gmra.mxu0 %v7739
        %v7963 = vpop.f32.mrf.mxu0
        %v7964 = vadd.f32 0.0, %v7963
        %v7965 = vpop.f32.mrf.mxu0
        %v7966 = vpop.f32.mrf.mxu0
        %v7967 = vadd.f32 0.0, %v7966
        %v7968 = vpop.f32.mrf.mxu0
        %7969 = vmatprep.mubr.bf16.mxu0 0
        %7970 = vmatmul.mubr.bf16.gmra.mxu0 %v7742
        %v7971 = vpop.f32.mrf.mxu0
        %v7972 = vadd.f32 0.0, %v7971
        %v7973 = vpop.f32.mrf.mxu0
        %v7974 = vpop.f32.mrf.mxu0
        %v7975 = vadd.f32 0.0, %v7974
        %v7976 = vpop.f32.mrf.mxu0
        %7977 = vmatprep.mubr.bf16.mxu0 0
        %7978 = vmatmul.mubr.bf16.gmra.mxu0 %v7745
        %v7979 = vpop.f32.mrf.mxu0
        %v7980 = vadd.f32 0.0, %v7979
        %v7981 = vpop.f32.mrf.mxu0
        %v7982 = vpop.f32.mrf.mxu0
        %v7983 = vadd.f32 0.0, %v7982
        %v7984 = vpop.f32.mrf.mxu0
        %7985 = vmatprep.mubr.bf16.mxu0 0
        %7986 = vmatmul.mubr.bf16.gmra.mxu0 %v7748
        %v7987 = vpop.f32.mrf.mxu0
        %v7988 = vadd.f32 0.0, %v7987
        %v7989 = vpop.f32.mrf.mxu0
        %v7990 = vpop.f32.mrf.mxu0
        %v7991 = vadd.f32 0.0, %v7990
        %v7992 = vpop.f32.mrf.mxu0
        %7993 = vmatprep.mubr.bf16.mxu0 0
        %7994 = vmatmul.mubr.bf16.gmra.mxu0 %v7751
        %v7995 = vpop.f32.mrf.mxu0
        %v7996 = vadd.f32 0.0, %v7995
        %v7997 = vpop.f32.mrf.mxu0
        %v7998 = vpop.f32.mrf.mxu0
        %v7999 = vadd.f32 0.0, %v7998
        %v8000 = vpop.f32.mrf.mxu0
        %8001 = vmatprep.mubr.bf16.mxu0 0
        %8002 = vmatmul.mubr.bf16.gmra.mxu0 %v7754
        %v8003 = vpop.f32.mrf.mxu0
        %v8004 = vadd.f32 0.0, %v8003
        %v8005 = vpop.f32.mrf.mxu0
        %v8006 = vpop.f32.mrf.mxu0
        %v8007 = vadd.f32 0.0, %v8006
        %v8008 = vpop.f32.mrf.mxu0
        %8009 = vmatprep.mubr.bf16.mxu0 0
        %8010 = vmatmul.mubr.bf16.gmra.mxu0 %v7757
        %v8011 = vpop.f32.mrf.mxu0
        %v8012 = vadd.f32 0.0, %v8011
        %v8013 = vpop.f32.mrf.mxu0
        %v8014 = vpop.f32.mrf.mxu0
        %v8015 = vadd.f32 0.0, %v8014
        %v8016 = vpop.f32.mrf.mxu0
        %8017 = vmatprep.mubr.bf16.mxu0 0
        %8018 = vmatmul.mubr.bf16.gmra.mxu0 %v7760
        %v8019 = vpop.f32.mrf.mxu0
        %v8020 = vadd.f32 0.0, %v8019
        %v8021 = vpop.f32.mrf.mxu0
        %v8022 = vpop.f32.mrf.mxu0
        %v8023 = vadd.f32 0.0, %v8022
        %v8024 = vpop.f32.mrf.mxu0
        %8025 = vmatprep.mubr.bf16.mxu0 0
        %8026 = vmatmul.mubr.bf16.gmra.mxu0 %v7763
        %v8027 = vpop.f32.mrf.mxu0
        %v8028 = vadd.f32 0.0, %v8027
        %v8029 = vpop.f32.mrf.mxu0
        %v8030 = vpop.f32.mrf.mxu0
        %v8031 = vadd.f32 0.0, %v8030
        %v8032 = vpop.f32.mrf.mxu0
        %8033 = vmatprep.mubr.bf16.mxu0 0
        %8034 = vmatmul.mubr.bf16.gmra.mxu0 %v7766
        %v8035 = vpop.f32.mrf.mxu0
        %v8036 = vadd.f32 0.0, %v8035
        %v8037 = vpop.f32.mrf.mxu0
        %v8038 = vpop.f32.mrf.mxu0
        %v8039 = vadd.f32 0.0, %v8038
        %v8040 = vpop.f32.mrf.mxu0
        %8041 = vmatprep.mubr.bf16.mxu0 0
        %8042 = vmatmul.mubr.bf16.gmra.mxu0 %v7769
        %v8043 = vpop.f32.mrf.mxu0
        %v8044 = vadd.f32 0.0, %v8043
        %v8045 = vpop.f32.mrf.mxu0
        %v8046 = vpop.f32.mrf.mxu0
        %v8047 = vadd.f32 0.0, %v8046
        %v8048 = vpop.f32.mrf.mxu0
        %8049 = vmatprep.mubr.bf16.mxu0 0
        %8050 = vmatmul.mubr.bf16.gmra.mxu0 %v7772
        %v8051 = vpop.f32.mrf.mxu0
        %v8052 = vadd.f32 0.0, %v8051
        %v8053 = vpop.f32.mrf.mxu0
        %v8054 = vpop.f32.mrf.mxu0
        %v8055 = vadd.f32 0.0, %v8054
        %v8056 = vpop.f32.mrf.mxu0
        %8057 = vmatprep.mubr.bf16.mxu0 0
        %8058 = vmatmul.mubr.bf16.gmra.mxu0 %v7775
        %v8059 = vpop.f32.mrf.mxu0
        %v8060 = vadd.f32 0.0, %v8059
        %v8061 = vpop.f32.mrf.mxu0
        %v8062 = vpop.f32.mrf.mxu0
        %v8063 = vadd.f32 0.0, %v8062
        %v8064 = vpop.f32.mrf.mxu0
        %8065 = vdwg.mxu0
        %v8066 = vadd.f32 %v7314, %v7812
        %v8067 = vadd.f32 %v7317, %v7815
        %v8068 = vadd.f32 %v7322, %v7820
        %v8069 = vadd.f32 %v7325, %v7823
        %v8070 = vadd.f32 %v7330, %v7828
        %v8071 = vadd.f32 %v7333, %v7831
        %v8072 = vadd.f32 %v7338, %v7836
        %v8073 = vadd.f32 %v7341, %v7839
        %v8074 = vadd.f32 %v7346, %v7844
        %v8075 = vadd.f32 %v7349, %v7847
        %v8076 = vadd.f32 %v7354, %v7852
        %v8077 = vadd.f32 %v7357, %v7855
        %v8078 = vadd.f32 %v7362, %v7860
        %v8079 = vadd.f32 %v7365, %v7863
        %v8080 = vadd.f32 %v7370, %v7868
        %v8081 = vadd.f32 %v7373, %v7871
        %v8082 = vadd.f32 %v7378, %v7876
        %v8083 = vadd.f32 %v7381, %v7879
        %v8084 = vadd.f32 %v7386, %v7884
        %v8085 = vadd.f32 %v7389, %v7887
        %v8086 = vadd.f32 %v7394, %v7892
        %v8087 = vadd.f32 %v7397, %v7895
        %v8088 = vadd.f32 %v7402, %v7900
        %v8089 = vadd.f32 %v7405, %v7903
        %v8090 = vadd.f32 %v7410, %v7908
        %v8091 = vadd.f32 %v7413, %v7911
        %v8092 = vadd.f32 %v7418, %v7916
        %v8093 = vadd.f32 %v7421, %v7919
        %v8094 = vadd.f32 %v7426, %v7924
        %v8095 = vadd.f32 %v7429, %v7927
        %v8096 = vadd.f32 %v7434, %v7932
        %v8097 = vadd.f32 %v7437, %v7935
        %v8098 = vadd.f32 %v7442, %v7940
        %v8099 = vadd.f32 %v7445, %v7943
        %v8100 = vadd.f32 %v7450, %v7948
        %v8101 = vadd.f32 %v7453, %v7951
        %v8102 = vadd.f32 %v7458, %v7956
        %v8103 = vadd.f32 %v7461, %v7959
        %v8104 = vadd.f32 %v7466, %v7964
        %v8105 = vadd.f32 %v7469, %v7967
        %v8106 = vadd.f32 %v7474, %v7972
        %v8107 = vadd.f32 %v7477, %v7975
        %v8108 = vadd.f32 %v7482, %v7980
        %v8109 = vadd.f32 %v7485, %v7983
        %v8110 = vadd.f32 %v7490, %v7988
        %v8111 = vadd.f32 %v7493, %v7991
        %v8112 = vadd.f32 %v7498, %v7996
        %v8113 = vadd.f32 %v7501, %v7999
        %v8114 = vadd.f32 %v7506, %v8004
        %v8115 = vadd.f32 %v7509, %v8007
        %v8116 = vadd.f32 %v7514, %v8012
        %v8117 = vadd.f32 %v7517, %v8015
        %v8118 = vadd.f32 %v7522, %v8020
        %v8119 = vadd.f32 %v7525, %v8023
        %v8120 = vadd.f32 %v7530, %v8028
        %v8121 = vadd.f32 %v7533, %v8031
        %v8122 = vadd.f32 %v7538, %v8036
        %v8123 = vadd.f32 %v7541, %v8039
        %v8124 = vadd.f32 %v7546, %v8044
        %v8125 = vadd.f32 %v7549, %v8047
        %v8126 = vadd.f32 %v7554, %v8052
        %v8127 = vadd.f32 %v7557, %v8055
        %v8128 = vadd.f32 %v7562, %v8060
        %v8129 = vadd.f32 %v7565, %v8063
        %v8130 = vld [vmem:[%s279] sm:$0xff]
        %v8131 = vld [vmem:[%s279 + $0x8] sm:$0xff]
        %v8132 = vld [vmem:[%s279 + $0x18] sm:$0xff]
        %v8133 = vld [vmem:[%s279 + $0x20] sm:$0xff]
        %v8134 = vld [vmem:[%s279 + $0x30] sm:$0xff]
        %v8135 = vld [vmem:[%s279 + $0x38] sm:$0xff]
        %v8136 = vld [vmem:[%s279 + $0x48] sm:$0xff]
        %v8137 = vld [vmem:[%s279 + $0x50] sm:$0xff]
        %v8138 = vld [vmem:[%s279 + $0x60] sm:$0xff]
        %v8139 = vld [vmem:[%s279 + $0x68] sm:$0xff]
        %v8140 = vld [vmem:[%s279 + $0x78] sm:$0xff]
        %v8141 = vld [vmem:[%s279 + $0x80] sm:$0xff]
        %v8142 = vld [vmem:[%s279 + $0x90] sm:$0xff]
        %v8143 = vld [vmem:[%s279 + $0x98] sm:$0xff]
        %v8144 = vld [vmem:[%s279 + $0xa8] sm:$0xff]
        %v8145 = vld [vmem:[%s279 + $0xb0] sm:$0xff]
        %v8146 = vld [vmem:[%s279 + $0xc0] sm:$0xff]
        %v8147 = vld [vmem:[%s279 + $0xc8] sm:$0xff]
        %v8148 = vld [vmem:[%s279 + $0xd8] sm:$0xff]
        %v8149 = vld [vmem:[%s279 + $0xe0] sm:$0xff]
        %v8150 = vld [vmem:[%s279 + $0xf0] sm:$0xff]
        %v8151 = vld [vmem:[%s279 + $0xf8] sm:$0xff]
        %v8152 = vld [vmem:[%s279 + $0x108] sm:$0xff]
        %v8153 = vld [vmem:[%s279 + $0x110] sm:$0xff]
        %v8154 = vld [vmem:[%s279 + $0x120] sm:$0xff]
        %v8155 = vld [vmem:[%s279 + $0x128] sm:$0xff]
        %v8156 = vld [vmem:[%s279 + $0x138] sm:$0xff]
        %v8157 = vld [vmem:[%s279 + $0x140] sm:$0xff]
        %v8158 = vld [vmem:[%s279 + $0x150] sm:$0xff]
        %v8159 = vld [vmem:[%s279 + $0x158] sm:$0xff]
        %v8160 = vld [vmem:[%s279 + $0x168] sm:$0xff]
        %v8161 = vld [vmem:[%s279 + $0x170] sm:$0xff]
        %v8162 = vld [vmem:[%s279 + $0x1b0] sm:$0xff]
        %v8163 = vld [vmem:[%s279 + $0x1b8] sm:$0xff]
        %v8164 = vld [vmem:[%s279 + $0x1c8] sm:$0xff]
        %v8165 = vld [vmem:[%s279 + $0x1d0] sm:$0xff]
        %v8166 = vld [vmem:[%s279 + $0x1e0] sm:$0xff]
        %v8167 = vld [vmem:[%s279 + $0x1e8] sm:$0xff]
        %v8168 = vld [vmem:[%s279 + $0x1f8] sm:$0xff]
        %v8169 = vld [vmem:[%s279 + $0x200] sm:$0xff]
        %v8170 = vld [vmem:[%s279 + $0x210] sm:$0xff]
        %v8171 = vld [vmem:[%s279 + $0x218] sm:$0xff]
        %v8172 = vld [vmem:[%s279 + $0x228] sm:$0xff]
        %v8173 = vld [vmem:[%s279 + $0x230] sm:$0xff]
        %v8174 = vld [vmem:[%s279 + $0x240] sm:$0xff]
        %v8175 = vld [vmem:[%s279 + $0x248] sm:$0xff]
        %v8176 = vld [vmem:[%s279 + $0x258] sm:$0xff]
        %v8177 = vld [vmem:[%s279 + $0x260] sm:$0xff]
        %v8178 = vld [vmem:[%s279 + $0x270] sm:$0xff]
        %v8179 = vld [vmem:[%s279 + $0x278] sm:$0xff]
        %v8180 = vld [vmem:[%s279 + $0x288] sm:$0xff]
        %v8181 = vld [vmem:[%s279 + $0x290] sm:$0xff]
        %v8182 = vld [vmem:[%s279 + $0x2a0] sm:$0xff]
        %v8183 = vld [vmem:[%s279 + $0x2a8] sm:$0xff]
        %v8184 = vld [vmem:[%s279 + $0x2b8] sm:$0xff]
        %v8185 = vld [vmem:[%s279 + $0x2c0] sm:$0xff]
        %v8186 = vld [vmem:[%s279 + $0x2d0] sm:$0xff]
        %v8187 = vld [vmem:[%s279 + $0x2d8] sm:$0xff]
        %v8188 = vld [vmem:[%s279 + $0x2e8] sm:$0xff]
        %v8189 = vld [vmem:[%s279 + $0x2f0] sm:$0xff]
        %v8190 = vld [vmem:[%s279 + $0x300] sm:$0xff]
        %v8191 = vld [vmem:[%s279 + $0x308] sm:$0xff]
        %v8192 = vld [vmem:[%s279 + $0x318] sm:$0xff]
        %v8193 = vld [vmem:[%s279 + $0x320] sm:$0xff]
        %v8194 = vpack.c.bf16 %v8131, %v8130
        %v8195 = vpack.c.bf16 %v8133, %v8132
        %v8196 = vpack.c.bf16 %v8135, %v8134
        %v8197 = vpack.c.bf16 %v8137, %v8136
        %v8198 = vpack.c.bf16 %v8139, %v8138
        %v8199 = vpack.c.bf16 %v8141, %v8140
        %v8200 = vpack.c.bf16 %v8143, %v8142
        %v8201 = vpack.c.bf16 %v8145, %v8144
        %v8202 = vpack.c.bf16 %v8147, %v8146
        %v8203 = vpack.c.bf16 %v8149, %v8148
        %v8204 = vpack.c.bf16 %v8151, %v8150
        %v8205 = vpack.c.bf16 %v8153, %v8152
        %v8206 = vpack.c.bf16 %v8155, %v8154
        %v8207 = vpack.c.bf16 %v8157, %v8156
        %v8208 = vpack.c.bf16 %v8159, %v8158
        %v8209 = vpack.c.bf16 %v8161, %v8160
        %v8210 = vpack.c.bf16 %v8163, %v8162
        %v8211 = vpack.c.bf16 %v8165, %v8164
        %v8212 = vpack.c.bf16 %v8167, %v8166
        %v8213 = vpack.c.bf16 %v8169, %v8168
        %v8214 = vpack.c.bf16 %v8171, %v8170
        %v8215 = vpack.c.bf16 %v8173, %v8172
        %v8216 = vpack.c.bf16 %v8175, %v8174
        %v8217 = vpack.c.bf16 %v8177, %v8176
        %v8218 = vpack.c.bf16 %v8179, %v8178
        %v8219 = vpack.c.bf16 %v8181, %v8180
        %v8220 = vpack.c.bf16 %v8183, %v8182
        %v8221 = vpack.c.bf16 %v8185, %v8184
        %v8222 = vpack.c.bf16 %v8187, %v8186
        %v8223 = vpack.c.bf16 %v8189, %v8188
        %v8224 = vpack.c.bf16 %v8191, %v8190
        %v8225 = vpack.c.bf16 %v8193, %v8192
        %s8226 = scalar_lea.vmem [#allocation9], 48
        %v8227 = vld [vmem:[%s8226] sm:$0xf]
        %v8228 = vld [vmem:[%s8226 + $0x4] sm:$0xf]
        %v8229 = vld [vmem:[%s8226 + $0x8] sm:$0xf]
        %v8230 = vld [vmem:[%s8226 + $0xc] sm:$0xf]
        %v8235 = vunpack.c.l.b16 %v8227
        %v8236 = vunpack.c.l.b16 %v8228
        %v8237 = vunpack.c.l.b16 %v8229
        %v8238 = vunpack.c.l.b16 %v8230
        %v8239 = vpack.c.b16 %v8236, %v8235
        %v8240 = vpack.c.b16 %v8238, %v8237
        %v8244 = vsel %vm6508, %v8194, 0
        %v8247 = vsel %vm6508, %v8195, 0
        %v8250 = vsel %vm6508, %v8196, 0
        %v8253 = vsel %vm6508, %v8197, 0
        %v8256 = vsel %vm6508, %v8198, 0
        %v8259 = vsel %vm6508, %v8199, 0
        %v8262 = vsel %vm6508, %v8200, 0
        %v8265 = vsel %vm6508, %v8201, 0
        %v8268 = vsel %vm6508, %v8202, 0
        %v8271 = vsel %vm6508, %v8203, 0
        %v8274 = vsel %vm6508, %v8204, 0
        %v8277 = vsel %vm6508, %v8205, 0
        %v8280 = vsel %vm6508, %v8206, 0
        %v8283 = vsel %vm6508, %v8207, 0
        %v8286 = vsel %vm6508, %v8208, 0
        %v8289 = vsel %vm6508, %v8209, 0
        %v8292 = vsel %vm6508, %v8210, 0
        %v8295 = vsel %vm6508, %v8211, 0
        %v8298 = vsel %vm6508, %v8212, 0
        %v8301 = vsel %vm6508, %v8213, 0
        %v8304 = vsel %vm6508, %v8214, 0
        %v8307 = vsel %vm6508, %v8215, 0
        %v8310 = vsel %vm6508, %v8216, 0
        %v8313 = vsel %vm6508, %v8217, 0
        %v8316 = vsel %vm6508, %v8218, 0
        %v8319 = vsel %vm6508, %v8219, 0
        %v8322 = vsel %vm6508, %v8220, 0
        %v8325 = vsel %vm6508, %v8221, 0
        %v8328 = vsel %vm6508, %v8222, 0
        %v8331 = vsel %vm6508, %v8223, 0
        %v8334 = vsel %vm6508, %v8224, 0
        %v8337 = vsel %vm6508, %v8225, 0
        %8339 = vmatprep.subr.bf16.mxu0 0
        %8340 = vmatpush1.bf16.msra.mxu0 0
        %8341 = vmatprep.subr.bf16.mxu0 0
        %8342 = vmatpush1.bf16.msra.mxu0 0
        %8343 = vmatprep.subr.bf16.mxu0 0
        %8344 = vmatpush1.bf16.msra.mxu0 0
        %8345 = vmatprep.subr.bf16.mxu0 0
        %8346 = vmatpush1.bf16.msra.mxu0 0
        %8347 = vmatprep.subr.bf16.mxu0 0
        %8348 = vmatpush1.bf16.msra.mxu0 0
        %8349 = vmatprep.subr.bf16.mxu0 0
        %8350 = vmatpush1.bf16.msra.mxu0 0
        %8351 = vmatprep.subr.bf16.mxu0 0
        %8352 = vmatpush1.bf16.msra.mxu0 %v8240
        %8353 = vmatprep.subr.bf16.mxu0 0
        %8354 = vmatpush1.bf16.msra.mxu0 %v8239
        %8355 = vmatprep.subr.bf16.mxu0 0
        %8356 = vmatpush2.bf16.msra.mxu0 0
        %8357 = vmatprep.subr.bf16.mxu0 0
        %8358 = vmatpush2.bf16.msra.mxu0 0
        %8359 = vmatprep.subr.bf16.mxu0 0
        %8360 = vmatpush2.bf16.msra.mxu0 0
        %8361 = vmatprep.subr.bf16.mxu0 0
        %8362 = vmatpush2.bf16.msra.mxu0 0
        %8363 = vmatprep.subr.bf16.mxu0 0
        %8364 = vmatpush2.bf16.msra.mxu0 0
        %8365 = vmatprep.subr.bf16.mxu0 0
        %8366 = vmatpush2.bf16.msra.mxu0 0
        %8367 = vmatprep.subr.bf16.mxu0 0
        %8368 = vmatpush2.bf16.msra.mxu0 0
        %8369 = vmatprep.subr.bf16.mxu0 0
        %8370 = vmatpush2.bf16.msra.mxu0 0
        %8371 = vmatprep.mubr.bf16.mxu0 0
        %8372 = vmatmul.mubr.bf16.gmra.mxu0 %v8244
        %v8373 = vpop.f32.mrf.mxu0
        %v8374 = vadd.f32 0.0, %v8373
        %v8375 = vpop.f32.mrf.mxu0
        %v8376 = vpop.f32.mrf.mxu0
        %v8377 = vadd.f32 0.0, %v8376
        %v8378 = vpop.f32.mrf.mxu0
        %8379 = vmatprep.mubr.bf16.mxu0 0
        %8380 = vmatmul.mubr.bf16.gmra.mxu0 %v8247
        %v8381 = vpop.f32.mrf.mxu0
        %v8382 = vadd.f32 0.0, %v8381
        %v8383 = vpop.f32.mrf.mxu0
        %v8384 = vpop.f32.mrf.mxu0
        %v8385 = vadd.f32 0.0, %v8384
        %v8386 = vpop.f32.mrf.mxu0
        %8387 = vmatprep.mubr.bf16.mxu0 0
        %8388 = vmatmul.mubr.bf16.gmra.mxu0 %v8250
        %v8389 = vpop.f32.mrf.mxu0
        %v8390 = vadd.f32 0.0, %v8389
        %v8391 = vpop.f32.mrf.mxu0
        %v8392 = vpop.f32.mrf.mxu0
        %v8393 = vadd.f32 0.0, %v8392
        %v8394 = vpop.f32.mrf.mxu0
        %8395 = vmatprep.mubr.bf16.mxu0 0
        %8396 = vmatmul.mubr.bf16.gmra.mxu0 %v8253
        %v8397 = vpop.f32.mrf.mxu0
        %v8398 = vadd.f32 0.0, %v8397
        %v8399 = vpop.f32.mrf.mxu0
        %v8400 = vpop.f32.mrf.mxu0
        %v8401 = vadd.f32 0.0, %v8400
        %v8402 = vpop.f32.mrf.mxu0
        %8403 = vmatprep.mubr.bf16.mxu0 0
        %8404 = vmatmul.mubr.bf16.gmra.mxu0 %v8256
        %v8405 = vpop.f32.mrf.mxu0
        %v8406 = vadd.f32 0.0, %v8405
        %v8407 = vpop.f32.mrf.mxu0
        %v8408 = vpop.f32.mrf.mxu0
        %v8409 = vadd.f32 0.0, %v8408
        %v8410 = vpop.f32.mrf.mxu0
        %8411 = vmatprep.mubr.bf16.mxu0 0
        %8412 = vmatmul.mubr.bf16.gmra.mxu0 %v8259
        %v8413 = vpop.f32.mrf.mxu0
        %v8414 = vadd.f32 0.0, %v8413
        %v8415 = vpop.f32.mrf.mxu0
        %v8416 = vpop.f32.mrf.mxu0
        %v8417 = vadd.f32 0.0, %v8416
        %v8418 = vpop.f32.mrf.mxu0
        %8419 = vmatprep.mubr.bf16.mxu0 0
        %8420 = vmatmul.mubr.bf16.gmra.mxu0 %v8262
        %v8421 = vpop.f32.mrf.mxu0
        %v8422 = vadd.f32 0.0, %v8421
        %v8423 = vpop.f32.mrf.mxu0
        %v8424 = vpop.f32.mrf.mxu0
        %v8425 = vadd.f32 0.0, %v8424
        %v8426 = vpop.f32.mrf.mxu0
        %8427 = vmatprep.mubr.bf16.mxu0 0
        %8428 = vmatmul.mubr.bf16.gmra.mxu0 %v8265
        %v8429 = vpop.f32.mrf.mxu0
        %v8430 = vadd.f32 0.0, %v8429
        %v8431 = vpop.f32.mrf.mxu0
        %v8432 = vpop.f32.mrf.mxu0
        %v8433 = vadd.f32 0.0, %v8432
        %v8434 = vpop.f32.mrf.mxu0
        %8435 = vmatprep.mubr.bf16.mxu0 0
        %8436 = vmatmul.mubr.bf16.gmra.mxu0 %v8268
        %v8437 = vpop.f32.mrf.mxu0
        %v8438 = vadd.f32 0.0, %v8437
        %v8439 = vpop.f32.mrf.mxu0
        %v8440 = vpop.f32.mrf.mxu0
        %v8441 = vadd.f32 0.0, %v8440
        %v8442 = vpop.f32.mrf.mxu0
        %8443 = vmatprep.mubr.bf16.mxu0 0
        %8444 = vmatmul.mubr.bf16.gmra.mxu0 %v8271
        %v8445 = vpop.f32.mrf.mxu0
        %v8446 = vadd.f32 0.0, %v8445
        %v8447 = vpop.f32.mrf.mxu0
        %v8448 = vpop.f32.mrf.mxu0
        %v8449 = vadd.f32 0.0, %v8448
        %v8450 = vpop.f32.mrf.mxu0
        %8451 = vmatprep.mubr.bf16.mxu0 0
        %8452 = vmatmul.mubr.bf16.gmra.mxu0 %v8274
        %v8453 = vpop.f32.mrf.mxu0
        %v8454 = vadd.f32 0.0, %v8453
        %v8455 = vpop.f32.mrf.mxu0
        %v8456 = vpop.f32.mrf.mxu0
        %v8457 = vadd.f32 0.0, %v8456
        %v8458 = vpop.f32.mrf.mxu0
        %8459 = vmatprep.mubr.bf16.mxu0 0
        %8460 = vmatmul.mubr.bf16.gmra.mxu0 %v8277
        %v8461 = vpop.f32.mrf.mxu0
        %v8462 = vadd.f32 0.0, %v8461
        %v8463 = vpop.f32.mrf.mxu0
        %v8464 = vpop.f32.mrf.mxu0
        %v8465 = vadd.f32 0.0, %v8464
        %v8466 = vpop.f32.mrf.mxu0
        %8467 = vmatprep.mubr.bf16.mxu0 0
        %8468 = vmatmul.mubr.bf16.gmra.mxu0 %v8280
        %v8469 = vpop.f32.mrf.mxu0
        %v8470 = vadd.f32 0.0, %v8469
        %v8471 = vpop.f32.mrf.mxu0
        %v8472 = vpop.f32.mrf.mxu0
        %v8473 = vadd.f32 0.0, %v8472
        %v8474 = vpop.f32.mrf.mxu0
        %8475 = vmatprep.mubr.bf16.mxu0 0
        %8476 = vmatmul.mubr.bf16.gmra.mxu0 %v8283
        %v8477 = vpop.f32.mrf.mxu0
        %v8478 = vadd.f32 0.0, %v8477
        %v8479 = vpop.f32.mrf.mxu0
        %v8480 = vpop.f32.mrf.mxu0
        %v8481 = vadd.f32 0.0, %v8480
        %v8482 = vpop.f32.mrf.mxu0
        %8483 = vmatprep.mubr.bf16.mxu0 0
        %8484 = vmatmul.mubr.bf16.gmra.mxu0 %v8286
        %v8485 = vpop.f32.mrf.mxu0
        %v8486 = vadd.f32 0.0, %v8485
        %v8487 = vpop.f32.mrf.mxu0
        %v8488 = vpop.f32.mrf.mxu0
        %v8489 = vadd.f32 0.0, %v8488
        %v8490 = vpop.f32.mrf.mxu0
        %8491 = vmatprep.mubr.bf16.mxu0 0
        %8492 = vmatmul.mubr.bf16.gmra.mxu0 %v8289
        %v8493 = vpop.f32.mrf.mxu0
        %v8494 = vadd.f32 0.0, %v8493
        %v8495 = vpop.f32.mrf.mxu0
        %v8496 = vpop.f32.mrf.mxu0
        %v8497 = vadd.f32 0.0, %v8496
        %v8498 = vpop.f32.mrf.mxu0
        %8499 = vmatprep.mubr.bf16.mxu0 0
        %8500 = vmatmul.mubr.bf16.gmra.mxu0 %v8292
        %v8501 = vpop.f32.mrf.mxu0
        %v8502 = vadd.f32 0.0, %v8501
        %v8503 = vpop.f32.mrf.mxu0
        %v8504 = vpop.f32.mrf.mxu0
        %v8505 = vadd.f32 0.0, %v8504
        %v8506 = vpop.f32.mrf.mxu0
        %8507 = vmatprep.mubr.bf16.mxu0 0
        %8508 = vmatmul.mubr.bf16.gmra.mxu0 %v8295
        %v8509 = vpop.f32.mrf.mxu0
        %v8510 = vadd.f32 0.0, %v8509
        %v8511 = vpop.f32.mrf.mxu0
        %v8512 = vpop.f32.mrf.mxu0
        %v8513 = vadd.f32 0.0, %v8512
        %v8514 = vpop.f32.mrf.mxu0
        %8515 = vmatprep.mubr.bf16.mxu0 0
        %8516 = vmatmul.mubr.bf16.gmra.mxu0 %v8298
        %v8517 = vpop.f32.mrf.mxu0
        %v8518 = vadd.f32 0.0, %v8517
        %v8519 = vpop.f32.mrf.mxu0
        %v8520 = vpop.f32.mrf.mxu0
        %v8521 = vadd.f32 0.0, %v8520
        %v8522 = vpop.f32.mrf.mxu0
        %8523 = vmatprep.mubr.bf16.mxu0 0
        %8524 = vmatmul.mubr.bf16.gmra.mxu0 %v8301
        %v8525 = vpop.f32.mrf.mxu0
        %v8526 = vadd.f32 0.0, %v8525
        %v8527 = vpop.f32.mrf.mxu0
        %v8528 = vpop.f32.mrf.mxu0
        %v8529 = vadd.f32 0.0, %v8528
        %v8530 = vpop.f32.mrf.mxu0
        %8531 = vmatprep.mubr.bf16.mxu0 0
        %8532 = vmatmul.mubr.bf16.gmra.mxu0 %v8304
        %v8533 = vpop.f32.mrf.mxu0
        %v8534 = vadd.f32 0.0, %v8533
        %v8535 = vpop.f32.mrf.mxu0
        %v8536 = vpop.f32.mrf.mxu0
        %v8537 = vadd.f32 0.0, %v8536
        %v8538 = vpop.f32.mrf.mxu0
        %8539 = vmatprep.mubr.bf16.mxu0 0
        %8540 = vmatmul.mubr.bf16.gmra.mxu0 %v8307
        %v8541 = vpop.f32.mrf.mxu0
        %v8542 = vadd.f32 0.0, %v8541
        %v8543 = vpop.f32.mrf.mxu0
        %v8544 = vpop.f32.mrf.mxu0
        %v8545 = vadd.f32 0.0, %v8544
        %v8546 = vpop.f32.mrf.mxu0
        %8547 = vmatprep.mubr.bf16.mxu0 0
        %8548 = vmatmul.mubr.bf16.gmra.mxu0 %v8310
        %v8549 = vpop.f32.mrf.mxu0
        %v8550 = vadd.f32 0.0, %v8549
        %v8551 = vpop.f32.mrf.mxu0
        %v8552 = vpop.f32.mrf.mxu0
        %v8553 = vadd.f32 0.0, %v8552
        %v8554 = vpop.f32.mrf.mxu0
        %8555 = vmatprep.mubr.bf16.mxu0 0
        %8556 = vmatmul.mubr.bf16.gmra.mxu0 %v8313
        %v8557 = vpop.f32.mrf.mxu0
        %v8558 = vadd.f32 0.0, %v8557
        %v8559 = vpop.f32.mrf.mxu0
        %v8560 = vpop.f32.mrf.mxu0
        %v8561 = vadd.f32 0.0, %v8560
        %v8562 = vpop.f32.mrf.mxu0
        %8563 = vmatprep.mubr.bf16.mxu0 0
        %8564 = vmatmul.mubr.bf16.gmra.mxu0 %v8316
        %v8565 = vpop.f32.mrf.mxu0
        %v8566 = vadd.f32 0.0, %v8565
        %v8567 = vpop.f32.mrf.mxu0
        %v8568 = vpop.f32.mrf.mxu0
        %v8569 = vadd.f32 0.0, %v8568
        %v8570 = vpop.f32.mrf.mxu0
        %8571 = vmatprep.mubr.bf16.mxu0 0
        %8572 = vmatmul.mubr.bf16.gmra.mxu0 %v8319
        %v8573 = vpop.f32.mrf.mxu0
        %v8574 = vadd.f32 0.0, %v8573
        %v8575 = vpop.f32.mrf.mxu0
        %v8576 = vpop.f32.mrf.mxu0
        %v8577 = vadd.f32 0.0, %v8576
        %v8578 = vpop.f32.mrf.mxu0
        %8579 = vmatprep.mubr.bf16.mxu0 0
        %8580 = vmatmul.mubr.bf16.gmra.mxu0 %v8322
        %v8581 = vpop.f32.mrf.mxu0
        %v8582 = vadd.f32 0.0, %v8581
        %v8583 = vpop.f32.mrf.mxu0
        %v8584 = vpop.f32.mrf.mxu0
        %v8585 = vadd.f32 0.0, %v8584
        %v8586 = vpop.f32.mrf.mxu0
        %8587 = vmatprep.mubr.bf16.mxu0 0
        %8588 = vmatmul.mubr.bf16.gmra.mxu0 %v8325
        %v8589 = vpop.f32.mrf.mxu0
        %v8590 = vadd.f32 0.0, %v8589
        %v8591 = vpop.f32.mrf.mxu0
        %v8592 = vpop.f32.mrf.mxu0
        %v8593 = vadd.f32 0.0, %v8592
        %v8594 = vpop.f32.mrf.mxu0
        %8595 = vmatprep.mubr.bf16.mxu0 0
        %8596 = vmatmul.mubr.bf16.gmra.mxu0 %v8328
        %v8597 = vpop.f32.mrf.mxu0
        %v8598 = vadd.f32 0.0, %v8597
        %v8599 = vpop.f32.mrf.mxu0
        %v8600 = vpop.f32.mrf.mxu0
        %v8601 = vadd.f32 0.0, %v8600
        %v8602 = vpop.f32.mrf.mxu0
        %8603 = vmatprep.mubr.bf16.mxu0 0
        %8604 = vmatmul.mubr.bf16.gmra.mxu0 %v8331
        %v8605 = vpop.f32.mrf.mxu0
        %v8606 = vadd.f32 0.0, %v8605
        %v8607 = vpop.f32.mrf.mxu0
        %v8608 = vpop.f32.mrf.mxu0
        %v8609 = vadd.f32 0.0, %v8608
        %v8610 = vpop.f32.mrf.mxu0
        %8611 = vmatprep.mubr.bf16.mxu0 0
        %8612 = vmatmul.mubr.bf16.gmra.mxu0 %v8334
        %v8613 = vpop.f32.mrf.mxu0
        %v8614 = vadd.f32 0.0, %v8613
        %v8615 = vpop.f32.mrf.mxu0
        %v8616 = vpop.f32.mrf.mxu0
        %v8617 = vadd.f32 0.0, %v8616
        %v8618 = vpop.f32.mrf.mxu0
        %8619 = vmatprep.mubr.bf16.mxu0 0
        %8620 = vmatmul.mubr.bf16.gmra.mxu0 %v8337
        %v8621 = vpop.f32.mrf.mxu0
        %v8622 = vadd.f32 0.0, %v8621
        %v8623 = vpop.f32.mrf.mxu0
        %v8624 = vpop.f32.mrf.mxu0
        %v8625 = vadd.f32 0.0, %v8624
        %v8626 = vpop.f32.mrf.mxu0
        %8627 = vdwg.mxu0
        %v8628 = vadd.f32 %v8066, %v8374
        %v8629 = vadd.f32 %v8067, %v8377
        %v8630 = vadd.f32 %v8068, %v8382
        %v8631 = vadd.f32 %v8069, %v8385
        %v8632 = vadd.f32 %v8070, %v8390
        %v8633 = vadd.f32 %v8071, %v8393
        %v8634 = vadd.f32 %v8072, %v8398
        %v8635 = vadd.f32 %v8073, %v8401
        %v8636 = vadd.f32 %v8074, %v8406
        %v8637 = vadd.f32 %v8075, %v8409
        %v8638 = vadd.f32 %v8076, %v8414
        %v8639 = vadd.f32 %v8077, %v8417
        %v8640 = vadd.f32 %v8078, %v8422
        %v8641 = vadd.f32 %v8079, %v8425
        %v8642 = vadd.f32 %v8080, %v8430
        %v8643 = vadd.f32 %v8081, %v8433
        %v8644 = vadd.f32 %v8082, %v8438
        %v8645 = vadd.f32 %v8083, %v8441
        %v8646 = vadd.f32 %v8084, %v8446
        %v8647 = vadd.f32 %v8085, %v8449
        %v8648 = vadd.f32 %v8086, %v8454
        %v8649 = vadd.f32 %v8087, %v8457
        %v8650 = vadd.f32 %v8088, %v8462
        %v8651 = vadd.f32 %v8089, %v8465
        %v8652 = vadd.f32 %v8090, %v8470
        %v8653 = vadd.f32 %v8091, %v8473
        %v8654 = vadd.f32 %v8092, %v8478
        %v8655 = vadd.f32 %v8093, %v8481
        %v8656 = vadd.f32 %v8094, %v8486
        %v8657 = vadd.f32 %v8095, %v8489
        %v8658 = vadd.f32 %v8096, %v8494
        %v8659 = vadd.f32 %v8097, %v8497
        %v8660 = vadd.f32 %v8098, %v8502
        %v8661 = vadd.f32 %v8099, %v8505
        %v8662 = vadd.f32 %v8100, %v8510
        %v8663 = vadd.f32 %v8101, %v8513
        %v8664 = vadd.f32 %v8102, %v8518
        %v8665 = vadd.f32 %v8103, %v8521
        %v8666 = vadd.f32 %v8104, %v8526
        %v8667 = vadd.f32 %v8105, %v8529
        %v8668 = vadd.f32 %v8106, %v8534
        %v8669 = vadd.f32 %v8107, %v8537
        %v8670 = vadd.f32 %v8108, %v8542
        %v8671 = vadd.f32 %v8109, %v8545
        %v8672 = vadd.f32 %v8110, %v8550
        %v8673 = vadd.f32 %v8111, %v8553
        %v8674 = vadd.f32 %v8112, %v8558
        %v8675 = vadd.f32 %v8113, %v8561
        %v8676 = vadd.f32 %v8114, %v8566
        %v8677 = vadd.f32 %v8115, %v8569
        %v8678 = vadd.f32 %v8116, %v8574
        %v8679 = vadd.f32 %v8117, %v8577
        %v8680 = vadd.f32 %v8118, %v8582
        %v8681 = vadd.f32 %v8119, %v8585
        %v8682 = vadd.f32 %v8120, %v8590
        %v8683 = vadd.f32 %v8121, %v8593
        %v8684 = vadd.f32 %v8122, %v8598
        %v8685 = vadd.f32 %v8123, %v8601
        %v8686 = vadd.f32 %v8124, %v8606
        %v8687 = vadd.f32 %v8125, %v8609
        %v8688 = vadd.f32 %v8126, %v8614
        %v8689 = vadd.f32 %v8127, %v8617
        %v8690 = vadd.f32 %v8128, %v8622
        %v8691 = vadd.f32 %v8129, %v8625
        %v8692 = vld [vmem:[%s279 + $0x1] sm:$0xff]
        %v8693 = vld [vmem:[%s279 + $0x9] sm:$0xff]
        %v8694 = vld [vmem:[%s279 + $0x19] sm:$0xff]
        %v8695 = vld [vmem:[%s279 + $0x21] sm:$0xff]
        %v8696 = vld [vmem:[%s279 + $0x31] sm:$0xff]
        %v8697 = vld [vmem:[%s279 + $0x39] sm:$0xff]
        %v8698 = vld [vmem:[%s279 + $0x49] sm:$0xff]
        %v8699 = vld [vmem:[%s279 + $0x51] sm:$0xff]
        %v8700 = vld [vmem:[%s279 + $0x61] sm:$0xff]
        %v8701 = vld [vmem:[%s279 + $0x69] sm:$0xff]
        %v8702 = vld [vmem:[%s279 + $0x79] sm:$0xff]
        %v8703 = vld [vmem:[%s279 + $0x81] sm:$0xff]
        %v8704 = vld [vmem:[%s279 + $0x91] sm:$0xff]
        %v8705 = vld [vmem:[%s279 + $0x99] sm:$0xff]
        %v8706 = vld [vmem:[%s279 + $0xa9] sm:$0xff]
        %v8707 = vld [vmem:[%s279 + $0xb1] sm:$0xff]
        %v8708 = vld [vmem:[%s279 + $0xc1] sm:$0xff]
        %v8709 = vld [vmem:[%s279 + $0xc9] sm:$0xff]
        %v8710 = vld [vmem:[%s279 + $0xd9] sm:$0xff]
        %v8711 = vld [vmem:[%s279 + $0xe1] sm:$0xff]
        %v8712 = vld [vmem:[%s279 + $0xf1] sm:$0xff]
        %v8713 = vld [vmem:[%s279 + $0xf9] sm:$0xff]
        %v8714 = vld [vmem:[%s279 + $0x109] sm:$0xff]
        %v8715 = vld [vmem:[%s279 + $0x111] sm:$0xff]
        %v8716 = vld [vmem:[%s279 + $0x121] sm:$0xff]
        %v8717 = vld [vmem:[%s279 + $0x129] sm:$0xff]
        %v8718 = vld [vmem:[%s279 + $0x139] sm:$0xff]
        %v8719 = vld [vmem:[%s279 + $0x141] sm:$0xff]
        %v8720 = vld [vmem:[%s279 + $0x151] sm:$0xff]
        %v8721 = vld [vmem:[%s279 + $0x159] sm:$0xff]
        %v8722 = vld [vmem:[%s279 + $0x169] sm:$0xff]
        %v8723 = vld [vmem:[%s279 + $0x171] sm:$0xff]
        %v8724 = vld [vmem:[%s279 + $0x1b1] sm:$0xff]
        %v8725 = vld [vmem:[%s279 + $0x1b9] sm:$0xff]
        %v8726 = vld [vmem:[%s279 + $0x1c9] sm:$0xff]
        %v8727 = vld [vmem:[%s279 + $0x1d1] sm:$0xff]
        %v8728 = vld [vmem:[%s279 + $0x1e1] sm:$0xff]
        %v8729 = vld [vmem:[%s279 + $0x1e9] sm:$0xff]
        %v8730 = vld [vmem:[%s279 + $0x1f9] sm:$0xff]
        %v8731 = vld [vmem:[%s279 + $0x201] sm:$0xff]
        %v8732 = vld [vmem:[%s279 + $0x211] sm:$0xff]
        %v8733 = vld [vmem:[%s279 + $0x219] sm:$0xff]
        %v8734 = vld [vmem:[%s279 + $0x229] sm:$0xff]
        %v8735 = vld [vmem:[%s279 + $0x231] sm:$0xff]
        %v8736 = vld [vmem:[%s279 + $0x241] sm:$0xff]
        %v8737 = vld [vmem:[%s279 + $0x249] sm:$0xff]
        %v8738 = vld [vmem:[%s279 + $0x259] sm:$0xff]
        %v8739 = vld [vmem:[%s279 + $0x261] sm:$0xff]
        %v8740 = vld [vmem:[%s279 + $0x271] sm:$0xff]
        %v8741 = vld [vmem:[%s279 + $0x279] sm:$0xff]
        %v8742 = vld [vmem:[%s279 + $0x289] sm:$0xff]
        %v8743 = vld [vmem:[%s279 + $0x291] sm:$0xff]
        %v8744 = vld [vmem:[%s279 + $0x2a1] sm:$0xff]
        %v8745 = vld [vmem:[%s279 + $0x2a9] sm:$0xff]
        %v8746 = vld [vmem:[%s279 + $0x2b9] sm:$0xff]
        %v8747 = vld [vmem:[%s279 + $0x2c1] sm:$0xff]
        %v8748 = vld [vmem:[%s279 + $0x2d1] sm:$0xff]
        %v8749 = vld [vmem:[%s279 + $0x2d9] sm:$0xff]
        %v8750 = vld [vmem:[%s279 + $0x2e9] sm:$0xff]
        %v8751 = vld [vmem:[%s279 + $0x2f1] sm:$0xff]
        %v8752 = vld [vmem:[%s279 + $0x301] sm:$0xff]
        %v8753 = vld [vmem:[%s279 + $0x309] sm:$0xff]
        %v8754 = vld [vmem:[%s279 + $0x319] sm:$0xff]
        %v8755 = vld [vmem:[%s279 + $0x321] sm:$0xff]
        %v8756 = vpack.c.bf16 %v8693, %v8692
        %v8757 = vpack.c.bf16 %v8695, %v8694
        %v8758 = vpack.c.bf16 %v8697, %v8696
        %v8759 = vpack.c.bf16 %v8699, %v8698
        %v8760 = vpack.c.bf16 %v8701, %v8700
        %v8761 = vpack.c.bf16 %v8703, %v8702
        %v8762 = vpack.c.bf16 %v8705, %v8704
        %v8763 = vpack.c.bf16 %v8707, %v8706
        %v8764 = vpack.c.bf16 %v8709, %v8708
        %v8765 = vpack.c.bf16 %v8711, %v8710
        %v8766 = vpack.c.bf16 %v8713, %v8712
        %v8767 = vpack.c.bf16 %v8715, %v8714
        %v8768 = vpack.c.bf16 %v8717, %v8716
        %v8769 = vpack.c.bf16 %v8719, %v8718
        %v8770 = vpack.c.bf16 %v8721, %v8720
        %v8771 = vpack.c.bf16 %v8723, %v8722
        %v8772 = vpack.c.bf16 %v8725, %v8724
        %v8773 = vpack.c.bf16 %v8727, %v8726
        %v8774 = vpack.c.bf16 %v8729, %v8728
        %v8775 = vpack.c.bf16 %v8731, %v8730
        %v8776 = vpack.c.bf16 %v8733, %v8732
        %v8777 = vpack.c.bf16 %v8735, %v8734
        %v8778 = vpack.c.bf16 %v8737, %v8736
        %v8779 = vpack.c.bf16 %v8739, %v8738
        %v8780 = vpack.c.bf16 %v8741, %v8740
        %v8781 = vpack.c.bf16 %v8743, %v8742
        %v8782 = vpack.c.bf16 %v8745, %v8744
        %v8783 = vpack.c.bf16 %v8747, %v8746
        %v8784 = vpack.c.bf16 %v8749, %v8748
        %v8785 = vpack.c.bf16 %v8751, %v8750
        %v8786 = vpack.c.bf16 %v8753, %v8752
        %v8787 = vpack.c.bf16 %v8755, %v8754
        %s8788 = scalar_lea.vmem [#allocation9], 64
        %v8789 = vld [vmem:[%s8788] sm:$0xf]
        %v8790 = vld [vmem:[%s8788 + $0x4] sm:$0xf]
        %v8791 = vld [vmem:[%s8788 + $0x8] sm:$0xf]
        %v8792 = vld [vmem:[%s8788 + $0xc] sm:$0xf]
        %v8797 = vunpack.c.l.b16 %v8789
        %v8798 = vunpack.c.l.b16 %v8790
        %v8799 = vunpack.c.l.b16 %v8791
        %v8800 = vunpack.c.l.b16 %v8792
        %v8801 = vpack.c.b16 %v8798, %v8797
        %v8802 = vpack.c.b16 %v8800, %v8799
        %v8806 = vsel %vm6508, %v8756, 0
        %v8809 = vsel %vm6508, %v8757, 0
        %v8812 = vsel %vm6508, %v8758, 0
        %v8815 = vsel %vm6508, %v8759, 0
        %v8818 = vsel %vm6508, %v8760, 0
        %v8821 = vsel %vm6508, %v8761, 0
        %v8824 = vsel %vm6508, %v8762, 0
        %v8827 = vsel %vm6508, %v8763, 0
        %v8830 = vsel %vm6508, %v8764, 0
        %v8833 = vsel %vm6508, %v8765, 0
        %v8836 = vsel %vm6508, %v8766, 0
        %v8839 = vsel %vm6508, %v8767, 0
        %v8842 = vsel %vm6508, %v8768, 0
        %v8845 = vsel %vm6508, %v8769, 0
        %v8848 = vsel %vm6508, %v8770, 0
        %v8851 = vsel %vm6508, %v8771, 0
        %v8854 = vsel %vm6508, %v8772, 0
        %v8857 = vsel %vm6508, %v8773, 0
        %v8860 = vsel %vm6508, %v8774, 0
        %v8863 = vsel %vm6508, %v8775, 0
        %v8866 = vsel %vm6508, %v8776, 0
        %v8869 = vsel %vm6508, %v8777, 0
        %v8872 = vsel %vm6508, %v8778, 0
        %v8875 = vsel %vm6508, %v8779, 0
        %v8878 = vsel %vm6508, %v8780, 0
        %v8881 = vsel %vm6508, %v8781, 0
        %v8884 = vsel %vm6508, %v8782, 0
        %v8887 = vsel %vm6508, %v8783, 0
        %v8890 = vsel %vm6508, %v8784, 0
        %v8893 = vsel %vm6508, %v8785, 0
        %v8896 = vsel %vm6508, %v8786, 0
        %v8899 = vsel %vm6508, %v8787, 0
        %8901 = vmatprep.subr.bf16.mxu0 0
        %8902 = vmatpush1.bf16.msra.mxu0 0
        %8903 = vmatprep.subr.bf16.mxu0 0
        %8904 = vmatpush1.bf16.msra.mxu0 0
        %8905 = vmatprep.subr.bf16.mxu0 0
        %8906 = vmatpush1.bf16.msra.mxu0 0
        %8907 = vmatprep.subr.bf16.mxu0 0
        %8908 = vmatpush1.bf16.msra.mxu0 0
        %8909 = vmatprep.subr.bf16.mxu0 0
        %8910 = vmatpush1.bf16.msra.mxu0 0
        %8911 = vmatprep.subr.bf16.mxu0 0
        %8912 = vmatpush1.bf16.msra.mxu0 0
        %8913 = vmatprep.subr.bf16.mxu0 0
        %8914 = vmatpush1.bf16.msra.mxu0 %v8802
        %8915 = vmatprep.subr.bf16.mxu0 0
        %8916 = vmatpush1.bf16.msra.mxu0 %v8801
        %8917 = vmatprep.subr.bf16.mxu0 0
        %8918 = vmatpush2.bf16.msra.mxu0 0
        %8919 = vmatprep.subr.bf16.mxu0 0
        %8920 = vmatpush2.bf16.msra.mxu0 0
        %8921 = vmatprep.subr.bf16.mxu0 0
        %8922 = vmatpush2.bf16.msra.mxu0 0
        %8923 = vmatprep.subr.bf16.mxu0 0
        %8924 = vmatpush2.bf16.msra.mxu0 0
        %8925 = vmatprep.subr.bf16.mxu0 0
        %8926 = vmatpush2.bf16.msra.mxu0 0
        %8927 = vmatprep.subr.bf16.mxu0 0
        %8928 = vmatpush2.bf16.msra.mxu0 0
        %8929 = vmatprep.subr.bf16.mxu0 0
        %8930 = vmatpush2.bf16.msra.mxu0 0
        %8931 = vmatprep.subr.bf16.mxu0 0
        %8932 = vmatpush2.bf16.msra.mxu0 0
        %8933 = vmatprep.mubr.bf16.mxu0 0
        %8934 = vmatmul.mubr.bf16.gmra.mxu0 %v8806
        %v8935 = vpop.f32.mrf.mxu0
        %v8936 = vadd.f32 0.0, %v8935
        %v8937 = vpop.f32.mrf.mxu0
        %v8938 = vpop.f32.mrf.mxu0
        %v8939 = vadd.f32 0.0, %v8938
        %v8940 = vpop.f32.mrf.mxu0
        %8941 = vmatprep.mubr.bf16.mxu0 0
        %8942 = vmatmul.mubr.bf16.gmra.mxu0 %v8809
        %v8943 = vpop.f32.mrf.mxu0
        %v8944 = vadd.f32 0.0, %v8943
        %v8945 = vpop.f32.mrf.mxu0
        %v8946 = vpop.f32.mrf.mxu0
        %v8947 = vadd.f32 0.0, %v8946
        %v8948 = vpop.f32.mrf.mxu0
        %8949 = vmatprep.mubr.bf16.mxu0 0
        %8950 = vmatmul.mubr.bf16.gmra.mxu0 %v8812
        %v8951 = vpop.f32.mrf.mxu0
        %v8952 = vadd.f32 0.0, %v8951
        %v8953 = vpop.f32.mrf.mxu0
        %v8954 = vpop.f32.mrf.mxu0
        %v8955 = vadd.f32 0.0, %v8954
        %v8956 = vpop.f32.mrf.mxu0
        %8957 = vmatprep.mubr.bf16.mxu0 0
        %8958 = vmatmul.mubr.bf16.gmra.mxu0 %v8815
        %v8959 = vpop.f32.mrf.mxu0
        %v8960 = vadd.f32 0.0, %v8959
        %v8961 = vpop.f32.mrf.mxu0
        %v8962 = vpop.f32.mrf.mxu0
        %v8963 = vadd.f32 0.0, %v8962
        %v8964 = vpop.f32.mrf.mxu0
        %8965 = vmatprep.mubr.bf16.mxu0 0
        %8966 = vmatmul.mubr.bf16.gmra.mxu0 %v8818
        %v8967 = vpop.f32.mrf.mxu0
        %v8968 = vadd.f32 0.0, %v8967
        %v8969 = vpop.f32.mrf.mxu0
        %v8970 = vpop.f32.mrf.mxu0
        %v8971 = vadd.f32 0.0, %v8970
        %v8972 = vpop.f32.mrf.mxu0
        %8973 = vmatprep.mubr.bf16.mxu0 0
        %8974 = vmatmul.mubr.bf16.gmra.mxu0 %v8821
        %v8975 = vpop.f32.mrf.mxu0
        %v8976 = vadd.f32 0.0, %v8975
        %v8977 = vpop.f32.mrf.mxu0
        %v8978 = vpop.f32.mrf.mxu0
        %v8979 = vadd.f32 0.0, %v8978
        %v8980 = vpop.f32.mrf.mxu0
        %8981 = vmatprep.mubr.bf16.mxu0 0
        %8982 = vmatmul.mubr.bf16.gmra.mxu0 %v8824
        %v8983 = vpop.f32.mrf.mxu0
        %v8984 = vadd.f32 0.0, %v8983
        %v8985 = vpop.f32.mrf.mxu0
        %v8986 = vpop.f32.mrf.mxu0
        %v8987 = vadd.f32 0.0, %v8986
        %v8988 = vpop.f32.mrf.mxu0
        %8989 = vmatprep.mubr.bf16.mxu0 0
        %8990 = vmatmul.mubr.bf16.gmra.mxu0 %v8827
        %v8991 = vpop.f32.mrf.mxu0
        %v8992 = vadd.f32 0.0, %v8991
        %v8993 = vpop.f32.mrf.mxu0
        %v8994 = vpop.f32.mrf.mxu0
        %v8995 = vadd.f32 0.0, %v8994
        %v8996 = vpop.f32.mrf.mxu0
        %8997 = vmatprep.mubr.bf16.mxu0 0
        %8998 = vmatmul.mubr.bf16.gmra.mxu0 %v8830
        %v8999 = vpop.f32.mrf.mxu0
        %v9000 = vadd.f32 0.0, %v8999
        %v9001 = vpop.f32.mrf.mxu0
        %v9002 = vpop.f32.mrf.mxu0
        %v9003 = vadd.f32 0.0, %v9002
        %v9004 = vpop.f32.mrf.mxu0
        %9005 = vmatprep.mubr.bf16.mxu0 0
        %9006 = vmatmul.mubr.bf16.gmra.mxu0 %v8833
        %v9007 = vpop.f32.mrf.mxu0
        %v9008 = vadd.f32 0.0, %v9007
        %v9009 = vpop.f32.mrf.mxu0
        %v9010 = vpop.f32.mrf.mxu0
        %v9011 = vadd.f32 0.0, %v9010
        %v9012 = vpop.f32.mrf.mxu0
        %9013 = vmatprep.mubr.bf16.mxu0 0
        %9014 = vmatmul.mubr.bf16.gmra.mxu0 %v8836
        %v9015 = vpop.f32.mrf.mxu0
        %v9016 = vadd.f32 0.0, %v9015
        %v9017 = vpop.f32.mrf.mxu0
        %v9018 = vpop.f32.mrf.mxu0
        %v9019 = vadd.f32 0.0, %v9018
        %v9020 = vpop.f32.mrf.mxu0
        %9021 = vmatprep.mubr.bf16.mxu0 0
        %9022 = vmatmul.mubr.bf16.gmra.mxu0 %v8839
        %v9023 = vpop.f32.mrf.mxu0
        %v9024 = vadd.f32 0.0, %v9023
        %v9025 = vpop.f32.mrf.mxu0
        %v9026 = vpop.f32.mrf.mxu0
        %v9027 = vadd.f32 0.0, %v9026
        %v9028 = vpop.f32.mrf.mxu0
        %9029 = vmatprep.mubr.bf16.mxu0 0
        %9030 = vmatmul.mubr.bf16.gmra.mxu0 %v8842
        %v9031 = vpop.f32.mrf.mxu0
        %v9032 = vadd.f32 0.0, %v9031
        %v9033 = vpop.f32.mrf.mxu0
        %v9034 = vpop.f32.mrf.mxu0
        %v9035 = vadd.f32 0.0, %v9034
        %v9036 = vpop.f32.mrf.mxu0
        %9037 = vmatprep.mubr.bf16.mxu0 0
        %9038 = vmatmul.mubr.bf16.gmra.mxu0 %v8845
        %v9039 = vpop.f32.mrf.mxu0
        %v9040 = vadd.f32 0.0, %v9039
        %v9041 = vpop.f32.mrf.mxu0
        %v9042 = vpop.f32.mrf.mxu0
        %v9043 = vadd.f32 0.0, %v9042
        %v9044 = vpop.f32.mrf.mxu0
        %9045 = vmatprep.mubr.bf16.mxu0 0
        %9046 = vmatmul.mubr.bf16.gmra.mxu0 %v8848
        %v9047 = vpop.f32.mrf.mxu0
        %v9048 = vadd.f32 0.0, %v9047
        %v9049 = vpop.f32.mrf.mxu0
        %v9050 = vpop.f32.mrf.mxu0
        %v9051 = vadd.f32 0.0, %v9050
        %v9052 = vpop.f32.mrf.mxu0
        %9053 = vmatprep.mubr.bf16.mxu0 0
        %9054 = vmatmul.mubr.bf16.gmra.mxu0 %v8851
        %v9055 = vpop.f32.mrf.mxu0
        %v9056 = vadd.f32 0.0, %v9055
        %v9057 = vpop.f32.mrf.mxu0
        %v9058 = vpop.f32.mrf.mxu0
        %v9059 = vadd.f32 0.0, %v9058
        %v9060 = vpop.f32.mrf.mxu0
        %9061 = vmatprep.mubr.bf16.mxu0 0
        %9062 = vmatmul.mubr.bf16.gmra.mxu0 %v8854
        %v9063 = vpop.f32.mrf.mxu0
        %v9064 = vadd.f32 0.0, %v9063
        %v9065 = vpop.f32.mrf.mxu0
        %v9066 = vpop.f32.mrf.mxu0
        %v9067 = vadd.f32 0.0, %v9066
        %v9068 = vpop.f32.mrf.mxu0
        %9069 = vmatprep.mubr.bf16.mxu0 0
        %9070 = vmatmul.mubr.bf16.gmra.mxu0 %v8857
        %v9071 = vpop.f32.mrf.mxu0
        %v9072 = vadd.f32 0.0, %v9071
        %v9073 = vpop.f32.mrf.mxu0
        %v9074 = vpop.f32.mrf.mxu0
        %v9075 = vadd.f32 0.0, %v9074
        %v9076 = vpop.f32.mrf.mxu0
        %9077 = vmatprep.mubr.bf16.mxu0 0
        %9078 = vmatmul.mubr.bf16.gmra.mxu0 %v8860
        %v9079 = vpop.f32.mrf.mxu0
        %v9080 = vadd.f32 0.0, %v9079
        %v9081 = vpop.f32.mrf.mxu0
        %v9082 = vpop.f32.mrf.mxu0
        %v9083 = vadd.f32 0.0, %v9082
        %v9084 = vpop.f32.mrf.mxu0
        %9085 = vmatprep.mubr.bf16.mxu0 0
        %9086 = vmatmul.mubr.bf16.gmra.mxu0 %v8863
        %v9087 = vpop.f32.mrf.mxu0
        %v9088 = vadd.f32 0.0, %v9087
        %v9089 = vpop.f32.mrf.mxu0
        %v9090 = vpop.f32.mrf.mxu0
        %v9091 = vadd.f32 0.0, %v9090
        %v9092 = vpop.f32.mrf.mxu0
        %9093 = vmatprep.mubr.bf16.mxu0 0
        %9094 = vmatmul.mubr.bf16.gmra.mxu0 %v8866
        %v9095 = vpop.f32.mrf.mxu0
        %v9096 = vadd.f32 0.0, %v9095
        %v9097 = vpop.f32.mrf.mxu0
        %v9098 = vpop.f32.mrf.mxu0
        %v9099 = vadd.f32 0.0, %v9098
        %v9100 = vpop.f32.mrf.mxu0
        %9101 = vmatprep.mubr.bf16.mxu0 0
        %9102 = vmatmul.mubr.bf16.gmra.mxu0 %v8869
        %v9103 = vpop.f32.mrf.mxu0
        %v9104 = vadd.f32 0.0, %v9103
        %v9105 = vpop.f32.mrf.mxu0
        %v9106 = vpop.f32.mrf.mxu0
        %v9107 = vadd.f32 0.0, %v9106
        %v9108 = vpop.f32.mrf.mxu0
        %9109 = vmatprep.mubr.bf16.mxu0 0
        %9110 = vmatmul.mubr.bf16.gmra.mxu0 %v8872
        %v9111 = vpop.f32.mrf.mxu0
        %v9112 = vadd.f32 0.0, %v9111
        %v9113 = vpop.f32.mrf.mxu0
        %v9114 = vpop.f32.mrf.mxu0
        %v9115 = vadd.f32 0.0, %v9114
        %v9116 = vpop.f32.mrf.mxu0
        %9117 = vmatprep.mubr.bf16.mxu0 0
        %9118 = vmatmul.mubr.bf16.gmra.mxu0 %v8875
        %v9119 = vpop.f32.mrf.mxu0
        %v9120 = vadd.f32 0.0, %v9119
        %v9121 = vpop.f32.mrf.mxu0
        %v9122 = vpop.f32.mrf.mxu0
        %v9123 = vadd.f32 0.0, %v9122
        %v9124 = vpop.f32.mrf.mxu0
        %9125 = vmatprep.mubr.bf16.mxu0 0
        %9126 = vmatmul.mubr.bf16.gmra.mxu0 %v8878
        %v9127 = vpop.f32.mrf.mxu0
        %v9128 = vadd.f32 0.0, %v9127
        %v9129 = vpop.f32.mrf.mxu0
        %v9130 = vpop.f32.mrf.mxu0
        %v9131 = vadd.f32 0.0, %v9130
        %v9132 = vpop.f32.mrf.mxu0
        %9133 = vmatprep.mubr.bf16.mxu0 0
        %9134 = vmatmul.mubr.bf16.gmra.mxu0 %v8881
        %v9135 = vpop.f32.mrf.mxu0
        %v9136 = vadd.f32 0.0, %v9135
        %v9137 = vpop.f32.mrf.mxu0
        %v9138 = vpop.f32.mrf.mxu0
        %v9139 = vadd.f32 0.0, %v9138
        %v9140 = vpop.f32.mrf.mxu0
        %9141 = vmatprep.mubr.bf16.mxu0 0
        %9142 = vmatmul.mubr.bf16.gmra.mxu0 %v8884
        %v9143 = vpop.f32.mrf.mxu0
        %v9144 = vadd.f32 0.0, %v9143
        %v9145 = vpop.f32.mrf.mxu0
        %v9146 = vpop.f32.mrf.mxu0
        %v9147 = vadd.f32 0.0, %v9146
        %v9148 = vpop.f32.mrf.mxu0
        %9149 = vmatprep.mubr.bf16.mxu0 0
        %9150 = vmatmul.mubr.bf16.gmra.mxu0 %v8887
        %v9151 = vpop.f32.mrf.mxu0
        %v9152 = vadd.f32 0.0, %v9151
        %v9153 = vpop.f32.mrf.mxu0
        %v9154 = vpop.f32.mrf.mxu0
        %v9155 = vadd.f32 0.0, %v9154
        %v9156 = vpop.f32.mrf.mxu0
        %9157 = vmatprep.mubr.bf16.mxu0 0
        %9158 = vmatmul.mubr.bf16.gmra.mxu0 %v8890
        %v9159 = vpop.f32.mrf.mxu0
        %v9160 = vadd.f32 0.0, %v9159
        %v9161 = vpop.f32.mrf.mxu0
        %v9162 = vpop.f32.mrf.mxu0
        %v9163 = vadd.f32 0.0, %v9162
        %v9164 = vpop.f32.mrf.mxu0
        %9165 = vmatprep.mubr.bf16.mxu0 0
        %9166 = vmatmul.mubr.bf16.gmra.mxu0 %v8893
        %v9167 = vpop.f32.mrf.mxu0
        %v9168 = vadd.f32 0.0, %v9167
        %v9169 = vpop.f32.mrf.mxu0
        %v9170 = vpop.f32.mrf.mxu0
        %v9171 = vadd.f32 0.0, %v9170
        %v9172 = vpop.f32.mrf.mxu0
        %9173 = vmatprep.mubr.bf16.mxu0 0
        %9174 = vmatmul.mubr.bf16.gmra.mxu0 %v8896
        %v9175 = vpop.f32.mrf.mxu0
        %v9176 = vadd.f32 0.0, %v9175
        %v9177 = vpop.f32.mrf.mxu0
        %v9178 = vpop.f32.mrf.mxu0
        %v9179 = vadd.f32 0.0, %v9178
        %v9180 = vpop.f32.mrf.mxu0
        %9181 = vmatprep.mubr.bf16.mxu0 0
        %9182 = vmatmul.mubr.bf16.gmra.mxu0 %v8899
        %v9183 = vpop.f32.mrf.mxu0
        %v9184 = vadd.f32 0.0, %v9183
        %v9185 = vpop.f32.mrf.mxu0
        %v9186 = vpop.f32.mrf.mxu0
        %v9187 = vadd.f32 0.0, %v9186
        %v9188 = vpop.f32.mrf.mxu0
        %9189 = vdwg.mxu0
        %v9190 = vadd.f32 %v8628, %v8936
        %v9191 = vadd.f32 %v8629, %v8939
        %v9192 = vadd.f32 %v8630, %v8944
        %v9193 = vadd.f32 %v8631, %v8947
        %v9194 = vadd.f32 %v8632, %v8952
        %v9195 = vadd.f32 %v8633, %v8955
        %v9196 = vadd.f32 %v8634, %v8960
        %v9197 = vadd.f32 %v8635, %v8963
        %v9198 = vadd.f32 %v8636, %v8968
        %v9199 = vadd.f32 %v8637, %v8971
        %v9200 = vadd.f32 %v8638, %v8976
        %v9201 = vadd.f32 %v8639, %v8979
        %v9202 = vadd.f32 %v8640, %v8984
        %v9203 = vadd.f32 %v8641, %v8987
        %v9204 = vadd.f32 %v8642, %v8992
        %v9205 = vadd.f32 %v8643, %v8995
        %v9206 = vadd.f32 %v8644, %v9000
        %v9207 = vadd.f32 %v8645, %v9003
        %v9208 = vadd.f32 %v8646, %v9008
        %v9209 = vadd.f32 %v8647, %v9011
        %v9210 = vadd.f32 %v8648, %v9016
        %v9211 = vadd.f32 %v8649, %v9019
        %v9212 = vadd.f32 %v8650, %v9024
        %v9213 = vadd.f32 %v8651, %v9027
        %v9214 = vadd.f32 %v8652, %v9032
        %v9215 = vadd.f32 %v8653, %v9035
        %v9216 = vadd.f32 %v8654, %v9040
        %v9217 = vadd.f32 %v8655, %v9043
        %v9218 = vadd.f32 %v8656, %v9048
        %v9219 = vadd.f32 %v8657, %v9051
        %v9220 = vadd.f32 %v8658, %v9056
        %v9221 = vadd.f32 %v8659, %v9059
        %v9222 = vadd.f32 %v8660, %v9064
        %v9223 = vadd.f32 %v8661, %v9067
        %v9224 = vadd.f32 %v8662, %v9072
        %v9225 = vadd.f32 %v8663, %v9075
        %v9226 = vadd.f32 %v8664, %v9080
        %v9227 = vadd.f32 %v8665, %v9083
        %v9228 = vadd.f32 %v8666, %v9088
        %v9229 = vadd.f32 %v8667, %v9091
        %v9230 = vadd.f32 %v8668, %v9096
        %v9231 = vadd.f32 %v8669, %v9099
        %v9232 = vadd.f32 %v8670, %v9104
        %v9233 = vadd.f32 %v8671, %v9107
        %v9234 = vadd.f32 %v8672, %v9112
        %v9235 = vadd.f32 %v8673, %v9115
        %v9236 = vadd.f32 %v8674, %v9120
        %v9237 = vadd.f32 %v8675, %v9123
        %v9238 = vadd.f32 %v8676, %v9128
        %v9239 = vadd.f32 %v8677, %v9131
        %v9240 = vadd.f32 %v8678, %v9136
        %v9241 = vadd.f32 %v8679, %v9139
        %v9242 = vadd.f32 %v8680, %v9144
        %v9243 = vadd.f32 %v8681, %v9147
        %v9244 = vadd.f32 %v8682, %v9152
        %v9245 = vadd.f32 %v8683, %v9155
        %v9246 = vadd.f32 %v8684, %v9160
        %v9247 = vadd.f32 %v8685, %v9163
        %v9248 = vadd.f32 %v8686, %v9168
        %v9249 = vadd.f32 %v8687, %v9171
        %v9250 = vadd.f32 %v8688, %v9176
        %v9251 = vadd.f32 %v8689, %v9179
        %v9252 = vadd.f32 %v8690, %v9184
        %v9253 = vadd.f32 %v8691, %v9187
        %v9254 = vld [vmem:[%s279 + $0x2] sm:$0xff]
        %v9255 = vld [vmem:[%s279 + $0xa] sm:$0xff]
        %v9256 = vld [vmem:[%s279 + $0x1a] sm:$0xff]
        %v9257 = vld [vmem:[%s279 + $0x22] sm:$0xff]
        %v9258 = vld [vmem:[%s279 + $0x32] sm:$0xff]
        %v9259 = vld [vmem:[%s279 + $0x3a] sm:$0xff]
        %v9260 = vld [vmem:[%s279 + $0x4a] sm:$0xff]
        %v9261 = vld [vmem:[%s279 + $0x52] sm:$0xff]
        %v9262 = vld [vmem:[%s279 + $0x62] sm:$0xff]
        %v9263 = vld [vmem:[%s279 + $0x6a] sm:$0xff]
        %v9264 = vld [vmem:[%s279 + $0x7a] sm:$0xff]
        %v9265 = vld [vmem:[%s279 + $0x82] sm:$0xff]
        %v9266 = vld [vmem:[%s279 + $0x92] sm:$0xff]
        %v9267 = vld [vmem:[%s279 + $0x9a] sm:$0xff]
        %v9268 = vld [vmem:[%s279 + $0xaa] sm:$0xff]
        %v9269 = vld [vmem:[%s279 + $0xb2] sm:$0xff]
        %v9270 = vld [vmem:[%s279 + $0xc2] sm:$0xff]
        %v9271 = vld [vmem:[%s279 + $0xca] sm:$0xff]
        %v9272 = vld [vmem:[%s279 + $0xda] sm:$0xff]
        %v9273 = vld [vmem:[%s279 + $0xe2] sm:$0xff]
        %v9274 = vld [vmem:[%s279 + $0xf2] sm:$0xff]
        %v9275 = vld [vmem:[%s279 + $0xfa] sm:$0xff]
        %v9276 = vld [vmem:[%s279 + $0x10a] sm:$0xff]
        %v9277 = vld [vmem:[%s279 + $0x112] sm:$0xff]
        %v9278 = vld [vmem:[%s279 + $0x122] sm:$0xff]
        %v9279 = vld [vmem:[%s279 + $0x12a] sm:$0xff]
        %v9280 = vld [vmem:[%s279 + $0x13a] sm:$0xff]
        %v9281 = vld [vmem:[%s279 + $0x142] sm:$0xff]
        %v9282 = vld [vmem:[%s279 + $0x152] sm:$0xff]
        %v9283 = vld [vmem:[%s279 + $0x15a] sm:$0xff]
        %v9284 = vld [vmem:[%s279 + $0x16a] sm:$0xff]
        %v9285 = vld [vmem:[%s279 + $0x172] sm:$0xff]
        %v9286 = vld [vmem:[%s279 + $0x1b2] sm:$0xff]
        %v9287 = vld [vmem:[%s279 + $0x1ba] sm:$0xff]
        %v9288 = vld [vmem:[%s279 + $0x1ca] sm:$0xff]
        %v9289 = vld [vmem:[%s279 + $0x1d2] sm:$0xff]
        %v9290 = vld [vmem:[%s279 + $0x1e2] sm:$0xff]
        %v9291 = vld [vmem:[%s279 + $0x1ea] sm:$0xff]
        %v9292 = vld [vmem:[%s279 + $0x1fa] sm:$0xff]
        %v9293 = vld [vmem:[%s279 + $0x202] sm:$0xff]
        %v9294 = vld [vmem:[%s279 + $0x212] sm:$0xff]
        %v9295 = vld [vmem:[%s279 + $0x21a] sm:$0xff]
        %v9296 = vld [vmem:[%s279 + $0x22a] sm:$0xff]
        %v9297 = vld [vmem:[%s279 + $0x232] sm:$0xff]
        %v9298 = vld [vmem:[%s279 + $0x242] sm:$0xff]
        %v9299 = vld [vmem:[%s279 + $0x24a] sm:$0xff]
        %v9300 = vld [vmem:[%s279 + $0x25a] sm:$0xff]
        %v9301 = vld [vmem:[%s279 + $0x262] sm:$0xff]
        %v9302 = vld [vmem:[%s279 + $0x272] sm:$0xff]
        %v9303 = vld [vmem:[%s279 + $0x27a] sm:$0xff]
        %v9304 = vld [vmem:[%s279 + $0x28a] sm:$0xff]
        %v9305 = vld [vmem:[%s279 + $0x292] sm:$0xff]
        %v9306 = vld [vmem:[%s279 + $0x2a2] sm:$0xff]
        %v9307 = vld [vmem:[%s279 + $0x2aa] sm:$0xff]
        %v9308 = vld [vmem:[%s279 + $0x2ba] sm:$0xff]
        %v9309 = vld [vmem:[%s279 + $0x2c2] sm:$0xff]
        %v9310 = vld [vmem:[%s279 + $0x2d2] sm:$0xff]
        %v9311 = vld [vmem:[%s279 + $0x2da] sm:$0xff]
        %v9312 = vld [vmem:[%s279 + $0x2ea] sm:$0xff]
        %v9313 = vld [vmem:[%s279 + $0x2f2] sm:$0xff]
        %v9314 = vld [vmem:[%s279 + $0x302] sm:$0xff]
        %v9315 = vld [vmem:[%s279 + $0x30a] sm:$0xff]
        %v9316 = vld [vmem:[%s279 + $0x31a] sm:$0xff]
        %v9317 = vld [vmem:[%s279 + $0x322] sm:$0xff]
        %v9318 = vpack.c.bf16 %v9255, %v9254
        %v9319 = vpack.c.bf16 %v9257, %v9256
        %v9320 = vpack.c.bf16 %v9259, %v9258
        %v9321 = vpack.c.bf16 %v9261, %v9260
        %v9322 = vpack.c.bf16 %v9263, %v9262
        %v9323 = vpack.c.bf16 %v9265, %v9264
        %v9324 = vpack.c.bf16 %v9267, %v9266
        %v9325 = vpack.c.bf16 %v9269, %v9268
        %v9326 = vpack.c.bf16 %v9271, %v9270
        %v9327 = vpack.c.bf16 %v9273, %v9272
        %v9328 = vpack.c.bf16 %v9275, %v9274
        %v9329 = vpack.c.bf16 %v9277, %v9276
        %v9330 = vpack.c.bf16 %v9279, %v9278
        %v9331 = vpack.c.bf16 %v9281, %v9280
        %v9332 = vpack.c.bf16 %v9283, %v9282
        %v9333 = vpack.c.bf16 %v9285, %v9284
        %v9334 = vpack.c.bf16 %v9287, %v9286
        %v9335 = vpack.c.bf16 %v9289, %v9288
        %v9336 = vpack.c.bf16 %v9291, %v9290
        %v9337 = vpack.c.bf16 %v9293, %v9292
        %v9338 = vpack.c.bf16 %v9295, %v9294
        %v9339 = vpack.c.bf16 %v9297, %v9296
        %v9340 = vpack.c.bf16 %v9299, %v9298
        %v9341 = vpack.c.bf16 %v9301, %v9300
        %v9342 = vpack.c.bf16 %v9303, %v9302
        %v9343 = vpack.c.bf16 %v9305, %v9304
        %v9344 = vpack.c.bf16 %v9307, %v9306
        %v9345 = vpack.c.bf16 %v9309, %v9308
        %v9346 = vpack.c.bf16 %v9311, %v9310
        %v9347 = vpack.c.bf16 %v9313, %v9312
        %v9348 = vpack.c.bf16 %v9315, %v9314
        %v9349 = vpack.c.bf16 %v9317, %v9316
        %s9350 = scalar_lea.vmem [#allocation9], 80
        %v9351 = vld [vmem:[%s9350] sm:$0xf]
        %v9352 = vld [vmem:[%s9350 + $0x4] sm:$0xf]
        %v9353 = vld [vmem:[%s9350 + $0x8] sm:$0xf]
        %v9354 = vld [vmem:[%s9350 + $0xc] sm:$0xf]
        %v9359 = vunpack.c.l.b16 %v9351
        %v9360 = vunpack.c.l.b16 %v9352
        %v9361 = vunpack.c.l.b16 %v9353
        %v9362 = vunpack.c.l.b16 %v9354
        %v9363 = vpack.c.b16 %v9360, %v9359
        %v9364 = vpack.c.b16 %v9362, %v9361
        %v9368 = vsel %vm6508, %v9318, 0
        %v9371 = vsel %vm6508, %v9319, 0
        %v9374 = vsel %vm6508, %v9320, 0
        %v9377 = vsel %vm6508, %v9321, 0
        %v9380 = vsel %vm6508, %v9322, 0
        %v9383 = vsel %vm6508, %v9323, 0
        %v9386 = vsel %vm6508, %v9324, 0
        %v9389 = vsel %vm6508, %v9325, 0
        %v9392 = vsel %vm6508, %v9326, 0
        %v9395 = vsel %vm6508, %v9327, 0
        %v9398 = vsel %vm6508, %v9328, 0
        %v9401 = vsel %vm6508, %v9329, 0
        %v9404 = vsel %vm6508, %v9330, 0
        %v9407 = vsel %vm6508, %v9331, 0
        %v9410 = vsel %vm6508, %v9332, 0
        %v9413 = vsel %vm6508, %v9333, 0
        %v9416 = vsel %vm6508, %v9334, 0
        %v9419 = vsel %vm6508, %v9335, 0
        %v9422 = vsel %vm6508, %v9336, 0
        %v9425 = vsel %vm6508, %v9337, 0
        %v9428 = vsel %vm6508, %v9338, 0
        %v9431 = vsel %vm6508, %v9339, 0
        %v9434 = vsel %vm6508, %v9340, 0
        %v9437 = vsel %vm6508, %v9341, 0
        %v9440 = vsel %vm6508, %v9342, 0
        %v9443 = vsel %vm6508, %v9343, 0
        %v9446 = vsel %vm6508, %v9344, 0
        %v9449 = vsel %vm6508, %v9345, 0
        %v9452 = vsel %vm6508, %v9346, 0
        %v9455 = vsel %vm6508, %v9347, 0
        %v9458 = vsel %vm6508, %v9348, 0
        %v9461 = vsel %vm6508, %v9349, 0
        %9463 = vmatprep.subr.bf16.mxu0 0
        %9464 = vmatpush1.bf16.msra.mxu0 0
        %9465 = vmatprep.subr.bf16.mxu0 0
        %9466 = vmatpush1.bf16.msra.mxu0 0
        %9467 = vmatprep.subr.bf16.mxu0 0
        %9468 = vmatpush1.bf16.msra.mxu0 0
        %9469 = vmatprep.subr.bf16.mxu0 0
        %9470 = vmatpush1.bf16.msra.mxu0 0
        %9471 = vmatprep.subr.bf16.mxu0 0
        %9472 = vmatpush1.bf16.msra.mxu0 0
        %9473 = vmatprep.subr.bf16.mxu0 0
        %9474 = vmatpush1.bf16.msra.mxu0 0
        %9475 = vmatprep.subr.bf16.mxu0 0
        %9476 = vmatpush1.bf16.msra.mxu0 %v9364
        %9477 = vmatprep.subr.bf16.mxu0 0
        %9478 = vmatpush1.bf16.msra.mxu0 %v9363
        %9479 = vmatprep.subr.bf16.mxu0 0
        %9480 = vmatpush2.bf16.msra.mxu0 0
        %9481 = vmatprep.subr.bf16.mxu0 0
        %9482 = vmatpush2.bf16.msra.mxu0 0
        %9483 = vmatprep.subr.bf16.mxu0 0
        %9484 = vmatpush2.bf16.msra.mxu0 0
        %9485 = vmatprep.subr.bf16.mxu0 0
        %9486 = vmatpush2.bf16.msra.mxu0 0
        %9487 = vmatprep.subr.bf16.mxu0 0
        %9488 = vmatpush2.bf16.msra.mxu0 0
        %9489 = vmatprep.subr.bf16.mxu0 0
        %9490 = vmatpush2.bf16.msra.mxu0 0
        %9491 = vmatprep.subr.bf16.mxu0 0
        %9492 = vmatpush2.bf16.msra.mxu0 0
        %9493 = vmatprep.subr.bf16.mxu0 0
        %9494 = vmatpush2.bf16.msra.mxu0 0
        %9495 = vmatprep.mubr.bf16.mxu0 0
        %9496 = vmatmul.mubr.bf16.gmra.mxu0 %v9368
        %v9497 = vpop.f32.mrf.mxu0
        %v9498 = vadd.f32 0.0, %v9497
        %v9499 = vpop.f32.mrf.mxu0
        %v9500 = vpop.f32.mrf.mxu0
        %v9501 = vadd.f32 0.0, %v9500
        %v9502 = vpop.f32.mrf.mxu0
        %9503 = vmatprep.mubr.bf16.mxu0 0
        %9504 = vmatmul.mubr.bf16.gmra.mxu0 %v9371
        %v9505 = vpop.f32.mrf.mxu0
        %v9506 = vadd.f32 0.0, %v9505
        %v9507 = vpop.f32.mrf.mxu0
        %v9508 = vpop.f32.mrf.mxu0
        %v9509 = vadd.f32 0.0, %v9508
        %v9510 = vpop.f32.mrf.mxu0
        %9511 = vmatprep.mubr.bf16.mxu0 0
        %9512 = vmatmul.mubr.bf16.gmra.mxu0 %v9374
        %v9513 = vpop.f32.mrf.mxu0
        %v9514 = vadd.f32 0.0, %v9513
        %v9515 = vpop.f32.mrf.mxu0
        %v9516 = vpop.f32.mrf.mxu0
        %v9517 = vadd.f32 0.0, %v9516
        %v9518 = vpop.f32.mrf.mxu0
        %9519 = vmatprep.mubr.bf16.mxu0 0
        %9520 = vmatmul.mubr.bf16.gmra.mxu0 %v9377
        %v9521 = vpop.f32.mrf.mxu0
        %v9522 = vadd.f32 0.0, %v9521
        %v9523 = vpop.f32.mrf.mxu0
        %v9524 = vpop.f32.mrf.mxu0
        %v9525 = vadd.f32 0.0, %v9524
        %v9526 = vpop.f32.mrf.mxu0
        %9527 = vmatprep.mubr.bf16.mxu0 0
        %9528 = vmatmul.mubr.bf16.gmra.mxu0 %v9380
        %v9529 = vpop.f32.mrf.mxu0
        %v9530 = vadd.f32 0.0, %v9529
        %v9531 = vpop.f32.mrf.mxu0
        %v9532 = vpop.f32.mrf.mxu0
        %v9533 = vadd.f32 0.0, %v9532
        %v9534 = vpop.f32.mrf.mxu0
        %9535 = vmatprep.mubr.bf16.mxu0 0
        %9536 = vmatmul.mubr.bf16.gmra.mxu0 %v9383
        %v9537 = vpop.f32.mrf.mxu0
        %v9538 = vadd.f32 0.0, %v9537
        %v9539 = vpop.f32.mrf.mxu0
        %v9540 = vpop.f32.mrf.mxu0
        %v9541 = vadd.f32 0.0, %v9540
        %v9542 = vpop.f32.mrf.mxu0
        %9543 = vmatprep.mubr.bf16.mxu0 0
        %9544 = vmatmul.mubr.bf16.gmra.mxu0 %v9386
        %v9545 = vpop.f32.mrf.mxu0
        %v9546 = vadd.f32 0.0, %v9545
        %v9547 = vpop.f32.mrf.mxu0
        %v9548 = vpop.f32.mrf.mxu0
        %v9549 = vadd.f32 0.0, %v9548
        %v9550 = vpop.f32.mrf.mxu0
        %9551 = vmatprep.mubr.bf16.mxu0 0
        %9552 = vmatmul.mubr.bf16.gmra.mxu0 %v9389
        %v9553 = vpop.f32.mrf.mxu0
        %v9554 = vadd.f32 0.0, %v9553
        %v9555 = vpop.f32.mrf.mxu0
        %v9556 = vpop.f32.mrf.mxu0
        %v9557 = vadd.f32 0.0, %v9556
        %v9558 = vpop.f32.mrf.mxu0
        %9559 = vmatprep.mubr.bf16.mxu0 0
        %9560 = vmatmul.mubr.bf16.gmra.mxu0 %v9392
        %v9561 = vpop.f32.mrf.mxu0
        %v9562 = vadd.f32 0.0, %v9561
        %v9563 = vpop.f32.mrf.mxu0
        %v9564 = vpop.f32.mrf.mxu0
        %v9565 = vadd.f32 0.0, %v9564
        %v9566 = vpop.f32.mrf.mxu0
        %9567 = vmatprep.mubr.bf16.mxu0 0
        %9568 = vmatmul.mubr.bf16.gmra.mxu0 %v9395
        %v9569 = vpop.f32.mrf.mxu0
        %v9570 = vadd.f32 0.0, %v9569
        %v9571 = vpop.f32.mrf.mxu0
        %v9572 = vpop.f32.mrf.mxu0
        %v9573 = vadd.f32 0.0, %v9572
        %v9574 = vpop.f32.mrf.mxu0
        %9575 = vmatprep.mubr.bf16.mxu0 0
        %9576 = vmatmul.mubr.bf16.gmra.mxu0 %v9398
        %v9577 = vpop.f32.mrf.mxu0
        %v9578 = vadd.f32 0.0, %v9577
        %v9579 = vpop.f32.mrf.mxu0
        %v9580 = vpop.f32.mrf.mxu0
        %v9581 = vadd.f32 0.0, %v9580
        %v9582 = vpop.f32.mrf.mxu0
        %9583 = vmatprep.mubr.bf16.mxu0 0
        %9584 = vmatmul.mubr.bf16.gmra.mxu0 %v9401
        %v9585 = vpop.f32.mrf.mxu0
        %v9586 = vadd.f32 0.0, %v9585
        %v9587 = vpop.f32.mrf.mxu0
        %v9588 = vpop.f32.mrf.mxu0
        %v9589 = vadd.f32 0.0, %v9588
        %v9590 = vpop.f32.mrf.mxu0
        %9591 = vmatprep.mubr.bf16.mxu0 0
        %9592 = vmatmul.mubr.bf16.gmra.mxu0 %v9404
        %v9593 = vpop.f32.mrf.mxu0
        %v9594 = vadd.f32 0.0, %v9593
        %v9595 = vpop.f32.mrf.mxu0
        %v9596 = vpop.f32.mrf.mxu0
        %v9597 = vadd.f32 0.0, %v9596
        %v9598 = vpop.f32.mrf.mxu0
        %9599 = vmatprep.mubr.bf16.mxu0 0
        %9600 = vmatmul.mubr.bf16.gmra.mxu0 %v9407
        %v9601 = vpop.f32.mrf.mxu0
        %v9602 = vadd.f32 0.0, %v9601
        %v9603 = vpop.f32.mrf.mxu0
        %v9604 = vpop.f32.mrf.mxu0
        %v9605 = vadd.f32 0.0, %v9604
        %v9606 = vpop.f32.mrf.mxu0
        %9607 = vmatprep.mubr.bf16.mxu0 0
        %9608 = vmatmul.mubr.bf16.gmra.mxu0 %v9410
        %v9609 = vpop.f32.mrf.mxu0
        %v9610 = vadd.f32 0.0, %v9609
        %v9611 = vpop.f32.mrf.mxu0
        %v9612 = vpop.f32.mrf.mxu0
        %v9613 = vadd.f32 0.0, %v9612
        %v9614 = vpop.f32.mrf.mxu0
        %9615 = vmatprep.mubr.bf16.mxu0 0
        %9616 = vmatmul.mubr.bf16.gmra.mxu0 %v9413
        %v9617 = vpop.f32.mrf.mxu0
        %v9618 = vadd.f32 0.0, %v9617
        %v9619 = vpop.f32.mrf.mxu0
        %v9620 = vpop.f32.mrf.mxu0
        %v9621 = vadd.f32 0.0, %v9620
        %v9622 = vpop.f32.mrf.mxu0
        %9623 = vmatprep.mubr.bf16.mxu0 0
        %9624 = vmatmul.mubr.bf16.gmra.mxu0 %v9416
        %v9625 = vpop.f32.mrf.mxu0
        %v9626 = vadd.f32 0.0, %v9625
        %v9627 = vpop.f32.mrf.mxu0
        %v9628 = vpop.f32.mrf.mxu0
        %v9629 = vadd.f32 0.0, %v9628
        %v9630 = vpop.f32.mrf.mxu0
        %9631 = vmatprep.mubr.bf16.mxu0 0
        %9632 = vmatmul.mubr.bf16.gmra.mxu0 %v9419
        %v9633 = vpop.f32.mrf.mxu0
        %v9634 = vadd.f32 0.0, %v9633
        %v9635 = vpop.f32.mrf.mxu0
        %v9636 = vpop.f32.mrf.mxu0
        %v9637 = vadd.f32 0.0, %v9636
        %v9638 = vpop.f32.mrf.mxu0
        %9639 = vmatprep.mubr.bf16.mxu0 0
        %9640 = vmatmul.mubr.bf16.gmra.mxu0 %v9422
        %v9641 = vpop.f32.mrf.mxu0
        %v9642 = vadd.f32 0.0, %v9641
        %v9643 = vpop.f32.mrf.mxu0
        %v9644 = vpop.f32.mrf.mxu0
        %v9645 = vadd.f32 0.0, %v9644
        %v9646 = vpop.f32.mrf.mxu0
        %9647 = vmatprep.mubr.bf16.mxu0 0
        %9648 = vmatmul.mubr.bf16.gmra.mxu0 %v9425
        %v9649 = vpop.f32.mrf.mxu0
        %v9650 = vadd.f32 0.0, %v9649
        %v9651 = vpop.f32.mrf.mxu0
        %v9652 = vpop.f32.mrf.mxu0
        %v9653 = vadd.f32 0.0, %v9652
        %v9654 = vpop.f32.mrf.mxu0
        %9655 = vmatprep.mubr.bf16.mxu0 0
        %9656 = vmatmul.mubr.bf16.gmra.mxu0 %v9428
        %v9657 = vpop.f32.mrf.mxu0
        %v9658 = vadd.f32 0.0, %v9657
        %v9659 = vpop.f32.mrf.mxu0
        %v9660 = vpop.f32.mrf.mxu0
        %v9661 = vadd.f32 0.0, %v9660
        %v9662 = vpop.f32.mrf.mxu0
        %9663 = vmatprep.mubr.bf16.mxu0 0
        %9664 = vmatmul.mubr.bf16.gmra.mxu0 %v9431
        %v9665 = vpop.f32.mrf.mxu0
        %v9666 = vadd.f32 0.0, %v9665
        %v9667 = vpop.f32.mrf.mxu0
        %v9668 = vpop.f32.mrf.mxu0
        %v9669 = vadd.f32 0.0, %v9668
        %v9670 = vpop.f32.mrf.mxu0
        %9671 = vmatprep.mubr.bf16.mxu0 0
        %9672 = vmatmul.mubr.bf16.gmra.mxu0 %v9434
        %v9673 = vpop.f32.mrf.mxu0
        %v9674 = vadd.f32 0.0, %v9673
        %v9675 = vpop.f32.mrf.mxu0
        %v9676 = vpop.f32.mrf.mxu0
        %v9677 = vadd.f32 0.0, %v9676
        %v9678 = vpop.f32.mrf.mxu0
        %9679 = vmatprep.mubr.bf16.mxu0 0
        %9680 = vmatmul.mubr.bf16.gmra.mxu0 %v9437
        %v9681 = vpop.f32.mrf.mxu0
        %v9682 = vadd.f32 0.0, %v9681
        %v9683 = vpop.f32.mrf.mxu0
        %v9684 = vpop.f32.mrf.mxu0
        %v9685 = vadd.f32 0.0, %v9684
        %v9686 = vpop.f32.mrf.mxu0
        %9687 = vmatprep.mubr.bf16.mxu0 0
        %9688 = vmatmul.mubr.bf16.gmra.mxu0 %v9440
        %v9689 = vpop.f32.mrf.mxu0
        %v9690 = vadd.f32 0.0, %v9689
        %v9691 = vpop.f32.mrf.mxu0
        %v9692 = vpop.f32.mrf.mxu0
        %v9693 = vadd.f32 0.0, %v9692
        %v9694 = vpop.f32.mrf.mxu0
        %9695 = vmatprep.mubr.bf16.mxu0 0
        %9696 = vmatmul.mubr.bf16.gmra.mxu0 %v9443
        %v9697 = vpop.f32.mrf.mxu0
        %v9698 = vadd.f32 0.0, %v9697
        %v9699 = vpop.f32.mrf.mxu0
        %v9700 = vpop.f32.mrf.mxu0
        %v9701 = vadd.f32 0.0, %v9700
        %v9702 = vpop.f32.mrf.mxu0
        %9703 = vmatprep.mubr.bf16.mxu0 0
        %9704 = vmatmul.mubr.bf16.gmra.mxu0 %v9446
        %v9705 = vpop.f32.mrf.mxu0
        %v9706 = vadd.f32 0.0, %v9705
        %v9707 = vpop.f32.mrf.mxu0
        %v9708 = vpop.f32.mrf.mxu0
        %v9709 = vadd.f32 0.0, %v9708
        %v9710 = vpop.f32.mrf.mxu0
        %9711 = vmatprep.mubr.bf16.mxu0 0
        %9712 = vmatmul.mubr.bf16.gmra.mxu0 %v9449
        %v9713 = vpop.f32.mrf.mxu0
        %v9714 = vadd.f32 0.0, %v9713
        %v9715 = vpop.f32.mrf.mxu0
        %v9716 = vpop.f32.mrf.mxu0
        %v9717 = vadd.f32 0.0, %v9716
        %v9718 = vpop.f32.mrf.mxu0
        %9719 = vmatprep.mubr.bf16.mxu0 0
        %9720 = vmatmul.mubr.bf16.gmra.mxu0 %v9452
        %v9721 = vpop.f32.mrf.mxu0
        %v9722 = vadd.f32 0.0, %v9721
        %v9723 = vpop.f32.mrf.mxu0
        %v9724 = vpop.f32.mrf.mxu0
        %v9725 = vadd.f32 0.0, %v9724
        %v9726 = vpop.f32.mrf.mxu0
        %9727 = vmatprep.mubr.bf16.mxu0 0
        %9728 = vmatmul.mubr.bf16.gmra.mxu0 %v9455
        %v9729 = vpop.f32.mrf.mxu0
        %v9730 = vadd.f32 0.0, %v9729
        %v9731 = vpop.f32.mrf.mxu0
        %v9732 = vpop.f32.mrf.mxu0
        %v9733 = vadd.f32 0.0, %v9732
        %v9734 = vpop.f32.mrf.mxu0
        %9735 = vmatprep.mubr.bf16.mxu0 0
        %9736 = vmatmul.mubr.bf16.gmra.mxu0 %v9458
        %v9737 = vpop.f32.mrf.mxu0
        %v9738 = vadd.f32 0.0, %v9737
        %v9739 = vpop.f32.mrf.mxu0
        %v9740 = vpop.f32.mrf.mxu0
        %v9741 = vadd.f32 0.0, %v9740
        %v9742 = vpop.f32.mrf.mxu0
        %9743 = vmatprep.mubr.bf16.mxu0 0
        %9744 = vmatmul.mubr.bf16.gmra.mxu0 %v9461
        %v9745 = vpop.f32.mrf.mxu0
        %v9746 = vadd.f32 0.0, %v9745
        %v9747 = vpop.f32.mrf.mxu0
        %v9748 = vpop.f32.mrf.mxu0
        %v9749 = vadd.f32 0.0, %v9748
        %v9750 = vpop.f32.mrf.mxu0
        %9751 = vdwg.mxu0
        %v9752 = vadd.f32 %v9190, %v9498
        %v9753 = vadd.f32 %v9191, %v9501
        %v9754 = vadd.f32 %v9192, %v9506
        %v9755 = vadd.f32 %v9193, %v9509
        %v9756 = vadd.f32 %v9194, %v9514
        %v9757 = vadd.f32 %v9195, %v9517
        %v9758 = vadd.f32 %v9196, %v9522
        %v9759 = vadd.f32 %v9197, %v9525
        %v9760 = vadd.f32 %v9198, %v9530
        %v9761 = vadd.f32 %v9199, %v9533
        %v9762 = vadd.f32 %v9200, %v9538
        %v9763 = vadd.f32 %v9201, %v9541
        %v9764 = vadd.f32 %v9202, %v9546
        %v9765 = vadd.f32 %v9203, %v9549
        %v9766 = vadd.f32 %v9204, %v9554
        %v9767 = vadd.f32 %v9205, %v9557
        %v9768 = vadd.f32 %v9206, %v9562
        %v9769 = vadd.f32 %v9207, %v9565
        %v9770 = vadd.f32 %v9208, %v9570
        %v9771 = vadd.f32 %v9209, %v9573
        %v9772 = vadd.f32 %v9210, %v9578
        %v9773 = vadd.f32 %v9211, %v9581
        %v9774 = vadd.f32 %v9212, %v9586
        %v9775 = vadd.f32 %v9213, %v9589
        %v9776 = vadd.f32 %v9214, %v9594
        %v9777 = vadd.f32 %v9215, %v9597
        %v9778 = vadd.f32 %v9216, %v9602
        %v9779 = vadd.f32 %v9217, %v9605
        %v9780 = vadd.f32 %v9218, %v9610
        %v9781 = vadd.f32 %v9219, %v9613
        %v9782 = vadd.f32 %v9220, %v9618
        %v9783 = vadd.f32 %v9221, %v9621
        %v9784 = vadd.f32 %v9222, %v9626
        %v9785 = vadd.f32 %v9223, %v9629
        %v9786 = vadd.f32 %v9224, %v9634
        %v9787 = vadd.f32 %v9225, %v9637
        %v9788 = vadd.f32 %v9226, %v9642
        %v9789 = vadd.f32 %v9227, %v9645
        %v9790 = vadd.f32 %v9228, %v9650
        %v9791 = vadd.f32 %v9229, %v9653
        %v9792 = vadd.f32 %v9230, %v9658
        %v9793 = vadd.f32 %v9231, %v9661
        %v9794 = vadd.f32 %v9232, %v9666
        %v9795 = vadd.f32 %v9233, %v9669
        %v9796 = vadd.f32 %v9234, %v9674
        %v9797 = vadd.f32 %v9235, %v9677
        %v9798 = vadd.f32 %v9236, %v9682
        %v9799 = vadd.f32 %v9237, %v9685
        %v9800 = vadd.f32 %v9238, %v9690
        %v9801 = vadd.f32 %v9239, %v9693
        %v9802 = vadd.f32 %v9240, %v9698
        %v9803 = vadd.f32 %v9241, %v9701
        %v9804 = vadd.f32 %v9242, %v9706
        %v9805 = vadd.f32 %v9243, %v9709
        %v9806 = vadd.f32 %v9244, %v9714
        %v9807 = vadd.f32 %v9245, %v9717
        %v9808 = vadd.f32 %v9246, %v9722
        %v9809 = vadd.f32 %v9247, %v9725
        %v9810 = vadd.f32 %v9248, %v9730
        %v9811 = vadd.f32 %v9249, %v9733
        %v9812 = vadd.f32 %v9250, %v9738
        %v9813 = vadd.f32 %v9251, %v9741
        %v9814 = vadd.f32 %v9252, %v9746
        %v9815 = vadd.f32 %v9253, %v9749
        %v9816 = vld [vmem:[%s4389] sm:$0xff]
        %v9817 = vld [vmem:[%s4389 + $0x8] sm:$0xff]
        %v9818 = vld [vmem:[%s4389 + $0x18] sm:$0xff]
        %v9819 = vld [vmem:[%s4389 + $0x20] sm:$0xff]
        %v9820 = vld [vmem:[%s4389 + $0x30] sm:$0xff]
        %v9821 = vld [vmem:[%s4389 + $0x38] sm:$0xff]
        %v9822 = vld [vmem:[%s4389 + $0x48] sm:$0xff]
        %v9823 = vld [vmem:[%s4389 + $0x50] sm:$0xff]
        %v9824 = vld [vmem:[%s4389 + $0x60] sm:$0xff]
        %v9825 = vld [vmem:[%s4389 + $0x68] sm:$0xff]
        %v9826 = vld [vmem:[%s4389 + $0x78] sm:$0xff]
        %v9827 = vld [vmem:[%s4389 + $0x80] sm:$0xff]
        %v9828 = vld [vmem:[%s4389 + $0x90] sm:$0xff]
        %v9829 = vld [vmem:[%s4389 + $0x98] sm:$0xff]
        %v9830 = vld [vmem:[%s4389 + $0xa8] sm:$0xff]
        %v9831 = vld [vmem:[%s4389 + $0xb0] sm:$0xff]
        %v9832 = vld [vmem:[%s4389 + $0xc0] sm:$0xff]
        %v9833 = vld [vmem:[%s4389 + $0xc8] sm:$0xff]
        %v9834 = vld [vmem:[%s4389 + $0xd8] sm:$0xff]
        %v9835 = vld [vmem:[%s4389 + $0xe0] sm:$0xff]
        %v9836 = vld [vmem:[%s4389 + $0xf0] sm:$0xff]
        %v9837 = vld [vmem:[%s4389 + $0xf8] sm:$0xff]
        %v9838 = vld [vmem:[%s4389 + $0x108] sm:$0xff]
        %v9839 = vld [vmem:[%s4389 + $0x110] sm:$0xff]
        %v9840 = vld [vmem:[%s4389 + $0x120] sm:$0xff]
        %v9841 = vld [vmem:[%s4389 + $0x128] sm:$0xff]
        %v9842 = vld [vmem:[%s4389 + $0x138] sm:$0xff]
        %v9843 = vld [vmem:[%s4389 + $0x140] sm:$0xff]
        %v9844 = vld [vmem:[%s4389 + $0x150] sm:$0xff]
        %v9845 = vld [vmem:[%s4389 + $0x158] sm:$0xff]
        %v9846 = vld [vmem:[%s4389 + $0x168] sm:$0xff]
        %v9847 = vld [vmem:[%s4389 + $0x170] sm:$0xff]
        %v9848 = vld [vmem:[%s4389 + $0x1b0] sm:$0xff]
        %v9849 = vld [vmem:[%s4389 + $0x1b8] sm:$0xff]
        %v9850 = vld [vmem:[%s4389 + $0x1c8] sm:$0xff]
        %v9851 = vld [vmem:[%s4389 + $0x1d0] sm:$0xff]
        %v9852 = vld [vmem:[%s4389 + $0x1e0] sm:$0xff]
        %v9853 = vld [vmem:[%s4389 + $0x1e8] sm:$0xff]
        %v9854 = vld [vmem:[%s4389 + $0x1f8] sm:$0xff]
        %v9855 = vld [vmem:[%s4389 + $0x200] sm:$0xff]
        %v9856 = vld [vmem:[%s4389 + $0x210] sm:$0xff]
        %v9857 = vld [vmem:[%s4389 + $0x218] sm:$0xff]
        %v9858 = vld [vmem:[%s4389 + $0x228] sm:$0xff]
        %v9859 = vld [vmem:[%s4389 + $0x230] sm:$0xff]
        %v9860 = vld [vmem:[%s4389 + $0x240] sm:$0xff]
        %v9861 = vld [vmem:[%s4389 + $0x248] sm:$0xff]
        %v9862 = vld [vmem:[%s4389 + $0x258] sm:$0xff]
        %v9863 = vld [vmem:[%s4389 + $0x260] sm:$0xff]
        %v9864 = vld [vmem:[%s4389 + $0x270] sm:$0xff]
        %v9865 = vld [vmem:[%s4389 + $0x278] sm:$0xff]
        %v9866 = vld [vmem:[%s4389 + $0x288] sm:$0xff]
        %v9867 = vld [vmem:[%s4389 + $0x290] sm:$0xff]
        %v9868 = vld [vmem:[%s4389 + $0x2a0] sm:$0xff]
        %v9869 = vld [vmem:[%s4389 + $0x2a8] sm:$0xff]
        %v9870 = vld [vmem:[%s4389 + $0x2b8] sm:$0xff]
        %v9871 = vld [vmem:[%s4389 + $0x2c0] sm:$0xff]
        %v9872 = vld [vmem:[%s4389 + $0x2d0] sm:$0xff]
        %v9873 = vld [vmem:[%s4389 + $0x2d8] sm:$0xff]
        %v9874 = vld [vmem:[%s4389 + $0x2e8] sm:$0xff]
        %v9875 = vld [vmem:[%s4389 + $0x2f0] sm:$0xff]
        %v9876 = vld [vmem:[%s4389 + $0x300] sm:$0xff]
        %v9877 = vld [vmem:[%s4389 + $0x308] sm:$0xff]
        %v9878 = vld [vmem:[%s4389 + $0x318] sm:$0xff]
        %v9879 = vld [vmem:[%s4389 + $0x320] sm:$0xff]
        %v9880 = vpack.c.bf16 %v9817, %v9816
        %v9881 = vpack.c.bf16 %v9819, %v9818
        %v9882 = vpack.c.bf16 %v9821, %v9820
        %v9883 = vpack.c.bf16 %v9823, %v9822
        %v9884 = vpack.c.bf16 %v9825, %v9824
        %v9885 = vpack.c.bf16 %v9827, %v9826
        %v9886 = vpack.c.bf16 %v9829, %v9828
        %v9887 = vpack.c.bf16 %v9831, %v9830
        %v9888 = vpack.c.bf16 %v9833, %v9832
        %v9889 = vpack.c.bf16 %v9835, %v9834
        %v9890 = vpack.c.bf16 %v9837, %v9836
        %v9891 = vpack.c.bf16 %v9839, %v9838
        %v9892 = vpack.c.bf16 %v9841, %v9840
        %v9893 = vpack.c.bf16 %v9843, %v9842
        %v9894 = vpack.c.bf16 %v9845, %v9844
        %v9895 = vpack.c.bf16 %v9847, %v9846
        %v9896 = vpack.c.bf16 %v9849, %v9848
        %v9897 = vpack.c.bf16 %v9851, %v9850
        %v9898 = vpack.c.bf16 %v9853, %v9852
        %v9899 = vpack.c.bf16 %v9855, %v9854
        %v9900 = vpack.c.bf16 %v9857, %v9856
        %v9901 = vpack.c.bf16 %v9859, %v9858
        %v9902 = vpack.c.bf16 %v9861, %v9860
        %v9903 = vpack.c.bf16 %v9863, %v9862
        %v9904 = vpack.c.bf16 %v9865, %v9864
        %v9905 = vpack.c.bf16 %v9867, %v9866
        %v9906 = vpack.c.bf16 %v9869, %v9868
        %v9907 = vpack.c.bf16 %v9871, %v9870
        %v9908 = vpack.c.bf16 %v9873, %v9872
        %v9909 = vpack.c.bf16 %v9875, %v9874
        %v9910 = vpack.c.bf16 %v9877, %v9876
        %v9911 = vpack.c.bf16 %v9879, %v9878
        %s9912 = scalar_lea.vmem [#allocation9], 96
        %v9913 = vld [vmem:[%s9912] sm:$0xf]
        %v9914 = vld [vmem:[%s9912 + $0x4] sm:$0xf]
        %v9915 = vld [vmem:[%s9912 + $0x8] sm:$0xf]
        %v9916 = vld [vmem:[%s9912 + $0xc] sm:$0xf]
        %v9921 = vunpack.c.l.b16 %v9913
        %v9922 = vunpack.c.l.b16 %v9914
        %v9923 = vunpack.c.l.b16 %v9915
        %v9924 = vunpack.c.l.b16 %v9916
        %v9925 = vpack.c.b16 %v9922, %v9921
        %v9926 = vpack.c.b16 %v9924, %v9923
        %v9930 = vsel %vm6508, %v9880, 0
        %v9933 = vsel %vm6508, %v9881, 0
        %v9936 = vsel %vm6508, %v9882, 0
        %v9939 = vsel %vm6508, %v9883, 0
        %v9942 = vsel %vm6508, %v9884, 0
        %v9945 = vsel %vm6508, %v9885, 0
        %v9948 = vsel %vm6508, %v9886, 0
        %v9951 = vsel %vm6508, %v9887, 0
        %v9954 = vsel %vm6508, %v9888, 0
        %v9957 = vsel %vm6508, %v9889, 0
        %v9960 = vsel %vm6508, %v9890, 0
        %v9963 = vsel %vm6508, %v9891, 0
        %v9966 = vsel %vm6508, %v9892, 0
        %v9969 = vsel %vm6508, %v9893, 0
        %v9972 = vsel %vm6508, %v9894, 0
        %v9975 = vsel %vm6508, %v9895, 0
        %v9978 = vsel %vm6508, %v9896, 0
        %v9981 = vsel %vm6508, %v9897, 0
        %v9984 = vsel %vm6508, %v9898, 0
        %v9987 = vsel %vm6508, %v9899, 0
        %v9990 = vsel %vm6508, %v9900, 0
        %v9993 = vsel %vm6508, %v9901, 0
        %v9996 = vsel %vm6508, %v9902, 0
        %v9999 = vsel %vm6508, %v9903, 0
        %v10002 = vsel %vm6508, %v9904, 0
        %v10005 = vsel %vm6508, %v9905, 0
        %v10008 = vsel %vm6508, %v9906, 0
        %v10011 = vsel %vm6508, %v9907, 0
        %v10014 = vsel %vm6508, %v9908, 0
        %v10017 = vsel %vm6508, %v9909, 0
        %v10020 = vsel %vm6508, %v9910, 0
        %v10023 = vsel %vm6508, %v9911, 0
        %10025 = vmatprep.subr.bf16.mxu0 0
        %10026 = vmatpush1.bf16.msra.mxu0 0
        %10027 = vmatprep.subr.bf16.mxu0 0
        %10028 = vmatpush1.bf16.msra.mxu0 0
        %10029 = vmatprep.subr.bf16.mxu0 0
        %10030 = vmatpush1.bf16.msra.mxu0 0
        %10031 = vmatprep.subr.bf16.mxu0 0
        %10032 = vmatpush1.bf16.msra.mxu0 0
        %10033 = vmatprep.subr.bf16.mxu0 0
        %10034 = vmatpush1.bf16.msra.mxu0 0
        %10035 = vmatprep.subr.bf16.mxu0 0
        %10036 = vmatpush1.bf16.msra.mxu0 0
        %10037 = vmatprep.subr.bf16.mxu0 0
        %10038 = vmatpush1.bf16.msra.mxu0 %v9926
        %10039 = vmatprep.subr.bf16.mxu0 0
        %10040 = vmatpush1.bf16.msra.mxu0 %v9925
        %10041 = vmatprep.subr.bf16.mxu0 0
        %10042 = vmatpush2.bf16.msra.mxu0 0
        %10043 = vmatprep.subr.bf16.mxu0 0
        %10044 = vmatpush2.bf16.msra.mxu0 0
        %10045 = vmatprep.subr.bf16.mxu0 0
        %10046 = vmatpush2.bf16.msra.mxu0 0
        %10047 = vmatprep.subr.bf16.mxu0 0
        %10048 = vmatpush2.bf16.msra.mxu0 0
        %10049 = vmatprep.subr.bf16.mxu0 0
        %10050 = vmatpush2.bf16.msra.mxu0 0
        %10051 = vmatprep.subr.bf16.mxu0 0
        %10052 = vmatpush2.bf16.msra.mxu0 0
        %10053 = vmatprep.subr.bf16.mxu0 0
        %10054 = vmatpush2.bf16.msra.mxu0 0
        %10055 = vmatprep.subr.bf16.mxu0 0
        %10056 = vmatpush2.bf16.msra.mxu0 0
        %10057 = vmatprep.mubr.bf16.mxu0 0
        %10058 = vmatmul.mubr.bf16.gmra.mxu0 %v9930
        %v10059 = vpop.f32.mrf.mxu0
        %v10060 = vadd.f32 0.0, %v10059
        %v10061 = vpop.f32.mrf.mxu0
        %v10062 = vpop.f32.mrf.mxu0
        %v10063 = vadd.f32 0.0, %v10062
        %v10064 = vpop.f32.mrf.mxu0
        %10065 = vmatprep.mubr.bf16.mxu0 0
        %10066 = vmatmul.mubr.bf16.gmra.mxu0 %v9933
        %v10067 = vpop.f32.mrf.mxu0
        %v10068 = vadd.f32 0.0, %v10067
        %v10069 = vpop.f32.mrf.mxu0
        %v10070 = vpop.f32.mrf.mxu0
        %v10071 = vadd.f32 0.0, %v10070
        %v10072 = vpop.f32.mrf.mxu0
        %10073 = vmatprep.mubr.bf16.mxu0 0
        %10074 = vmatmul.mubr.bf16.gmra.mxu0 %v9936
        %v10075 = vpop.f32.mrf.mxu0
        %v10076 = vadd.f32 0.0, %v10075
        %v10077 = vpop.f32.mrf.mxu0
        %v10078 = vpop.f32.mrf.mxu0
        %v10079 = vadd.f32 0.0, %v10078
        %v10080 = vpop.f32.mrf.mxu0
        %10081 = vmatprep.mubr.bf16.mxu0 0
        %10082 = vmatmul.mubr.bf16.gmra.mxu0 %v9939
        %v10083 = vpop.f32.mrf.mxu0
        %v10084 = vadd.f32 0.0, %v10083
        %v10085 = vpop.f32.mrf.mxu0
        %v10086 = vpop.f32.mrf.mxu0
        %v10087 = vadd.f32 0.0, %v10086
        %v10088 = vpop.f32.mrf.mxu0
        %10089 = vmatprep.mubr.bf16.mxu0 0
        %10090 = vmatmul.mubr.bf16.gmra.mxu0 %v9942
        %v10091 = vpop.f32.mrf.mxu0
        %v10092 = vadd.f32 0.0, %v10091
        %v10093 = vpop.f32.mrf.mxu0
        %v10094 = vpop.f32.mrf.mxu0
        %v10095 = vadd.f32 0.0, %v10094
        %v10096 = vpop.f32.mrf.mxu0
        %10097 = vmatprep.mubr.bf16.mxu0 0
        %10098 = vmatmul.mubr.bf16.gmra.mxu0 %v9945
        %v10099 = vpop.f32.mrf.mxu0
        %v10100 = vadd.f32 0.0, %v10099
        %v10101 = vpop.f32.mrf.mxu0
        %v10102 = vpop.f32.mrf.mxu0
        %v10103 = vadd.f32 0.0, %v10102
        %v10104 = vpop.f32.mrf.mxu0
        %10105 = vmatprep.mubr.bf16.mxu0 0
        %10106 = vmatmul.mubr.bf16.gmra.mxu0 %v9948
        %v10107 = vpop.f32.mrf.mxu0
        %v10108 = vadd.f32 0.0, %v10107
        %v10109 = vpop.f32.mrf.mxu0
        %v10110 = vpop.f32.mrf.mxu0
        %v10111 = vadd.f32 0.0, %v10110
        %v10112 = vpop.f32.mrf.mxu0
        %10113 = vmatprep.mubr.bf16.mxu0 0
        %10114 = vmatmul.mubr.bf16.gmra.mxu0 %v9951
        %v10115 = vpop.f32.mrf.mxu0
        %v10116 = vadd.f32 0.0, %v10115
        %v10117 = vpop.f32.mrf.mxu0
        %v10118 = vpop.f32.mrf.mxu0
        %v10119 = vadd.f32 0.0, %v10118
        %v10120 = vpop.f32.mrf.mxu0
        %10121 = vmatprep.mubr.bf16.mxu0 0
        %10122 = vmatmul.mubr.bf16.gmra.mxu0 %v9954
        %v10123 = vpop.f32.mrf.mxu0
        %v10124 = vadd.f32 0.0, %v10123
        %v10125 = vpop.f32.mrf.mxu0
        %v10126 = vpop.f32.mrf.mxu0
        %v10127 = vadd.f32 0.0, %v10126
        %v10128 = vpop.f32.mrf.mxu0
        %10129 = vmatprep.mubr.bf16.mxu0 0
        %10130 = vmatmul.mubr.bf16.gmra.mxu0 %v9957
        %v10131 = vpop.f32.mrf.mxu0
        %v10132 = vadd.f32 0.0, %v10131
        %v10133 = vpop.f32.mrf.mxu0
        %v10134 = vpop.f32.mrf.mxu0
        %v10135 = vadd.f32 0.0, %v10134
        %v10136 = vpop.f32.mrf.mxu0
        %10137 = vmatprep.mubr.bf16.mxu0 0
        %10138 = vmatmul.mubr.bf16.gmra.mxu0 %v9960
        %v10139 = vpop.f32.mrf.mxu0
        %v10140 = vadd.f32 0.0, %v10139
        %v10141 = vpop.f32.mrf.mxu0
        %v10142 = vpop.f32.mrf.mxu0
        %v10143 = vadd.f32 0.0, %v10142
        %v10144 = vpop.f32.mrf.mxu0
        %10145 = vmatprep.mubr.bf16.mxu0 0
        %10146 = vmatmul.mubr.bf16.gmra.mxu0 %v9963
        %v10147 = vpop.f32.mrf.mxu0
        %v10148 = vadd.f32 0.0, %v10147
        %v10149 = vpop.f32.mrf.mxu0
        %v10150 = vpop.f32.mrf.mxu0
        %v10151 = vadd.f32 0.0, %v10150
        %v10152 = vpop.f32.mrf.mxu0
        %10153 = vmatprep.mubr.bf16.mxu0 0
        %10154 = vmatmul.mubr.bf16.gmra.mxu0 %v9966
        %v10155 = vpop.f32.mrf.mxu0
        %v10156 = vadd.f32 0.0, %v10155
        %v10157 = vpop.f32.mrf.mxu0
        %v10158 = vpop.f32.mrf.mxu0
        %v10159 = vadd.f32 0.0, %v10158
        %v10160 = vpop.f32.mrf.mxu0
        %10161 = vmatprep.mubr.bf16.mxu0 0
        %10162 = vmatmul.mubr.bf16.gmra.mxu0 %v9969
        %v10163 = vpop.f32.mrf.mxu0
        %v10164 = vadd.f32 0.0, %v10163
        %v10165 = vpop.f32.mrf.mxu0
        %v10166 = vpop.f32.mrf.mxu0
        %v10167 = vadd.f32 0.0, %v10166
        %v10168 = vpop.f32.mrf.mxu0
        %10169 = vmatprep.mubr.bf16.mxu0 0
        %10170 = vmatmul.mubr.bf16.gmra.mxu0 %v9972
        %v10171 = vpop.f32.mrf.mxu0
        %v10172 = vadd.f32 0.0, %v10171
        %v10173 = vpop.f32.mrf.mxu0
        %v10174 = vpop.f32.mrf.mxu0
        %v10175 = vadd.f32 0.0, %v10174
        %v10176 = vpop.f32.mrf.mxu0
        %10177 = vmatprep.mubr.bf16.mxu0 0
        %10178 = vmatmul.mubr.bf16.gmra.mxu0 %v9975
        %v10179 = vpop.f32.mrf.mxu0
        %v10180 = vadd.f32 0.0, %v10179
        %v10181 = vpop.f32.mrf.mxu0
        %v10182 = vpop.f32.mrf.mxu0
        %v10183 = vadd.f32 0.0, %v10182
        %v10184 = vpop.f32.mrf.mxu0
        %10185 = vmatprep.mubr.bf16.mxu0 0
        %10186 = vmatmul.mubr.bf16.gmra.mxu0 %v9978
        %v10187 = vpop.f32.mrf.mxu0
        %v10188 = vadd.f32 0.0, %v10187
        %v10189 = vpop.f32.mrf.mxu0
        %v10190 = vpop.f32.mrf.mxu0
        %v10191 = vadd.f32 0.0, %v10190
        %v10192 = vpop.f32.mrf.mxu0
        %10193 = vmatprep.mubr.bf16.mxu0 0
        %10194 = vmatmul.mubr.bf16.gmra.mxu0 %v9981
        %v10195 = vpop.f32.mrf.mxu0
        %v10196 = vadd.f32 0.0, %v10195
        %v10197 = vpop.f32.mrf.mxu0
        %v10198 = vpop.f32.mrf.mxu0
        %v10199 = vadd.f32 0.0, %v10198
        %v10200 = vpop.f32.mrf.mxu0
        %10201 = vmatprep.mubr.bf16.mxu0 0
        %10202 = vmatmul.mubr.bf16.gmra.mxu0 %v9984
        %v10203 = vpop.f32.mrf.mxu0
        %v10204 = vadd.f32 0.0, %v10203
        %v10205 = vpop.f32.mrf.mxu0
        %v10206 = vpop.f32.mrf.mxu0
        %v10207 = vadd.f32 0.0, %v10206
        %v10208 = vpop.f32.mrf.mxu0
        %10209 = vmatprep.mubr.bf16.mxu0 0
        %10210 = vmatmul.mubr.bf16.gmra.mxu0 %v9987
        %v10211 = vpop.f32.mrf.mxu0
        %v10212 = vadd.f32 0.0, %v10211
        %v10213 = vpop.f32.mrf.mxu0
        %v10214 = vpop.f32.mrf.mxu0
        %v10215 = vadd.f32 0.0, %v10214
        %v10216 = vpop.f32.mrf.mxu0
        %10217 = vmatprep.mubr.bf16.mxu0 0
        %10218 = vmatmul.mubr.bf16.gmra.mxu0 %v9990
        %v10219 = vpop.f32.mrf.mxu0
        %v10220 = vadd.f32 0.0, %v10219
        %v10221 = vpop.f32.mrf.mxu0
        %v10222 = vpop.f32.mrf.mxu0
        %v10223 = vadd.f32 0.0, %v10222
        %v10224 = vpop.f32.mrf.mxu0
        %10225 = vmatprep.mubr.bf16.mxu0 0
        %10226 = vmatmul.mubr.bf16.gmra.mxu0 %v9993
        %v10227 = vpop.f32.mrf.mxu0
        %v10228 = vadd.f32 0.0, %v10227
        %v10229 = vpop.f32.mrf.mxu0
        %v10230 = vpop.f32.mrf.mxu0
        %v10231 = vadd.f32 0.0, %v10230
        %v10232 = vpop.f32.mrf.mxu0
        %10233 = vmatprep.mubr.bf16.mxu0 0
        %10234 = vmatmul.mubr.bf16.gmra.mxu0 %v9996
        %v10235 = vpop.f32.mrf.mxu0
        %v10236 = vadd.f32 0.0, %v10235
        %v10237 = vpop.f32.mrf.mxu0
        %v10238 = vpop.f32.mrf.mxu0
        %v10239 = vadd.f32 0.0, %v10238
        %v10240 = vpop.f32.mrf.mxu0
        %10241 = vmatprep.mubr.bf16.mxu0 0
        %10242 = vmatmul.mubr.bf16.gmra.mxu0 %v9999
        %v10243 = vpop.f32.mrf.mxu0
        %v10244 = vadd.f32 0.0, %v10243
        %v10245 = vpop.f32.mrf.mxu0
        %v10246 = vpop.f32.mrf.mxu0
        %v10247 = vadd.f32 0.0, %v10246
        %v10248 = vpop.f32.mrf.mxu0
        %10249 = vmatprep.mubr.bf16.mxu0 0
        %10250 = vmatmul.mubr.bf16.gmra.mxu0 %v10002
        %v10251 = vpop.f32.mrf.mxu0
        %v10252 = vadd.f32 0.0, %v10251
        %v10253 = vpop.f32.mrf.mxu0
        %v10254 = vpop.f32.mrf.mxu0
        %v10255 = vadd.f32 0.0, %v10254
        %v10256 = vpop.f32.mrf.mxu0
        %10257 = vmatprep.mubr.bf16.mxu0 0
        %10258 = vmatmul.mubr.bf16.gmra.mxu0 %v10005
        %v10259 = vpop.f32.mrf.mxu0
        %v10260 = vadd.f32 0.0, %v10259
        %v10261 = vpop.f32.mrf.mxu0
        %v10262 = vpop.f32.mrf.mxu0
        %v10263 = vadd.f32 0.0, %v10262
        %v10264 = vpop.f32.mrf.mxu0
        %10265 = vmatprep.mubr.bf16.mxu0 0
        %10266 = vmatmul.mubr.bf16.gmra.mxu0 %v10008
        %v10267 = vpop.f32.mrf.mxu0
        %v10268 = vadd.f32 0.0, %v10267
        %v10269 = vpop.f32.mrf.mxu0
        %v10270 = vpop.f32.mrf.mxu0
        %v10271 = vadd.f32 0.0, %v10270
        %v10272 = vpop.f32.mrf.mxu0
        %10273 = vmatprep.mubr.bf16.mxu0 0
        %10274 = vmatmul.mubr.bf16.gmra.mxu0 %v10011
        %v10275 = vpop.f32.mrf.mxu0
        %v10276 = vadd.f32 0.0, %v10275
        %v10277 = vpop.f32.mrf.mxu0
        %v10278 = vpop.f32.mrf.mxu0
        %v10279 = vadd.f32 0.0, %v10278
        %v10280 = vpop.f32.mrf.mxu0
        %10281 = vmatprep.mubr.bf16.mxu0 0
        %10282 = vmatmul.mubr.bf16.gmra.mxu0 %v10014
        %v10283 = vpop.f32.mrf.mxu0
        %v10284 = vadd.f32 0.0, %v10283
        %v10285 = vpop.f32.mrf.mxu0
        %v10286 = vpop.f32.mrf.mxu0
        %v10287 = vadd.f32 0.0, %v10286
        %v10288 = vpop.f32.mrf.mxu0
        %10289 = vmatprep.mubr.bf16.mxu0 0
        %10290 = vmatmul.mubr.bf16.gmra.mxu0 %v10017
        %v10291 = vpop.f32.mrf.mxu0
        %v10292 = vadd.f32 0.0, %v10291
        %v10293 = vpop.f32.mrf.mxu0
        %v10294 = vpop.f32.mrf.mxu0
        %v10295 = vadd.f32 0.0, %v10294
        %v10296 = vpop.f32.mrf.mxu0
        %10297 = vmatprep.mubr.bf16.mxu0 0
        %10298 = vmatmul.mubr.bf16.gmra.mxu0 %v10020
        %v10299 = vpop.f32.mrf.mxu0
        %v10300 = vadd.f32 0.0, %v10299
        %v10301 = vpop.f32.mrf.mxu0
        %v10302 = vpop.f32.mrf.mxu0
        %v10303 = vadd.f32 0.0, %v10302
        %v10304 = vpop.f32.mrf.mxu0
        %10305 = vmatprep.mubr.bf16.mxu0 0
        %10306 = vmatmul.mubr.bf16.gmra.mxu0 %v10023
        %v10307 = vpop.f32.mrf.mxu0
        %v10308 = vadd.f32 0.0, %v10307
        %v10309 = vpop.f32.mrf.mxu0
        %v10310 = vpop.f32.mrf.mxu0
        %v10311 = vadd.f32 0.0, %v10310
        %v10312 = vpop.f32.mrf.mxu0
        %10313 = vdwg.mxu0
        %v10314 = vadd.f32 %v9752, %v10060
        %v10315 = vadd.f32 %v9753, %v10063
        %v10316 = vadd.f32 %v9754, %v10068
        %v10317 = vadd.f32 %v9755, %v10071
        %v10318 = vadd.f32 %v9756, %v10076
        %v10319 = vadd.f32 %v9757, %v10079
        %v10320 = vadd.f32 %v9758, %v10084
        %v10321 = vadd.f32 %v9759, %v10087
        %v10322 = vadd.f32 %v9760, %v10092
        %v10323 = vadd.f32 %v9761, %v10095
        %v10324 = vadd.f32 %v9762, %v10100
        %v10325 = vadd.f32 %v9763, %v10103
        %v10326 = vadd.f32 %v9764, %v10108
        %v10327 = vadd.f32 %v9765, %v10111
        %v10328 = vadd.f32 %v9766, %v10116
        %v10329 = vadd.f32 %v9767, %v10119
        %v10330 = vadd.f32 %v9768, %v10124
        %v10331 = vadd.f32 %v9769, %v10127
        %v10332 = vadd.f32 %v9770, %v10132
        %v10333 = vadd.f32 %v9771, %v10135
        %v10334 = vadd.f32 %v9772, %v10140
        %v10335 = vadd.f32 %v9773, %v10143
        %v10336 = vadd.f32 %v9774, %v10148
        %v10337 = vadd.f32 %v9775, %v10151
        %v10338 = vadd.f32 %v9776, %v10156
        %v10339 = vadd.f32 %v9777, %v10159
        %v10340 = vadd.f32 %v9778, %v10164
        %v10341 = vadd.f32 %v9779, %v10167
        %v10342 = vadd.f32 %v9780, %v10172
        %v10343 = vadd.f32 %v9781, %v10175
        %v10344 = vadd.f32 %v9782, %v10180
        %v10345 = vadd.f32 %v9783, %v10183
        %v10346 = vadd.f32 %v9784, %v10188
        %v10347 = vadd.f32 %v9785, %v10191
        %v10348 = vadd.f32 %v9786, %v10196
        %v10349 = vadd.f32 %v9787, %v10199
        %v10350 = vadd.f32 %v9788, %v10204
        %v10351 = vadd.f32 %v9789, %v10207
        %v10352 = vadd.f32 %v9790, %v10212
        %v10353 = vadd.f32 %v9791, %v10215
        %v10354 = vadd.f32 %v9792, %v10220
        %v10355 = vadd.f32 %v9793, %v10223
        %v10356 = vadd.f32 %v9794, %v10228
        %v10357 = vadd.f32 %v9795, %v10231
        %v10358 = vadd.f32 %v9796, %v10236
        %v10359 = vadd.f32 %v9797, %v10239
        %v10360 = vadd.f32 %v9798, %v10244
        %v10361 = vadd.f32 %v9799, %v10247
        %v10362 = vadd.f32 %v9800, %v10252
        %v10363 = vadd.f32 %v9801, %v10255
        %v10364 = vadd.f32 %v9802, %v10260
        %v10365 = vadd.f32 %v9803, %v10263
        %v10366 = vadd.f32 %v9804, %v10268
        %v10367 = vadd.f32 %v9805, %v10271
        %v10368 = vadd.f32 %v9806, %v10276
        %v10369 = vadd.f32 %v9807, %v10279
        %v10370 = vadd.f32 %v9808, %v10284
        %v10371 = vadd.f32 %v9809, %v10287
        %v10372 = vadd.f32 %v9810, %v10292
        %v10373 = vadd.f32 %v9811, %v10295
        %v10374 = vadd.f32 %v9812, %v10300
        %v10375 = vadd.f32 %v9813, %v10303
        %v10376 = vadd.f32 %v9814, %v10308
        %v10377 = vadd.f32 %v9815, %v10311
        %v10378 = vld [vmem:[%s4389 + $0x1] sm:$0xff]
        %v10379 = vld [vmem:[%s4389 + $0x9] sm:$0xff]
        %v10380 = vld [vmem:[%s4389 + $0x19] sm:$0xff]
        %v10381 = vld [vmem:[%s4389 + $0x21] sm:$0xff]
        %v10382 = vld [vmem:[%s4389 + $0x31] sm:$0xff]
        %v10383 = vld [vmem:[%s4389 + $0x39] sm:$0xff]
        %v10384 = vld [vmem:[%s4389 + $0x49] sm:$0xff]
        %v10385 = vld [vmem:[%s4389 + $0x51] sm:$0xff]
        %v10386 = vld [vmem:[%s4389 + $0x61] sm:$0xff]
        %v10387 = vld [vmem:[%s4389 + $0x69] sm:$0xff]
        %v10388 = vld [vmem:[%s4389 + $0x79] sm:$0xff]
        %v10389 = vld [vmem:[%s4389 + $0x81] sm:$0xff]
        %v10390 = vld [vmem:[%s4389 + $0x91] sm:$0xff]
        %v10391 = vld [vmem:[%s4389 + $0x99] sm:$0xff]
        %v10392 = vld [vmem:[%s4389 + $0xa9] sm:$0xff]
        %v10393 = vld [vmem:[%s4389 + $0xb1] sm:$0xff]
        %v10394 = vld [vmem:[%s4389 + $0xc1] sm:$0xff]
        %v10395 = vld [vmem:[%s4389 + $0xc9] sm:$0xff]
        %v10396 = vld [vmem:[%s4389 + $0xd9] sm:$0xff]
        %v10397 = vld [vmem:[%s4389 + $0xe1] sm:$0xff]
        %v10398 = vld [vmem:[%s4389 + $0xf1] sm:$0xff]
        %v10399 = vld [vmem:[%s4389 + $0xf9] sm:$0xff]
        %v10400 = vld [vmem:[%s4389 + $0x109] sm:$0xff]
        %v10401 = vld [vmem:[%s4389 + $0x111] sm:$0xff]
        %v10402 = vld [vmem:[%s4389 + $0x121] sm:$0xff]
        %v10403 = vld [vmem:[%s4389 + $0x129] sm:$0xff]
        %v10404 = vld [vmem:[%s4389 + $0x139] sm:$0xff]
        %v10405 = vld [vmem:[%s4389 + $0x141] sm:$0xff]
        %v10406 = vld [vmem:[%s4389 + $0x151] sm:$0xff]
        %v10407 = vld [vmem:[%s4389 + $0x159] sm:$0xff]
        %v10408 = vld [vmem:[%s4389 + $0x169] sm:$0xff]
        %v10409 = vld [vmem:[%s4389 + $0x171] sm:$0xff]
        %v10410 = vld [vmem:[%s4389 + $0x1b1] sm:$0xff]
        %v10411 = vld [vmem:[%s4389 + $0x1b9] sm:$0xff]
        %v10412 = vld [vmem:[%s4389 + $0x1c9] sm:$0xff]
        %v10413 = vld [vmem:[%s4389 + $0x1d1] sm:$0xff]
        %v10414 = vld [vmem:[%s4389 + $0x1e1] sm:$0xff]
        %v10415 = vld [vmem:[%s4389 + $0x1e9] sm:$0xff]
        %v10416 = vld [vmem:[%s4389 + $0x1f9] sm:$0xff]
        %v10417 = vld [vmem:[%s4389 + $0x201] sm:$0xff]
        %v10418 = vld [vmem:[%s4389 + $0x211] sm:$0xff]
        %v10419 = vld [vmem:[%s4389 + $0x219] sm:$0xff]
        %v10420 = vld [vmem:[%s4389 + $0x229] sm:$0xff]
        %v10421 = vld [vmem:[%s4389 + $0x231] sm:$0xff]
        %v10422 = vld [vmem:[%s4389 + $0x241] sm:$0xff]
        %v10423 = vld [vmem:[%s4389 + $0x249] sm:$0xff]
        %v10424 = vld [vmem:[%s4389 + $0x259] sm:$0xff]
        %v10425 = vld [vmem:[%s4389 + $0x261] sm:$0xff]
        %v10426 = vld [vmem:[%s4389 + $0x271] sm:$0xff]
        %v10427 = vld [vmem:[%s4389 + $0x279] sm:$0xff]
        %v10428 = vld [vmem:[%s4389 + $0x289] sm:$0xff]
        %v10429 = vld [vmem:[%s4389 + $0x291] sm:$0xff]
        %v10430 = vld [vmem:[%s4389 + $0x2a1] sm:$0xff]
        %v10431 = vld [vmem:[%s4389 + $0x2a9] sm:$0xff]
        %v10432 = vld [vmem:[%s4389 + $0x2b9] sm:$0xff]
        %v10433 = vld [vmem:[%s4389 + $0x2c1] sm:$0xff]
        %v10434 = vld [vmem:[%s4389 + $0x2d1] sm:$0xff]
        %v10435 = vld [vmem:[%s4389 + $0x2d9] sm:$0xff]
        %v10436 = vld [vmem:[%s4389 + $0x2e9] sm:$0xff]
        %v10437 = vld [vmem:[%s4389 + $0x2f1] sm:$0xff]
        %v10438 = vld [vmem:[%s4389 + $0x301] sm:$0xff]
        %v10439 = vld [vmem:[%s4389 + $0x309] sm:$0xff]
        %v10440 = vld [vmem:[%s4389 + $0x319] sm:$0xff]
        %v10441 = vld [vmem:[%s4389 + $0x321] sm:$0xff]
        %v10442 = vpack.c.bf16 %v10379, %v10378
        %v10443 = vpack.c.bf16 %v10381, %v10380
        %v10444 = vpack.c.bf16 %v10383, %v10382
        %v10445 = vpack.c.bf16 %v10385, %v10384
        %v10446 = vpack.c.bf16 %v10387, %v10386
        %v10447 = vpack.c.bf16 %v10389, %v10388
        %v10448 = vpack.c.bf16 %v10391, %v10390
        %v10449 = vpack.c.bf16 %v10393, %v10392
        %v10450 = vpack.c.bf16 %v10395, %v10394
        %v10451 = vpack.c.bf16 %v10397, %v10396
        %v10452 = vpack.c.bf16 %v10399, %v10398
        %v10453 = vpack.c.bf16 %v10401, %v10400
        %v10454 = vpack.c.bf16 %v10403, %v10402
        %v10455 = vpack.c.bf16 %v10405, %v10404
        %v10456 = vpack.c.bf16 %v10407, %v10406
        %v10457 = vpack.c.bf16 %v10409, %v10408
        %v10458 = vpack.c.bf16 %v10411, %v10410
        %v10459 = vpack.c.bf16 %v10413, %v10412
        %v10460 = vpack.c.bf16 %v10415, %v10414
        %v10461 = vpack.c.bf16 %v10417, %v10416
        %v10462 = vpack.c.bf16 %v10419, %v10418
        %v10463 = vpack.c.bf16 %v10421, %v10420
        %v10464 = vpack.c.bf16 %v10423, %v10422
        %v10465 = vpack.c.bf16 %v10425, %v10424
        %v10466 = vpack.c.bf16 %v10427, %v10426
        %v10467 = vpack.c.bf16 %v10429, %v10428
        %v10468 = vpack.c.bf16 %v10431, %v10430
        %v10469 = vpack.c.bf16 %v10433, %v10432
        %v10470 = vpack.c.bf16 %v10435, %v10434
        %v10471 = vpack.c.bf16 %v10437, %v10436
        %v10472 = vpack.c.bf16 %v10439, %v10438
        %v10473 = vpack.c.bf16 %v10441, %v10440
        %s10474 = scalar_lea.vmem [#allocation9], 112
        %v10475 = vld [vmem:[%s10474] sm:$0xf]
        %v10476 = vld [vmem:[%s10474 + $0x4] sm:$0xf]
        %v10477 = vld [vmem:[%s10474 + $0x8] sm:$0xf]
        %v10478 = vld [vmem:[%s10474 + $0xc] sm:$0xf]
        %v10483 = vunpack.c.l.b16 %v10475
        %v10484 = vunpack.c.l.b16 %v10476
        %v10485 = vunpack.c.l.b16 %v10477
        %v10486 = vunpack.c.l.b16 %v10478
        %v10487 = vpack.c.b16 %v10484, %v10483
        %v10488 = vpack.c.b16 %v10486, %v10485
        %v10492 = vsel %vm6508, %v10442, 0
        %v10495 = vsel %vm6508, %v10443, 0
        %v10498 = vsel %vm6508, %v10444, 0
        %v10501 = vsel %vm6508, %v10445, 0
        %v10504 = vsel %vm6508, %v10446, 0
        %v10507 = vsel %vm6508, %v10447, 0
        %v10510 = vsel %vm6508, %v10448, 0
        %v10513 = vsel %vm6508, %v10449, 0
        %v10516 = vsel %vm6508, %v10450, 0
        %v10519 = vsel %vm6508, %v10451, 0
        %v10522 = vsel %vm6508, %v10452, 0
        %v10525 = vsel %vm6508, %v10453, 0
        %v10528 = vsel %vm6508, %v10454, 0
        %v10531 = vsel %vm6508, %v10455, 0
        %v10534 = vsel %vm6508, %v10456, 0
        %v10537 = vsel %vm6508, %v10457, 0
        %v10540 = vsel %vm6508, %v10458, 0
        %v10543 = vsel %vm6508, %v10459, 0
        %v10546 = vsel %vm6508, %v10460, 0
        %v10549 = vsel %vm6508, %v10461, 0
        %v10552 = vsel %vm6508, %v10462, 0
        %v10555 = vsel %vm6508, %v10463, 0
        %v10558 = vsel %vm6508, %v10464, 0
        %v10561 = vsel %vm6508, %v10465, 0
        %v10564 = vsel %vm6508, %v10466, 0
        %v10567 = vsel %vm6508, %v10467, 0
        %v10570 = vsel %vm6508, %v10468, 0
        %v10573 = vsel %vm6508, %v10469, 0
        %v10576 = vsel %vm6508, %v10470, 0
        %v10579 = vsel %vm6508, %v10471, 0
        %v10582 = vsel %vm6508, %v10472, 0
        %v10585 = vsel %vm6508, %v10473, 0
        %10587 = vmatprep.subr.bf16.mxu0 0
        %10588 = vmatpush1.bf16.msra.mxu0 0
        %10589 = vmatprep.subr.bf16.mxu0 0
        %10590 = vmatpush1.bf16.msra.mxu0 0
        %10591 = vmatprep.subr.bf16.mxu0 0
        %10592 = vmatpush1.bf16.msra.mxu0 0
        %10593 = vmatprep.subr.bf16.mxu0 0
        %10594 = vmatpush1.bf16.msra.mxu0 0
        %10595 = vmatprep.subr.bf16.mxu0 0
        %10596 = vmatpush1.bf16.msra.mxu0 0
        %10597 = vmatprep.subr.bf16.mxu0 0
        %10598 = vmatpush1.bf16.msra.mxu0 0
        %10599 = vmatprep.subr.bf16.mxu0 0
        %10600 = vmatpush1.bf16.msra.mxu0 %v10488
        %10601 = vmatprep.subr.bf16.mxu0 0
        %10602 = vmatpush1.bf16.msra.mxu0 %v10487
        %10603 = vmatprep.subr.bf16.mxu0 0
        %10604 = vmatpush2.bf16.msra.mxu0 0
        %10605 = vmatprep.subr.bf16.mxu0 0
        %10606 = vmatpush2.bf16.msra.mxu0 0
        %10607 = vmatprep.subr.bf16.mxu0 0
        %10608 = vmatpush2.bf16.msra.mxu0 0
        %10609 = vmatprep.subr.bf16.mxu0 0
        %10610 = vmatpush2.bf16.msra.mxu0 0
        %10611 = vmatprep.subr.bf16.mxu0 0
        %10612 = vmatpush2.bf16.msra.mxu0 0
        %10613 = vmatprep.subr.bf16.mxu0 0
        %10614 = vmatpush2.bf16.msra.mxu0 0
        %10615 = vmatprep.subr.bf16.mxu0 0
        %10616 = vmatpush2.bf16.msra.mxu0 0
        %10617 = vmatprep.subr.bf16.mxu0 0
        %10618 = vmatpush2.bf16.msra.mxu0 0
        %10619 = vmatprep.mubr.bf16.mxu0 0
        %10620 = vmatmul.mubr.bf16.gmra.mxu0 %v10492
        %v10621 = vpop.f32.mrf.mxu0
        %v10622 = vadd.f32 0.0, %v10621
        %v10623 = vpop.f32.mrf.mxu0
        %v10624 = vpop.f32.mrf.mxu0
        %v10625 = vadd.f32 0.0, %v10624
        %v10626 = vpop.f32.mrf.mxu0
        %10627 = vmatprep.mubr.bf16.mxu0 0
        %10628 = vmatmul.mubr.bf16.gmra.mxu0 %v10495
        %v10629 = vpop.f32.mrf.mxu0
        %v10630 = vadd.f32 0.0, %v10629
        %v10631 = vpop.f32.mrf.mxu0
        %v10632 = vpop.f32.mrf.mxu0
        %v10633 = vadd.f32 0.0, %v10632
        %v10634 = vpop.f32.mrf.mxu0
        %10635 = vmatprep.mubr.bf16.mxu0 0
        %10636 = vmatmul.mubr.bf16.gmra.mxu0 %v10498
        %v10637 = vpop.f32.mrf.mxu0
        %v10638 = vadd.f32 0.0, %v10637
        %v10639 = vpop.f32.mrf.mxu0
        %v10640 = vpop.f32.mrf.mxu0
        %v10641 = vadd.f32 0.0, %v10640
        %v10642 = vpop.f32.mrf.mxu0
        %10643 = vmatprep.mubr.bf16.mxu0 0
        %10644 = vmatmul.mubr.bf16.gmra.mxu0 %v10501
        %v10645 = vpop.f32.mrf.mxu0
        %v10646 = vadd.f32 0.0, %v10645
        %v10647 = vpop.f32.mrf.mxu0
        %v10648 = vpop.f32.mrf.mxu0
        %v10649 = vadd.f32 0.0, %v10648
        %v10650 = vpop.f32.mrf.mxu0
        %10651 = vmatprep.mubr.bf16.mxu0 0
        %10652 = vmatmul.mubr.bf16.gmra.mxu0 %v10504
        %v10653 = vpop.f32.mrf.mxu0
        %v10654 = vadd.f32 0.0, %v10653
        %v10655 = vpop.f32.mrf.mxu0
        %v10656 = vpop.f32.mrf.mxu0
        %v10657 = vadd.f32 0.0, %v10656
        %v10658 = vpop.f32.mrf.mxu0
        %10659 = vmatprep.mubr.bf16.mxu0 0
        %10660 = vmatmul.mubr.bf16.gmra.mxu0 %v10507
        %v10661 = vpop.f32.mrf.mxu0
        %v10662 = vadd.f32 0.0, %v10661
        %v10663 = vpop.f32.mrf.mxu0
        %v10664 = vpop.f32.mrf.mxu0
        %v10665 = vadd.f32 0.0, %v10664
        %v10666 = vpop.f32.mrf.mxu0
        %10667 = vmatprep.mubr.bf16.mxu0 0
        %10668 = vmatmul.mubr.bf16.gmra.mxu0 %v10510
        %v10669 = vpop.f32.mrf.mxu0
        %v10670 = vadd.f32 0.0, %v10669
        %v10671 = vpop.f32.mrf.mxu0
        %v10672 = vpop.f32.mrf.mxu0
        %v10673 = vadd.f32 0.0, %v10672
        %v10674 = vpop.f32.mrf.mxu0
        %10675 = vmatprep.mubr.bf16.mxu0 0
        %10676 = vmatmul.mubr.bf16.gmra.mxu0 %v10513
        %v10677 = vpop.f32.mrf.mxu0
        %v10678 = vadd.f32 0.0, %v10677
        %v10679 = vpop.f32.mrf.mxu0
        %v10680 = vpop.f32.mrf.mxu0
        %v10681 = vadd.f32 0.0, %v10680
        %v10682 = vpop.f32.mrf.mxu0
        %10683 = vmatprep.mubr.bf16.mxu0 0
        %10684 = vmatmul.mubr.bf16.gmra.mxu0 %v10516
        %v10685 = vpop.f32.mrf.mxu0
        %v10686 = vadd.f32 0.0, %v10685
        %v10687 = vpop.f32.mrf.mxu0
        %v10688 = vpop.f32.mrf.mxu0
        %v10689 = vadd.f32 0.0, %v10688
        %v10690 = vpop.f32.mrf.mxu0
        %10691 = vmatprep.mubr.bf16.mxu0 0
        %10692 = vmatmul.mubr.bf16.gmra.mxu0 %v10519
        %v10693 = vpop.f32.mrf.mxu0
        %v10694 = vadd.f32 0.0, %v10693
        %v10695 = vpop.f32.mrf.mxu0
        %v10696 = vpop.f32.mrf.mxu0
        %v10697 = vadd.f32 0.0, %v10696
        %v10698 = vpop.f32.mrf.mxu0
        %10699 = vmatprep.mubr.bf16.mxu0 0
        %10700 = vmatmul.mubr.bf16.gmra.mxu0 %v10522
        %v10701 = vpop.f32.mrf.mxu0
        %v10702 = vadd.f32 0.0, %v10701
        %v10703 = vpop.f32.mrf.mxu0
        %v10704 = vpop.f32.mrf.mxu0
        %v10705 = vadd.f32 0.0, %v10704
        %v10706 = vpop.f32.mrf.mxu0
        %10707 = vmatprep.mubr.bf16.mxu0 0
        %10708 = vmatmul.mubr.bf16.gmra.mxu0 %v10525
        %v10709 = vpop.f32.mrf.mxu0
        %v10710 = vadd.f32 0.0, %v10709
        %v10711 = vpop.f32.mrf.mxu0
        %v10712 = vpop.f32.mrf.mxu0
        %v10713 = vadd.f32 0.0, %v10712
        %v10714 = vpop.f32.mrf.mxu0
        %10715 = vmatprep.mubr.bf16.mxu0 0
        %10716 = vmatmul.mubr.bf16.gmra.mxu0 %v10528
        %v10717 = vpop.f32.mrf.mxu0
        %v10718 = vadd.f32 0.0, %v10717
        %v10719 = vpop.f32.mrf.mxu0
        %v10720 = vpop.f32.mrf.mxu0
        %v10721 = vadd.f32 0.0, %v10720
        %v10722 = vpop.f32.mrf.mxu0
        %10723 = vmatprep.mubr.bf16.mxu0 0
        %10724 = vmatmul.mubr.bf16.gmra.mxu0 %v10531
        %v10725 = vpop.f32.mrf.mxu0
        %v10726 = vadd.f32 0.0, %v10725
        %v10727 = vpop.f32.mrf.mxu0
        %v10728 = vpop.f32.mrf.mxu0
        %v10729 = vadd.f32 0.0, %v10728
        %v10730 = vpop.f32.mrf.mxu0
        %10731 = vmatprep.mubr.bf16.mxu0 0
        %10732 = vmatmul.mubr.bf16.gmra.mxu0 %v10534
        %v10733 = vpop.f32.mrf.mxu0
        %v10734 = vadd.f32 0.0, %v10733
        %v10735 = vpop.f32.mrf.mxu0
        %v10736 = vpop.f32.mrf.mxu0
        %v10737 = vadd.f32 0.0, %v10736
        %v10738 = vpop.f32.mrf.mxu0
        %10739 = vmatprep.mubr.bf16.mxu0 0
        %10740 = vmatmul.mubr.bf16.gmra.mxu0 %v10537
        %v10741 = vpop.f32.mrf.mxu0
        %v10742 = vadd.f32 0.0, %v10741
        %v10743 = vpop.f32.mrf.mxu0
        %v10744 = vpop.f32.mrf.mxu0
        %v10745 = vadd.f32 0.0, %v10744
        %v10746 = vpop.f32.mrf.mxu0
        %10747 = vmatprep.mubr.bf16.mxu0 0
        %10748 = vmatmul.mubr.bf16.gmra.mxu0 %v10540
        %v10749 = vpop.f32.mrf.mxu0
        %v10750 = vadd.f32 0.0, %v10749
        %v10751 = vpop.f32.mrf.mxu0
        %v10752 = vpop.f32.mrf.mxu0
        %v10753 = vadd.f32 0.0, %v10752
        %v10754 = vpop.f32.mrf.mxu0
        %10755 = vmatprep.mubr.bf16.mxu0 0
        %10756 = vmatmul.mubr.bf16.gmra.mxu0 %v10543
        %v10757 = vpop.f32.mrf.mxu0
        %v10758 = vadd.f32 0.0, %v10757
        %v10759 = vpop.f32.mrf.mxu0
        %v10760 = vpop.f32.mrf.mxu0
        %v10761 = vadd.f32 0.0, %v10760
        %v10762 = vpop.f32.mrf.mxu0
        %10763 = vmatprep.mubr.bf16.mxu0 0
        %10764 = vmatmul.mubr.bf16.gmra.mxu0 %v10546
        %v10765 = vpop.f32.mrf.mxu0
        %v10766 = vadd.f32 0.0, %v10765
        %v10767 = vpop.f32.mrf.mxu0
        %v10768 = vpop.f32.mrf.mxu0
        %v10769 = vadd.f32 0.0, %v10768
        %v10770 = vpop.f32.mrf.mxu0
        %10771 = vmatprep.mubr.bf16.mxu0 0
        %10772 = vmatmul.mubr.bf16.gmra.mxu0 %v10549
        %v10773 = vpop.f32.mrf.mxu0
        %v10774 = vadd.f32 0.0, %v10773
        %v10775 = vpop.f32.mrf.mxu0
        %v10776 = vpop.f32.mrf.mxu0
        %v10777 = vadd.f32 0.0, %v10776
        %v10778 = vpop.f32.mrf.mxu0
        %10779 = vmatprep.mubr.bf16.mxu0 0
        %10780 = vmatmul.mubr.bf16.gmra.mxu0 %v10552
        %v10781 = vpop.f32.mrf.mxu0
        %v10782 = vadd.f32 0.0, %v10781
        %v10783 = vpop.f32.mrf.mxu0
        %v10784 = vpop.f32.mrf.mxu0
        %v10785 = vadd.f32 0.0, %v10784
        %v10786 = vpop.f32.mrf.mxu0
        %10787 = vmatprep.mubr.bf16.mxu0 0
        %10788 = vmatmul.mubr.bf16.gmra.mxu0 %v10555
        %v10789 = vpop.f32.mrf.mxu0
        %v10790 = vadd.f32 0.0, %v10789
        %v10791 = vpop.f32.mrf.mxu0
        %v10792 = vpop.f32.mrf.mxu0
        %v10793 = vadd.f32 0.0, %v10792
        %v10794 = vpop.f32.mrf.mxu0
        %10795 = vmatprep.mubr.bf16.mxu0 0
        %10796 = vmatmul.mubr.bf16.gmra.mxu0 %v10558
        %v10797 = vpop.f32.mrf.mxu0
        %v10798 = vadd.f32 0.0, %v10797
        %v10799 = vpop.f32.mrf.mxu0
        %v10800 = vpop.f32.mrf.mxu0
        %v10801 = vadd.f32 0.0, %v10800
        %v10802 = vpop.f32.mrf.mxu0
        %10803 = vmatprep.mubr.bf16.mxu0 0
        %10804 = vmatmul.mubr.bf16.gmra.mxu0 %v10561
        %v10805 = vpop.f32.mrf.mxu0
        %v10806 = vadd.f32 0.0, %v10805
        %v10807 = vpop.f32.mrf.mxu0
        %v10808 = vpop.f32.mrf.mxu0
        %v10809 = vadd.f32 0.0, %v10808
        %v10810 = vpop.f32.mrf.mxu0
        %10811 = vmatprep.mubr.bf16.mxu0 0
        %10812 = vmatmul.mubr.bf16.gmra.mxu0 %v10564
        %v10813 = vpop.f32.mrf.mxu0
        %v10814 = vadd.f32 0.0, %v10813
        %v10815 = vpop.f32.mrf.mxu0
        %v10816 = vpop.f32.mrf.mxu0
        %v10817 = vadd.f32 0.0, %v10816
        %v10818 = vpop.f32.mrf.mxu0
        %10819 = vmatprep.mubr.bf16.mxu0 0
        %10820 = vmatmul.mubr.bf16.gmra.mxu0 %v10567
        %v10821 = vpop.f32.mrf.mxu0
        %v10822 = vadd.f32 0.0, %v10821
        %v10823 = vpop.f32.mrf.mxu0
        %v10824 = vpop.f32.mrf.mxu0
        %v10825 = vadd.f32 0.0, %v10824
        %v10826 = vpop.f32.mrf.mxu0
        %10827 = vmatprep.mubr.bf16.mxu0 0
        %10828 = vmatmul.mubr.bf16.gmra.mxu0 %v10570
        %v10829 = vpop.f32.mrf.mxu0
        %v10830 = vadd.f32 0.0, %v10829
        %v10831 = vpop.f32.mrf.mxu0
        %v10832 = vpop.f32.mrf.mxu0
        %v10833 = vadd.f32 0.0, %v10832
        %v10834 = vpop.f32.mrf.mxu0
        %10835 = vmatprep.mubr.bf16.mxu0 0
        %10836 = vmatmul.mubr.bf16.gmra.mxu0 %v10573
        %v10837 = vpop.f32.mrf.mxu0
        %v10838 = vadd.f32 0.0, %v10837
        %v10839 = vpop.f32.mrf.mxu0
        %v10840 = vpop.f32.mrf.mxu0
        %v10841 = vadd.f32 0.0, %v10840
        %v10842 = vpop.f32.mrf.mxu0
        %10843 = vmatprep.mubr.bf16.mxu0 0
        %10844 = vmatmul.mubr.bf16.gmra.mxu0 %v10576
        %v10845 = vpop.f32.mrf.mxu0
        %v10846 = vadd.f32 0.0, %v10845
        %v10847 = vpop.f32.mrf.mxu0
        %v10848 = vpop.f32.mrf.mxu0
        %v10849 = vadd.f32 0.0, %v10848
        %v10850 = vpop.f32.mrf.mxu0
        %10851 = vmatprep.mubr.bf16.mxu0 0
        %10852 = vmatmul.mubr.bf16.gmra.mxu0 %v10579
        %v10853 = vpop.f32.mrf.mxu0
        %v10854 = vadd.f32 0.0, %v10853
        %v10855 = vpop.f32.mrf.mxu0
        %v10856 = vpop.f32.mrf.mxu0
        %v10857 = vadd.f32 0.0, %v10856
        %v10858 = vpop.f32.mrf.mxu0
        %10859 = vmatprep.mubr.bf16.mxu0 0
        %10860 = vmatmul.mubr.bf16.gmra.mxu0 %v10582
        %v10861 = vpop.f32.mrf.mxu0
        %v10862 = vadd.f32 0.0, %v10861
        %v10863 = vpop.f32.mrf.mxu0
        %v10864 = vpop.f32.mrf.mxu0
        %v10865 = vadd.f32 0.0, %v10864
        %v10866 = vpop.f32.mrf.mxu0
        %10867 = vmatprep.mubr.bf16.mxu0 0
        %10868 = vmatmul.mubr.bf16.gmra.mxu0 %v10585
        %v10869 = vpop.f32.mrf.mxu0
        %v10870 = vadd.f32 0.0, %v10869
        %v10871 = vpop.f32.mrf.mxu0
        %v10872 = vpop.f32.mrf.mxu0
        %v10873 = vadd.f32 0.0, %v10872
        %v10874 = vpop.f32.mrf.mxu0
        %10875 = vdwg.mxu0
        %v10876 = vadd.f32 %v10314, %v10622
        %v10877 = vadd.f32 %v10315, %v10625
        %v10878 = vadd.f32 %v10316, %v10630
        %v10879 = vadd.f32 %v10317, %v10633
        %v10880 = vadd.f32 %v10318, %v10638
        %v10881 = vadd.f32 %v10319, %v10641
        %v10882 = vadd.f32 %v10320, %v10646
        %v10883 = vadd.f32 %v10321, %v10649
        %v10884 = vadd.f32 %v10322, %v10654
        %v10885 = vadd.f32 %v10323, %v10657
        %v10886 = vadd.f32 %v10324, %v10662
        %v10887 = vadd.f32 %v10325, %v10665
        %v10888 = vadd.f32 %v10326, %v10670
        %v10889 = vadd.f32 %v10327, %v10673
        %v10890 = vadd.f32 %v10328, %v10678
        %v10891 = vadd.f32 %v10329, %v10681
        %v10892 = vadd.f32 %v10330, %v10686
        %v10893 = vadd.f32 %v10331, %v10689
        %v10894 = vadd.f32 %v10332, %v10694
        %v10895 = vadd.f32 %v10333, %v10697
        %v10896 = vadd.f32 %v10334, %v10702
        %v10897 = vadd.f32 %v10335, %v10705
        %v10898 = vadd.f32 %v10336, %v10710
        %v10899 = vadd.f32 %v10337, %v10713
        %v10900 = vadd.f32 %v10338, %v10718
        %v10901 = vadd.f32 %v10339, %v10721
        %v10902 = vadd.f32 %v10340, %v10726
        %v10903 = vadd.f32 %v10341, %v10729
        %v10904 = vadd.f32 %v10342, %v10734
        %v10905 = vadd.f32 %v10343, %v10737
        %v10906 = vadd.f32 %v10344, %v10742
        %v10907 = vadd.f32 %v10345, %v10745
        %v10908 = vadd.f32 %v10346, %v10750
        %v10909 = vadd.f32 %v10347, %v10753
        %v10910 = vadd.f32 %v10348, %v10758
        %v10911 = vadd.f32 %v10349, %v10761
        %v10912 = vadd.f32 %v10350, %v10766
        %v10913 = vadd.f32 %v10351, %v10769
        %v10914 = vadd.f32 %v10352, %v10774
        %v10915 = vadd.f32 %v10353, %v10777
        %v10916 = vadd.f32 %v10354, %v10782
        %v10917 = vadd.f32 %v10355, %v10785
        %v10918 = vadd.f32 %v10356, %v10790
        %v10919 = vadd.f32 %v10357, %v10793
        %v10920 = vadd.f32 %v10358, %v10798
        %v10921 = vadd.f32 %v10359, %v10801
        %v10922 = vadd.f32 %v10360, %v10806
        %v10923 = vadd.f32 %v10361, %v10809
        %v10924 = vadd.f32 %v10362, %v10814
        %v10925 = vadd.f32 %v10363, %v10817
        %v10926 = vadd.f32 %v10364, %v10822
        %v10927 = vadd.f32 %v10365, %v10825
        %v10928 = vadd.f32 %v10366, %v10830
        %v10929 = vadd.f32 %v10367, %v10833
        %v10930 = vadd.f32 %v10368, %v10838
        %v10931 = vadd.f32 %v10369, %v10841
        %v10932 = vadd.f32 %v10370, %v10846
        %v10933 = vadd.f32 %v10371, %v10849
        %v10934 = vadd.f32 %v10372, %v10854
        %v10935 = vadd.f32 %v10373, %v10857
        %v10936 = vadd.f32 %v10374, %v10862
        %v10937 = vadd.f32 %v10375, %v10865
        %v10938 = vadd.f32 %v10376, %v10870
        %v10939 = vadd.f32 %v10377, %v10873
        %v10940 = vld [vmem:[%s4389 + $0x2] sm:$0xff]
        %v10941 = vld [vmem:[%s4389 + $0xa] sm:$0xff]
        %v10942 = vld [vmem:[%s4389 + $0x1a] sm:$0xff]
        %v10943 = vld [vmem:[%s4389 + $0x22] sm:$0xff]
        %v10944 = vld [vmem:[%s4389 + $0x32] sm:$0xff]
        %v10945 = vld [vmem:[%s4389 + $0x3a] sm:$0xff]
        %v10946 = vld [vmem:[%s4389 + $0x4a] sm:$0xff]
        %v10947 = vld [vmem:[%s4389 + $0x52] sm:$0xff]
        %v10948 = vld [vmem:[%s4389 + $0x62] sm:$0xff]
        %v10949 = vld [vmem:[%s4389 + $0x6a] sm:$0xff]
        %v10950 = vld [vmem:[%s4389 + $0x7a] sm:$0xff]
        %v10951 = vld [vmem:[%s4389 + $0x82] sm:$0xff]
        %v10952 = vld [vmem:[%s4389 + $0x92] sm:$0xff]
        %v10953 = vld [vmem:[%s4389 + $0x9a] sm:$0xff]
        %v10954 = vld [vmem:[%s4389 + $0xaa] sm:$0xff]
        %v10955 = vld [vmem:[%s4389 + $0xb2] sm:$0xff]
        %v10956 = vld [vmem:[%s4389 + $0xc2] sm:$0xff]
        %v10957 = vld [vmem:[%s4389 + $0xca] sm:$0xff]
        %v10958 = vld [vmem:[%s4389 + $0xda] sm:$0xff]
        %v10959 = vld [vmem:[%s4389 + $0xe2] sm:$0xff]
        %v10960 = vld [vmem:[%s4389 + $0xf2] sm:$0xff]
        %v10961 = vld [vmem:[%s4389 + $0xfa] sm:$0xff]
        %v10962 = vld [vmem:[%s4389 + $0x10a] sm:$0xff]
        %v10963 = vld [vmem:[%s4389 + $0x112] sm:$0xff]
        %v10964 = vld [vmem:[%s4389 + $0x122] sm:$0xff]
        %v10965 = vld [vmem:[%s4389 + $0x12a] sm:$0xff]
        %v10966 = vld [vmem:[%s4389 + $0x13a] sm:$0xff]
        %v10967 = vld [vmem:[%s4389 + $0x142] sm:$0xff]
        %v10968 = vld [vmem:[%s4389 + $0x152] sm:$0xff]
        %v10969 = vld [vmem:[%s4389 + $0x15a] sm:$0xff]
        %v10970 = vld [vmem:[%s4389 + $0x16a] sm:$0xff]
        %v10971 = vld [vmem:[%s4389 + $0x172] sm:$0xff]
        %v10972 = vld [vmem:[%s4389 + $0x1b2] sm:$0xff]
        %v10973 = vld [vmem:[%s4389 + $0x1ba] sm:$0xff]
        %v10974 = vld [vmem:[%s4389 + $0x1ca] sm:$0xff]
        %v10975 = vld [vmem:[%s4389 + $0x1d2] sm:$0xff]
        %v10976 = vld [vmem:[%s4389 + $0x1e2] sm:$0xff]
        %v10977 = vld [vmem:[%s4389 + $0x1ea] sm:$0xff]
        %v10978 = vld [vmem:[%s4389 + $0x1fa] sm:$0xff]
        %v10979 = vld [vmem:[%s4389 + $0x202] sm:$0xff]
        %v10980 = vld [vmem:[%s4389 + $0x212] sm:$0xff]
        %v10981 = vld [vmem:[%s4389 + $0x21a] sm:$0xff]
        %v10982 = vld [vmem:[%s4389 + $0x22a] sm:$0xff]
        %v10983 = vld [vmem:[%s4389 + $0x232] sm:$0xff]
        %v10984 = vld [vmem:[%s4389 + $0x242] sm:$0xff]
        %v10985 = vld [vmem:[%s4389 + $0x24a] sm:$0xff]
        %v10986 = vld [vmem:[%s4389 + $0x25a] sm:$0xff]
        %v10987 = vld [vmem:[%s4389 + $0x262] sm:$0xff]
        %v10988 = vld [vmem:[%s4389 + $0x272] sm:$0xff]
        %v10989 = vld [vmem:[%s4389 + $0x27a] sm:$0xff]
        %v10990 = vld [vmem:[%s4389 + $0x28a] sm:$0xff]
        %v10991 = vld [vmem:[%s4389 + $0x292] sm:$0xff]
        %v10992 = vld [vmem:[%s4389 + $0x2a2] sm:$0xff]
        %v10993 = vld [vmem:[%s4389 + $0x2aa] sm:$0xff]
        %v10994 = vld [vmem:[%s4389 + $0x2ba] sm:$0xff]
        %v10995 = vld [vmem:[%s4389 + $0x2c2] sm:$0xff]
        %v10996 = vld [vmem:[%s4389 + $0x2d2] sm:$0xff]
        %v10997 = vld [vmem:[%s4389 + $0x2da] sm:$0xff]
        %v10998 = vld [vmem:[%s4389 + $0x2ea] sm:$0xff]
        %v10999 = vld [vmem:[%s4389 + $0x2f2] sm:$0xff]
        %v11000 = vld [vmem:[%s4389 + $0x302] sm:$0xff]
        %v11001 = vld [vmem:[%s4389 + $0x30a] sm:$0xff]
        %v11002 = vld [vmem:[%s4389 + $0x31a] sm:$0xff]
        %v11003 = vld [vmem:[%s4389 + $0x322] sm:$0xff]
        %v11004 = vpack.c.bf16 %v10941, %v10940
        %v11005 = vpack.c.bf16 %v10943, %v10942
        %v11006 = vpack.c.bf16 %v10945, %v10944
        %v11007 = vpack.c.bf16 %v10947, %v10946
        %v11008 = vpack.c.bf16 %v10949, %v10948
        %v11009 = vpack.c.bf16 %v10951, %v10950
        %v11010 = vpack.c.bf16 %v10953, %v10952
        %v11011 = vpack.c.bf16 %v10955, %v10954
        %v11012 = vpack.c.bf16 %v10957, %v10956
        %v11013 = vpack.c.bf16 %v10959, %v10958
        %v11014 = vpack.c.bf16 %v10961, %v10960
        %v11015 = vpack.c.bf16 %v10963, %v10962
        %v11016 = vpack.c.bf16 %v10965, %v10964
        %v11017 = vpack.c.bf16 %v10967, %v10966
        %v11018 = vpack.c.bf16 %v10969, %v10968
        %v11019 = vpack.c.bf16 %v10971, %v10970
        %v11020 = vpack.c.bf16 %v10973, %v10972
        %v11021 = vpack.c.bf16 %v10975, %v10974
        %v11022 = vpack.c.bf16 %v10977, %v10976
        %v11023 = vpack.c.bf16 %v10979, %v10978
        %v11024 = vpack.c.bf16 %v10981, %v10980
        %v11025 = vpack.c.bf16 %v10983, %v10982
        %v11026 = vpack.c.bf16 %v10985, %v10984
        %v11027 = vpack.c.bf16 %v10987, %v10986
        %v11028 = vpack.c.bf16 %v10989, %v10988
        %v11029 = vpack.c.bf16 %v10991, %v10990
        %v11030 = vpack.c.bf16 %v10993, %v10992
        %v11031 = vpack.c.bf16 %v10995, %v10994
        %v11032 = vpack.c.bf16 %v10997, %v10996
        %v11033 = vpack.c.bf16 %v10999, %v10998
        %v11034 = vpack.c.bf16 %v11001, %v11000
        %v11035 = vpack.c.bf16 %v11003, %v11002
        %s11036 = scalar_lea.vmem [#allocation9], 128
        %v11037 = vld [vmem:[%s11036] sm:$0xf]
        %v11038 = vld [vmem:[%s11036 + $0x4] sm:$0xf]
        %v11039 = vld [vmem:[%s11036 + $0x8] sm:$0xf]
        %v11040 = vld [vmem:[%s11036 + $0xc] sm:$0xf]
        %v11045 = vunpack.c.l.b16 %v11037
        %v11046 = vunpack.c.l.b16 %v11038
        %v11047 = vunpack.c.l.b16 %v11039
        %v11048 = vunpack.c.l.b16 %v11040
        %v11049 = vpack.c.b16 %v11046, %v11045
        %v11050 = vpack.c.b16 %v11048, %v11047
        %v11054 = vsel %vm6508, %v11004, 0
        %v11057 = vsel %vm6508, %v11005, 0
        %v11060 = vsel %vm6508, %v11006, 0
        %v11063 = vsel %vm6508, %v11007, 0
        %v11066 = vsel %vm6508, %v11008, 0
        %v11069 = vsel %vm6508, %v11009, 0
        %v11072 = vsel %vm6508, %v11010, 0
        %v11075 = vsel %vm6508, %v11011, 0
        %v11078 = vsel %vm6508, %v11012, 0
        %v11081 = vsel %vm6508, %v11013, 0
        %v11084 = vsel %vm6508, %v11014, 0
        %v11087 = vsel %vm6508, %v11015, 0
        %v11090 = vsel %vm6508, %v11016, 0
        %v11093 = vsel %vm6508, %v11017, 0
        %v11096 = vsel %vm6508, %v11018, 0
        %v11099 = vsel %vm6508, %v11019, 0
        %v11102 = vsel %vm6508, %v11020, 0
        %v11105 = vsel %vm6508, %v11021, 0
        %v11108 = vsel %vm6508, %v11022, 0
        %v11111 = vsel %vm6508, %v11023, 0
        %v11114 = vsel %vm6508, %v11024, 0
        %v11117 = vsel %vm6508, %v11025, 0
        %v11120 = vsel %vm6508, %v11026, 0
        %v11123 = vsel %vm6508, %v11027, 0
        %v11126 = vsel %vm6508, %v11028, 0
        %v11129 = vsel %vm6508, %v11029, 0
        %v11132 = vsel %vm6508, %v11030, 0
        %v11135 = vsel %vm6508, %v11031, 0
        %v11138 = vsel %vm6508, %v11032, 0
        %v11141 = vsel %vm6508, %v11033, 0
        %v11144 = vsel %vm6508, %v11034, 0
        %v11147 = vsel %vm6508, %v11035, 0
        %11149 = vmatprep.subr.bf16.mxu0 0
        %11150 = vmatpush1.bf16.msra.mxu0 0
        %11151 = vmatprep.subr.bf16.mxu0 0
        %11152 = vmatpush1.bf16.msra.mxu0 0
        %11153 = vmatprep.subr.bf16.mxu0 0
        %11154 = vmatpush1.bf16.msra.mxu0 0
        %11155 = vmatprep.subr.bf16.mxu0 0
        %11156 = vmatpush1.bf16.msra.mxu0 0
        %11157 = vmatprep.subr.bf16.mxu0 0
        %11158 = vmatpush1.bf16.msra.mxu0 0
        %11159 = vmatprep.subr.bf16.mxu0 0
        %11160 = vmatpush1.bf16.msra.mxu0 0
        %11161 = vmatprep.subr.bf16.mxu0 0
        %11162 = vmatpush1.bf16.msra.mxu0 %v11050
        %11163 = vmatprep.subr.bf16.mxu0 0
        %11164 = vmatpush1.bf16.msra.mxu0 %v11049
        %11165 = vmatprep.subr.bf16.mxu0 0
        %11166 = vmatpush2.bf16.msra.mxu0 0
        %11167 = vmatprep.subr.bf16.mxu0 0
        %11168 = vmatpush2.bf16.msra.mxu0 0
        %11169 = vmatprep.subr.bf16.mxu0 0
        %11170 = vmatpush2.bf16.msra.mxu0 0
        %11171 = vmatprep.subr.bf16.mxu0 0
        %11172 = vmatpush2.bf16.msra.mxu0 0
        %11173 = vmatprep.subr.bf16.mxu0 0
        %11174 = vmatpush2.bf16.msra.mxu0 0
        %11175 = vmatprep.subr.bf16.mxu0 0
        %11176 = vmatpush2.bf16.msra.mxu0 0
        %11177 = vmatprep.subr.bf16.mxu0 0
        %11178 = vmatpush2.bf16.msra.mxu0 0
        %11179 = vmatprep.subr.bf16.mxu0 0
        %11180 = vmatpush2.bf16.msra.mxu0 0
        %11181 = vmatprep.mubr.bf16.mxu0 0
        %11182 = vmatmul.mubr.bf16.gmra.mxu0 %v11054
        %v11183 = vpop.f32.mrf.mxu0
        %v11184 = vadd.f32 0.0, %v11183
        %v11185 = vpop.f32.mrf.mxu0
        %v11186 = vpop.f32.mrf.mxu0
        %v11187 = vadd.f32 0.0, %v11186
        %v11188 = vpop.f32.mrf.mxu0
        %11189 = vmatprep.mubr.bf16.mxu0 0
        %11190 = vmatmul.mubr.bf16.gmra.mxu0 %v11057
        %v11191 = vpop.f32.mrf.mxu0
        %v11192 = vadd.f32 0.0, %v11191
        %v11193 = vpop.f32.mrf.mxu0
        %v11194 = vpop.f32.mrf.mxu0
        %v11195 = vadd.f32 0.0, %v11194
        %v11196 = vpop.f32.mrf.mxu0
        %11197 = vmatprep.mubr.bf16.mxu0 0
        %11198 = vmatmul.mubr.bf16.gmra.mxu0 %v11060
        %v11199 = vpop.f32.mrf.mxu0
        %v11200 = vadd.f32 0.0, %v11199
        %v11201 = vpop.f32.mrf.mxu0
        %v11202 = vpop.f32.mrf.mxu0
        %v11203 = vadd.f32 0.0, %v11202
        %v11204 = vpop.f32.mrf.mxu0
        %11205 = vmatprep.mubr.bf16.mxu0 0
        %11206 = vmatmul.mubr.bf16.gmra.mxu0 %v11063
        %v11207 = vpop.f32.mrf.mxu0
        %v11208 = vadd.f32 0.0, %v11207
        %v11209 = vpop.f32.mrf.mxu0
        %v11210 = vpop.f32.mrf.mxu0
        %v11211 = vadd.f32 0.0, %v11210
        %v11212 = vpop.f32.mrf.mxu0
        %11213 = vmatprep.mubr.bf16.mxu0 0
        %11214 = vmatmul.mubr.bf16.gmra.mxu0 %v11066
        %v11215 = vpop.f32.mrf.mxu0
        %v11216 = vadd.f32 0.0, %v11215
        %v11217 = vpop.f32.mrf.mxu0
        %v11218 = vpop.f32.mrf.mxu0
        %v11219 = vadd.f32 0.0, %v11218
        %v11220 = vpop.f32.mrf.mxu0
        %11221 = vmatprep.mubr.bf16.mxu0 0
        %11222 = vmatmul.mubr.bf16.gmra.mxu0 %v11069
        %v11223 = vpop.f32.mrf.mxu0
        %v11224 = vadd.f32 0.0, %v11223
        %v11225 = vpop.f32.mrf.mxu0
        %v11226 = vpop.f32.mrf.mxu0
        %v11227 = vadd.f32 0.0, %v11226
        %v11228 = vpop.f32.mrf.mxu0
        %11229 = vmatprep.mubr.bf16.mxu0 0
        %11230 = vmatmul.mubr.bf16.gmra.mxu0 %v11072
        %v11231 = vpop.f32.mrf.mxu0
        %v11232 = vadd.f32 0.0, %v11231
        %v11233 = vpop.f32.mrf.mxu0
        %v11234 = vpop.f32.mrf.mxu0
        %v11235 = vadd.f32 0.0, %v11234
        %v11236 = vpop.f32.mrf.mxu0
        %11237 = vmatprep.mubr.bf16.mxu0 0
        %11238 = vmatmul.mubr.bf16.gmra.mxu0 %v11075
        %v11239 = vpop.f32.mrf.mxu0
        %v11240 = vadd.f32 0.0, %v11239
        %v11241 = vpop.f32.mrf.mxu0
        %v11242 = vpop.f32.mrf.mxu0
        %v11243 = vadd.f32 0.0, %v11242
        %v11244 = vpop.f32.mrf.mxu0
        %11245 = vmatprep.mubr.bf16.mxu0 0
        %11246 = vmatmul.mubr.bf16.gmra.mxu0 %v11078
        %v11247 = vpop.f32.mrf.mxu0
        %v11248 = vadd.f32 0.0, %v11247
        %v11249 = vpop.f32.mrf.mxu0
        %v11250 = vpop.f32.mrf.mxu0
        %v11251 = vadd.f32 0.0, %v11250
        %v11252 = vpop.f32.mrf.mxu0
        %11253 = vmatprep.mubr.bf16.mxu0 0
        %11254 = vmatmul.mubr.bf16.gmra.mxu0 %v11081
        %v11255 = vpop.f32.mrf.mxu0
        %v11256 = vadd.f32 0.0, %v11255
        %v11257 = vpop.f32.mrf.mxu0
        %v11258 = vpop.f32.mrf.mxu0
        %v11259 = vadd.f32 0.0, %v11258
        %v11260 = vpop.f32.mrf.mxu0
        %11261 = vmatprep.mubr.bf16.mxu0 0
        %11262 = vmatmul.mubr.bf16.gmra.mxu0 %v11084
        %v11263 = vpop.f32.mrf.mxu0
        %v11264 = vadd.f32 0.0, %v11263
        %v11265 = vpop.f32.mrf.mxu0
        %v11266 = vpop.f32.mrf.mxu0
        %v11267 = vadd.f32 0.0, %v11266
        %v11268 = vpop.f32.mrf.mxu0
        %11269 = vmatprep.mubr.bf16.mxu0 0
        %11270 = vmatmul.mubr.bf16.gmra.mxu0 %v11087
        %v11271 = vpop.f32.mrf.mxu0
        %v11272 = vadd.f32 0.0, %v11271
        %v11273 = vpop.f32.mrf.mxu0
        %v11274 = vpop.f32.mrf.mxu0
        %v11275 = vadd.f32 0.0, %v11274
        %v11276 = vpop.f32.mrf.mxu0
        %11277 = vmatprep.mubr.bf16.mxu0 0
        %11278 = vmatmul.mubr.bf16.gmra.mxu0 %v11090
        %v11279 = vpop.f32.mrf.mxu0
        %v11280 = vadd.f32 0.0, %v11279
        %v11281 = vpop.f32.mrf.mxu0
        %v11282 = vpop.f32.mrf.mxu0
        %v11283 = vadd.f32 0.0, %v11282
        %v11284 = vpop.f32.mrf.mxu0
        %11285 = vmatprep.mubr.bf16.mxu0 0
        %11286 = vmatmul.mubr.bf16.gmra.mxu0 %v11093
        %v11287 = vpop.f32.mrf.mxu0
        %v11288 = vadd.f32 0.0, %v11287
        %v11289 = vpop.f32.mrf.mxu0
        %v11290 = vpop.f32.mrf.mxu0
        %v11291 = vadd.f32 0.0, %v11290
        %v11292 = vpop.f32.mrf.mxu0
        %11293 = vmatprep.mubr.bf16.mxu0 0
        %11294 = vmatmul.mubr.bf16.gmra.mxu0 %v11096
        %v11295 = vpop.f32.mrf.mxu0
        %v11296 = vadd.f32 0.0, %v11295
        %v11297 = vpop.f32.mrf.mxu0
        %v11298 = vpop.f32.mrf.mxu0
        %v11299 = vadd.f32 0.0, %v11298
        %v11300 = vpop.f32.mrf.mxu0
        %11301 = vmatprep.mubr.bf16.mxu0 0
        %11302 = vmatmul.mubr.bf16.gmra.mxu0 %v11099
        %v11303 = vpop.f32.mrf.mxu0
        %v11304 = vadd.f32 0.0, %v11303
        %v11305 = vpop.f32.mrf.mxu0
        %v11306 = vpop.f32.mrf.mxu0
        %v11307 = vadd.f32 0.0, %v11306
        %v11308 = vpop.f32.mrf.mxu0
        %11309 = vmatprep.mubr.bf16.mxu0 0
        %11310 = vmatmul.mubr.bf16.gmra.mxu0 %v11102
        %v11311 = vpop.f32.mrf.mxu0
        %v11312 = vadd.f32 0.0, %v11311
        %v11313 = vpop.f32.mrf.mxu0
        %v11314 = vpop.f32.mrf.mxu0
        %v11315 = vadd.f32 0.0, %v11314
        %v11316 = vpop.f32.mrf.mxu0
        %11317 = vmatprep.mubr.bf16.mxu0 0
        %11318 = vmatmul.mubr.bf16.gmra.mxu0 %v11105
        %v11319 = vpop.f32.mrf.mxu0
        %v11320 = vadd.f32 0.0, %v11319
        %v11321 = vpop.f32.mrf.mxu0
        %v11322 = vpop.f32.mrf.mxu0
        %v11323 = vadd.f32 0.0, %v11322
        %v11324 = vpop.f32.mrf.mxu0
        %11325 = vmatprep.mubr.bf16.mxu0 0
        %11326 = vmatmul.mubr.bf16.gmra.mxu0 %v11108
        %v11327 = vpop.f32.mrf.mxu0
        %v11328 = vadd.f32 0.0, %v11327
        %v11329 = vpop.f32.mrf.mxu0
        %v11330 = vpop.f32.mrf.mxu0
        %v11331 = vadd.f32 0.0, %v11330
        %v11332 = vpop.f32.mrf.mxu0
        %11333 = vmatprep.mubr.bf16.mxu0 0
        %11334 = vmatmul.mubr.bf16.gmra.mxu0 %v11111
        %v11335 = vpop.f32.mrf.mxu0
        %v11336 = vadd.f32 0.0, %v11335
        %v11337 = vpop.f32.mrf.mxu0
        %v11338 = vpop.f32.mrf.mxu0
        %v11339 = vadd.f32 0.0, %v11338
        %v11340 = vpop.f32.mrf.mxu0
        %11341 = vmatprep.mubr.bf16.mxu0 0
        %11342 = vmatmul.mubr.bf16.gmra.mxu0 %v11114
        %v11343 = vpop.f32.mrf.mxu0
        %v11344 = vadd.f32 0.0, %v11343
        %v11345 = vpop.f32.mrf.mxu0
        %v11346 = vpop.f32.mrf.mxu0
        %v11347 = vadd.f32 0.0, %v11346
        %v11348 = vpop.f32.mrf.mxu0
        %11349 = vmatprep.mubr.bf16.mxu0 0
        %11350 = vmatmul.mubr.bf16.gmra.mxu0 %v11117
        %v11351 = vpop.f32.mrf.mxu0
        %v11352 = vadd.f32 0.0, %v11351
        %v11353 = vpop.f32.mrf.mxu0
        %v11354 = vpop.f32.mrf.mxu0
        %v11355 = vadd.f32 0.0, %v11354
        %v11356 = vpop.f32.mrf.mxu0
        %11357 = vmatprep.mubr.bf16.mxu0 0
        %11358 = vmatmul.mubr.bf16.gmra.mxu0 %v11120
        %v11359 = vpop.f32.mrf.mxu0
        %v11360 = vadd.f32 0.0, %v11359
        %v11361 = vpop.f32.mrf.mxu0
        %v11362 = vpop.f32.mrf.mxu0
        %v11363 = vadd.f32 0.0, %v11362
        %v11364 = vpop.f32.mrf.mxu0
        %11365 = vmatprep.mubr.bf16.mxu0 0
        %11366 = vmatmul.mubr.bf16.gmra.mxu0 %v11123
        %v11367 = vpop.f32.mrf.mxu0
        %v11368 = vadd.f32 0.0, %v11367
        %v11369 = vpop.f32.mrf.mxu0
        %v11370 = vpop.f32.mrf.mxu0
        %v11371 = vadd.f32 0.0, %v11370
        %v11372 = vpop.f32.mrf.mxu0
        %11373 = vmatprep.mubr.bf16.mxu0 0
        %11374 = vmatmul.mubr.bf16.gmra.mxu0 %v11126
        %v11375 = vpop.f32.mrf.mxu0
        %v11376 = vadd.f32 0.0, %v11375
        %v11377 = vpop.f32.mrf.mxu0
        %v11378 = vpop.f32.mrf.mxu0
        %v11379 = vadd.f32 0.0, %v11378
        %v11380 = vpop.f32.mrf.mxu0
        %11381 = vmatprep.mubr.bf16.mxu0 0
        %11382 = vmatmul.mubr.bf16.gmra.mxu0 %v11129
        %v11383 = vpop.f32.mrf.mxu0
        %v11384 = vadd.f32 0.0, %v11383
        %v11385 = vpop.f32.mrf.mxu0
        %v11386 = vpop.f32.mrf.mxu0
        %v11387 = vadd.f32 0.0, %v11386
        %v11388 = vpop.f32.mrf.mxu0
        %11389 = vmatprep.mubr.bf16.mxu0 0
        %11390 = vmatmul.mubr.bf16.gmra.mxu0 %v11132
        %v11391 = vpop.f32.mrf.mxu0
        %v11392 = vadd.f32 0.0, %v11391
        %v11393 = vpop.f32.mrf.mxu0
        %v11394 = vpop.f32.mrf.mxu0
        %v11395 = vadd.f32 0.0, %v11394
        %v11396 = vpop.f32.mrf.mxu0
        %11397 = vmatprep.mubr.bf16.mxu0 0
        %11398 = vmatmul.mubr.bf16.gmra.mxu0 %v11135
        %v11399 = vpop.f32.mrf.mxu0
        %v11400 = vadd.f32 0.0, %v11399
        %v11401 = vpop.f32.mrf.mxu0
        %v11402 = vpop.f32.mrf.mxu0
        %v11403 = vadd.f32 0.0, %v11402
        %v11404 = vpop.f32.mrf.mxu0
        %11405 = vmatprep.mubr.bf16.mxu0 0
        %11406 = vmatmul.mubr.bf16.gmra.mxu0 %v11138
        %v11407 = vpop.f32.mrf.mxu0
        %v11408 = vadd.f32 0.0, %v11407
        %v11409 = vpop.f32.mrf.mxu0
        %v11410 = vpop.f32.mrf.mxu0
        %v11411 = vadd.f32 0.0, %v11410
        %v11412 = vpop.f32.mrf.mxu0
        %11413 = vmatprep.mubr.bf16.mxu0 0
        %11414 = vmatmul.mubr.bf16.gmra.mxu0 %v11141
        %v11415 = vpop.f32.mrf.mxu0
        %v11416 = vadd.f32 0.0, %v11415
        %v11417 = vpop.f32.mrf.mxu0
        %v11418 = vpop.f32.mrf.mxu0
        %v11419 = vadd.f32 0.0, %v11418
        %v11420 = vpop.f32.mrf.mxu0
        %11421 = vmatprep.mubr.bf16.mxu0 0
        %11422 = vmatmul.mubr.bf16.gmra.mxu0 %v11144
        %v11423 = vpop.f32.mrf.mxu0
        %v11424 = vadd.f32 0.0, %v11423
        %v11425 = vpop.f32.mrf.mxu0
        %v11426 = vpop.f32.mrf.mxu0
        %v11427 = vadd.f32 0.0, %v11426
        %v11428 = vpop.f32.mrf.mxu0
        %11429 = vmatprep.mubr.bf16.mxu0 0
        %11430 = vmatmul.mubr.bf16.gmra.mxu0 %v11147
        %v11431 = vpop.f32.mrf.mxu0
        %v11432 = vadd.f32 0.0, %v11431
        %v11433 = vpop.f32.mrf.mxu0
        %v11434 = vpop.f32.mrf.mxu0
        %v11435 = vadd.f32 0.0, %v11434
        %v11436 = vpop.f32.mrf.mxu0
        %11437 = vdwg.mxu0
        %v11438 = vadd.f32 %v10876, %v11184
        %v11439 = vadd.f32 %v10877, %v11187
        %v11440 = vadd.f32 %v10878, %v11192
        %v11441 = vadd.f32 %v10879, %v11195
        %v11442 = vadd.f32 %v10880, %v11200
        %v11443 = vadd.f32 %v10881, %v11203
        %v11444 = vadd.f32 %v10882, %v11208
        %v11445 = vadd.f32 %v10883, %v11211
        %v11446 = vadd.f32 %v10884, %v11216
        %v11447 = vadd.f32 %v10885, %v11219
        %v11448 = vadd.f32 %v10886, %v11224
        %v11449 = vadd.f32 %v10887, %v11227
        %v11450 = vadd.f32 %v10888, %v11232
        %v11451 = vadd.f32 %v10889, %v11235
        %v11452 = vadd.f32 %v10890, %v11240
        %v11453 = vadd.f32 %v10891, %v11243
        %v11454 = vadd.f32 %v10892, %v11248
        %v11455 = vadd.f32 %v10893, %v11251
        %v11456 = vadd.f32 %v10894, %v11256
        %v11457 = vadd.f32 %v10895, %v11259
        %v11458 = vadd.f32 %v10896, %v11264
        %v11459 = vadd.f32 %v10897, %v11267
        %v11460 = vadd.f32 %v10898, %v11272
        %v11461 = vadd.f32 %v10899, %v11275
        %v11462 = vadd.f32 %v10900, %v11280
        %v11463 = vadd.f32 %v10901, %v11283
        %v11464 = vadd.f32 %v10902, %v11288
        %v11465 = vadd.f32 %v10903, %v11291
        %v11466 = vadd.f32 %v10904, %v11296
        %v11467 = vadd.f32 %v10905, %v11299
        %v11468 = vadd.f32 %v10906, %v11304
        %v11469 = vadd.f32 %v10907, %v11307
        %v11470 = vadd.f32 %v10908, %v11312
        %v11471 = vadd.f32 %v10909, %v11315
        %v11472 = vadd.f32 %v10910, %v11320
        %v11473 = vadd.f32 %v10911, %v11323
        %v11474 = vadd.f32 %v10912, %v11328
        %v11475 = vadd.f32 %v10913, %v11331
        %v11476 = vadd.f32 %v10914, %v11336
        %v11477 = vadd.f32 %v10915, %v11339
        %v11478 = vadd.f32 %v10916, %v11344
        %v11479 = vadd.f32 %v10917, %v11347
        %v11480 = vadd.f32 %v10918, %v11352
        %v11481 = vadd.f32 %v10919, %v11355
        %v11482 = vadd.f32 %v10920, %v11360
        %v11483 = vadd.f32 %v10921, %v11363
        %v11484 = vadd.f32 %v10922, %v11368
        %v11485 = vadd.f32 %v10923, %v11371
        %v11486 = vadd.f32 %v10924, %v11376
        %v11487 = vadd.f32 %v10925, %v11379
        %v11488 = vadd.f32 %v10926, %v11384
        %v11489 = vadd.f32 %v10927, %v11387
        %v11490 = vadd.f32 %v10928, %v11392
        %v11491 = vadd.f32 %v10929, %v11395
        %v11492 = vadd.f32 %v10930, %v11400
        %v11493 = vadd.f32 %v10931, %v11403
        %v11494 = vadd.f32 %v10932, %v11408
        %v11495 = vadd.f32 %v10933, %v11411
        %v11496 = vadd.f32 %v10934, %v11416
        %v11497 = vadd.f32 %v10935, %v11419
        %v11498 = vadd.f32 %v10936, %v11424
        %v11499 = vadd.f32 %v10937, %v11427
        %v11500 = vadd.f32 %v10938, %v11432
        %v11501 = vadd.f32 %v10939, %v11435
        %v11502 = vmul.f32 %v11438, 0.2
        %v11503 = vmul.f32 %v11439, 0.2
        %v11504 = vmul.f32 %v11440, 0.2
        %v11505 = vmul.f32 %v11441, 0.2
        %v11506 = vmul.f32 %v11442, 0.2
        %v11507 = vmul.f32 %v11443, 0.2
        %v11508 = vmul.f32 %v11444, 0.2
        %v11509 = vmul.f32 %v11445, 0.2
        %v11510 = vmul.f32 %v11446, 0.2
        %v11511 = vmul.f32 %v11447, 0.2
        %v11512 = vmul.f32 %v11448, 0.2
        %v11513 = vmul.f32 %v11449, 0.2
        %v11514 = vmul.f32 %v11450, 0.2
        %v11515 = vmul.f32 %v11451, 0.2
        %v11516 = vmul.f32 %v11452, 0.2
        %v11517 = vmul.f32 %v11453, 0.2
        %v11518 = vmul.f32 %v11454, 0.2
        %v11519 = vmul.f32 %v11455, 0.2
        %v11520 = vmul.f32 %v11456, 0.2
        %v11521 = vmul.f32 %v11457, 0.2
        %v11522 = vmul.f32 %v11458, 0.2
        %v11523 = vmul.f32 %v11459, 0.2
        %v11524 = vmul.f32 %v11460, 0.2
        %v11525 = vmul.f32 %v11461, 0.2
        %v11526 = vmul.f32 %v11462, 0.2
        %v11527 = vmul.f32 %v11463, 0.2
        %v11528 = vmul.f32 %v11464, 0.2
        %v11529 = vmul.f32 %v11465, 0.2
        %v11530 = vmul.f32 %v11466, 0.2
        %v11531 = vmul.f32 %v11467, 0.2
        %v11532 = vmul.f32 %v11468, 0.2
        %v11533 = vmul.f32 %v11469, 0.2
        %v11534 = vmul.f32 %v11470, 0.2
        %v11535 = vmul.f32 %v11471, 0.2
        %v11536 = vmul.f32 %v11472, 0.2
        %v11537 = vmul.f32 %v11473, 0.2
        %v11538 = vmul.f32 %v11474, 0.2
        %v11539 = vmul.f32 %v11475, 0.2
        %v11540 = vmul.f32 %v11476, 0.2
        %v11541 = vmul.f32 %v11477, 0.2
        %v11542 = vmul.f32 %v11478, 0.2
        %v11543 = vmul.f32 %v11479, 0.2
        %v11544 = vmul.f32 %v11480, 0.2
        %v11545 = vmul.f32 %v11481, 0.2
        %v11546 = vmul.f32 %v11482, 0.2
        %v11547 = vmul.f32 %v11483, 0.2
        %v11548 = vmul.f32 %v11484, 0.2
        %v11549 = vmul.f32 %v11485, 0.2
        %v11550 = vmul.f32 %v11486, 0.2
        %v11551 = vmul.f32 %v11487, 0.2
        %v11552 = vmul.f32 %v11488, 0.2
        %v11553 = vmul.f32 %v11489, 0.2
        %v11554 = vmul.f32 %v11490, 0.2
        %v11555 = vmul.f32 %v11491, 0.2
        %v11556 = vmul.f32 %v11492, 0.2
        %v11557 = vmul.f32 %v11493, 0.2
        %v11558 = vmul.f32 %v11494, 0.2
        %v11559 = vmul.f32 %v11495, 0.2
        %v11560 = vmul.f32 %v11496, 0.2
        %v11561 = vmul.f32 %v11497, 0.2
        %v11562 = vmul.f32 %v11498, 0.2
        %v11563 = vmul.f32 %v11499, 0.2
        %v11564 = vmul.f32 %v11500, 0.2
        %v11565 = vmul.f32 %v11501, 0.2
        %v11566 = vmax.f32 %v11438, %v11502
        %v11567 = vmax.f32 %v11439, %v11503
        %v11568 = vmax.f32 %v11440, %v11504
        %v11569 = vmax.f32 %v11441, %v11505
        %v11570 = vmax.f32 %v11442, %v11506
        %v11571 = vmax.f32 %v11443, %v11507
        %v11572 = vmax.f32 %v11444, %v11508
        %v11573 = vmax.f32 %v11445, %v11509
        %v11574 = vmax.f32 %v11446, %v11510
        %v11575 = vmax.f32 %v11447, %v11511
        %v11576 = vmax.f32 %v11448, %v11512
        %v11577 = vmax.f32 %v11449, %v11513
        %v11578 = vmax.f32 %v11450, %v11514
        %v11579 = vmax.f32 %v11451, %v11515
        %v11580 = vmax.f32 %v11452, %v11516
        %v11581 = vmax.f32 %v11453, %v11517
        %v11582 = vmax.f32 %v11454, %v11518
        %v11583 = vmax.f32 %v11455, %v11519
        %v11584 = vmax.f32 %v11456, %v11520
        %v11585 = vmax.f32 %v11457, %v11521
        %v11586 = vmax.f32 %v11458, %v11522
        %v11587 = vmax.f32 %v11459, %v11523
        %v11588 = vmax.f32 %v11460, %v11524
        %v11589 = vmax.f32 %v11461, %v11525
        %v11590 = vmax.f32 %v11462, %v11526
        %v11591 = vmax.f32 %v11463, %v11527
        %v11592 = vmax.f32 %v11464, %v11528
        %v11593 = vmax.f32 %v11465, %v11529
        %v11594 = vmax.f32 %v11466, %v11530
        %v11595 = vmax.f32 %v11467, %v11531
        %v11596 = vmax.f32 %v11468, %v11532
        %v11597 = vmax.f32 %v11469, %v11533
        %v11598 = vmax.f32 %v11470, %v11534
        %v11599 = vmax.f32 %v11471, %v11535
        %v11600 = vmax.f32 %v11472, %v11536
        %v11601 = vmax.f32 %v11473, %v11537
        %v11602 = vmax.f32 %v11474, %v11538
        %v11603 = vmax.f32 %v11475, %v11539
        %v11604 = vmax.f32 %v11476, %v11540
        %v11605 = vmax.f32 %v11477, %v11541
        %v11606 = vmax.f32 %v11478, %v11542
        %v11607 = vmax.f32 %v11479, %v11543
        %v11608 = vmax.f32 %v11480, %v11544
        %v11609 = vmax.f32 %v11481, %v11545
        %v11610 = vmax.f32 %v11482, %v11546
        %v11611 = vmax.f32 %v11483, %v11547
        %v11612 = vmax.f32 %v11484, %v11548
        %v11613 = vmax.f32 %v11485, %v11549
        %v11614 = vmax.f32 %v11486, %v11550
        %v11615 = vmax.f32 %v11487, %v11551
        %v11616 = vmax.f32 %v11488, %v11552
        %v11617 = vmax.f32 %v11489, %v11553
        %v11618 = vmax.f32 %v11490, %v11554
        %v11619 = vmax.f32 %v11491, %v11555
        %v11620 = vmax.f32 %v11492, %v11556
        %v11621 = vmax.f32 %v11493, %v11557
        %v11622 = vmax.f32 %v11494, %v11558
        %v11623 = vmax.f32 %v11495, %v11559
        %v11624 = vmax.f32 %v11496, %v11560
        %v11625 = vmax.f32 %v11497, %v11561
        %v11626 = vmax.f32 %v11498, %v11562
        %v11627 = vmax.f32 %v11499, %v11563
        %v11628 = vmax.f32 %v11500, %v11564
        %v11629 = vmax.f32 %v11501, %v11565
        %11694 = vrot.lane.b32.xlu0 %v11566, 32
        %v11695 = vpop.permute.xlu0 %11694
        %11696 = vrot.lane.b32.xlu0 %v11567, 32
        %v11697 = vpop.permute.xlu0 %11696
        %11698 = vrot.lane.b32.xlu0 %v11568, 32
        %v11699 = vpop.permute.xlu0 %11698
        %11700 = vrot.lane.b32.xlu0 %v11569, 32
        %v11701 = vpop.permute.xlu0 %11700
        %11702 = vrot.lane.b32.xlu0 %v11570, 32
        %v11703 = vpop.permute.xlu0 %11702
        %11704 = vrot.lane.b32.xlu0 %v11571, 32
        %v11705 = vpop.permute.xlu0 %11704
        %11706 = vrot.lane.b32.xlu0 %v11572, 32
        %v11707 = vpop.permute.xlu0 %11706
        %11708 = vrot.lane.b32.xlu0 %v11573, 32
        %v11709 = vpop.permute.xlu0 %11708
        %11710 = vrot.lane.b32.xlu0 %v11574, 32
        %v11711 = vpop.permute.xlu0 %11710
        %11712 = vrot.lane.b32.xlu0 %v11575, 32
        %v11713 = vpop.permute.xlu0 %11712
        %11714 = vrot.lane.b32.xlu0 %v11576, 32
        %v11715 = vpop.permute.xlu0 %11714
        %11716 = vrot.lane.b32.xlu0 %v11577, 32
        %v11717 = vpop.permute.xlu0 %11716
        %11718 = vrot.lane.b32.xlu0 %v11578, 32
        %v11719 = vpop.permute.xlu0 %11718
        %11720 = vrot.lane.b32.xlu0 %v11579, 32
        %v11721 = vpop.permute.xlu0 %11720
        %11722 = vrot.lane.b32.xlu0 %v11580, 32
        %v11723 = vpop.permute.xlu0 %11722
        %11724 = vrot.lane.b32.xlu0 %v11581, 32
        %v11725 = vpop.permute.xlu0 %11724
        %11726 = vrot.lane.b32.xlu0 %v11582, 32
        %v11727 = vpop.permute.xlu0 %11726
        %11728 = vrot.lane.b32.xlu0 %v11583, 32
        %v11729 = vpop.permute.xlu0 %11728
        %11730 = vrot.lane.b32.xlu0 %v11584, 32
        %v11731 = vpop.permute.xlu0 %11730
        %11732 = vrot.lane.b32.xlu0 %v11585, 32
        %v11733 = vpop.permute.xlu0 %11732
        %11734 = vrot.lane.b32.xlu0 %v11586, 32
        %v11735 = vpop.permute.xlu0 %11734
        %11736 = vrot.lane.b32.xlu0 %v11587, 32
        %v11737 = vpop.permute.xlu0 %11736
        %11738 = vrot.lane.b32.xlu0 %v11588, 32
        %v11739 = vpop.permute.xlu0 %11738
        %11740 = vrot.lane.b32.xlu0 %v11589, 32
        %v11741 = vpop.permute.xlu0 %11740
        %11742 = vrot.lane.b32.xlu0 %v11590, 32
        %v11743 = vpop.permute.xlu0 %11742
        %11744 = vrot.lane.b32.xlu0 %v11591, 32
        %v11745 = vpop.permute.xlu0 %11744
        %11746 = vrot.lane.b32.xlu0 %v11592, 32
        %v11747 = vpop.permute.xlu0 %11746
        %11748 = vrot.lane.b32.xlu0 %v11593, 32
        %v11749 = vpop.permute.xlu0 %11748
        %11750 = vrot.lane.b32.xlu0 %v11594, 32
        %v11751 = vpop.permute.xlu0 %11750
        %11752 = vrot.lane.b32.xlu0 %v11595, 32
        %v11753 = vpop.permute.xlu0 %11752
        %11754 = vrot.lane.b32.xlu0 %v11596, 32
        %v11755 = vpop.permute.xlu0 %11754
        %11756 = vrot.lane.b32.xlu0 %v11597, 32
        %v11757 = vpop.permute.xlu0 %11756
        %11758 = vrot.lane.b32.xlu0 %v11598, 32
        %v11759 = vpop.permute.xlu0 %11758
        %11760 = vrot.lane.b32.xlu0 %v11599, 32
        %v11761 = vpop.permute.xlu0 %11760
        %11762 = vrot.lane.b32.xlu0 %v11600, 32
        %v11763 = vpop.permute.xlu0 %11762
        %11764 = vrot.lane.b32.xlu0 %v11601, 32
        %v11765 = vpop.permute.xlu0 %11764
        %11766 = vrot.lane.b32.xlu0 %v11602, 32
        %v11767 = vpop.permute.xlu0 %11766
        %11768 = vrot.lane.b32.xlu0 %v11603, 32
        %v11769 = vpop.permute.xlu0 %11768
        %11770 = vrot.lane.b32.xlu0 %v11604, 32
        %v11771 = vpop.permute.xlu0 %11770
        %11772 = vrot.lane.b32.xlu0 %v11605, 32
        %v11773 = vpop.permute.xlu0 %11772
        %11774 = vrot.lane.b32.xlu0 %v11606, 32
        %v11775 = vpop.permute.xlu0 %11774
        %11776 = vrot.lane.b32.xlu0 %v11607, 32
        %v11777 = vpop.permute.xlu0 %11776
        %11778 = vrot.lane.b32.xlu0 %v11608, 32
        %v11779 = vpop.permute.xlu0 %11778
        %11780 = vrot.lane.b32.xlu0 %v11609, 32
        %v11781 = vpop.permute.xlu0 %11780
        %11782 = vrot.lane.b32.xlu0 %v11610, 32
        %v11783 = vpop.permute.xlu0 %11782
        %11784 = vrot.lane.b32.xlu0 %v11611, 32
        %v11785 = vpop.permute.xlu0 %11784
        %11786 = vrot.lane.b32.xlu0 %v11612, 32
        %v11787 = vpop.permute.xlu0 %11786
        %11788 = vrot.lane.b32.xlu0 %v11613, 32
        %v11789 = vpop.permute.xlu0 %11788
        %11790 = vrot.lane.b32.xlu0 %v11614, 32
        %v11791 = vpop.permute.xlu0 %11790
        %11792 = vrot.lane.b32.xlu0 %v11615, 32
        %v11793 = vpop.permute.xlu0 %11792
        %11794 = vrot.lane.b32.xlu0 %v11616, 32
        %v11795 = vpop.permute.xlu0 %11794
        %11796 = vrot.lane.b32.xlu0 %v11617, 32
        %v11797 = vpop.permute.xlu0 %11796
        %11798 = vrot.lane.b32.xlu0 %v11618, 32
        %v11799 = vpop.permute.xlu0 %11798
        %11800 = vrot.lane.b32.xlu0 %v11619, 32
        %v11801 = vpop.permute.xlu0 %11800
        %11802 = vrot.lane.b32.xlu0 %v11620, 32
        %v11803 = vpop.permute.xlu0 %11802
        %11804 = vrot.lane.b32.xlu0 %v11621, 32
        %v11805 = vpop.permute.xlu0 %11804
        %11806 = vrot.lane.b32.xlu0 %v11622, 32
        %v11807 = vpop.permute.xlu0 %11806
        %11808 = vrot.lane.b32.xlu0 %v11623, 32
        %v11809 = vpop.permute.xlu0 %11808
        %11810 = vrot.lane.b32.xlu0 %v11624, 32
        %v11811 = vpop.permute.xlu0 %11810
        %11812 = vrot.lane.b32.xlu0 %v11625, 32
        %v11813 = vpop.permute.xlu0 %11812
        %11814 = vrot.lane.b32.xlu0 %v11626, 32
        %v11815 = vpop.permute.xlu0 %11814
        %11816 = vrot.lane.b32.xlu0 %v11627, 32
        %v11817 = vpop.permute.xlu0 %11816
        %11818 = vrot.lane.b32.xlu0 %v11628, 32
        %v11819 = vpop.permute.xlu0 %11818
        %11820 = vrot.lane.b32.xlu0 %v11629, 32
        %v11821 = vpop.permute.xlu0 %11820
        %v11886 = vsel %vm6508, %v6188, %v11695
        %v11887 = vsel %vm6508, %v6189, %v11697
        %v11888 = vsel %vm6508, %v6190, %v11699
        %v11889 = vsel %vm6508, %v6191, %v11701
        %v11890 = vsel %vm6508, %v6192, %v11703
        %v11891 = vsel %vm6508, %v6193, %v11705
        %v11892 = vsel %vm6508, %v6194, %v11707
        %v11893 = vsel %vm6508, %v6195, %v11709
        %v11894 = vsel %vm6508, %v6196, %v11711
        %v11895 = vsel %vm6508, %v6197, %v11713
        %v11896 = vsel %vm6508, %v6198, %v11715
        %v11897 = vsel %vm6508, %v6199, %v11717
        %v11898 = vsel %vm6508, %v6200, %v11719
        %v11899 = vsel %vm6508, %v6201, %v11721
        %v11900 = vsel %vm6508, %v6202, %v11723
        %v11901 = vsel %vm6508, %v6203, %v11725
        %v11902 = vsel %vm6508, %v6204, %v11727
        %v11903 = vsel %vm6508, %v6205, %v11729
        %v11904 = vsel %vm6508, %v6206, %v11731
        %v11905 = vsel %vm6508, %v6207, %v11733
        %v11906 = vsel %vm6508, %v6208, %v11735
        %v11907 = vsel %vm6508, %v6209, %v11737
        %v11908 = vsel %vm6508, %v6210, %v11739
        %v11909 = vsel %vm6508, %v6211, %v11741
        %v11910 = vsel %vm6508, %v6212, %v11743
        %v11911 = vsel %vm6508, %v6213, %v11745
        %v11912 = vsel %vm6508, %v6214, %v11747
        %v11913 = vsel %vm6508, %v6215, %v11749
        %v11914 = vsel %vm6508, %v6216, %v11751
        %v11915 = vsel %vm6508, %v6217, %v11753
        %v11916 = vsel %vm6508, %v6218, %v11755
        %v11917 = vsel %vm6508, %v6219, %v11757
        %v11918 = vsel %vm6508, %v6220, %v11759
        %v11919 = vsel %vm6508, %v6221, %v11761
        %v11920 = vsel %vm6508, %v6222, %v11763
        %v11921 = vsel %vm6508, %v6223, %v11765
        %v11922 = vsel %vm6508, %v6224, %v11767
        %v11923 = vsel %vm6508, %v6225, %v11769
        %v11924 = vsel %vm6508, %v6226, %v11771
        %v11925 = vsel %vm6508, %v6227, %v11773
        %v11926 = vsel %vm6508, %v6228, %v11775
        %v11927 = vsel %vm6508, %v6229, %v11777
        %v11928 = vsel %vm6508, %v6230, %v11779
        %v11929 = vsel %vm6508, %v6231, %v11781
        %v11930 = vsel %vm6508, %v6232, %v11783
        %v11931 = vsel %vm6508, %v6233, %v11785
        %v11932 = vsel %vm6508, %v6234, %v11787
        %v11933 = vsel %vm6508, %v6235, %v11789
        %v11934 = vsel %vm6508, %v6236, %v11791
        %v11935 = vsel %vm6508, %v6237, %v11793
        %v11936 = vsel %vm6508, %v6238, %v11795
        %v11937 = vsel %vm6508, %v6239, %v11797
        %v11938 = vsel %vm6508, %v6240, %v11799
        %v11939 = vsel %vm6508, %v6241, %v11801
        %v11940 = vsel %vm6508, %v6242, %v11803
        %v11941 = vsel %vm6508, %v6243, %v11805
        %v11942 = vsel %vm6508, %v6244, %v11807
        %v11943 = vsel %vm6508, %v6245, %v11809
        %v11944 = vsel %vm6508, %v6246, %v11811
        %v11945 = vsel %vm6508, %v6247, %v11813
        %v11946 = vsel %vm6508, %v6248, %v11815
        %v11947 = vsel %vm6508, %v6249, %v11817
        %v11948 = vsel %vm6508, %v6250, %v11819
        %v11949 = vsel %vm6508, %v6251, %v11821
        %v11950 = vadd.f32 %v11886, %v345
        %v11951 = vadd.f32 %v11887, %v346
        %v11952 = vadd.f32 %v11888, %v347
        %v11953 = vadd.f32 %v11889, %v348
        %v11954 = vadd.f32 %v11890, %v349
        %v11955 = vadd.f32 %v11891, %v350
        %v11956 = vadd.f32 %v11892, %v351
        %v11957 = vadd.f32 %v11893, %v352
        %v11958 = vadd.f32 %v11894, %v353
        %v11959 = vadd.f32 %v11895, %v354
        %v11960 = vadd.f32 %v11896, %v355
        %v11961 = vadd.f32 %v11897, %v356
        %v11962 = vadd.f32 %v11898, %v357
        %v11963 = vadd.f32 %v11899, %v358
        %v11964 = vadd.f32 %v11900, %v359
        %v11965 = vadd.f32 %v11901, %v360
        %v11966 = vadd.f32 %v11902, %v361
        %v11967 = vadd.f32 %v11903, %v362
        %v11968 = vadd.f32 %v11904, %v363
        %v11969 = vadd.f32 %v11905, %v364
        %v11970 = vadd.f32 %v11906, %v365
        %v11971 = vadd.f32 %v11907, %v366
        %v11972 = vadd.f32 %v11908, %v367
        %v11973 = vadd.f32 %v11909, %v368
        %v11974 = vadd.f32 %v11910, %v369
        %v11975 = vadd.f32 %v11911, %v370
        %v11976 = vadd.f32 %v11912, %v371
        %v11977 = vadd.f32 %v11913, %v372
        %v11978 = vadd.f32 %v11914, %v373
        %v11979 = vadd.f32 %v11915, %v374
        %v11980 = vadd.f32 %v11916, %v375
        %v11981 = vadd.f32 %v11917, %v376
        %v11982 = vadd.f32 %v11918, %v377
        %v11983 = vadd.f32 %v11919, %v378
        %v11984 = vadd.f32 %v11920, %v379
        %v11985 = vadd.f32 %v11921, %v380
        %v11986 = vadd.f32 %v11922, %v381
        %v11987 = vadd.f32 %v11923, %v382
        %v11988 = vadd.f32 %v11924, %v383
        %v11989 = vadd.f32 %v11925, %v384
        %v11990 = vadd.f32 %v11926, %v385
        %v11991 = vadd.f32 %v11927, %v386
        %v11992 = vadd.f32 %v11928, %v387
        %v11993 = vadd.f32 %v11929, %v388
        %v11994 = vadd.f32 %v11930, %v389
        %v11995 = vadd.f32 %v11931, %v390
        %v11996 = vadd.f32 %v11932, %v391
        %v11997 = vadd.f32 %v11933, %v392
        %v11998 = vadd.f32 %v11934, %v393
        %v11999 = vadd.f32 %v11935, %v394
        %v12000 = vadd.f32 %v11936, %v395
        %v12001 = vadd.f32 %v11937, %v396
        %v12002 = vadd.f32 %v11938, %v397
        %v12003 = vadd.f32 %v11939, %v398
        %v12004 = vadd.f32 %v11940, %v399
        %v12005 = vadd.f32 %v11941, %v400
        %v12006 = vadd.f32 %v11942, %v401
        %v12007 = vadd.f32 %v11943, %v402
        %v12008 = vadd.f32 %v11944, %v403
        %v12009 = vadd.f32 %v11945, %v404
        %v12010 = vadd.f32 %v11946, %v405
        %v12011 = vadd.f32 %v11947, %v406
        %v12012 = vadd.f32 %v11948, %v407
        %v12013 = vadd.f32 %v11949, %v408
        %12014 = vst.msk [vmem:[%s260] sm:$0xff] %vm264, %v11950
        %12015 = vst.msk [vmem:[%s260 + $0x8] sm:$0xff] %vm264, %v11951
        %12016 = vst.msk [vmem:[%s260 + $0x10] sm:$0xff] %vm264, %v11952
        %12017 = vst.msk [vmem:[%s260 + $0x18] sm:$0xff] %vm264, %v11953
        %12018 = vst.msk [vmem:[%s260 + $0x20] sm:$0xff] %vm264, %v11954
        %12019 = vst.msk [vmem:[%s260 + $0x28] sm:$0xff] %vm264, %v11955
        %12020 = vst.msk [vmem:[%s260 + $0x30] sm:$0xff] %vm264, %v11956
        %12021 = vst.msk [vmem:[%s260 + $0x38] sm:$0xff] %vm264, %v11957
        %12022 = vst.msk [vmem:[%s260 + $0x40] sm:$0xff] %vm264, %v11958
        %12023 = vst.msk [vmem:[%s260 + $0x48] sm:$0xff] %vm264, %v11959
        %12024 = vst.msk [vmem:[%s260 + $0x50] sm:$0xff] %vm264, %v11960
        %12025 = vst.msk [vmem:[%s260 + $0x58] sm:$0xff] %vm264, %v11961
        %12026 = vst.msk [vmem:[%s260 + $0x60] sm:$0xff] %vm264, %v11962
        %12027 = vst.msk [vmem:[%s260 + $0x68] sm:$0xff] %vm264, %v11963
        %12028 = vst.msk [vmem:[%s260 + $0x70] sm:$0xff] %vm264, %v11964
        %12029 = vst.msk [vmem:[%s260 + $0x78] sm:$0xff] %vm264, %v11965
        %12030 = vst.msk [vmem:[%s260 + $0x80] sm:$0xff] %vm264, %v11966
        %12031 = vst.msk [vmem:[%s260 + $0x88] sm:$0xff] %vm264, %v11967
        %12032 = vst.msk [vmem:[%s260 + $0x90] sm:$0xff] %vm264, %v11968
        %12033 = vst.msk [vmem:[%s260 + $0x98] sm:$0xff] %vm264, %v11969
        %12034 = vst.msk [vmem:[%s260 + $0xa0] sm:$0xff] %vm264, %v11970
        %12035 = vst.msk [vmem:[%s260 + $0xa8] sm:$0xff] %vm264, %v11971
        %12036 = vst.msk [vmem:[%s260 + $0xb0] sm:$0xff] %vm264, %v11972
        %12037 = vst.msk [vmem:[%s260 + $0xb8] sm:$0xff] %vm264, %v11973
        %12038 = vst.msk [vmem:[%s260 + $0xc0] sm:$0xff] %vm264, %v11974
        %12039 = vst.msk [vmem:[%s260 + $0xc8] sm:$0xff] %vm264, %v11975
        %12040 = vst.msk [vmem:[%s260 + $0xd0] sm:$0xff] %vm264, %v11976
        %12041 = vst.msk [vmem:[%s260 + $0xd8] sm:$0xff] %vm264, %v11977
        %12042 = vst.msk [vmem:[%s260 + $0xe0] sm:$0xff] %vm264, %v11978
        %12043 = vst.msk [vmem:[%s260 + $0xe8] sm:$0xff] %vm264, %v11979
        %12044 = vst.msk [vmem:[%s260 + $0xf0] sm:$0xff] %vm264, %v11980
        %12045 = vst.msk [vmem:[%s260 + $0xf8] sm:$0xff] %vm264, %v11981
        %12046 = vst.msk [vmem:[%s260 + $0x100] sm:$0xff] %vm264, %v11982
        %12047 = vst.msk [vmem:[%s260 + $0x108] sm:$0xff] %vm264, %v11983
        %12048 = vst.msk [vmem:[%s260 + $0x110] sm:$0xff] %vm264, %v11984
        %12049 = vst.msk [vmem:[%s260 + $0x118] sm:$0xff] %vm264, %v11985
        %12050 = vst.msk [vmem:[%s260 + $0x120] sm:$0xff] %vm264, %v11986
        %12051 = vst.msk [vmem:[%s260 + $0x128] sm:$0xff] %vm264, %v11987
        %12052 = vst.msk [vmem:[%s260 + $0x130] sm:$0xff] %vm264, %v11988
        %12053 = vst.msk [vmem:[%s260 + $0x138] sm:$0xff] %vm264, %v11989
        %12054 = vst.msk [vmem:[%s260 + $0x140] sm:$0xff] %vm264, %v11990
        %12055 = vst.msk [vmem:[%s260 + $0x148] sm:$0xff] %vm264, %v11991
        %12056 = vst.msk [vmem:[%s260 + $0x150] sm:$0xff] %vm264, %v11992
        %12057 = vst.msk [vmem:[%s260 + $0x158] sm:$0xff] %vm264, %v11993
        %12058 = vst.msk [vmem:[%s260 + $0x160] sm:$0xff] %vm264, %v11994
        %12059 = vst.msk [vmem:[%s260 + $0x168] sm:$0xff] %vm264, %v11995
        %12060 = vst.msk [vmem:[%s260 + $0x170] sm:$0xff] %vm264, %v11996
        %12061 = vst.msk [vmem:[%s260 + $0x178] sm:$0xff] %vm264, %v11997
        %12062 = vst.msk [vmem:[%s260 + $0x180] sm:$0xff] %vm264, %v11998
        %12063 = vst.msk [vmem:[%s260 + $0x188] sm:$0xff] %vm264, %v11999
        %12064 = vst.msk [vmem:[%s260 + $0x190] sm:$0xff] %vm264, %v12000
        %12065 = vst.msk [vmem:[%s260 + $0x198] sm:$0xff] %vm264, %v12001
        %12066 = vst.msk [vmem:[%s260 + $0x1a0] sm:$0xff] %vm264, %v12002
        %12067 = vst.msk [vmem:[%s260 + $0x1a8] sm:$0xff] %vm264, %v12003
        %12068 = vst.msk [vmem:[%s260 + $0x1b0] sm:$0xff] %vm264, %v12004
        %12069 = vst.msk [vmem:[%s260 + $0x1b8] sm:$0xff] %vm264, %v12005
        %12070 = vst.msk [vmem:[%s260 + $0x1c0] sm:$0xff] %vm264, %v12006
        %12071 = vst.msk [vmem:[%s260 + $0x1c8] sm:$0xff] %vm264, %v12007
        %12072 = vst.msk [vmem:[%s260 + $0x1d0] sm:$0xff] %vm264, %v12008
        %12073 = vst.msk [vmem:[%s260 + $0x1d8] sm:$0xff] %vm264, %v12009
        %12074 = vst.msk [vmem:[%s260 + $0x1e0] sm:$0xff] %vm264, %v12010
        %12075 = vst.msk [vmem:[%s260 + $0x1e8] sm:$0xff] %vm264, %v12011
        %12076 = vst.msk [vmem:[%s260 + $0x1f0] sm:$0xff] %vm264, %v12012
        %12077 = vst.msk [vmem:[%s260 + $0x1f8] sm:$0xff] %vm264, %v12013
        %s12078 = sand.u32 %s120, 1
        %s12079 = scalar_lea.sflag [#allocation5], %s12078
        %s12080 = sand.u32 %s120, 1
        %s12081 = smul.addr %s12080, 512
        %s12082 = scalar_lea.vmem [#allocation11], %s12081
        // Predicated region
        $region53: #{tpu_custom_call.1} parent=35 // pred_check
          %p12083 = pneg %p130
        $region54: #{tpu_custom_call.1} parent=35 // pred_check_branch
          %12085 = sbr.rel (%p12083) target = $region56
        $region55: #{tpu_custom_call.1} parent=35 // pred_region
          %s12086 = smul.u32 2, %s23
          %s12088 = ssub.s32 8192, 8192
          %12089 = vsyncadd %s12079, %s12088
          %s12090 = smul.addr %s12086, 32
          %s12091 = smul.addr %s12090, 128
          %s12092 = scalar_lea.hbm %s4, %s12091
          %s12093 = sshll.u32 %s12082, 4
          %s12094 = int_to_ptr.vmem [resolvable:$true] %s12093
          %12099 = dma.vmem_to_hbm [thread:$0]  %s12094, 8192, %s12092, %s12079, 128, 128, 8
        $region56: #{tpu_custom_call.1} parent=35 // pred_fallthru
          _
      $region36: #{tpu_custom_call.1} parent=5 // pred_fallthru
        _
      %p12100 = scmp.le.s32.totalorder 2, %s18
      // Predicated region
      $region57: #{tpu_custom_call.1} parent=5 // pred_check
        %p12101 = pneg %p12100
      $region58: #{tpu_custom_call.1} parent=5 // pred_check_branch
        %12103 = sbr.rel (%p12101) target = $region60
      $region59: #{tpu_custom_call.1} parent=5 // pred_region
        %s12104 = ssub.s32 %s18, 2
        // Predicated region
        $region61: #{tpu_custom_call.1} parent=59 // pred_check
          %p12105 = pneg %p136
        $region62: #{tpu_custom_call.1} parent=59 // pred_check_branch
          %12107 = sbr.rel (%p12105) target = $region64
        $region63: #{tpu_custom_call.1} parent=59 // pred_region
          %s12108 = sand.u32 %s121, 1
          %s12109 = scalar_lea.sflag [#allocation5], %s12108
          %s12110 = sand.u32 %s121, 1
          %s12111 = smul.addr %s12110, 512
          %s12112 = scalar_lea.vmem [#allocation11], %s12111
          %12113 = dma.done %s12109, 8192
        $region64: #{tpu_custom_call.1} parent=59 // pred_fallthru
          _
      $region60: #{tpu_custom_call.1} parent=5 // pred_fallthru
        _
    $region6: #{tpu_custom_call.1} parent=1 // loop_footer
      %s22 = sadd.s32 1, %s18
    $region7: #{tpu_custom_call.1} parent=1 // loop_footer_branch
      %17 = sbr.rel target = $region3
    $region8: #{tpu_custom_call.1} parent=1 // loop_exit
      _
    %12114 = vsyncpa [#allocation4], 1
    %s12115 = scalar_lea.sflag [#allocation4], 1
    %12116 = vsyncpa %s12115, 1
    %12117 = vsyncpa [#allocation7], 1
    %12118 = vsyncpa [#allocation10], 1
    %12119 = vsyncpa [#allocation5], 1
    %s12120 = scalar_lea.sflag [#allocation5], 1
    %12121 = vsyncpa %s12120, 1

</llo_original>
